<compile_context>
chip_gen: v5e
topology: v5e:2x2
jax: 0.10.0
libtpu: 0.0.40
codegen_flags: <defaults>
</compile_context>

<pallas_src>
import functools

import jax
import jax.numpy as jnp
from jax.experimental import pallas as pl
from jax.experimental.pallas import tpu as pltpu


# ---------------------------------------------------------------------------
# in-kernel math helpers
# ---------------------------------------------------------------------------

def _gelu(x):
    # TODO(synk): HF Wav2Vec2 uses exact erf-GELU; tanh-approx is used because it lowers
    # cleanly on Mosaic (tanh/exp only). ~1e-3 deviation vs PyTorch.
    c = 0.7978845608028654  # sqrt(2/pi)
    return 0.5 * x * (1.0 + jnp.tanh(c * (x + 0.044715 * x * x * x)))


def _ln(x, g, b, eps):
    mu = jnp.mean(x, axis=-1, keepdims=True)
    xc = x - mu
    var = jnp.mean(xc * xc, axis=-1, keepdims=True)
    return xc * jax.lax.rsqrt(var + eps) * g + b


# ---------------------------------------------------------------------------
# kernel 1/2: conv (as im2col matmul) + bias + LayerNorm(channels) + GELU
# ---------------------------------------------------------------------------

def _conv_ln_gelu_kernel(x_ref, w_ref, b_ref, g_ref, beta_ref, o_ref, *, eps):
    y = jnp.dot(x_ref[...], w_ref[...], preferred_element_type=jnp.float32) + b_ref[...]
    o_ref[...] = _gelu(_ln(y, g_ref[...], beta_ref[...], eps))


def conv_ln_gelu(xm, w, b, g, beta, eps):
    """Fused conv+LN+GELU; 2-way row-parallel grid so both TCs are used on v7x."""
    M, K = xm.shape
    out_ch = w.shape[1]
    nblk = 2
    blk = M // nblk                       # M is padded to a multiple of 16 -> blk % 8 == 0
    vmem = pl.BlockSpec(memory_space=pltpu.MemorySpace.VMEM)
    return pl.pallas_call(
        functools.partial(_conv_ln_gelu_kernel, eps=eps),
        out_shape=jax.ShapeDtypeStruct((M, out_ch), jnp.float32),
        grid=(nblk,),
        in_specs=[pl.BlockSpec((blk, K), lambda i: (i, 0)), vmem, vmem, vmem, vmem],
        out_specs=pl.BlockSpec((blk, out_ch), lambda i: (i, 0)),
        compiler_params=pltpu.CompilerParams(dimension_semantics=("parallel",)),
    )(xm, w, b, g, beta)


# ---------------------------------------------------------------------------
# kernel 3: fused [feature projection + positional conv + 7 encoder layers]
# ---------------------------------------------------------------------------

def _fused_encoder_kernel(
        feats_ref, fpg_ref, fpb_ref, fpw_ref, fpbias_ref, posw_ref, posb_ref,
        ln1g_ref, ln1b_ref, wqkv_ref, bqkv_ref, wo_ref, bo_ref,
        ln2g_ref, ln2b_ref, wff1_ref, bff1_ref, wff2_ref, bff2_ref,
        o_ref, h_scr, pos_scr, *, B, T, nh, eps):
    """One grid step = one encoder layer; batch folded into the M dim of every matmul.
    All weight refs hold the FULL stacked arrays (VMEM-resident, fetched once)."""
    li = pl.program_id(0)
    n_layers = pl.num_programs(0)
    Tpad = feats_ref.shape[1]
    BT, H = h_scr.shape
    hd = H // nh
    kpc = posw_ref.shape[0]
    hp = kpc // 2                          # 'same' padding of the positional conv

    # ---- li == 0: feature projection + positional grouped conv + GELU + residual ----
    @pl.when(li == 0)
    def _front_end():
        valid = (jax.lax.broadcasted_iota(jnp.int32, (Tpad, 1), 0) < T
                 ).astype(jnp.float32)
        # zero the halo rows of the pos-conv window once (true zero padding)
        pos_scr[0:hp, :] = jnp.zeros((hp, H), jnp.float32)
        pos_scr[hp + Tpad:hp + Tpad + hp, :] = jnp.zeros((hp, H), jnp.float32)
        for b in range(B):
            xb = feats_ref[b]                                    # (Tpad, C)
            hb = _ln(xb, fpg_ref[...], fpb_ref[...], eps)
            hb = (jnp.dot(hb, fpw_ref[...], preferred_element_type=jnp.float32)
                  + fpbias_ref[...])
            hb = hb * valid                 # zero padded time rows before the conv
            pos_scr[hp:hp + Tpad, :] = hb
            acc = jnp.zeros((Tpad, H), jnp.float32)
            for j in range(kpc):            # 16-tap grouped conv as block-diag matmuls
                acc = acc + jnp.dot(pos_scr[j:j + Tpad, :], posw_ref[j],
                                    preferred_element_type=jnp.float32)
            h_scr[b * Tpad:(b + 1) * Tpad, :] = hb + _gelu(acc + posb_ref[...])

    h = h_scr[...]                                               # (B*Tpad, H)
    key_bias = jnp.where(
        jax.lax.broadcasted_iota(jnp.int32, (1, Tpad), 1) < T, 0.0, -1e30)

    # ---- self-attention block (pre-LN); fused QKV, q-scale folded into wq/bq ----
    xn = _ln(h, ln1g_ref[li], ln1b_ref[li], eps)
    qkv = jnp.dot(xn, wqkv_ref[li], preferred_element_type=jnp.float32) + bqkv_ref[li]
    wo = wo_ref[li]
    bo = bo_ref[li]
    for b in range(B):                     # attention must not mix batches -> per-batch
        r0 = b * Tpad
        qb = qkv[r0:r0 + Tpad, 0 * H:1 * H]
        km = qkv[r0:r0 + Tpad, 1 * H:2 * H]
        vb = qkv[r0:r0 + Tpad, 2 * H:3 * H]
        ob = jnp.zeros((Tpad, H), jnp.float32)
        for hh in range(nh):
            sl = slice(hh * hd, (hh + 1) * hd)
            s = jax.lax.dot_general(qb[:, sl], km[:, sl],
                                    (((1,), (1,)), ((), ())),
                                    preferred_element_type=jnp.float32)
            s = s + key_bias               # additive mask of padded keys (no where/select)
            p = jnp.exp(s - jnp.max(s, axis=-1, keepdims=True))
            p = p * pl.reciprocal(jnp.sum(p, axis=-1, keepdims=True), approx=True)
            ctx = jnp.dot(p, vb[:, sl], preferred_element_type=jnp.float32)
            # fold this head's context directly into the output projection (no concat)
            ob = ob + jnp.dot(ctx, wo[sl, :], preferred_element_type=jnp.float32)
        h_scr[r0:r0 + Tpad, :] = h[r0:r0 + Tpad, :] + ob + bo

    # ---- feed-forward block (pre-LN), batch folded into M ----
    h = h_scr[...]
    xn = _ln(h, ln2g_ref[li], ln2b_ref[li], eps)
    ff = _gelu(jnp.dot(xn, wff1_ref[li], preferred_element_type=jnp.float32)
               + bff1_ref[li])
    h = h + jnp.dot(ff, wff2_ref[li], preferred_element_type=jnp.float32) + bff2_ref[li]
    h_scr[...] = h

    @pl.when(li == n_layers - 1)
    def _finalize():
        o_ref[...] = h


def fused_encoder(params, cfg, feats_padded, T):
    """Feature projection + positional conv + full encoder stack in ONE pallas_call."""
    B, Tpad, C = feats_padded.shape
    H = cfg.hidden
    kpc = cfg.pos_conv_kernel
    n_layers = cfg.feature_layer

    args = [feats_padded,
            params["fp_ln_g"], params["fp_ln_b"], params["fp_w"], params["fp_b"],
            params["pos_w"], params["pos_b"],
            params["enc_ln1_g"], params["enc_ln1_b"],
            params["enc_wqkv"], params["enc_bqkv"],
            params["enc_wo"], params["enc_bo"],
            params["enc_ln2_g"], params["enc_ln2_b"],
            params["enc_wff1"], params["enc_bff1"],
            params["enc_wff2"], params["enc_bff2"]]

    vmem = pl.BlockSpec(memory_space=pltpu.MemorySpace.VMEM)
    out = pl.pallas_call(
        functools.partial(_fused_encoder_kernel, B=B, T=T, nh=cfg.num_heads,
                          eps=cfg.layer_norm_eps),
        out_shape=jax.ShapeDtypeStruct((B * Tpad, H), jnp.float32),
        grid=(n_layers,),
        in_specs=[vmem] * len(args),   # all inputs/weights VMEM-resident, fetched once
        out_specs=vmem,
        scratch_shapes=[pltpu.VMEM((B * Tpad, H), jnp.float32),       # activation
                        pltpu.VMEM((Tpad + kpc, H), jnp.float32)],    # pos-conv window
        compiler_params=pltpu.CompilerParams(
            dimension_semantics=("arbitrary",)),   # layers are sequential (carry in VMEM)
    )(*args)
    return out.reshape(B, Tpad, H)


# ---------------------------------------------------------------------------
# glue (im2col, padding, parameter setup, model wiring)
# ---------------------------------------------------------------------------

def _round_up(n, m):
    return -(-n // m) * m


def _pad_rows(x, mult):
    m = x.shape[0]
    mp = _round_up(m, mult)
    if mp != m:
        x = jnp.pad(x, ((0, mp - m),) + ((0, 0),) * (x.ndim - 1))
    return x


def im2col(x, kernel, stride):
    """x: (B, T, C) -> patches (B, T_out, kernel*C), flattened (tap j, channel c)."""
    # `kernel`/`stride` MUST be static Python ints (taken from cfg, never from params).
    B, T, C = x.shape
    T_out = (T - kernel) // stride + 1
    idx = jnp.arange(T_out)[:, None] * stride + jnp.arange(kernel)[None, :]
    patches = x[:, idx, :]                       # (B, T_out, kernel, C)
    return patches.reshape(B, T_out, kernel * C), T_out


class Config:
    # (out_channels, kernel, stride) — scaled-down Wav2Vec2 feature extractor
    conv_layers = ((32, 10, 5), (32, 3, 2))
    hidden = 32
    num_heads = 4
    ffn = 64
    pos_conv_kernel = 16
    pos_conv_groups = 4
    feature_layer = 7          # hidden_states[7] == output after 7 encoder layers
    layer_norm_eps = 1e-5


def init_params(key, cfg):
    keys = iter(jax.random.split(key, 64))

    def nrm(shape, scale=0.02):
        return scale * jax.random.normal(next(keys), shape, dtype=jnp.float32)

    params = {}

    # Feature extractor (layer_norm variant: conv -> LN(channels) -> GELU), conv_bias=True
    convs = []
    in_ch = 1
    for (out_ch, k, s) in cfg.conv_layers:          # kernel/stride stay static (in cfg)
        convs.append(dict(
            w=nrm((k * in_ch, out_ch)),             # (kernel*in, out) im2col layout
            b=nrm((1, out_ch)),
            ln_g=jnp.ones((1, out_ch), jnp.float32),
            ln_b=jnp.zeros((1, out_ch), jnp.float32)))
        in_ch = out_ch
    params["convs"] = convs

    # Feature projection: LN(conv_dim) -> Linear(conv_dim -> hidden)
    params["fp_ln_g"] = jnp.ones((1, in_ch), jnp.float32)
    params["fp_ln_b"] = jnp.zeros((1, in_ch), jnp.float32)
    params["fp_w"] = nrm((in_ch, cfg.hidden))
    params["fp_b"] = nrm((1, cfg.hidden))

    # Positional grouped conv: weight-norm folded (g is initialized to ||v|| so the
    # effective weight at init equals v) and stored per-tap block-diagonal (kpc, H, H).
    H = cfg.hidden
    kpc = cfg.pos_conv_kernel
    g = cfg.pos_conv_groups
    cpg = H // g
    v = nrm((H, cpg, kpc), scale=0.05)              # torch layout (out, in/groups, k)
    w_eff = v
    blockdiag = jnp.zeros((kpc, H, H), jnp.float32)
    for gi in range(g):
        blk = jnp.transpose(w_eff[gi * cpg:(gi + 1) * cpg], (2, 1, 0))  # (k, in, out)
        blockdiag = blockdiag.at[:, gi * cpg:(gi + 1) * cpg,
                                 gi * cpg:(gi + 1) * cpg].set(blk)
    params["pos_w"] = blockdiag                     # (kpc, H_in, H_out)
    params["pos_b"] = nrm((1, H))

    # Transformer encoder layers (stable-layer-norm variant), stacked over layers so the
    # fused encoder kernel can keep them all resident and index with w[layer].
    F, Lyr = cfg.ffn, cfg.feature_layer
    hd = H // cfg.num_heads
    scale = hd ** -0.5
    wq, bq = nrm((Lyr, H, H)), nrm((Lyr, 1, H))
    wk, bk = nrm((Lyr, H, H)), nrm((Lyr, 1, H))
    wv, bv = nrm((Lyr, H, H)), nrm((Lyr, 1, H))
    params["enc_ln1_g"] = jnp.ones((Lyr, 1, H), jnp.float32)
    params["enc_ln1_b"] = jnp.zeros((Lyr, 1, H), jnp.float32)
    params["enc_wqkv"] = jnp.concatenate([wq * scale, wk, wv], axis=-1)  # q-scale folded
    params["enc_bqkv"] = jnp.concatenate([bq * scale, bk, bv], axis=-1)
    params["enc_wo"] = nrm((Lyr, H, H))
    params["enc_bo"] = nrm((Lyr, 1, H))
    params["enc_ln2_g"] = jnp.ones((Lyr, 1, H), jnp.float32)
    params["enc_ln2_b"] = jnp.zeros((Lyr, 1, H), jnp.float32)
    params["enc_wff1"] = nrm((Lyr, H, F))
    params["enc_bff1"] = nrm((Lyr, 1, F))
    params["enc_wff2"] = nrm((Lyr, F, H))
    params["enc_bff2"] = nrm((Lyr, 1, H))
    return params


def wav2vec2_forward(params, cfg, x):
    """x: (B, 1, L) waveform -> (B, hidden, T) = hidden_states[feature_layer].permute(0,2,1)."""
    eps = cfg.layer_norm_eps
    B = x.shape[0]

    feats = x[:, 0, :, None]                       # x.squeeze(1) -> (B, L, 1) channels-last

    # --- feature extractor: fused conv-matmul + LN(channels) + GELU, one kernel/layer ---
    for li, (out_ch, kk, ss) in enumerate(cfg.conv_layers):
        # TODO(synk): im2col is still wrapper-side (XLA gather); in-kernel strided reads
        # would avoid materializing the kernel-times-expanded patch buffer at real sizes.
        patches, t_out = im2col(feats, kk, ss)
        m = B * t_out
        xm = _pad_rows(patches.reshape(m, -1), 16)   # rows multiple of 16 (2-way row grid)
        cp = params["convs"][li]
        y = conv_ln_gelu(xm, cp["w"], cp["b"], cp["ln_g"], cp["ln_b"], eps)
        feats = y[:m].reshape(B, t_out, out_ch)

    T = feats.shape[1]
    Tpad = _round_up(T, 8)
    # pad the time axis once; padded rows are zero-masked in-kernel and padded attention
    # keys are masked, so real rows are never affected.
    feats = jnp.pad(feats, ((0, 0), (0, Tpad - T), (0, 0)))

    # --- fused projection + positional conv + 7-layer encoder (1 launch) ---
    # hidden_states[k] is appended *before* layer k runs, so hidden_states[feature_layer]
    # is the output after the first `feature_layer` layers (no final encoder LayerNorm).
    h = fused_encoder(params, cfg, feats, T)       # (B, Tpad, H)

    return jnp.transpose(h[:, :T, :], (0, 2, 1))   # y.permute(0, 2, 1) -> (B, hidden, T)


# ---------------------------------------------------------------------------

if __name__ == "__main__":
    cfg = Config()
    key = jax.random.PRNGKey(0)
    pkey, xkey = jax.random.split(key)
    params = init_params(pkey, cfg)

    B, L = 2, 400                                  # small waveform
    x = jax.random.normal(xkey, (B, 1, L), dtype=jnp.float32)

    fwd = jax.jit(lambda p, xx: wav2vec2_forward(p, cfg, xx))
    y = fwd(params, x)
    jax.block_until_ready(y)

    # conv chain: (400-10)//5+1 = 79 ; (79-3)//2+1 = 39
    assert y.shape == (B, cfg.hidden, 39), y.shape
    assert y.dtype == jnp.float32
    print("KERNEL_OK")
</pallas_src>

<mosaic_0001>
module attributes {stable_mosaic.version = 11 : i64} {
  func.func @_conv_ln_gelu_kernel(%arg0: i32, %arg1: memref<80x10xf32, #tpu.memory_space<vmem>>, %arg2: memref<10x32xf32, #tpu.memory_space<vmem>>, %arg3: memref<1x32xf32, #tpu.memory_space<vmem>>, %arg4: memref<1x32xf32, #tpu.memory_space<vmem>>, %arg5: memref<1x32xf32, #tpu.memory_space<vmem>>, %arg6: memref<80x32xf32, #tpu.memory_space<vmem>>) attributes {dimension_semantics = [#tpu.dimension_semantics<parallel>], iteration_bounds = array<i64: 2>, scalar_prefetch = 0 : i64, scratch_operands = 0 : i64, tpu.core_type = #tpu.core_type<tc>, window_params = [{transform_indices = @transform_0, window_bounds = array<i64: 80, 10>}, {pipeline_mode = #tpu.pipeline_mode<synchronous>, transform_indices = @transform_1, window_bounds = array<i64: 10, 32>}, {pipeline_mode = #tpu.pipeline_mode<synchronous>, transform_indices = @transform_2, window_bounds = array<i64: 1, 32>}, {pipeline_mode = #tpu.pipeline_mode<synchronous>, transform_indices = @transform_3, window_bounds = array<i64: 1, 32>}, {pipeline_mode = #tpu.pipeline_mode<synchronous>, transform_indices = @transform_4, window_bounds = array<i64: 1, 32>}, {transform_indices = @transform_5, window_bounds = array<i64: 80, 32>}]} {
    %c0 = arith.constant 0 : index
    %c0_0 = arith.constant 0 : index
    %0 = vector.load %arg1[%c0, %c0_0] : memref<80x10xf32, #tpu.memory_space<vmem>>, vector<80x10xf32>
    %c0_1 = arith.constant 0 : index
    %c0_2 = arith.constant 0 : index
    %1 = vector.load %arg2[%c0_1, %c0_2] : memref<10x32xf32, #tpu.memory_space<vmem>>, vector<10x32xf32>
    %cst = arith.constant dense<0.000000e+00> : vector<80x32xf32>
    %2 = tpu.matmul %0, %1, %cst {dimension_numbers = #tpu.dot_dimension_numbers<[1], [0], [0], [1], [0, 0, 1, 1], [], []>} : vector<80x10xf32>, vector<10x32xf32>, vector<80x32xf32> -> vector<80x32xf32>
    %c0_3 = arith.constant 0 : index
    %c0_4 = arith.constant 0 : index
    %3 = vector.load %arg3[%c0_3, %c0_4] : memref<1x32xf32, #tpu.memory_space<vmem>>, vector<1x32xf32>
    %4 = vector.broadcast %3 : vector<1x32xf32> to vector<80x32xf32>
    %5 = arith.addf %2, %4 : vector<80x32xf32>
    %c0_5 = arith.constant 0 : index
    %c0_6 = arith.constant 0 : index
    %6 = vector.load %arg4[%c0_5, %c0_6] : memref<1x32xf32, #tpu.memory_space<vmem>>, vector<1x32xf32>
    %c0_7 = arith.constant 0 : index
    %c0_8 = arith.constant 0 : index
    %7 = vector.load %arg5[%c0_7, %c0_8] : memref<1x32xf32, #tpu.memory_space<vmem>>, vector<1x32xf32>
    %cst_9 = arith.constant dense<0.000000e+00> : vector<80xf32>
    %8 = vector.multi_reduction <add>, %5, %cst_9 [1] : vector<80x32xf32> to vector<80xf32>
    %9 = vector.shape_cast %8 : vector<80xf32> to vector<80x1xf32>
    %cst_10 = arith.constant 3.200000e+01 : f32
    %10 = vector.broadcast %cst_10 : f32 to vector<80x1xf32>
    %11 = arith.divf %9, %10 : vector<80x1xf32>
    %12 = vector.broadcast %11 : vector<80x1xf32> to vector<80x32xf32>
    %13 = arith.subf %5, %12 : vector<80x32xf32>
    %14 = arith.mulf %13, %13 : vector<80x32xf32>
    %cst_11 = arith.constant dense<0.000000e+00> : vector<80xf32>
    %15 = vector.multi_reduction <add>, %14, %cst_11 [1] : vector<80x32xf32> to vector<80xf32>
    %16 = vector.shape_cast %15 : vector<80xf32> to vector<80x1xf32>
    %cst_12 = arith.constant 3.200000e+01 : f32
    %17 = vector.broadcast %cst_12 : f32 to vector<80x1xf32>
    %18 = arith.divf %16, %17 : vector<80x1xf32>
    %cst_13 = arith.constant 9.99999974E-6 : f32
    %19 = vector.broadcast %cst_13 : f32 to vector<80x1xf32>
    %20 = arith.addf %18, %19 : vector<80x1xf32>
    %21 = math.rsqrt %20 : vector<80x1xf32>
    %22 = vector.broadcast %21 : vector<80x1xf32> to vector<80x32xf32>
    %23 = arith.mulf %13, %22 : vector<80x32xf32>
    %24 = vector.broadcast %6 : vector<1x32xf32> to vector<80x32xf32>
    %25 = arith.mulf %23, %24 : vector<80x32xf32>
    %26 = vector.broadcast %7 : vector<1x32xf32> to vector<80x32xf32>
    %27 = arith.addf %25, %26 : vector<80x32xf32>
    %cst_14 = arith.constant 5.000000e-01 : f32
    %28 = vector.broadcast %cst_14 : f32 to vector<80x32xf32>
    %29 = arith.mulf %28, %27 : vector<80x32xf32>
    %cst_15 = arith.constant 4.471500e-02 : f32
    %30 = vector.broadcast %cst_15 : f32 to vector<80x32xf32>
    %31 = arith.mulf %30, %27 : vector<80x32xf32>
    %32 = arith.mulf %31, %27 : vector<80x32xf32>
    %33 = arith.mulf %32, %27 : vector<80x32xf32>
    %34 = arith.addf %27, %33 : vector<80x32xf32>
    %cst_16 = arith.constant 0.797884583 : f32
    %35 = vector.broadcast %cst_16 : f32 to vector<80x32xf32>
    %36 = arith.mulf %35, %34 : vector<80x32xf32>
    %37 = math.tanh %36 : vector<80x32xf32>
    %cst_17 = arith.constant 1.000000e+00 : f32
    %38 = vector.broadcast %cst_17 : f32 to vector<80x32xf32>
    %39 = arith.addf %38, %37 : vector<80x32xf32>
    %40 = arith.mulf %29, %39 : vector<80x32xf32>
    %c0_18 = arith.constant 0 : index
    %c0_19 = arith.constant 0 : index
    %41 = vector.load %arg6[%c0_18, %c0_19] : memref<80x32xf32, #tpu.memory_space<vmem>>, vector<80x32xf32>
    tpu.vector_store %arg6[%c0_18, %c0_19], %40 {strides = array<i32>} : memref<80x32xf32, #tpu.memory_space<vmem>>, vector<80x32xf32>,
    return
  }
  func.func @transform_0(%arg0: i32) -> (i32, i32) {
    %c0_i32 = arith.constant 0 : i32
    %c0_i32_0 = arith.constant 0 : i32
    return %arg0, %c0_i32 : i32, i32
  }
  func.func @transform_1(%arg0: i32) -> (i32, i32) {
    %c0_i32 = arith.constant 0 : i32
    %c0_i32_0 = arith.constant 0 : i32
    %c0_i32_1 = arith.constant 0 : i32
    return %c0_i32, %c0_i32_0 : i32, i32
  }
  func.func @transform_2(%arg0: i32) -> (i32, i32) {
    %c0_i32 = arith.constant 0 : i32
    %c0_i32_0 = arith.constant 0 : i32
    %c0_i32_1 = arith.constant 0 : i32
    return %c0_i32, %c0_i32_0 : i32, i32
  }
  func.func @transform_3(%arg0: i32) -> (i32, i32) {
    %c0_i32 = arith.constant 0 : i32
    %c0_i32_0 = arith.constant 0 : i32
    %c0_i32_1 = arith.constant 0 : i32
    return %c0_i32, %c0_i32_0 : i32, i32
  }
  func.func @transform_4(%arg0: i32) -> (i32, i32) {
    %c0_i32 = arith.constant 0 : i32
    %c0_i32_0 = arith.constant 0 : i32
    %c0_i32_1 = arith.constant 0 : i32
    return %c0_i32, %c0_i32_0 : i32, i32
  }
  func.func @transform_5(%arg0: i32) -> (i32, i32) {
    %c0_i32 = arith.constant 0 : i32
    %c0_i32_0 = arith.constant 0 : i32
    return %arg0, %c0_i32 : i32, i32
  }
}

module attributes {stable_mosaic.version = 11 : i64} {
  func.func @_conv_ln_gelu_kernel(%arg0: i32, %arg1: memref<40x96xf32, #tpu.memory_space<vmem>>, %arg2: memref<96x32xf32, #tpu.memory_space<vmem>>, %arg3: memref<1x32xf32, #tpu.memory_space<vmem>>, %arg4: memref<1x32xf32, #tpu.memory_space<vmem>>, %arg5: memref<1x32xf32, #tpu.memory_space<vmem>>, %arg6: memref<40x32xf32, #tpu.memory_space<vmem>>) attributes {dimension_semantics = [#tpu.dimension_semantics<parallel>], iteration_bounds = array<i64: 2>, scalar_prefetch = 0 : i64, scratch_operands = 0 : i64, tpu.core_type = #tpu.core_type<tc>, window_params = [{transform_indices = @transform_0, window_bounds = array<i64: 40, 96>}, {pipeline_mode = #tpu.pipeline_mode<synchronous>, transform_indices = @transform_1, window_bounds = array<i64: 96, 32>}, {pipeline_mode = #tpu.pipeline_mode<synchronous>, transform_indices = @transform_2, window_bounds = array<i64: 1, 32>}, {pipeline_mode = #tpu.pipeline_mode<synchronous>, transform_indices = @transform_3, window_bounds = array<i64: 1, 32>}, {pipeline_mode = #tpu.pipeline_mode<synchronous>, transform_indices = @transform_4, window_bounds = array<i64: 1, 32>}, {transform_indices = @transform_5, window_bounds = array<i64: 40, 32>}]} {
    %c0 = arith.constant 0 : index
    %c0_0 = arith.constant 0 : index
    %0 = vector.load %arg1[%c0, %c0_0] : memref<40x96xf32, #tpu.memory_space<vmem>>, vector<40x96xf32>
    %c0_1 = arith.constant 0 : index
    %c0_2 = arith.constant 0 : index
    %1 = vector.load %arg2[%c0_1, %c0_2] : memref<96x32xf32, #tpu.memory_space<vmem>>, vector<96x32xf32>
    %cst = arith.constant dense<0.000000e+00> : vector<40x32xf32>
    %2 = tpu.matmul %0, %1, %cst {dimension_numbers = #tpu.dot_dimension_numbers<[1], [0], [0], [1], [0, 0, 1, 1], [], []>} : vector<40x96xf32>, vector<96x32xf32>, vector<40x32xf32> -> vector<40x32xf32>
    %c0_3 = arith.constant 0 : index
    %c0_4 = arith.constant 0 : index
    %3 = vector.load %arg3[%c0_3, %c0_4] : memref<1x32xf32, #tpu.memory_space<vmem>>, vector<1x32xf32>
    %4 = vector.broadcast %3 : vector<1x32xf32> to vector<40x32xf32>
    %5 = arith.addf %2, %4 : vector<40x32xf32>
    %c0_5 = arith.constant 0 : index
    %c0_6 = arith.constant 0 : index
    %6 = vector.load %arg4[%c0_5, %c0_6] : memref<1x32xf32, #tpu.memory_space<vmem>>, vector<1x32xf32>
    %c0_7 = arith.constant 0 : index
    %c0_8 = arith.constant 0 : index
    %7 = vector.load %arg5[%c0_7, %c0_8] : memref<1x32xf32, #tpu.memory_space<vmem>>, vector<1x32xf32>
    %cst_9 = arith.constant dense<0.000000e+00> : vector<40xf32>
    %8 = vector.multi_reduction <add>, %5, %cst_9 [1] : vector<40x32xf32> to vector<40xf32>
    %9 = vector.shape_cast %8 : vector<40xf32> to vector<40x1xf32>
    %cst_10 = arith.constant 3.200000e+01 : f32
    %10 = vector.broadcast %cst_10 : f32 to vector<40x1xf32>
    %11 = arith.divf %9, %10 : vector<40x1xf32>
    %12 = vector.broadcast %11 : vector<40x1xf32> to vector<40x32xf32>
    %13 = arith.subf %5, %12 : vector<40x32xf32>
    %14 = arith.mulf %13, %13 : vector<40x32xf32>
    %cst_11 = arith.constant dense<0.000000e+00> : vector<40xf32>
    %15 = vector.multi_reduction <add>, %14, %cst_11 [1] : vector<40x32xf32> to vector<40xf32>
    %16 = vector.shape_cast %15 : vector<40xf32> to vector<40x1xf32>
    %cst_12 = arith.constant 3.200000e+01 : f32
    %17 = vector.broadcast %cst_12 : f32 to vector<40x1xf32>
    %18 = arith.divf %16, %17 : vector<40x1xf32>
    %cst_13 = arith.constant 9.99999974E-6 : f32
    %19 = vector.broadcast %cst_13 : f32 to vector<40x1xf32>
    %20 = arith.addf %18, %19 : vector<40x1xf32>
    %21 = math.rsqrt %20 : vector<40x1xf32>
    %22 = vector.broadcast %21 : vector<40x1xf32> to vector<40x32xf32>
    %23 = arith.mulf %13, %22 : vector<40x32xf32>
    %24 = vector.broadcast %6 : vector<1x32xf32> to vector<40x32xf32>
    %25 = arith.mulf %23, %24 : vector<40x32xf32>
    %26 = vector.broadcast %7 : vector<1x32xf32> to vector<40x32xf32>
    %27 = arith.addf %25, %26 : vector<40x32xf32>
    %cst_14 = arith.constant 5.000000e-01 : f32
    %28 = vector.broadcast %cst_14 : f32 to vector<40x32xf32>
    %29 = arith.mulf %28, %27 : vector<40x32xf32>
    %cst_15 = arith.constant 4.471500e-02 : f32
    %30 = vector.broadcast %cst_15 : f32 to vector<40x32xf32>
    %31 = arith.mulf %30, %27 : vector<40x32xf32>
    %32 = arith.mulf %31, %27 : vector<40x32xf32>
    %33 = arith.mulf %32, %27 : vector<40x32xf32>
    %34 = arith.addf %27, %33 : vector<40x32xf32>
    %cst_16 = arith.constant 0.797884583 : f32
    %35 = vector.broadcast %cst_16 : f32 to vector<40x32xf32>
    %36 = arith.mulf %35, %34 : vector<40x32xf32>
    %37 = math.tanh %36 : vector<40x32xf32>
    %cst_17 = arith.constant 1.000000e+00 : f32
    %38 = vector.broadcast %cst_17 : f32 to vector<40x32xf32>
    %39 = arith.addf %38, %37 : vector<40x32xf32>
    %40 = arith.mulf %29, %39 : vector<40x32xf32>
    %c0_18 = arith.constant 0 : index
    %c0_19 = arith.constant 0 : index
    %41 = vector.load %arg6[%c0_18, %c0_19] : memref<40x32xf32, #tpu.memory_space<vmem>>, vector<40x32xf32>
    tpu.vector_store %arg6[%c0_18, %c0_19], %40 {strides = array<i32>} : memref<40x32xf32, #tpu.memory_space<vmem>>, vector<40x32xf32>,
    return
  }
  func.func @transform_0(%arg0: i32) -> (i32, i32) {
    %c0_i32 = arith.constant 0 : i32
    %c0_i32_0 = arith.constant 0 : i32
    return %arg0, %c0_i32 : i32, i32
  }
  func.func @transform_1(%arg0: i32) -> (i32, i32) {
    %c0_i32 = arith.constant 0 : i32
    %c0_i32_0 = arith.constant 0 : i32
    %c0_i32_1 = arith.constant 0 : i32
    return %c0_i32, %c0_i32_0 : i32, i32
  }
  func.func @transform_2(%arg0: i32) -> (i32, i32) {
    %c0_i32 = arith.constant 0 : i32
    %c0_i32_0 = arith.constant 0 : i32
    %c0_i32_1 = arith.constant 0 : i32
    return %c0_i32, %c0_i32_0 : i32, i32
  }
  func.func @transform_3(%arg0: i32) -> (i32, i32) {
    %c0_i32 = arith.constant 0 : i32
    %c0_i32_0 = arith.constant 0 : i32
    %c0_i32_1 = arith.constant 0 : i32
    return %c0_i32, %c0_i32_0 : i32, i32
  }
  func.func @transform_4(%arg0: i32) -> (i32, i32) {
    %c0_i32 = arith.constant 0 : i32
    %c0_i32_0 = arith.constant 0 : i32
    %c0_i32_1 = arith.constant 0 : i32
    return %c0_i32, %c0_i32_0 : i32, i32
  }
  func.func @transform_5(%arg0: i32) -> (i32, i32) {
    %c0_i32 = arith.constant 0 : i32
    %c0_i32_0 = arith.constant 0 : i32
    return %arg0, %c0_i32 : i32, i32
  }
}

module attributes {stable_mosaic.version = 11 : i64} {
  func.func @_fused_encoder_kernel(%arg0: i32, %arg1: memref<2x40x32xf32, #tpu.memory_space<vmem>>, %arg2: memref<1x32xf32, #tpu.memory_space<vmem>>, %arg3: memref<1x32xf32, #tpu.memory_space<vmem>>, %arg4: memref<32x32xf32, #tpu.memory_space<vmem>>, %arg5: memref<1x32xf32, #tpu.memory_space<vmem>>, %arg6: memref<16x32x32xf32, #tpu.memory_space<vmem>>, %arg7: memref<1x32xf32, #tpu.memory_space<vmem>>, %arg8: memref<7x1x32xf32, #tpu.memory_space<vmem>>, %arg9: memref<7x1x32xf32, #tpu.memory_space<vmem>>, %arg10: memref<7x32x96xf32, #tpu.memory_space<vmem>>, %arg11: memref<7x1x96xf32, #tpu.memory_space<vmem>>, %arg12: memref<7x32x32xf32, #tpu.memory_space<vmem>>, %arg13: memref<7x1x32xf32, #tpu.memory_space<vmem>>, %arg14: memref<7x1x32xf32, #tpu.memory_space<vmem>>, %arg15: memref<7x1x32xf32, #tpu.memory_space<vmem>>, %arg16: memref<7x32x64xf32, #tpu.memory_space<vmem>>, %arg17: memref<7x1x64xf32, #tpu.memory_space<vmem>>, %arg18: memref<7x64x32xf32, #tpu.memory_space<vmem>>, %arg19: memref<7x1x32xf32, #tpu.memory_space<vmem>>, %arg20: memref<80x32xf32, #tpu.memory_space<vmem>>, %arg21: memref<80x32xf32, #tpu.memory_space<vmem>>, %arg22: memref<56x32xf32, #tpu.memory_space<vmem>>) attributes {dimension_semantics = [#tpu.dimension_semantics<arbitrary>], iteration_bounds = array<i64: 7>, scalar_prefetch = 0 : i64, scratch_operands = 2 : i64, tpu.core_type = #tpu.core_type<tc>, window_params = [{pipeline_mode = #tpu.pipeline_mode<synchronous>, transform_indices = @transform_0, window_bounds = array<i64: 2, 40, 32>}, {pipeline_mode = #tpu.pipeline_mode<synchronous>, transform_indices = @transform_1, window_bounds = array<i64: 1, 32>}, {pipeline_mode = #tpu.pipeline_mode<synchronous>, transform_indices = @transform_2, window_bounds = array<i64: 1, 32>}, {pipeline_mode = #tpu.pipeline_mode<synchronous>, transform_indices = @transform_3, window_bounds = array<i64: 32, 32>}, {pipeline_mode = #tpu.pipeline_mode<synchronous>, transform_indices = @transform_4, window_bounds = array<i64: 1, 32>}, {pipeline_mode = #tpu.pipeline_mode<synchronous>, transform_indices = @transform_5, window_bounds = array<i64: 16, 32, 32>}, {pipeline_mode = #tpu.pipeline_mode<synchronous>, transform_indices = @transform_6, window_bounds = array<i64: 1, 32>}, {pipeline_mode = #tpu.pipeline_mode<synchronous>, transform_indices = @transform_7, window_bounds = array<i64: 7, 1, 32>}, {pipeline_mode = #tpu.pipeline_mode<synchronous>, transform_indices = @transform_8, window_bounds = array<i64: 7, 1, 32>}, {pipeline_mode = #tpu.pipeline_mode<synchronous>, transform_indices = @transform_9, window_bounds = array<i64: 7, 32, 96>}, {pipeline_mode = #tpu.pipeline_mode<synchronous>, transform_indices = @transform_10, window_bounds = array<i64: 7, 1, 96>}, {pipeline_mode = #tpu.pipeline_mode<synchronous>, transform_indices = @transform_11, window_bounds = array<i64: 7, 32, 32>}, {pipeline_mode = #tpu.pipeline_mode<synchronous>, transform_indices = @transform_12, window_bounds = array<i64: 7, 1, 32>}, {pipeline_mode = #tpu.pipeline_mode<synchronous>, transform_indices = @transform_13, window_bounds = array<i64: 7, 1, 32>}, {pipeline_mode = #tpu.pipeline_mode<synchronous>, transform_indices = @transform_14, window_bounds = array<i64: 7, 1, 32>}, {pipeline_mode = #tpu.pipeline_mode<synchronous>, transform_indices = @transform_15, window_bounds = array<i64: 7, 32, 64>}, {pipeline_mode = #tpu.pipeline_mode<synchronous>, transform_indices = @transform_16, window_bounds = array<i64: 7, 1, 64>}, {pipeline_mode = #tpu.pipeline_mode<synchronous>, transform_indices = @transform_17, window_bounds = array<i64: 7, 64, 32>}, {pipeline_mode = #tpu.pipeline_mode<synchronous>, transform_indices = @transform_18, window_bounds = array<i64: 7, 1, 32>}, {pipeline_mode = #tpu.pipeline_mode<synchronous>, transform_indices = @transform_19, window_bounds = array<i64: 80, 32>}]} {
    %c0_i32 = arith.constant 0 : i32
    %0 = arith.cmpi eq, %arg0, %c0_i32 : i32
    %1 = arith.extui %0 : i1 to i32
    %c0_i32_0 = arith.constant 0 : i32
    %2 = arith.cmpi ne, %1, %c0_i32_0 : i32
    scf.if %2 {
      %292 = tpu.iota {dimensions = array<i32: 0>} : vector<40x1xi32>
      %c39_i32_94 = arith.constant 39 : i32
      %293 = vector.broadcast %c39_i32_94 : i32 to vector<40x1xi32>
      %294 = arith.cmpi slt, %292, %293 : vector<40x1xi32>
      %295 = arith.extui %294 : vector<40x1xi1> to vector<40x1xi32>
      %296 = arith.sitofp %295 : vector<40x1xi32> to vector<40x1xf32>
      %cst_95 = arith.constant 0.000000e+00 : f32
      %297 = vector.broadcast %cst_95 : f32 to vector<8x32xf32>
      %c0_96 = arith.constant 0 : index
      %c0_97 = arith.constant 0 : index
      %298 = vector.load %arg22[%c0_96, %c0_97] : memref<56x32xf32, #tpu.memory_space<vmem>>, vector<8x32xf32>
      tpu.vector_store %arg22[%c0_96, %c0_97], %297 {strides = array<i32>} : memref<56x32xf32, #tpu.memory_space<vmem>>, vector<8x32xf32>,
      %cst_98 = arith.constant 0.000000e+00 : f32
      %299 = vector.broadcast %cst_98 : f32 to vector<8x32xf32>
      %c48 = arith.constant 48 : index
      %c0_99 = arith.constant 0 : index
      %300 = vector.load %arg22[%c48, %c0_99] : memref<56x32xf32, #tpu.memory_space<vmem>>, vector<8x32xf32>
      tpu.vector_store %arg22[%c48, %c0_99], %299 {strides = array<i32>} : memref<56x32xf32, #tpu.memory_space<vmem>>, vector<8x32xf32>,
      %c0_100 = arith.constant 0 : index
      %c0_101 = arith.constant 0 : index
      %c0_102 = arith.constant 0 : index
      %301 = vector.load %arg1[%c0_100, %c0_101, %c0_102] : memref<2x40x32xf32, #tpu.memory_space<vmem>>, vector<1x40x32xf32>
      %302 = vector.shape_cast %301 : vector<1x40x32xf32> to vector<40x32xf32>
      %c0_103 = arith.constant 0 : index
      %c0_104 = arith.constant 0 : index
      %303 = vector.load %arg2[%c0_103, %c0_104] : memref<1x32xf32, #tpu.memory_space<vmem>>, vector<1x32xf32>
      %c0_105 = arith.constant 0 : index
      %c0_106 = arith.constant 0 : index
      %304 = vector.load %arg3[%c0_105, %c0_106] : memref<1x32xf32, #tpu.memory_space<vmem>>, vector<1x32xf32>
      %cst_107 = arith.constant dense<0.000000e+00> : vector<40xf32>
      %305 = vector.multi_reduction <add>, %302, %cst_107 [1] : vector<40x32xf32> to vector<40xf32>
      %306 = vector.shape_cast %305 : vector<40xf32> to vector<40x1xf32>
      %cst_108 = arith.constant 3.200000e+01 : f32
      %307 = vector.broadcast %cst_108 : f32 to vector<40x1xf32>
      %308 = arith.divf %306, %307 : vector<40x1xf32>
      %309 = vector.broadcast %308 : vector<40x1xf32> to vector<40x32xf32>
      %310 = arith.subf %302, %309 : vector<40x32xf32>
      %311 = arith.mulf %310, %310 : vector<40x32xf32>
      %cst_109 = arith.constant dense<0.000000e+00> : vector<40xf32>
      %312 = vector.multi_reduction <add>, %311, %cst_109 [1] : vector<40x32xf32> to vector<40xf32>
      %313 = vector.shape_cast %312 : vector<40xf32> to vector<40x1xf32>
      %cst_110 = arith.constant 3.200000e+01 : f32
      %314 = vector.broadcast %cst_110 : f32 to vector<40x1xf32>
      %315 = arith.divf %313, %314 : vector<40x1xf32>
      %cst_111 = arith.constant 9.99999974E-6 : f32
      %316 = vector.broadcast %cst_111 : f32 to vector<40x1xf32>
      %317 = arith.addf %315, %316 : vector<40x1xf32>
      %318 = math.rsqrt %317 : vector<40x1xf32>
      %319 = vector.broadcast %318 : vector<40x1xf32> to vector<40x32xf32>
      %320 = arith.mulf %310, %319 : vector<40x32xf32>
      %321 = vector.broadcast %303 : vector<1x32xf32> to vector<40x32xf32>
      %322 = arith.mulf %320, %321 : vector<40x32xf32>
      %323 = vector.broadcast %304 : vector<1x32xf32> to vector<40x32xf32>
      %324 = arith.addf %322, %323 : vector<40x32xf32>
      %c0_112 = arith.constant 0 : index
      %c0_113 = arith.constant 0 : index
      %325 = vector.load %arg4[%c0_112, %c0_113] : memref<32x32xf32, #tpu.memory_space<vmem>>, vector<32x32xf32>
      %cst_114 = arith.constant dense<0.000000e+00> : vector<40x32xf32>
      %326 = tpu.matmul %324, %325, %cst_114 {dimension_numbers = #tpu.dot_dimension_numbers<[1], [0], [0], [1], [0, 0, 1, 1], [], []>} : vector<40x32xf32>, vector<32x32xf32>, vector<40x32xf32> -> vector<40x32xf32>
      %c0_115 = arith.constant 0 : index
      %c0_116 = arith.constant 0 : index
      %327 = vector.load %arg5[%c0_115, %c0_116] : memref<1x32xf32, #tpu.memory_space<vmem>>, vector<1x32xf32>
      %328 = vector.broadcast %327 : vector<1x32xf32> to vector<40x32xf32>
      %329 = arith.addf %326, %328 : vector<40x32xf32>
      %330 = vector.broadcast %296 : vector<40x1xf32> to vector<40x32xf32>
      %331 = arith.mulf %329, %330 : vector<40x32xf32>
      %c8 = arith.constant 8 : index
      %c0_117 = arith.constant 0 : index
      %332 = vector.load %arg22[%c8, %c0_117] : memref<56x32xf32, #tpu.memory_space<vmem>>, vector<40x32xf32>
      tpu.vector_store %arg22[%c8, %c0_117], %331 {strides = array<i32>} : memref<56x32xf32, #tpu.memory_space<vmem>>, vector<40x32xf32>,
      %cst_118 = arith.constant 0.000000e+00 : f32
      %333 = vector.broadcast %cst_118 : f32 to vector<40x32xf32>
      %c0_119 = arith.constant 0 : index
      %c0_120 = arith.constant 0 : index
      %334 = vector.load %arg22[%c0_119, %c0_120] : memref<56x32xf32, #tpu.memory_space<vmem>>, vector<40x32xf32>
      %c0_121 = arith.constant 0 : index
      %c0_122 = arith.constant 0 : index
      %c0_123 = arith.constant 0 : index
      %335 = vector.load %arg6[%c0_121, %c0_122, %c0_123] : memref<16x32x32xf32, #tpu.memory_space<vmem>>, vector<1x32x32xf32>
      %336 = vector.shape_cast %335 : vector<1x32x32xf32> to vector<32x32xf32>
      %cst_124 = arith.constant dense<0.000000e+00> : vector<40x32xf32>
      %337 = tpu.matmul %334, %336, %cst_124 {dimension_numbers = #tpu.dot_dimension_numbers<[1], [0], [0], [1], [0, 0, 1, 1], [], []>} : vector<40x32xf32>, vector<32x32xf32>, vector<40x32xf32> -> vector<40x32xf32>
      %338 = arith.addf %333, %337 : vector<40x32xf32>
      %c1 = arith.constant 1 : index
      %c0_125 = arith.constant 0 : index
      %339 = vector.load %arg22[%c1, %c0_125] : memref<56x32xf32, #tpu.memory_space<vmem>>, vector<40x32xf32>
      %c1_126 = arith.constant 1 : index
      %c0_127 = arith.constant 0 : index
      %c0_128 = arith.constant 0 : index
      %340 = vector.load %arg6[%c1_126, %c0_127, %c0_128] : memref<16x32x32xf32, #tpu.memory_space<vmem>>, vector<1x32x32xf32>
      %341 = vector.shape_cast %340 : vector<1x32x32xf32> to vector<32x32xf32>
      %cst_129 = arith.constant dense<0.000000e+00> : vector<40x32xf32>
      %342 = tpu.matmul %339, %341, %cst_129 {dimension_numbers = #tpu.dot_dimension_numbers<[1], [0], [0], [1], [0, 0, 1, 1], [], []>} : vector<40x32xf32>, vector<32x32xf32>, vector<40x32xf32> -> vector<40x32xf32>
      %343 = arith.addf %338, %342 : vector<40x32xf32>
      %c2 = arith.constant 2 : index
      %c0_130 = arith.constant 0 : index
      %344 = vector.load %arg22[%c2, %c0_130] : memref<56x32xf32, #tpu.memory_space<vmem>>, vector<40x32xf32>
      %c2_131 = arith.constant 2 : index
      %c0_132 = arith.constant 0 : index
      %c0_133 = arith.constant 0 : index
      %345 = vector.load %arg6[%c2_131, %c0_132, %c0_133] : memref<16x32x32xf32, #tpu.memory_space<vmem>>, vector<1x32x32xf32>
      %346 = vector.shape_cast %345 : vector<1x32x32xf32> to vector<32x32xf32>
      %cst_134 = arith.constant dense<0.000000e+00> : vector<40x32xf32>
      %347 = tpu.matmul %344, %346, %cst_134 {dimension_numbers = #tpu.dot_dimension_numbers<[1], [0], [0], [1], [0, 0, 1, 1], [], []>} : vector<40x32xf32>, vector<32x32xf32>, vector<40x32xf32> -> vector<40x32xf32>
      %348 = arith.addf %343, %347 : vector<40x32xf32>
      %c3 = arith.constant 3 : index
      %c0_135 = arith.constant 0 : index
      %349 = vector.load %arg22[%c3, %c0_135] : memref<56x32xf32, #tpu.memory_space<vmem>>, vector<40x32xf32>
      %c3_136 = arith.constant 3 : index
      %c0_137 = arith.constant 0 : index
      %c0_138 = arith.constant 0 : index
      %350 = vector.load %arg6[%c3_136, %c0_137, %c0_138] : memref<16x32x32xf32, #tpu.memory_space<vmem>>, vector<1x32x32xf32>
      %351 = vector.shape_cast %350 : vector<1x32x32xf32> to vector<32x32xf32>
      %cst_139 = arith.constant dense<0.000000e+00> : vector<40x32xf32>
      %352 = tpu.matmul %349, %351, %cst_139 {dimension_numbers = #tpu.dot_dimension_numbers<[1], [0], [0], [1], [0, 0, 1, 1], [], []>} : vector<40x32xf32>, vector<32x32xf32>, vector<40x32xf32> -> vector<40x32xf32>
      %353 = arith.addf %348, %352 : vector<40x32xf32>
      %c4 = arith.constant 4 : index
      %c0_140 = arith.constant 0 : index
      %354 = vector.load %arg22[%c4, %c0_140] : memref<56x32xf32, #tpu.memory_space<vmem>>, vector<40x32xf32>
      %c4_141 = arith.constant 4 : index
      %c0_142 = arith.constant 0 : index
      %c0_143 = arith.constant 0 : index
      %355 = vector.load %arg6[%c4_141, %c0_142, %c0_143] : memref<16x32x32xf32, #tpu.memory_space<vmem>>, vector<1x32x32xf32>
      %356 = vector.shape_cast %355 : vector<1x32x32xf32> to vector<32x32xf32>
      %cst_144 = arith.constant dense<0.000000e+00> : vector<40x32xf32>
      %357 = tpu.matmul %354, %356, %cst_144 {dimension_numbers = #tpu.dot_dimension_numbers<[1], [0], [0], [1], [0, 0, 1, 1], [], []>} : vector<40x32xf32>, vector<32x32xf32>, vector<40x32xf32> -> vector<40x32xf32>
      %358 = arith.addf %353, %357 : vector<40x32xf32>
      %c5 = arith.constant 5 : index
      %c0_145 = arith.constant 0 : index
      %359 = vector.load %arg22[%c5, %c0_145] : memref<56x32xf32, #tpu.memory_space<vmem>>, vector<40x32xf32>
      %c5_146 = arith.constant 5 : index
      %c0_147 = arith.constant 0 : index
      %c0_148 = arith.constant 0 : index
      %360 = vector.load %arg6[%c5_146, %c0_147, %c0_148] : memref<16x32x32xf32, #tpu.memory_space<vmem>>, vector<1x32x32xf32>
      %361 = vector.shape_cast %360 : vector<1x32x32xf32> to vector<32x32xf32>
      %cst_149 = arith.constant dense<0.000000e+00> : vector<40x32xf32>
      %362 = tpu.matmul %359, %361, %cst_149 {dimension_numbers = #tpu.dot_dimension_numbers<[1], [0], [0], [1], [0, 0, 1, 1], [], []>} : vector<40x32xf32>, vector<32x32xf32>, vector<40x32xf32> -> vector<40x32xf32>
      %363 = arith.addf %358, %362 : vector<40x32xf32>
      %c6 = arith.constant 6 : index
      %c0_150 = arith.constant 0 : index
      %364 = vector.load %arg22[%c6, %c0_150] : memref<56x32xf32, #tpu.memory_space<vmem>>, vector<40x32xf32>
      %c6_151 = arith.constant 6 : index
      %c0_152 = arith.constant 0 : index
      %c0_153 = arith.constant 0 : index
      %365 = vector.load %arg6[%c6_151, %c0_152, %c0_153] : memref<16x32x32xf32, #tpu.memory_space<vmem>>, vector<1x32x32xf32>
      %366 = vector.shape_cast %365 : vector<1x32x32xf32> to vector<32x32xf32>
      %cst_154 = arith.constant dense<0.000000e+00> : vector<40x32xf32>
      %367 = tpu.matmul %364, %366, %cst_154 {dimension_numbers = #tpu.dot_dimension_numbers<[1], [0], [0], [1], [0, 0, 1, 1], [], []>} : vector<40x32xf32>, vector<32x32xf32>, vector<40x32xf32> -> vector<40x32xf32>
      %368 = arith.addf %363, %367 : vector<40x32xf32>
      %c7 = arith.constant 7 : index
      %c0_155 = arith.constant 0 : index
      %369 = vector.load %arg22[%c7, %c0_155] : memref<56x32xf32, #tpu.memory_space<vmem>>, vector<40x32xf32>
      %c7_156 = arith.constant 7 : index
      %c0_157 = arith.constant 0 : index
      %c0_158 = arith.constant 0 : index
      %370 = vector.load %arg6[%c7_156, %c0_157, %c0_158] : memref<16x32x32xf32, #tpu.memory_space<vmem>>, vector<1x32x32xf32>
      %371 = vector.shape_cast %370 : vector<1x32x32xf32> to vector<32x32xf32>
      %cst_159 = arith.constant dense<0.000000e+00> : vector<40x32xf32>
      %372 = tpu.matmul %369, %371, %cst_159 {dimension_numbers = #tpu.dot_dimension_numbers<[1], [0], [0], [1], [0, 0, 1, 1], [], []>} : vector<40x32xf32>, vector<32x32xf32>, vector<40x32xf32> -> vector<40x32xf32>
      %373 = arith.addf %368, %372 : vector<40x32xf32>
      %c8_160 = arith.constant 8 : index
      %c0_161 = arith.constant 0 : index
      %374 = vector.load %arg22[%c8_160, %c0_161] : memref<56x32xf32, #tpu.memory_space<vmem>>, vector<40x32xf32>
      %c8_162 = arith.constant 8 : index
      %c0_163 = arith.constant 0 : index
      %c0_164 = arith.constant 0 : index
      %375 = vector.load %arg6[%c8_162, %c0_163, %c0_164] : memref<16x32x32xf32, #tpu.memory_space<vmem>>, vector<1x32x32xf32>
      %376 = vector.shape_cast %375 : vector<1x32x32xf32> to vector<32x32xf32>
      %cst_165 = arith.constant dense<0.000000e+00> : vector<40x32xf32>
      %377 = tpu.matmul %374, %376, %cst_165 {dimension_numbers = #tpu.dot_dimension_numbers<[1], [0], [0], [1], [0, 0, 1, 1], [], []>} : vector<40x32xf32>, vector<32x32xf32>, vector<40x32xf32> -> vector<40x32xf32>
      %378 = arith.addf %373, %377 : vector<40x32xf32>
      %c9 = arith.constant 9 : index
      %c0_166 = arith.constant 0 : index
      %379 = vector.load %arg22[%c9, %c0_166] : memref<56x32xf32, #tpu.memory_space<vmem>>, vector<40x32xf32>
      %c9_167 = arith.constant 9 : index
      %c0_168 = arith.constant 0 : index
      %c0_169 = arith.constant 0 : index
      %380 = vector.load %arg6[%c9_167, %c0_168, %c0_169] : memref<16x32x32xf32, #tpu.memory_space<vmem>>, vector<1x32x32xf32>
      %381 = vector.shape_cast %380 : vector<1x32x32xf32> to vector<32x32xf32>
      %cst_170 = arith.constant dense<0.000000e+00> : vector<40x32xf32>
      %382 = tpu.matmul %379, %381, %cst_170 {dimension_numbers = #tpu.dot_dimension_numbers<[1], [0], [0], [1], [0, 0, 1, 1], [], []>} : vector<40x32xf32>, vector<32x32xf32>, vector<40x32xf32> -> vector<40x32xf32>
      %383 = arith.addf %378, %382 : vector<40x32xf32>
      %c10 = arith.constant 10 : index
      %c0_171 = arith.constant 0 : index
      %384 = vector.load %arg22[%c10, %c0_171] : memref<56x32xf32, #tpu.memory_space<vmem>>, vector<40x32xf32>
      %c10_172 = arith.constant 10 : index
      %c0_173 = arith.constant 0 : index
      %c0_174 = arith.constant 0 : index
      %385 = vector.load %arg6[%c10_172, %c0_173, %c0_174] : memref<16x32x32xf32, #tpu.memory_space<vmem>>, vector<1x32x32xf32>
      %386 = vector.shape_cast %385 : vector<1x32x32xf32> to vector<32x32xf32>
      %cst_175 = arith.constant dense<0.000000e+00> : vector<40x32xf32>
      %387 = tpu.matmul %384, %386, %cst_175 {dimension_numbers = #tpu.dot_dimension_numbers<[1], [0], [0], [1], [0, 0, 1, 1], [], []>} : vector<40x32xf32>, vector<32x32xf32>, vector<40x32xf32> -> vector<40x32xf32>
      %388 = arith.addf %383, %387 : vector<40x32xf32>
      %c11 = arith.constant 11 : index
      %c0_176 = arith.constant 0 : index
      %389 = vector.load %arg22[%c11, %c0_176] : memref<56x32xf32, #tpu.memory_space<vmem>>, vector<40x32xf32>
      %c11_177 = arith.constant 11 : index
      %c0_178 = arith.constant 0 : index
      %c0_179 = arith.constant 0 : index
      %390 = vector.load %arg6[%c11_177, %c0_178, %c0_179] : memref<16x32x32xf32, #tpu.memory_space<vmem>>, vector<1x32x32xf32>
      %391 = vector.shape_cast %390 : vector<1x32x32xf32> to vector<32x32xf32>
      %cst_180 = arith.constant dense<0.000000e+00> : vector<40x32xf32>
      %392 = tpu.matmul %389, %391, %cst_180 {dimension_numbers = #tpu.dot_dimension_numbers<[1], [0], [0], [1], [0, 0, 1, 1], [], []>} : vector<40x32xf32>, vector<32x32xf32>, vector<40x32xf32> -> vector<40x32xf32>
      %393 = arith.addf %388, %392 : vector<40x32xf32>
      %c12 = arith.constant 12 : index
      %c0_181 = arith.constant 0 : index
      %394 = vector.load %arg22[%c12, %c0_181] : memref<56x32xf32, #tpu.memory_space<vmem>>, vector<40x32xf32>
      %c12_182 = arith.constant 12 : index
      %c0_183 = arith.constant 0 : index
      %c0_184 = arith.constant 0 : index
      %395 = vector.load %arg6[%c12_182, %c0_183, %c0_184] : memref<16x32x32xf32, #tpu.memory_space<vmem>>, vector<1x32x32xf32>
      %396 = vector.shape_cast %395 : vector<1x32x32xf32> to vector<32x32xf32>
      %cst_185 = arith.constant dense<0.000000e+00> : vector<40x32xf32>
      %397 = tpu.matmul %394, %396, %cst_185 {dimension_numbers = #tpu.dot_dimension_numbers<[1], [0], [0], [1], [0, 0, 1, 1], [], []>} : vector<40x32xf32>, vector<32x32xf32>, vector<40x32xf32> -> vector<40x32xf32>
      %398 = arith.addf %393, %397 : vector<40x32xf32>
      %c13 = arith.constant 13 : index
      %c0_186 = arith.constant 0 : index
      %399 = vector.load %arg22[%c13, %c0_186] : memref<56x32xf32, #tpu.memory_space<vmem>>, vector<40x32xf32>
      %c13_187 = arith.constant 13 : index
      %c0_188 = arith.constant 0 : index
      %c0_189 = arith.constant 0 : index
      %400 = vector.load %arg6[%c13_187, %c0_188, %c0_189] : memref<16x32x32xf32, #tpu.memory_space<vmem>>, vector<1x32x32xf32>
      %401 = vector.shape_cast %400 : vector<1x32x32xf32> to vector<32x32xf32>
      %cst_190 = arith.constant dense<0.000000e+00> : vector<40x32xf32>
      %402 = tpu.matmul %399, %401, %cst_190 {dimension_numbers = #tpu.dot_dimension_numbers<[1], [0], [0], [1], [0, 0, 1, 1], [], []>} : vector<40x32xf32>, vector<32x32xf32>, vector<40x32xf32> -> vector<40x32xf32>
      %403 = arith.addf %398, %402 : vector<40x32xf32>
      %c14 = arith.constant 14 : index
      %c0_191 = arith.constant 0 : index
      %404 = vector.load %arg22[%c14, %c0_191] : memref<56x32xf32, #tpu.memory_space<vmem>>, vector<40x32xf32>
      %c14_192 = arith.constant 14 : index
      %c0_193 = arith.constant 0 : index
      %c0_194 = arith.constant 0 : index
      %405 = vector.load %arg6[%c14_192, %c0_193, %c0_194] : memref<16x32x32xf32, #tpu.memory_space<vmem>>, vector<1x32x32xf32>
      %406 = vector.shape_cast %405 : vector<1x32x32xf32> to vector<32x32xf32>
      %cst_195 = arith.constant dense<0.000000e+00> : vector<40x32xf32>
      %407 = tpu.matmul %404, %406, %cst_195 {dimension_numbers = #tpu.dot_dimension_numbers<[1], [0], [0], [1], [0, 0, 1, 1], [], []>} : vector<40x32xf32>, vector<32x32xf32>, vector<40x32xf32> -> vector<40x32xf32>
      %408 = arith.addf %403, %407 : vector<40x32xf32>
      %c15 = arith.constant 15 : index
      %c0_196 = arith.constant 0 : index
      %409 = vector.load %arg22[%c15, %c0_196] : memref<56x32xf32, #tpu.memory_space<vmem>>, vector<40x32xf32>
      %c15_197 = arith.constant 15 : index
      %c0_198 = arith.constant 0 : index
      %c0_199 = arith.constant 0 : index
      %410 = vector.load %arg6[%c15_197, %c0_198, %c0_199] : memref<16x32x32xf32, #tpu.memory_space<vmem>>, vector<1x32x32xf32>
      %411 = vector.shape_cast %410 : vector<1x32x32xf32> to vector<32x32xf32>
      %cst_200 = arith.constant dense<0.000000e+00> : vector<40x32xf32>
      %412 = tpu.matmul %409, %411, %cst_200 {dimension_numbers = #tpu.dot_dimension_numbers<[1], [0], [0], [1], [0, 0, 1, 1], [], []>} : vector<40x32xf32>, vector<32x32xf32>, vector<40x32xf32> -> vector<40x32xf32>
      %413 = arith.addf %408, %412 : vector<40x32xf32>
      %c0_201 = arith.constant 0 : index
      %c0_202 = arith.constant 0 : index
      %414 = vector.load %arg7[%c0_201, %c0_202] : memref<1x32xf32, #tpu.memory_space<vmem>>, vector<1x32xf32>
      %415 = vector.broadcast %414 : vector<1x32xf32> to vector<40x32xf32>
      %416 = arith.addf %413, %415 : vector<40x32xf32>
      %cst_203 = arith.constant 5.000000e-01 : f32
      %417 = vector.broadcast %cst_203 : f32 to vector<40x32xf32>
      %418 = arith.mulf %417, %416 : vector<40x32xf32>
      %cst_204 = arith.constant 4.471500e-02 : f32
      %419 = vector.broadcast %cst_204 : f32 to vector<40x32xf32>
      %420 = arith.mulf %419, %416 : vector<40x32xf32>
      %421 = arith.mulf %420, %416 : vector<40x32xf32>
      %422 = arith.mulf %421, %416 : vector<40x32xf32>
      %423 = arith.addf %416, %422 : vector<40x32xf32>
      %cst_205 = arith.constant 0.797884583 : f32
      %424 = vector.broadcast %cst_205 : f32 to vector<40x32xf32>
      %425 = arith.mulf %424, %423 : vector<40x32xf32>
      %426 = math.tanh %425 : vector<40x32xf32>
      %cst_206 = arith.constant 1.000000e+00 : f32
      %427 = vector.broadcast %cst_206 : f32 to vector<40x32xf32>
      %428 = arith.addf %427, %426 : vector<40x32xf32>
      %429 = arith.mulf %418, %428 : vector<40x32xf32>
      %430 = arith.addf %331, %429 : vector<40x32xf32>
      %c0_207 = arith.constant 0 : index
      %c0_208 = arith.constant 0 : index
      %431 = vector.load %arg21[%c0_207, %c0_208] : memref<80x32xf32, #tpu.memory_space<vmem>>, vector<40x32xf32>
      tpu.vector_store %arg21[%c0_207, %c0_208], %430 {strides = array<i32>} : memref<80x32xf32, #tpu.memory_space<vmem>>, vector<40x32xf32>,
      %c1_209 = arith.constant 1 : index
      %c0_210 = arith.constant 0 : index
      %c0_211 = arith.constant 0 : index
      %432 = vector.load %arg1[%c1_209, %c0_210, %c0_211] : memref<2x40x32xf32, #tpu.memory_space<vmem>>, vector<1x40x32xf32>
      %433 = vector.shape_cast %432 : vector<1x40x32xf32> to vector<40x32xf32>
      %c0_212 = arith.constant 0 : index
      %c0_213 = arith.constant 0 : index
      %434 = vector.load %arg2[%c0_212, %c0_213] : memref<1x32xf32, #tpu.memory_space<vmem>>, vector<1x32xf32>
      %c0_214 = arith.constant 0 : index
      %c0_215 = arith.constant 0 : index
      %435 = vector.load %arg3[%c0_214, %c0_215] : memref<1x32xf32, #tpu.memory_space<vmem>>, vector<1x32xf32>
      %cst_216 = arith.constant dense<0.000000e+00> : vector<40xf32>
      %436 = vector.multi_reduction <add>, %433, %cst_216 [1] : vector<40x32xf32> to vector<40xf32>
      %437 = vector.shape_cast %436 : vector<40xf32> to vector<40x1xf32>
      %cst_217 = arith.constant 3.200000e+01 : f32
      %438 = vector.broadcast %cst_217 : f32 to vector<40x1xf32>
      %439 = arith.divf %437, %438 : vector<40x1xf32>
      %440 = vector.broadcast %439 : vector<40x1xf32> to vector<40x32xf32>
      %441 = arith.subf %433, %440 : vector<40x32xf32>
      %442 = arith.mulf %441, %441 : vector<40x32xf32>
      %cst_218 = arith.constant dense<0.000000e+00> : vector<40xf32>
      %443 = vector.multi_reduction <add>, %442, %cst_218 [1] : vector<40x32xf32> to vector<40xf32>
      %444 = vector.shape_cast %443 : vector<40xf32> to vector<40x1xf32>
      %cst_219 = arith.constant 3.200000e+01 : f32
      %445 = vector.broadcast %cst_219 : f32 to vector<40x1xf32>
      %446 = arith.divf %444, %445 : vector<40x1xf32>
      %cst_220 = arith.constant 9.99999974E-6 : f32
      %447 = vector.broadcast %cst_220 : f32 to vector<40x1xf32>
      %448 = arith.addf %446, %447 : vector<40x1xf32>
      %449 = math.rsqrt %448 : vector<40x1xf32>
      %450 = vector.broadcast %449 : vector<40x1xf32> to vector<40x32xf32>
      %451 = arith.mulf %441, %450 : vector<40x32xf32>
      %452 = vector.broadcast %434 : vector<1x32xf32> to vector<40x32xf32>
      %453 = arith.mulf %451, %452 : vector<40x32xf32>
      %454 = vector.broadcast %435 : vector<1x32xf32> to vector<40x32xf32>
      %455 = arith.addf %453, %454 : vector<40x32xf32>
      %c0_221 = arith.constant 0 : index
      %c0_222 = arith.constant 0 : index
      %456 = vector.load %arg4[%c0_221, %c0_222] : memref<32x32xf32, #tpu.memory_space<vmem>>, vector<32x32xf32>
      %cst_223 = arith.constant dense<0.000000e+00> : vector<40x32xf32>
      %457 = tpu.matmul %455, %456, %cst_223 {dimension_numbers = #tpu.dot_dimension_numbers<[1], [0], [0], [1], [0, 0, 1, 1], [], []>} : vector<40x32xf32>, vector<32x32xf32>, vector<40x32xf32> -> vector<40x32xf32>
      %c0_224 = arith.constant 0 : index
      %c0_225 = arith.constant 0 : index
      %458 = vector.load %arg5[%c0_224, %c0_225] : memref<1x32xf32, #tpu.memory_space<vmem>>, vector<1x32xf32>
      %459 = vector.broadcast %458 : vector<1x32xf32> to vector<40x32xf32>
      %460 = arith.addf %457, %459 : vector<40x32xf32>
      %461 = vector.broadcast %296 : vector<40x1xf32> to vector<40x32xf32>
      %462 = arith.mulf %460, %461 : vector<40x32xf32>
      %c8_226 = arith.constant 8 : index
      %c0_227 = arith.constant 0 : index
      %463 = vector.load %arg22[%c8_226, %c0_227] : memref<56x32xf32, #tpu.memory_space<vmem>>, vector<40x32xf32>
      tpu.vector_store %arg22[%c8_226, %c0_227], %462 {strides = array<i32>} : memref<56x32xf32, #tpu.memory_space<vmem>>, vector<40x32xf32>,
      %cst_228 = arith.constant 0.000000e+00 : f32
      %464 = vector.broadcast %cst_228 : f32 to vector<40x32xf32>
      %c0_229 = arith.constant 0 : index
      %c0_230 = arith.constant 0 : index
      %465 = vector.load %arg22[%c0_229, %c0_230] : memref<56x32xf32, #tpu.memory_space<vmem>>, vector<40x32xf32>
      %c0_231 = arith.constant 0 : index
      %c0_232 = arith.constant 0 : index
      %c0_233 = arith.constant 0 : index
      %466 = vector.load %arg6[%c0_231, %c0_232, %c0_233] : memref<16x32x32xf32, #tpu.memory_space<vmem>>, vector<1x32x32xf32>
      %467 = vector.shape_cast %466 : vector<1x32x32xf32> to vector<32x32xf32>
      %cst_234 = arith.constant dense<0.000000e+00> : vector<40x32xf32>
      %468 = tpu.matmul %465, %467, %cst_234 {dimension_numbers = #tpu.dot_dimension_numbers<[1], [0], [0], [1], [0, 0, 1, 1], [], []>} : vector<40x32xf32>, vector<32x32xf32>, vector<40x32xf32> -> vector<40x32xf32>
      %469 = arith.addf %464, %468 : vector<40x32xf32>
      %c1_235 = arith.constant 1 : index
      %c0_236 = arith.constant 0 : index
      %470 = vector.load %arg22[%c1_235, %c0_236] : memref<56x32xf32, #tpu.memory_space<vmem>>, vector<40x32xf32>
      %c1_237 = arith.constant 1 : index
      %c0_238 = arith.constant 0 : index
      %c0_239 = arith.constant 0 : index
      %471 = vector.load %arg6[%c1_237, %c0_238, %c0_239] : memref<16x32x32xf32, #tpu.memory_space<vmem>>, vector<1x32x32xf32>
      %472 = vector.shape_cast %471 : vector<1x32x32xf32> to vector<32x32xf32>
      %cst_240 = arith.constant dense<0.000000e+00> : vector<40x32xf32>
      %473 = tpu.matmul %470, %472, %cst_240 {dimension_numbers = #tpu.dot_dimension_numbers<[1], [0], [0], [1], [0, 0, 1, 1], [], []>} : vector<40x32xf32>, vector<32x32xf32>, vector<40x32xf32> -> vector<40x32xf32>
      %474 = arith.addf %469, %473 : vector<40x32xf32>
      %c2_241 = arith.constant 2 : index
      %c0_242 = arith.constant 0 : index
      %475 = vector.load %arg22[%c2_241, %c0_242] : memref<56x32xf32, #tpu.memory_space<vmem>>, vector<40x32xf32>
      %c2_243 = arith.constant 2 : index
      %c0_244 = arith.constant 0 : index
      %c0_245 = arith.constant 0 : index
      %476 = vector.load %arg6[%c2_243, %c0_244, %c0_245] : memref<16x32x32xf32, #tpu.memory_space<vmem>>, vector<1x32x32xf32>
      %477 = vector.shape_cast %476 : vector<1x32x32xf32> to vector<32x32xf32>
      %cst_246 = arith.constant dense<0.000000e+00> : vector<40x32xf32>
      %478 = tpu.matmul %475, %477, %cst_246 {dimension_numbers = #tpu.dot_dimension_numbers<[1], [0], [0], [1], [0, 0, 1, 1], [], []>} : vector<40x32xf32>, vector<32x32xf32>, vector<40x32xf32> -> vector<40x32xf32>
      %479 = arith.addf %474, %478 : vector<40x32xf32>
      %c3_247 = arith.constant 3 : index
      %c0_248 = arith.constant 0 : index
      %480 = vector.load %arg22[%c3_247, %c0_248] : memref<56x32xf32, #tpu.memory_space<vmem>>, vector<40x32xf32>
      %c3_249 = arith.constant 3 : index
      %c0_250 = arith.constant 0 : index
      %c0_251 = arith.constant 0 : index
      %481 = vector.load %arg6[%c3_249, %c0_250, %c0_251] : memref<16x32x32xf32, #tpu.memory_space<vmem>>, vector<1x32x32xf32>
      %482 = vector.shape_cast %481 : vector<1x32x32xf32> to vector<32x32xf32>
      %cst_252 = arith.constant dense<0.000000e+00> : vector<40x32xf32>
      %483 = tpu.matmul %480, %482, %cst_252 {dimension_numbers = #tpu.dot_dimension_numbers<[1], [0], [0], [1], [0, 0, 1, 1], [], []>} : vector<40x32xf32>, vector<32x32xf32>, vector<40x32xf32> -> vector<40x32xf32>
      %484 = arith.addf %479, %483 : vector<40x32xf32>
      %c4_253 = arith.constant 4 : index
      %c0_254 = arith.constant 0 : index
      %485 = vector.load %arg22[%c4_253, %c0_254] : memref<56x32xf32, #tpu.memory_space<vmem>>, vector<40x32xf32>
      %c4_255 = arith.constant 4 : index
      %c0_256 = arith.constant 0 : index
      %c0_257 = arith.constant 0 : index
      %486 = vector.load %arg6[%c4_255, %c0_256, %c0_257] : memref<16x32x32xf32, #tpu.memory_space<vmem>>, vector<1x32x32xf32>
      %487 = vector.shape_cast %486 : vector<1x32x32xf32> to vector<32x32xf32>
      %cst_258 = arith.constant dense<0.000000e+00> : vector<40x32xf32>
      %488 = tpu.matmul %485, %487, %cst_258 {dimension_numbers = #tpu.dot_dimension_numbers<[1], [0], [0], [1], [0, 0, 1, 1], [], []>} : vector<40x32xf32>, vector<32x32xf32>, vector<40x32xf32> -> vector<40x32xf32>
      %489 = arith.addf %484, %488 : vector<40x32xf32>
      %c5_259 = arith.constant 5 : index
      %c0_260 = arith.constant 0 : index
      %490 = vector.load %arg22[%c5_259, %c0_260] : memref<56x32xf32, #tpu.memory_space<vmem>>, vector<40x32xf32>
      %c5_261 = arith.constant 5 : index
      %c0_262 = arith.constant 0 : index
      %c0_263 = arith.constant 0 : index
      %491 = vector.load %arg6[%c5_261, %c0_262, %c0_263] : memref<16x32x32xf32, #tpu.memory_space<vmem>>, vector<1x32x32xf32>
      %492 = vector.shape_cast %491 : vector<1x32x32xf32> to vector<32x32xf32>
      %cst_264 = arith.constant dense<0.000000e+00> : vector<40x32xf32>
      %493 = tpu.matmul %490, %492, %cst_264 {dimension_numbers = #tpu.dot_dimension_numbers<[1], [0], [0], [1], [0, 0, 1, 1], [], []>} : vector<40x32xf32>, vector<32x32xf32>, vector<40x32xf32> -> vector<40x32xf32>
      %494 = arith.addf %489, %493 : vector<40x32xf32>
      %c6_265 = arith.constant 6 : index
      %c0_266 = arith.constant 0 : index
      %495 = vector.load %arg22[%c6_265, %c0_266] : memref<56x32xf32, #tpu.memory_space<vmem>>, vector<40x32xf32>
      %c6_267 = arith.constant 6 : index
      %c0_268 = arith.constant 0 : index
      %c0_269 = arith.constant 0 : index
      %496 = vector.load %arg6[%c6_267, %c0_268, %c0_269] : memref<16x32x32xf32, #tpu.memory_space<vmem>>, vector<1x32x32xf32>
      %497 = vector.shape_cast %496 : vector<1x32x32xf32> to vector<32x32xf32>
      %cst_270 = arith.constant dense<0.000000e+00> : vector<40x32xf32>
      %498 = tpu.matmul %495, %497, %cst_270 {dimension_numbers = #tpu.dot_dimension_numbers<[1], [0], [0], [1], [0, 0, 1, 1], [], []>} : vector<40x32xf32>, vector<32x32xf32>, vector<40x32xf32> -> vector<40x32xf32>
      %499 = arith.addf %494, %498 : vector<40x32xf32>
      %c7_271 = arith.constant 7 : index
      %c0_272 = arith.constant 0 : index
      %500 = vector.load %arg22[%c7_271, %c0_272] : memref<56x32xf32, #tpu.memory_space<vmem>>, vector<40x32xf32>
      %c7_273 = arith.constant 7 : index
      %c0_274 = arith.constant 0 : index
      %c0_275 = arith.constant 0 : index
      %501 = vector.load %arg6[%c7_273, %c0_274, %c0_275] : memref<16x32x32xf32, #tpu.memory_space<vmem>>, vector<1x32x32xf32>
      %502 = vector.shape_cast %501 : vector<1x32x32xf32> to vector<32x32xf32>
      %cst_276 = arith.constant dense<0.000000e+00> : vector<40x32xf32>
      %503 = tpu.matmul %500, %502, %cst_276 {dimension_numbers = #tpu.dot_dimension_numbers<[1], [0], [0], [1], [0, 0, 1, 1], [], []>} : vector<40x32xf32>, vector<32x32xf32>, vector<40x32xf32> -> vector<40x32xf32>
      %504 = arith.addf %499, %503 : vector<40x32xf32>
      %c8_277 = arith.constant 8 : index
      %c0_278 = arith.constant 0 : index
      %505 = vector.load %arg22[%c8_277, %c0_278] : memref<56x32xf32, #tpu.memory_space<vmem>>, vector<40x32xf32>
      %c8_279 = arith.constant 8 : index
      %c0_280 = arith.constant 0 : index
      %c0_281 = arith.constant 0 : index
      %506 = vector.load %arg6[%c8_279, %c0_280, %c0_281] : memref<16x32x32xf32, #tpu.memory_space<vmem>>, vector<1x32x32xf32>
      %507 = vector.shape_cast %506 : vector<1x32x32xf32> to vector<32x32xf32>
      %cst_282 = arith.constant dense<0.000000e+00> : vector<40x32xf32>
      %508 = tpu.matmul %505, %507, %cst_282 {dimension_numbers = #tpu.dot_dimension_numbers<[1], [0], [0], [1], [0, 0, 1, 1], [], []>} : vector<40x32xf32>, vector<32x32xf32>, vector<40x32xf32> -> vector<40x32xf32>
      %509 = arith.addf %504, %508 : vector<40x32xf32>
      %c9_283 = arith.constant 9 : index
      %c0_284 = arith.constant 0 : index
      %510 = vector.load %arg22[%c9_283, %c0_284] : memref<56x32xf32, #tpu.memory_space<vmem>>, vector<40x32xf32>
      %c9_285 = arith.constant 9 : index
      %c0_286 = arith.constant 0 : index
      %c0_287 = arith.constant 0 : index
      %511 = vector.load %arg6[%c9_285, %c0_286, %c0_287] : memref<16x32x32xf32, #tpu.memory_space<vmem>>, vector<1x32x32xf32>
      %512 = vector.shape_cast %511 : vector<1x32x32xf32> to vector<32x32xf32>
      %cst_288 = arith.constant dense<0.000000e+00> : vector<40x32xf32>
      %513 = tpu.matmul %510, %512, %cst_288 {dimension_numbers = #tpu.dot_dimension_numbers<[1], [0], [0], [1], [0, 0, 1, 1], [], []>} : vector<40x32xf32>, vector<32x32xf32>, vector<40x32xf32> -> vector<40x32xf32>
      %514 = arith.addf %509, %513 : vector<40x32xf32>
      %c10_289 = arith.constant 10 : index
      %c0_290 = arith.constant 0 : index
      %515 = vector.load %arg22[%c10_289, %c0_290] : memref<56x32xf32, #tpu.memory_space<vmem>>, vector<40x32xf32>
      %c10_291 = arith.constant 10 : index
      %c0_292 = arith.constant 0 : index
      %c0_293 = arith.constant 0 : index
      %516 = vector.load %arg6[%c10_291, %c0_292, %c0_293] : memref<16x32x32xf32, #tpu.memory_space<vmem>>, vector<1x32x32xf32>
      %517 = vector.shape_cast %516 : vector<1x32x32xf32> to vector<32x32xf32>
      %cst_294 = arith.constant dense<0.000000e+00> : vector<40x32xf32>
      %518 = tpu.matmul %515, %517, %cst_294 {dimension_numbers = #tpu.dot_dimension_numbers<[1], [0], [0], [1], [0, 0, 1, 1], [], []>} : vector<40x32xf32>, vector<32x32xf32>, vector<40x32xf32> -> vector<40x32xf32>
      %519 = arith.addf %514, %518 : vector<40x32xf32>
      %c11_295 = arith.constant 11 : index
      %c0_296 = arith.constant 0 : index
      %520 = vector.load %arg22[%c11_295, %c0_296] : memref<56x32xf32, #tpu.memory_space<vmem>>, vector<40x32xf32>
      %c11_297 = arith.constant 11 : index
      %c0_298 = arith.constant 0 : index
      %c0_299 = arith.constant 0 : index
      %521 = vector.load %arg6[%c11_297, %c0_298, %c0_299] : memref<16x32x32xf32, #tpu.memory_space<vmem>>, vector<1x32x32xf32>
      %522 = vector.shape_cast %521 : vector<1x32x32xf32> to vector<32x32xf32>
      %cst_300 = arith.constant dense<0.000000e+00> : vector<40x32xf32>
      %523 = tpu.matmul %520, %522, %cst_300 {dimension_numbers = #tpu.dot_dimension_numbers<[1], [0], [0], [1], [0, 0, 1, 1], [], []>} : vector<40x32xf32>, vector<32x32xf32>, vector<40x32xf32> -> vector<40x32xf32>
      %524 = arith.addf %519, %523 : vector<40x32xf32>
      %c12_301 = arith.constant 12 : index
      %c0_302 = arith.constant 0 : index
      %525 = vector.load %arg22[%c12_301, %c0_302] : memref<56x32xf32, #tpu.memory_space<vmem>>, vector<40x32xf32>
      %c12_303 = arith.constant 12 : index
      %c0_304 = arith.constant 0 : index
      %c0_305 = arith.constant 0 : index
      %526 = vector.load %arg6[%c12_303, %c0_304, %c0_305] : memref<16x32x32xf32, #tpu.memory_space<vmem>>, vector<1x32x32xf32>
      %527 = vector.shape_cast %526 : vector<1x32x32xf32> to vector<32x32xf32>
      %cst_306 = arith.constant dense<0.000000e+00> : vector<40x32xf32>
      %528 = tpu.matmul %525, %527, %cst_306 {dimension_numbers = #tpu.dot_dimension_numbers<[1], [0], [0], [1], [0, 0, 1, 1], [], []>} : vector<40x32xf32>, vector<32x32xf32>, vector<40x32xf32> -> vector<40x32xf32>
      %529 = arith.addf %524, %528 : vector<40x32xf32>
      %c13_307 = arith.constant 13 : index
      %c0_308 = arith.constant 0 : index
      %530 = vector.load %arg22[%c13_307, %c0_308] : memref<56x32xf32, #tpu.memory_space<vmem>>, vector<40x32xf32>
      %c13_309 = arith.constant 13 : index
      %c0_310 = arith.constant 0 : index
      %c0_311 = arith.constant 0 : index
      %531 = vector.load %arg6[%c13_309, %c0_310, %c0_311] : memref<16x32x32xf32, #tpu.memory_space<vmem>>, vector<1x32x32xf32>
      %532 = vector.shape_cast %531 : vector<1x32x32xf32> to vector<32x32xf32>
      %cst_312 = arith.constant dense<0.000000e+00> : vector<40x32xf32>
      %533 = tpu.matmul %530, %532, %cst_312 {dimension_numbers = #tpu.dot_dimension_numbers<[1], [0], [0], [1], [0, 0, 1, 1], [], []>} : vector<40x32xf32>, vector<32x32xf32>, vector<40x32xf32> -> vector<40x32xf32>
      %534 = arith.addf %529, %533 : vector<40x32xf32>
      %c14_313 = arith.constant 14 : index
      %c0_314 = arith.constant 0 : index
      %535 = vector.load %arg22[%c14_313, %c0_314] : memref<56x32xf32, #tpu.memory_space<vmem>>, vector<40x32xf32>
      %c14_315 = arith.constant 14 : index
      %c0_316 = arith.constant 0 : index
      %c0_317 = arith.constant 0 : index
      %536 = vector.load %arg6[%c14_315, %c0_316, %c0_317] : memref<16x32x32xf32, #tpu.memory_space<vmem>>, vector<1x32x32xf32>
      %537 = vector.shape_cast %536 : vector<1x32x32xf32> to vector<32x32xf32>
      %cst_318 = arith.constant dense<0.000000e+00> : vector<40x32xf32>
      %538 = tpu.matmul %535, %537, %cst_318 {dimension_numbers = #tpu.dot_dimension_numbers<[1], [0], [0], [1], [0, 0, 1, 1], [], []>} : vector<40x32xf32>, vector<32x32xf32>, vector<40x32xf32> -> vector<40x32xf32>
      %539 = arith.addf %534, %538 : vector<40x32xf32>
      %c15_319 = arith.constant 15 : index
      %c0_320 = arith.constant 0 : index
      %540 = vector.load %arg22[%c15_319, %c0_320] : memref<56x32xf32, #tpu.memory_space<vmem>>, vector<40x32xf32>
      %c15_321 = arith.constant 15 : index
      %c0_322 = arith.constant 0 : index
      %c0_323 = arith.constant 0 : index
      %541 = vector.load %arg6[%c15_321, %c0_322, %c0_323] : memref<16x32x32xf32, #tpu.memory_space<vmem>>, vector<1x32x32xf32>
      %542 = vector.shape_cast %541 : vector<1x32x32xf32> to vector<32x32xf32>
      %cst_324 = arith.constant dense<0.000000e+00> : vector<40x32xf32>
      %543 = tpu.matmul %540, %542, %cst_324 {dimension_numbers = #tpu.dot_dimension_numbers<[1], [0], [0], [1], [0, 0, 1, 1], [], []>} : vector<40x32xf32>, vector<32x32xf32>, vector<40x32xf32> -> vector<40x32xf32>
      %544 = arith.addf %539, %543 : vector<40x32xf32>
      %c0_325 = arith.constant 0 : index
      %c0_326 = arith.constant 0 : index
      %545 = vector.load %arg7[%c0_325, %c0_326] : memref<1x32xf32, #tpu.memory_space<vmem>>, vector<1x32xf32>
      %546 = vector.broadcast %545 : vector<1x32xf32> to vector<40x32xf32>
      %547 = arith.addf %544, %546 : vector<40x32xf32>
      %cst_327 = arith.constant 5.000000e-01 : f32
      %548 = vector.broadcast %cst_327 : f32 to vector<40x32xf32>
      %549 = arith.mulf %548, %547 : vector<40x32xf32>
      %cst_328 = arith.constant 4.471500e-02 : f32
      %550 = vector.broadcast %cst_328 : f32 to vector<40x32xf32>
      %551 = arith.mulf %550, %547 : vector<40x32xf32>
      %552 = arith.mulf %551, %547 : vector<40x32xf32>
      %553 = arith.mulf %552, %547 : vector<40x32xf32>
      %554 = arith.addf %547, %553 : vector<40x32xf32>
      %cst_329 = arith.constant 0.797884583 : f32
      %555 = vector.broadcast %cst_329 : f32 to vector<40x32xf32>
      %556 = arith.mulf %555, %554 : vector<40x32xf32>
      %557 = math.tanh %556 : vector<40x32xf32>
      %cst_330 = arith.constant 1.000000e+00 : f32
      %558 = vector.broadcast %cst_330 : f32 to vector<40x32xf32>
      %559 = arith.addf %558, %557 : vector<40x32xf32>
      %560 = arith.mulf %549, %559 : vector<40x32xf32>
      %561 = arith.addf %462, %560 : vector<40x32xf32>
      %c40_331 = arith.constant 40 : index
      %c0_332 = arith.constant 0 : index
      %562 = vector.load %arg21[%c40_331, %c0_332] : memref<80x32xf32, #tpu.memory_space<vmem>>, vector<40x32xf32>
      tpu.vector_store %arg21[%c40_331, %c0_332], %561 {strides = array<i32>} : memref<80x32xf32, #tpu.memory_space<vmem>>, vector<40x32xf32>,
    } else {
    }
    %c0 = arith.constant 0 : index
    %c0_1 = arith.constant 0 : index
    %3 = vector.load %arg21[%c0, %c0_1] : memref<80x32xf32, #tpu.memory_space<vmem>>, vector<80x32xf32>
    %4 = tpu.iota {dimensions = array<i32: 1>} : vector<1x40xi32>
    %c39_i32 = arith.constant 39 : i32
    %5 = vector.broadcast %c39_i32 : i32 to vector<1x40xi32>
    %6 = arith.cmpi slt, %4, %5 : vector<1x40xi32>
    %cst = arith.constant 0.000000e+00 : f32
    %cst_2 = arith.constant -1.000000e+30 : f32
    %7 = vector.broadcast %cst : f32 to vector<1x40xf32>
    %8 = vector.broadcast %cst_2 : f32 to vector<1x40xf32>
    %9 = arith.select %6, %7, %8 : vector<1x40xi1>, vector<1x40xf32>
    %10 = arith.index_cast %arg0 : i32 to index
    %c0_3 = arith.constant 0 : index
    %c0_4 = arith.constant 0 : index
    %11 = vector.load %arg8[%10, %c0_3, %c0_4] : memref<7x1x32xf32, #tpu.memory_space<vmem>>, vector<1x1x32xf32>
    %12 = vector.shape_cast %11 : vector<1x1x32xf32> to vector<1x32xf32>
    %13 = arith.index_cast %arg0 : i32 to index
    %c0_5 = arith.constant 0 : index
    %c0_6 = arith.constant 0 : index
    %14 = vector.load %arg9[%13, %c0_5, %c0_6] : memref<7x1x32xf32, #tpu.memory_space<vmem>>, vector<1x1x32xf32>
    %15 = vector.shape_cast %14 : vector<1x1x32xf32> to vector<1x32xf32>
    %cst_7 = arith.constant dense<0.000000e+00> : vector<80xf32>
    %16 = vector.multi_reduction <add>, %3, %cst_7 [1] : vector<80x32xf32> to vector<80xf32>
    %17 = vector.shape_cast %16 : vector<80xf32> to vector<80x1xf32>
    %cst_8 = arith.constant 3.200000e+01 : f32
    %18 = vector.broadcast %cst_8 : f32 to vector<80x1xf32>
    %19 = arith.divf %17, %18 : vector<80x1xf32>
    %20 = vector.broadcast %19 : vector<80x1xf32> to vector<80x32xf32>
    %21 = arith.subf %3, %20 : vector<80x32xf32>
    %22 = arith.mulf %21, %21 : vector<80x32xf32>
    %cst_9 = arith.constant dense<0.000000e+00> : vector<80xf32>
    %23 = vector.multi_reduction <add>, %22, %cst_9 [1] : vector<80x32xf32> to vector<80xf32>
    %24 = vector.shape_cast %23 : vector<80xf32> to vector<80x1xf32>
    %cst_10 = arith.constant 3.200000e+01 : f32
    %25 = vector.broadcast %cst_10 : f32 to vector<80x1xf32>
    %26 = arith.divf %24, %25 : vector<80x1xf32>
    %cst_11 = arith.constant 9.99999974E-6 : f32
    %27 = vector.broadcast %cst_11 : f32 to vector<80x1xf32>
    %28 = arith.addf %26, %27 : vector<80x1xf32>
    %29 = math.rsqrt %28 : vector<80x1xf32>
    %30 = vector.broadcast %29 : vector<80x1xf32> to vector<80x32xf32>
    %31 = arith.mulf %21, %30 : vector<80x32xf32>
    %32 = vector.broadcast %12 : vector<1x32xf32> to vector<80x32xf32>
    %33 = arith.mulf %31, %32 : vector<80x32xf32>
    %34 = vector.broadcast %15 : vector<1x32xf32> to vector<80x32xf32>
    %35 = arith.addf %33, %34 : vector<80x32xf32>
    %36 = arith.index_cast %arg0 : i32 to index
    %c0_12 = arith.constant 0 : index
    %c0_13 = arith.constant 0 : index
    %37 = vector.load %arg10[%36, %c0_12, %c0_13] : memref<7x32x96xf32, #tpu.memory_space<vmem>>, vector<1x32x96xf32>
    %38 = vector.shape_cast %37 : vector<1x32x96xf32> to vector<32x96xf32>
    %cst_14 = arith.constant dense<0.000000e+00> : vector<80x96xf32>
    %39 = tpu.matmul %35, %38, %cst_14 {dimension_numbers = #tpu.dot_dimension_numbers<[1], [0], [0], [1], [0, 0, 1, 1], [], []>} : vector<80x32xf32>, vector<32x96xf32>, vector<80x96xf32> -> vector<80x96xf32>
    %40 = arith.index_cast %arg0 : i32 to index
    %c0_15 = arith.constant 0 : index
    %c0_16 = arith.constant 0 : index
    %41 = vector.load %arg11[%40, %c0_15, %c0_16] : memref<7x1x96xf32, #tpu.memory_space<vmem>>, vector<1x1x96xf32>
    %42 = vector.shape_cast %41 : vector<1x1x96xf32> to vector<1x96xf32>
    %43 = vector.broadcast %42 : vector<1x96xf32> to vector<80x96xf32>
    %44 = arith.addf %39, %43 : vector<80x96xf32>
    %45 = arith.index_cast %arg0 : i32 to index
    %c0_17 = arith.constant 0 : index
    %c0_18 = arith.constant 0 : index
    %46 = vector.load %arg12[%45, %c0_17, %c0_18] : memref<7x32x32xf32, #tpu.memory_space<vmem>>, vector<1x32x32xf32>
    %47 = vector.shape_cast %46 : vector<1x32x32xf32> to vector<32x32xf32>
    %48 = arith.index_cast %arg0 : i32 to index
    %c0_19 = arith.constant 0 : index
    %c0_20 = arith.constant 0 : index
    %49 = vector.load %arg13[%48, %c0_19, %c0_20] : memref<7x1x32xf32, #tpu.memory_space<vmem>>, vector<1x1x32xf32>
    %50 = vector.shape_cast %49 : vector<1x1x32xf32> to vector<1x32xf32>
    %51 = vector.extract_strided_slice %44 {offsets = [0, 0], sizes = [40, 32], strides = [1, 1]} : vector<80x96xf32> to vector<40x32xf32>
    %52 = vector.extract_strided_slice %44 {offsets = [0, 32], sizes = [40, 32], strides = [1, 1]} : vector<80x96xf32> to vector<40x32xf32>
    %53 = vector.extract_strided_slice %44 {offsets = [0, 64], sizes = [40, 32], strides = [1, 1]} : vector<80x96xf32> to vector<40x32xf32>
    %cst_21 = arith.constant 0.000000e+00 : f32
    %54 = vector.broadcast %cst_21 : f32 to vector<40x32xf32>
    %55 = vector.extract_strided_slice %51 {offsets = [0, 0], sizes = [40, 8], strides = [1, 1]} : vector<40x32xf32> to vector<40x8xf32>
    %56 = vector.extract_strided_slice %52 {offsets = [0, 0], sizes = [40, 8], strides = [1, 1]} : vector<40x32xf32> to vector<40x8xf32>
    %cst_22 = arith.constant dense<0.000000e+00> : vector<40x40xf32>
    %57 = tpu.matmul %55, %56, %cst_22 {dimension_numbers = #tpu.dot_dimension_numbers<[1], [1], [0], [0], [0, 0, 1, 0], [], []>} : vector<40x8xf32>, vector<40x8xf32>, vector<40x40xf32> -> vector<40x40xf32>
    %58 = vector.broadcast %9 : vector<1x40xf32> to vector<40x40xf32>
    %59 = arith.addf %57, %58 : vector<40x40xf32>
    %cst_23 = arith.constant dense<0xFF800000> : vector<40xf32>
    %60 = vector.multi_reduction <maximumf>, %59, %cst_23 [1] : vector<40x40xf32> to vector<40xf32>
    %61 = vector.shape_cast %60 : vector<40xf32> to vector<40x1xf32>
    %62 = vector.broadcast %61 : vector<40x1xf32> to vector<40x40xf32>
    %63 = arith.subf %59, %62 : vector<40x40xf32>
    %64 = math.exp %63 : vector<40x40xf32>
    %cst_24 = arith.constant dense<0.000000e+00> : vector<40xf32>
    %65 = vector.multi_reduction <add>, %64, %cst_24 [1] : vector<40x40xf32> to vector<40xf32>
    %66 = vector.shape_cast %65 : vector<40xf32> to vector<40x1xf32>
    %67 = tpu.reciprocal %66 {approx = true} : vector<40x1xf32> -> vector<40x1xf32>
    %68 = vector.broadcast %67 : vector<40x1xf32> to vector<40x40xf32>
    %69 = arith.mulf %64, %68 : vector<40x40xf32>
    %70 = vector.extract_strided_slice %53 {offsets = [0, 0], sizes = [40, 8], strides = [1, 1]} : vector<40x32xf32> to vector<40x8xf32>
    %cst_25 = arith.constant dense<0.000000e+00> : vector<40x8xf32>
    %71 = tpu.matmul %69, %70, %cst_25 {dimension_numbers = #tpu.dot_dimension_numbers<[1], [0], [0], [1], [0, 0, 1, 1], [], []>} : vector<40x40xf32>, vector<40x8xf32>, vector<40x8xf32> -> vector<40x8xf32>
    %72 = vector.extract_strided_slice %47 {offsets = [0, 0], sizes = [8, 32], strides = [1, 1]} : vector<32x32xf32> to vector<8x32xf32>
    %cst_26 = arith.constant dense<0.000000e+00> : vector<40x32xf32>
    %73 = tpu.matmul %71, %72, %cst_26 {dimension_numbers = #tpu.dot_dimension_numbers<[1], [0], [0], [1], [0, 0, 1, 1], [], []>} : vector<40x8xf32>, vector<8x32xf32>, vector<40x32xf32> -> vector<40x32xf32>
    %74 = arith.addf %54, %73 : vector<40x32xf32>
    %75 = vector.extract_strided_slice %51 {offsets = [0, 8], sizes = [40, 8], strides = [1, 1]} : vector<40x32xf32> to vector<40x8xf32>
    %76 = vector.extract_strided_slice %52 {offsets = [0, 8], sizes = [40, 8], strides = [1, 1]} : vector<40x32xf32> to vector<40x8xf32>
    %cst_27 = arith.constant dense<0.000000e+00> : vector<40x40xf32>
    %77 = tpu.matmul %75, %76, %cst_27 {dimension_numbers = #tpu.dot_dimension_numbers<[1], [1], [0], [0], [0, 0, 1, 0], [], []>} : vector<40x8xf32>, vector<40x8xf32>, vector<40x40xf32> -> vector<40x40xf32>
    %78 = vector.broadcast %9 : vector<1x40xf32> to vector<40x40xf32>
    %79 = arith.addf %77, %78 : vector<40x40xf32>
    %cst_28 = arith.constant dense<0xFF800000> : vector<40xf32>
    %80 = vector.multi_reduction <maximumf>, %79, %cst_28 [1] : vector<40x40xf32> to vector<40xf32>
    %81 = vector.shape_cast %80 : vector<40xf32> to vector<40x1xf32>
    %82 = vector.broadcast %81 : vector<40x1xf32> to vector<40x40xf32>
    %83 = arith.subf %79, %82 : vector<40x40xf32>
    %84 = math.exp %83 : vector<40x40xf32>
    %cst_29 = arith.constant dense<0.000000e+00> : vector<40xf32>
    %85 = vector.multi_reduction <add>, %84, %cst_29 [1] : vector<40x40xf32> to vector<40xf32>
    %86 = vector.shape_cast %85 : vector<40xf32> to vector<40x1xf32>
    %87 = tpu.reciprocal %86 {approx = true} : vector<40x1xf32> -> vector<40x1xf32>
    %88 = vector.broadcast %87 : vector<40x1xf32> to vector<40x40xf32>
    %89 = arith.mulf %84, %88 : vector<40x40xf32>
    %90 = vector.extract_strided_slice %53 {offsets = [0, 8], sizes = [40, 8], strides = [1, 1]} : vector<40x32xf32> to vector<40x8xf32>
    %cst_30 = arith.constant dense<0.000000e+00> : vector<40x8xf32>
    %91 = tpu.matmul %89, %90, %cst_30 {dimension_numbers = #tpu.dot_dimension_numbers<[1], [0], [0], [1], [0, 0, 1, 1], [], []>} : vector<40x40xf32>, vector<40x8xf32>, vector<40x8xf32> -> vector<40x8xf32>
    %92 = vector.extract_strided_slice %47 {offsets = [8, 0], sizes = [8, 32], strides = [1, 1]} : vector<32x32xf32> to vector<8x32xf32>
    %cst_31 = arith.constant dense<0.000000e+00> : vector<40x32xf32>
    %93 = tpu.matmul %91, %92, %cst_31 {dimension_numbers = #tpu.dot_dimension_numbers<[1], [0], [0], [1], [0, 0, 1, 1], [], []>} : vector<40x8xf32>, vector<8x32xf32>, vector<40x32xf32> -> vector<40x32xf32>
    %94 = arith.addf %74, %93 : vector<40x32xf32>
    %95 = vector.extract_strided_slice %51 {offsets = [0, 16], sizes = [40, 8], strides = [1, 1]} : vector<40x32xf32> to vector<40x8xf32>
    %96 = vector.extract_strided_slice %52 {offsets = [0, 16], sizes = [40, 8], strides = [1, 1]} : vector<40x32xf32> to vector<40x8xf32>
    %cst_32 = arith.constant dense<0.000000e+00> : vector<40x40xf32>
    %97 = tpu.matmul %95, %96, %cst_32 {dimension_numbers = #tpu.dot_dimension_numbers<[1], [1], [0], [0], [0, 0, 1, 0], [], []>} : vector<40x8xf32>, vector<40x8xf32>, vector<40x40xf32> -> vector<40x40xf32>
    %98 = vector.broadcast %9 : vector<1x40xf32> to vector<40x40xf32>
    %99 = arith.addf %97, %98 : vector<40x40xf32>
    %cst_33 = arith.constant dense<0xFF800000> : vector<40xf32>
    %100 = vector.multi_reduction <maximumf>, %99, %cst_33 [1] : vector<40x40xf32> to vector<40xf32>
    %101 = vector.shape_cast %100 : vector<40xf32> to vector<40x1xf32>
    %102 = vector.broadcast %101 : vector<40x1xf32> to vector<40x40xf32>
    %103 = arith.subf %99, %102 : vector<40x40xf32>
    %104 = math.exp %103 : vector<40x40xf32>
    %cst_34 = arith.constant dense<0.000000e+00> : vector<40xf32>
    %105 = vector.multi_reduction <add>, %104, %cst_34 [1] : vector<40x40xf32> to vector<40xf32>
    %106 = vector.shape_cast %105 : vector<40xf32> to vector<40x1xf32>
    %107 = tpu.reciprocal %106 {approx = true} : vector<40x1xf32> -> vector<40x1xf32>
    %108 = vector.broadcast %107 : vector<40x1xf32> to vector<40x40xf32>
    %109 = arith.mulf %104, %108 : vector<40x40xf32>
    %110 = vector.extract_strided_slice %53 {offsets = [0, 16], sizes = [40, 8], strides = [1, 1]} : vector<40x32xf32> to vector<40x8xf32>
    %cst_35 = arith.constant dense<0.000000e+00> : vector<40x8xf32>
    %111 = tpu.matmul %109, %110, %cst_35 {dimension_numbers = #tpu.dot_dimension_numbers<[1], [0], [0], [1], [0, 0, 1, 1], [], []>} : vector<40x40xf32>, vector<40x8xf32>, vector<40x8xf32> -> vector<40x8xf32>
    %112 = vector.extract_strided_slice %47 {offsets = [16, 0], sizes = [8, 32], strides = [1, 1]} : vector<32x32xf32> to vector<8x32xf32>
    %cst_36 = arith.constant dense<0.000000e+00> : vector<40x32xf32>
    %113 = tpu.matmul %111, %112, %cst_36 {dimension_numbers = #tpu.dot_dimension_numbers<[1], [0], [0], [1], [0, 0, 1, 1], [], []>} : vector<40x8xf32>, vector<8x32xf32>, vector<40x32xf32> -> vector<40x32xf32>
    %114 = arith.addf %94, %113 : vector<40x32xf32>
    %115 = vector.extract_strided_slice %51 {offsets = [0, 24], sizes = [40, 8], strides = [1, 1]} : vector<40x32xf32> to vector<40x8xf32>
    %116 = vector.extract_strided_slice %52 {offsets = [0, 24], sizes = [40, 8], strides = [1, 1]} : vector<40x32xf32> to vector<40x8xf32>
    %cst_37 = arith.constant dense<0.000000e+00> : vector<40x40xf32>
    %117 = tpu.matmul %115, %116, %cst_37 {dimension_numbers = #tpu.dot_dimension_numbers<[1], [1], [0], [0], [0, 0, 1, 0], [], []>} : vector<40x8xf32>, vector<40x8xf32>, vector<40x40xf32> -> vector<40x40xf32>
    %118 = vector.broadcast %9 : vector<1x40xf32> to vector<40x40xf32>
    %119 = arith.addf %117, %118 : vector<40x40xf32>
    %cst_38 = arith.constant dense<0xFF800000> : vector<40xf32>
    %120 = vector.multi_reduction <maximumf>, %119, %cst_38 [1] : vector<40x40xf32> to vector<40xf32>
    %121 = vector.shape_cast %120 : vector<40xf32> to vector<40x1xf32>
    %122 = vector.broadcast %121 : vector<40x1xf32> to vector<40x40xf32>
    %123 = arith.subf %119, %122 : vector<40x40xf32>
    %124 = math.exp %123 : vector<40x40xf32>
    %cst_39 = arith.constant dense<0.000000e+00> : vector<40xf32>
    %125 = vector.multi_reduction <add>, %124, %cst_39 [1] : vector<40x40xf32> to vector<40xf32>
    %126 = vector.shape_cast %125 : vector<40xf32> to vector<40x1xf32>
    %127 = tpu.reciprocal %126 {approx = true} : vector<40x1xf32> -> vector<40x1xf32>
    %128 = vector.broadcast %127 : vector<40x1xf32> to vector<40x40xf32>
    %129 = arith.mulf %124, %128 : vector<40x40xf32>
    %130 = vector.extract_strided_slice %53 {offsets = [0, 24], sizes = [40, 8], strides = [1, 1]} : vector<40x32xf32> to vector<40x8xf32>
    %cst_40 = arith.constant dense<0.000000e+00> : vector<40x8xf32>
    %131 = tpu.matmul %129, %130, %cst_40 {dimension_numbers = #tpu.dot_dimension_numbers<[1], [0], [0], [1], [0, 0, 1, 1], [], []>} : vector<40x40xf32>, vector<40x8xf32>, vector<40x8xf32> -> vector<40x8xf32>
    %132 = vector.extract_strided_slice %47 {offsets = [24, 0], sizes = [8, 32], strides = [1, 1]} : vector<32x32xf32> to vector<8x32xf32>
    %cst_41 = arith.constant dense<0.000000e+00> : vector<40x32xf32>
    %133 = tpu.matmul %131, %132, %cst_41 {dimension_numbers = #tpu.dot_dimension_numbers<[1], [0], [0], [1], [0, 0, 1, 1], [], []>} : vector<40x8xf32>, vector<8x32xf32>, vector<40x32xf32> -> vector<40x32xf32>
    %134 = arith.addf %114, %133 : vector<40x32xf32>
    %135 = vector.extract_strided_slice %3 {offsets = [0, 0], sizes = [40, 32], strides = [1, 1]} : vector<80x32xf32> to vector<40x32xf32>
    %136 = arith.addf %135, %134 : vector<40x32xf32>
    %137 = vector.broadcast %50 : vector<1x32xf32> to vector<40x32xf32>
    %138 = arith.addf %136, %137 : vector<40x32xf32>
    %c0_42 = arith.constant 0 : index
    %c0_43 = arith.constant 0 : index
    %139 = vector.load %arg21[%c0_42, %c0_43] : memref<80x32xf32, #tpu.memory_space<vmem>>, vector<40x32xf32>
    tpu.vector_store %arg21[%c0_42, %c0_43], %138 {strides = array<i32>} : memref<80x32xf32, #tpu.memory_space<vmem>>, vector<40x32xf32>,
    %140 = vector.extract_strided_slice %44 {offsets = [40, 0], sizes = [40, 32], strides = [1, 1]} : vector<80x96xf32> to vector<40x32xf32>
    %141 = vector.extract_strided_slice %44 {offsets = [40, 32], sizes = [40, 32], strides = [1, 1]} : vector<80x96xf32> to vector<40x32xf32>
    %142 = vector.extract_strided_slice %44 {offsets = [40, 64], sizes = [40, 32], strides = [1, 1]} : vector<80x96xf32> to vector<40x32xf32>
    %cst_44 = arith.constant 0.000000e+00 : f32
    %143 = vector.broadcast %cst_44 : f32 to vector<40x32xf32>
    %144 = vector.extract_strided_slice %140 {offsets = [0, 0], sizes = [40, 8], strides = [1, 1]} : vector<40x32xf32> to vector<40x8xf32>
    %145 = vector.extract_strided_slice %141 {offsets = [0, 0], sizes = [40, 8], strides = [1, 1]} : vector<40x32xf32> to vector<40x8xf32>
    %cst_45 = arith.constant dense<0.000000e+00> : vector<40x40xf32>
    %146 = tpu.matmul %144, %145, %cst_45 {dimension_numbers = #tpu.dot_dimension_numbers<[1], [1], [0], [0], [0, 0, 1, 0], [], []>} : vector<40x8xf32>, vector<40x8xf32>, vector<40x40xf32> -> vector<40x40xf32>
    %147 = vector.broadcast %9 : vector<1x40xf32> to vector<40x40xf32>
    %148 = arith.addf %146, %147 : vector<40x40xf32>
    %cst_46 = arith.constant dense<0xFF800000> : vector<40xf32>
    %149 = vector.multi_reduction <maximumf>, %148, %cst_46 [1] : vector<40x40xf32> to vector<40xf32>
    %150 = vector.shape_cast %149 : vector<40xf32> to vector<40x1xf32>
    %151 = vector.broadcast %150 : vector<40x1xf32> to vector<40x40xf32>
    %152 = arith.subf %148, %151 : vector<40x40xf32>
    %153 = math.exp %152 : vector<40x40xf32>
    %cst_47 = arith.constant dense<0.000000e+00> : vector<40xf32>
    %154 = vector.multi_reduction <add>, %153, %cst_47 [1] : vector<40x40xf32> to vector<40xf32>
    %155 = vector.shape_cast %154 : vector<40xf32> to vector<40x1xf32>
    %156 = tpu.reciprocal %155 {approx = true} : vector<40x1xf32> -> vector<40x1xf32>
    %157 = vector.broadcast %156 : vector<40x1xf32> to vector<40x40xf32>
    %158 = arith.mulf %153, %157 : vector<40x40xf32>
    %159 = vector.extract_strided_slice %142 {offsets = [0, 0], sizes = [40, 8], strides = [1, 1]} : vector<40x32xf32> to vector<40x8xf32>
    %cst_48 = arith.constant dense<0.000000e+00> : vector<40x8xf32>
    %160 = tpu.matmul %158, %159, %cst_48 {dimension_numbers = #tpu.dot_dimension_numbers<[1], [0], [0], [1], [0, 0, 1, 1], [], []>} : vector<40x40xf32>, vector<40x8xf32>, vector<40x8xf32> -> vector<40x8xf32>
    %161 = vector.extract_strided_slice %47 {offsets = [0, 0], sizes = [8, 32], strides = [1, 1]} : vector<32x32xf32> to vector<8x32xf32>
    %cst_49 = arith.constant dense<0.000000e+00> : vector<40x32xf32>
    %162 = tpu.matmul %160, %161, %cst_49 {dimension_numbers = #tpu.dot_dimension_numbers<[1], [0], [0], [1], [0, 0, 1, 1], [], []>} : vector<40x8xf32>, vector<8x32xf32>, vector<40x32xf32> -> vector<40x32xf32>
    %163 = arith.addf %143, %162 : vector<40x32xf32>
    %164 = vector.extract_strided_slice %140 {offsets = [0, 8], sizes = [40, 8], strides = [1, 1]} : vector<40x32xf32> to vector<40x8xf32>
    %165 = vector.extract_strided_slice %141 {offsets = [0, 8], sizes = [40, 8], strides = [1, 1]} : vector<40x32xf32> to vector<40x8xf32>
    %cst_50 = arith.constant dense<0.000000e+00> : vector<40x40xf32>
    %166 = tpu.matmul %164, %165, %cst_50 {dimension_numbers = #tpu.dot_dimension_numbers<[1], [1], [0], [0], [0, 0, 1, 0], [], []>} : vector<40x8xf32>, vector<40x8xf32>, vector<40x40xf32> -> vector<40x40xf32>
    %167 = vector.broadcast %9 : vector<1x40xf32> to vector<40x40xf32>
    %168 = arith.addf %166, %167 : vector<40x40xf32>
    %cst_51 = arith.constant dense<0xFF800000> : vector<40xf32>
    %169 = vector.multi_reduction <maximumf>, %168, %cst_51 [1] : vector<40x40xf32> to vector<40xf32>
    %170 = vector.shape_cast %169 : vector<40xf32> to vector<40x1xf32>
    %171 = vector.broadcast %170 : vector<40x1xf32> to vector<40x40xf32>
    %172 = arith.subf %168, %171 : vector<40x40xf32>
    %173 = math.exp %172 : vector<40x40xf32>
    %cst_52 = arith.constant dense<0.000000e+00> : vector<40xf32>
    %174 = vector.multi_reduction <add>, %173, %cst_52 [1] : vector<40x40xf32> to vector<40xf32>
    %175 = vector.shape_cast %174 : vector<40xf32> to vector<40x1xf32>
    %176 = tpu.reciprocal %175 {approx = true} : vector<40x1xf32> -> vector<40x1xf32>
    %177 = vector.broadcast %176 : vector<40x1xf32> to vector<40x40xf32>
    %178 = arith.mulf %173, %177 : vector<40x40xf32>
    %179 = vector.extract_strided_slice %142 {offsets = [0, 8], sizes = [40, 8], strides = [1, 1]} : vector<40x32xf32> to vector<40x8xf32>
    %cst_53 = arith.constant dense<0.000000e+00> : vector<40x8xf32>
    %180 = tpu.matmul %178, %179, %cst_53 {dimension_numbers = #tpu.dot_dimension_numbers<[1], [0], [0], [1], [0, 0, 1, 1], [], []>} : vector<40x40xf32>, vector<40x8xf32>, vector<40x8xf32> -> vector<40x8xf32>
    %181 = vector.extract_strided_slice %47 {offsets = [8, 0], sizes = [8, 32], strides = [1, 1]} : vector<32x32xf32> to vector<8x32xf32>
    %cst_54 = arith.constant dense<0.000000e+00> : vector<40x32xf32>
    %182 = tpu.matmul %180, %181, %cst_54 {dimension_numbers = #tpu.dot_dimension_numbers<[1], [0], [0], [1], [0, 0, 1, 1], [], []>} : vector<40x8xf32>, vector<8x32xf32>, vector<40x32xf32> -> vector<40x32xf32>
    %183 = arith.addf %163, %182 : vector<40x32xf32>
    %184 = vector.extract_strided_slice %140 {offsets = [0, 16], sizes = [40, 8], strides = [1, 1]} : vector<40x32xf32> to vector<40x8xf32>
    %185 = vector.extract_strided_slice %141 {offsets = [0, 16], sizes = [40, 8], strides = [1, 1]} : vector<40x32xf32> to vector<40x8xf32>
    %cst_55 = arith.constant dense<0.000000e+00> : vector<40x40xf32>
    %186 = tpu.matmul %184, %185, %cst_55 {dimension_numbers = #tpu.dot_dimension_numbers<[1], [1], [0], [0], [0, 0, 1, 0], [], []>} : vector<40x8xf32>, vector<40x8xf32>, vector<40x40xf32> -> vector<40x40xf32>
    %187 = vector.broadcast %9 : vector<1x40xf32> to vector<40x40xf32>
    %188 = arith.addf %186, %187 : vector<40x40xf32>
    %cst_56 = arith.constant dense<0xFF800000> : vector<40xf32>
    %189 = vector.multi_reduction <maximumf>, %188, %cst_56 [1] : vector<40x40xf32> to vector<40xf32>
    %190 = vector.shape_cast %189 : vector<40xf32> to vector<40x1xf32>
    %191 = vector.broadcast %190 : vector<40x1xf32> to vector<40x40xf32>
    %192 = arith.subf %188, %191 : vector<40x40xf32>
    %193 = math.exp %192 : vector<40x40xf32>
    %cst_57 = arith.constant dense<0.000000e+00> : vector<40xf32>
    %194 = vector.multi_reduction <add>, %193, %cst_57 [1] : vector<40x40xf32> to vector<40xf32>
    %195 = vector.shape_cast %194 : vector<40xf32> to vector<40x1xf32>
    %196 = tpu.reciprocal %195 {approx = true} : vector<40x1xf32> -> vector<40x1xf32>
    %197 = vector.broadcast %196 : vector<40x1xf32> to vector<40x40xf32>
    %198 = arith.mulf %193, %197 : vector<40x40xf32>
    %199 = vector.extract_strided_slice %142 {offsets = [0, 16], sizes = [40, 8], strides = [1, 1]} : vector<40x32xf32> to vector<40x8xf32>
    %cst_58 = arith.constant dense<0.000000e+00> : vector<40x8xf32>
    %200 = tpu.matmul %198, %199, %cst_58 {dimension_numbers = #tpu.dot_dimension_numbers<[1], [0], [0], [1], [0, 0, 1, 1], [], []>} : vector<40x40xf32>, vector<40x8xf32>, vector<40x8xf32> -> vector<40x8xf32>
    %201 = vector.extract_strided_slice %47 {offsets = [16, 0], sizes = [8, 32], strides = [1, 1]} : vector<32x32xf32> to vector<8x32xf32>
    %cst_59 = arith.constant dense<0.000000e+00> : vector<40x32xf32>
    %202 = tpu.matmul %200, %201, %cst_59 {dimension_numbers = #tpu.dot_dimension_numbers<[1], [0], [0], [1], [0, 0, 1, 1], [], []>} : vector<40x8xf32>, vector<8x32xf32>, vector<40x32xf32> -> vector<40x32xf32>
    %203 = arith.addf %183, %202 : vector<40x32xf32>
    %204 = vector.extract_strided_slice %140 {offsets = [0, 24], sizes = [40, 8], strides = [1, 1]} : vector<40x32xf32> to vector<40x8xf32>
    %205 = vector.extract_strided_slice %141 {offsets = [0, 24], sizes = [40, 8], strides = [1, 1]} : vector<40x32xf32> to vector<40x8xf32>
    %cst_60 = arith.constant dense<0.000000e+00> : vector<40x40xf32>
    %206 = tpu.matmul %204, %205, %cst_60 {dimension_numbers = #tpu.dot_dimension_numbers<[1], [1], [0], [0], [0, 0, 1, 0], [], []>} : vector<40x8xf32>, vector<40x8xf32>, vector<40x40xf32> -> vector<40x40xf32>
    %207 = vector.broadcast %9 : vector<1x40xf32> to vector<40x40xf32>
    %208 = arith.addf %206, %207 : vector<40x40xf32>
    %cst_61 = arith.constant dense<0xFF800000> : vector<40xf32>
    %209 = vector.multi_reduction <maximumf>, %208, %cst_61 [1] : vector<40x40xf32> to vector<40xf32>
    %210 = vector.shape_cast %209 : vector<40xf32> to vector<40x1xf32>
    %211 = vector.broadcast %210 : vector<40x1xf32> to vector<40x40xf32>
    %212 = arith.subf %208, %211 : vector<40x40xf32>
    %213 = math.exp %212 : vector<40x40xf32>
    %cst_62 = arith.constant dense<0.000000e+00> : vector<40xf32>
    %214 = vector.multi_reduction <add>, %213, %cst_62 [1] : vector<40x40xf32> to vector<40xf32>
    %215 = vector.shape_cast %214 : vector<40xf32> to vector<40x1xf32>
    %216 = tpu.reciprocal %215 {approx = true} : vector<40x1xf32> -> vector<40x1xf32>
    %217 = vector.broadcast %216 : vector<40x1xf32> to vector<40x40xf32>
    %218 = arith.mulf %213, %217 : vector<40x40xf32>
    %219 = vector.extract_strided_slice %142 {offsets = [0, 24], sizes = [40, 8], strides = [1, 1]} : vector<40x32xf32> to vector<40x8xf32>
    %cst_63 = arith.constant dense<0.000000e+00> : vector<40x8xf32>
    %220 = tpu.matmul %218, %219, %cst_63 {dimension_numbers = #tpu.dot_dimension_numbers<[1], [0], [0], [1], [0, 0, 1, 1], [], []>} : vector<40x40xf32>, vector<40x8xf32>, vector<40x8xf32> -> vector<40x8xf32>
    %221 = vector.extract_strided_slice %47 {offsets = [24, 0], sizes = [8, 32], strides = [1, 1]} : vector<32x32xf32> to vector<8x32xf32>
    %cst_64 = arith.constant dense<0.000000e+00> : vector<40x32xf32>
    %222 = tpu.matmul %220, %221, %cst_64 {dimension_numbers = #tpu.dot_dimension_numbers<[1], [0], [0], [1], [0, 0, 1, 1], [], []>} : vector<40x8xf32>, vector<8x32xf32>, vector<40x32xf32> -> vector<40x32xf32>
    %223 = arith.addf %203, %222 : vector<40x32xf32>
    %224 = vector.extract_strided_slice %3 {offsets = [40, 0], sizes = [40, 32], strides = [1, 1]} : vector<80x32xf32> to vector<40x32xf32>
    %225 = arith.addf %224, %223 : vector<40x32xf32>
    %226 = vector.broadcast %50 : vector<1x32xf32> to vector<40x32xf32>
    %227 = arith.addf %225, %226 : vector<40x32xf32>
    %c40 = arith.constant 40 : index
    %c0_65 = arith.constant 0 : index
    %228 = vector.load %arg21[%c40, %c0_65] : memref<80x32xf32, #tpu.memory_space<vmem>>, vector<40x32xf32>
    tpu.vector_store %arg21[%c40, %c0_65], %227 {strides = array<i32>} : memref<80x32xf32, #tpu.memory_space<vmem>>, vector<40x32xf32>,
    %c0_66 = arith.constant 0 : index
    %c0_67 = arith.constant 0 : index
    %229 = vector.load %arg21[%c0_66, %c0_67] : memref<80x32xf32, #tpu.memory_space<vmem>>, vector<80x32xf32>
    %230 = arith.index_cast %arg0 : i32 to index
    %c0_68 = arith.constant 0 : index
    %c0_69 = arith.constant 0 : index
    %231 = vector.load %arg14[%230, %c0_68, %c0_69] : memref<7x1x32xf32, #tpu.memory_space<vmem>>, vector<1x1x32xf32>
    %232 = vector.shape_cast %231 : vector<1x1x32xf32> to vector<1x32xf32>
    %233 = arith.index_cast %arg0 : i32 to index
    %c0_70 = arith.constant 0 : index
    %c0_71 = arith.constant 0 : index
    %234 = vector.load %arg15[%233, %c0_70, %c0_71] : memref<7x1x32xf32, #tpu.memory_space<vmem>>, vector<1x1x32xf32>
    %235 = vector.shape_cast %234 : vector<1x1x32xf32> to vector<1x32xf32>
    %cst_72 = arith.constant dense<0.000000e+00> : vector<80xf32>
    %236 = vector.multi_reduction <add>, %229, %cst_72 [1] : vector<80x32xf32> to vector<80xf32>
    %237 = vector.shape_cast %236 : vector<80xf32> to vector<80x1xf32>
    %cst_73 = arith.constant 3.200000e+01 : f32
    %238 = vector.broadcast %cst_73 : f32 to vector<80x1xf32>
    %239 = arith.divf %237, %238 : vector<80x1xf32>
    %240 = vector.broadcast %239 : vector<80x1xf32> to vector<80x32xf32>
    %241 = arith.subf %229, %240 : vector<80x32xf32>
    %242 = arith.mulf %241, %241 : vector<80x32xf32>
    %cst_74 = arith.constant dense<0.000000e+00> : vector<80xf32>
    %243 = vector.multi_reduction <add>, %242, %cst_74 [1] : vector<80x32xf32> to vector<80xf32>
    %244 = vector.shape_cast %243 : vector<80xf32> to vector<80x1xf32>
    %cst_75 = arith.constant 3.200000e+01 : f32
    %245 = vector.broadcast %cst_75 : f32 to vector<80x1xf32>
    %246 = arith.divf %244, %245 : vector<80x1xf32>
    %cst_76 = arith.constant 9.99999974E-6 : f32
    %247 = vector.broadcast %cst_76 : f32 to vector<80x1xf32>
    %248 = arith.addf %246, %247 : vector<80x1xf32>
    %249 = math.rsqrt %248 : vector<80x1xf32>
    %250 = vector.broadcast %249 : vector<80x1xf32> to vector<80x32xf32>
    %251 = arith.mulf %241, %250 : vector<80x32xf32>
    %252 = vector.broadcast %232 : vector<1x32xf32> to vector<80x32xf32>
    %253 = arith.mulf %251, %252 : vector<80x32xf32>
    %254 = vector.broadcast %235 : vector<1x32xf32> to vector<80x32xf32>
    %255 = arith.addf %253, %254 : vector<80x32xf32>
    %256 = arith.index_cast %arg0 : i32 to index
    %c0_77 = arith.constant 0 : index
    %c0_78 = arith.constant 0 : index
    %257 = vector.load %arg16[%256, %c0_77, %c0_78] : memref<7x32x64xf32, #tpu.memory_space<vmem>>, vector<1x32x64xf32>
    %258 = vector.shape_cast %257 : vector<1x32x64xf32> to vector<32x64xf32>
    %cst_79 = arith.constant dense<0.000000e+00> : vector<80x64xf32>
    %259 = tpu.matmul %255, %258, %cst_79 {dimension_numbers = #tpu.dot_dimension_numbers<[1], [0], [0], [1], [0, 0, 1, 1], [], []>} : vector<80x32xf32>, vector<32x64xf32>, vector<80x64xf32> -> vector<80x64xf32>
    %260 = arith.index_cast %arg0 : i32 to index
    %c0_80 = arith.constant 0 : index
    %c0_81 = arith.constant 0 : index
    %261 = vector.load %arg17[%260, %c0_80, %c0_81] : memref<7x1x64xf32, #tpu.memory_space<vmem>>, vector<1x1x64xf32>
    %262 = vector.shape_cast %261 : vector<1x1x64xf32> to vector<1x64xf32>
    %263 = vector.broadcast %262 : vector<1x64xf32> to vector<80x64xf32>
    %264 = arith.addf %259, %263 : vector<80x64xf32>
    %cst_82 = arith.constant 5.000000e-01 : f32
    %265 = vector.broadcast %cst_82 : f32 to vector<80x64xf32>
    %266 = arith.mulf %265, %264 : vector<80x64xf32>
    %cst_83 = arith.constant 4.471500e-02 : f32
    %267 = vector.broadcast %cst_83 : f32 to vector<80x64xf32>
    %268 = arith.mulf %267, %264 : vector<80x64xf32>
    %269 = arith.mulf %268, %264 : vector<80x64xf32>
    %270 = arith.mulf %269, %264 : vector<80x64xf32>
    %271 = arith.addf %264, %270 : vector<80x64xf32>
    %cst_84 = arith.constant 0.797884583 : f32
    %272 = vector.broadcast %cst_84 : f32 to vector<80x64xf32>
    %273 = arith.mulf %272, %271 : vector<80x64xf32>
    %274 = math.tanh %273 : vector<80x64xf32>
    %cst_85 = arith.constant 1.000000e+00 : f32
    %275 = vector.broadcast %cst_85 : f32 to vector<80x64xf32>
    %276 = arith.addf %275, %274 : vector<80x64xf32>
    %277 = arith.mulf %266, %276 : vector<80x64xf32>
    %278 = arith.index_cast %arg0 : i32 to index
    %c0_86 = arith.constant 0 : index
    %c0_87 = arith.constant 0 : index
    %279 = vector.load %arg18[%278, %c0_86, %c0_87] : memref<7x64x32xf32, #tpu.memory_space<vmem>>, vector<1x64x32xf32>
    %280 = vector.shape_cast %279 : vector<1x64x32xf32> to vector<64x32xf32>
    %cst_88 = arith.constant dense<0.000000e+00> : vector<80x32xf32>
    %281 = tpu.matmul %277, %280, %cst_88 {dimension_numbers = #tpu.dot_dimension_numbers<[1], [0], [0], [1], [0, 0, 1, 1], [], []>} : vector<80x64xf32>, vector<64x32xf32>, vector<80x32xf32> -> vector<80x32xf32>
    %282 = arith.addf %229, %281 : vector<80x32xf32>
    %283 = arith.index_cast %arg0 : i32 to index
    %c0_89 = arith.constant 0 : index
    %c0_90 = arith.constant 0 : index
    %284 = vector.load %arg19[%283, %c0_89, %c0_90] : memref<7x1x32xf32, #tpu.memory_space<vmem>>, vector<1x1x32xf32>
    %285 = vector.shape_cast %284 : vector<1x1x32xf32> to vector<1x32xf32>
    %286 = vector.broadcast %285 : vector<1x32xf32> to vector<80x32xf32>
    %287 = arith.addf %282, %286 : vector<80x32xf32>
    %c0_91 = arith.constant 0 : index
    %c0_92 = arith.constant 0 : index
    %288 = vector.load %arg21[%c0_91, %c0_92] : memref<80x32xf32, #tpu.memory_space<vmem>>, vector<80x32xf32>
    tpu.vector_store %arg21[%c0_91, %c0_92], %287 {strides = array<i32>} : memref<80x32xf32, #tpu.memory_space<vmem>>, vector<80x32xf32>,
    %c6_i32 = arith.constant 6 : i32
    %289 = arith.cmpi eq, %arg0, %c6_i32 : i32
    %290 = arith.extui %289 : i1 to i32
    %c0_i32_93 = arith.constant 0 : i32
    %291 = arith.cmpi ne, %290, %c0_i32_93 : i32
    scf.if %291 {
      %c0_94 = arith.constant 0 : index
      %c0_95 = arith.constant 0 : index
      %292 = vector.load %arg20[%c0_94, %c0_95] : memref<80x32xf32, #tpu.memory_space<vmem>>, vector<80x32xf32>
      tpu.vector_store %arg20[%c0_94, %c0_95], %287 {strides = array<i32>} : memref<80x32xf32, #tpu.memory_space<vmem>>, vector<80x32xf32>,
    } else {
    }
    return
  }
  func.func @transform_0(%arg0: i32) -> (i32, i32, i32) {
    %c0_i32 = arith.constant 0 : i32
    %c0_i32_0 = arith.constant 0 : i32
    %c0_i32_1 = arith.constant 0 : i32
    %c0_i32_2 = arith.constant 0 : i32
    return %c0_i32, %c0_i32_0, %c0_i32_1 : i32, i32, i32
  }
  func.func @transform_1(%arg0: i32) -> (i32, i32) {
    %c0_i32 = arith.constant 0 : i32
    %c0_i32_0 = arith.constant 0 : i32
    %c0_i32_1 = arith.constant 0 : i32
    return %c0_i32, %c0_i32_0 : i32, i32
  }
  func.func @transform_2(%arg0: i32) -> (i32, i32) {
    %c0_i32 = arith.constant 0 : i32
    %c0_i32_0 = arith.constant 0 : i32
    %c0_i32_1 = arith.constant 0 : i32
    return %c0_i32, %c0_i32_0 : i32, i32
  }
  func.func @transform_3(%arg0: i32) -> (i32, i32) {
    %c0_i32 = arith.constant 0 : i32
    %c0_i32_0 = arith.constant 0 : i32
    %c0_i32_1 = arith.constant 0 : i32
    return %c0_i32, %c0_i32_0 : i32, i32
  }
  func.func @transform_4(%arg0: i32) -> (i32, i32) {
    %c0_i32 = arith.constant 0 : i32
    %c0_i32_0 = arith.constant 0 : i32
    %c0_i32_1 = arith.constant 0 : i32
    return %c0_i32, %c0_i32_0 : i32, i32
  }
  func.func @transform_5(%arg0: i32) -> (i32, i32, i32) {
    %c0_i32 = arith.constant 0 : i32
    %c0_i32_0 = arith.constant 0 : i32
    %c0_i32_1 = arith.constant 0 : i32
    %c0_i32_2 = arith.constant 0 : i32
    return %c0_i32, %c0_i32_0, %c0_i32_1 : i32, i32, i32
  }
  func.func @transform_6(%arg0: i32) -> (i32, i32) {
    %c0_i32 = arith.constant 0 : i32
    %c0_i32_0 = arith.constant 0 : i32
    %c0_i32_1 = arith.constant 0 : i32
    return %c0_i32, %c0_i32_0 : i32, i32
  }
  func.func @transform_7(%arg0: i32) -> (i32, i32, i32) {
    %c0_i32 = arith.constant 0 : i32
    %c0_i32_0 = arith.constant 0 : i32
    %c0_i32_1 = arith.constant 0 : i32
    %c0_i32_2 = arith.constant 0 : i32
    return %c0_i32, %c0_i32_0, %c0_i32_1 : i32, i32, i32
  }
  func.func @transform_8(%arg0: i32) -> (i32, i32, i32) {
    %c0_i32 = arith.constant 0 : i32
    %c0_i32_0 = arith.constant 0 : i32
    %c0_i32_1 = arith.constant 0 : i32
    %c0_i32_2 = arith.constant 0 : i32
    return %c0_i32, %c0_i32_0, %c0_i32_1 : i32, i32, i32
  }
  func.func @transform_9(%arg0: i32) -> (i32, i32, i32) {
    %c0_i32 = arith.constant 0 : i32
    %c0_i32_0 = arith.constant 0 : i32
    %c0_i32_1 = arith.constant 0 : i32
    %c0_i32_2 = arith.constant 0 : i32
    return %c0_i32, %c0_i32_0, %c0_i32_1 : i32, i32, i32
  }
  func.func @transform_10(%arg0: i32) -> (i32, i32, i32) {
    %c0_i32 = arith.constant 0 : i32
    %c0_i32_0 = arith.constant 0 : i32
    %c0_i32_1 = arith.constant 0 : i32
    %c0_i32_2 = arith.constant 0 : i32
    return %c0_i32, %c0_i32_0, %c0_i32_1 : i32, i32, i32
  }
  func.func @transform_11(%arg0: i32) -> (i32, i32, i32) {
    %c0_i32 = arith.constant 0 : i32
    %c0_i32_0 = arith.constant 0 : i32
    %c0_i32_1 = arith.constant 0 : i32
    %c0_i32_2 = arith.constant 0 : i32
    return %c0_i32, %c0_i32_0, %c0_i32_1 : i32, i32, i32
  }
  func.func @transform_12(%arg0: i32) -> (i32, i32, i32) {
    %c0_i32 = arith.constant 0 : i32
    %c0_i32_0 = arith.constant 0 : i32
    %c0_i32_1 = arith.constant 0 : i32
    %c0_i32_2 = arith.constant 0 : i32
    return %c0_i32, %c0_i32_0, %c0_i32_1 : i32, i32, i32
  }
  func.func @transform_13(%arg0: i32) -> (i32, i32, i32) {
    %c0_i32 = arith.constant 0 : i32
    %c0_i32_0 = arith.constant 0 : i32
    %c0_i32_1 = arith.constant 0 : i32
    %c0_i32_2 = arith.constant 0 : i32
    return %c0_i32, %c0_i32_0, %c0_i32_1 : i32, i32, i32
  }
  func.func @transform_14(%arg0: i32) -> (i32, i32, i32) {
    %c0_i32 = arith.constant 0 : i32
    %c0_i32_0 = arith.constant 0 : i32
    %c0_i32_1 = arith.constant 0 : i32
    %c0_i32_2 = arith.constant 0 : i32
    return %c0_i32, %c0_i32_0, %c0_i32_1 : i32, i32, i32
  }
  func.func @transform_15(%arg0: i32) -> (i32, i32, i32) {
    %c0_i32 = arith.constant 0 : i32
    %c0_i32_0 = arith.constant 0 : i32
    %c0_i32_1 = arith.constant 0 : i32
    %c0_i32_2 = arith.constant 0 : i32
    return %c0_i32, %c0_i32_0, %c0_i32_1 : i32, i32, i32
  }
  func.func @transform_16(%arg0: i32) -> (i32, i32, i32) {
    %c0_i32 = arith.constant 0 : i32
    %c0_i32_0 = arith.constant 0 : i32
    %c0_i32_1 = arith.constant 0 : i32
    %c0_i32_2 = arith.constant 0 : i32
    return %c0_i32, %c0_i32_0, %c0_i32_1 : i32, i32, i32
  }
  func.func @transform_17(%arg0: i32) -> (i32, i32, i32) {
    %c0_i32 = arith.constant 0 : i32
    %c0_i32_0 = arith.constant 0 : i32
    %c0_i32_1 = arith.constant 0 : i32
    %c0_i32_2 = arith.constant 0 : i32
    return %c0_i32, %c0_i32_0, %c0_i32_1 : i32, i32, i32
  }
  func.func @transform_18(%arg0: i32) -> (i32, i32, i32) {
    %c0_i32 = arith.constant 0 : i32
    %c0_i32_0 = arith.constant 0 : i32
    %c0_i32_1 = arith.constant 0 : i32
    %c0_i32_2 = arith.constant 0 : i32
    return %c0_i32, %c0_i32_0, %c0_i32_1 : i32, i32, i32
  }
  func.func @transform_19(%arg0: i32) -> (i32, i32) {
    %c0_i32 = arith.constant 0 : i32
    %c0_i32_0 = arith.constant 0 : i32
    %c0_i32_1 = arith.constant 0 : i32
    return %c0_i32, %c0_i32_0 : i32, i32
  }
}

</mosaic_0001>

<llo_original>
// kernel: _lambda_.3
$region0: #{_lambda_.3}
  #allocation0 [shape = 'u32[]', space=smem, size = 0x4, offset = 0x4, fixed_abs, tag = 'smem constant byte address 0x4 - core index']
  #allocation1 [shape = 'u32[72,128]{1,0:T(1,128)}', space=vmem, size = 0x9000, scoped, tag = 'internal scratch']
  %s0 = inlined_call_operand.vmem [shape: f32[160,10], index: 0, kind: input, shape index: {}]
  %s1 = inlined_call_operand.vmem [shape: f32[10,32], index: 1, kind: input, shape index: {}]
  %s2 = inlined_call_operand.vmem [shape: f32[1,32], index: 2, kind: input, shape index: {}]
  %s3 = inlined_call_operand.vmem [shape: f32[1,32], index: 3, kind: input, shape index: {}]
  %s4 = inlined_call_operand.vmem [shape: f32[1,32], index: 4, kind: input, shape index: {}]
  %s5 = inlined_call_operand.vmem [shape: f32[160,32], index: 5, kind: output, shape index: {}]
  %s6 = sld [smem:[#allocation0]]
  $region53: #{_lambda_.3} parent=0
    _
  %s8 = ssub.s32 1, %s6
  %s9 = scalar_select 0, %s8, %s6
  loop: start=0, step=1, limit=4
  $region2: #{_lambda_.3} parent=0 // loop_pre_header
    _
  $region3: #{_lambda_.3} parent=0 // loop_header
    %s11 = sphi 0, %s15
    %p12 = scmp.ge.s32.totalorder %s11, 4
    %s21 = sphi 0, %s23
    %s24 = sphi 0, %s21
    %s25 = sphi 0, %s24
    %s41 = sphi 0, %s25
    %s45 = sphi 0, %s45
    %s47 = sphi 0, %s45
    %s48 = sphi 0, %s47
    %s62 = sphi 0, %s48
    %s66 = sphi 0, %s66
    %s68 = sphi 0, %s66
    %s69 = sphi 0, %s68
    %s83 = sphi 0, %s69
    %s87 = sphi 0, %s87
    %s89 = sphi 0, %s87
    %s90 = sphi 0, %s89
    %s104 = sphi 0, %s90
    %s108 = sphi 0, %s108
    %s110 = sphi 0, %s108
    %s111 = sphi 0, %s110
    %s125 = sphi 0, %s111
    %s131 = sphi 0, %s133
    %s134 = sphi 0, %s131
    %s135 = sphi 0, %s134
    %s151 = sphi 0, %s135
  $region4: #{_lambda_.3} parent=0 // loop_header_branch
    %14 = sbr.rel (%p12) target = $region8
  $region5: #{_lambda_.3} parent=0 // loop_body
    %s16 = ssub.s32 %s11, 1
    %s17 = ssub.s32 %s11, 2
    %s18 = sadd.s32 %s11, 1
    %s19 = ssub.s32 %s11, %s18
    %p20 = scmp.eq.s32.totalorder %s19, 0
    %s22 = sadd.s32 %s21, 1
    %s23 = scalar_select %p20, %s21, %s22
    %p26 = pneg %p20
    %p27 = scmp.eq.s32.totalorder %s11, 1
    %p28 = por %p26, %p27
    %p29 = scmp.ne.s32.totalorder %s21, %s24
    %p30 = scmp.eq.s32.totalorder %s11, 0
    %p31 = por %p29, %p30
    %p32 = scmp.ne.s32.totalorder %s21, %s24
    %p33 = scmp.eq.s32.totalorder %s16, 1
    %p34 = por %p32, %p33
    %p35 = scmp.ne.s32.totalorder %s24, %s25
    %p36 = scmp.eq.s32.totalorder %s16, 0
    %p37 = por %p35, %p36
    %p38 = scmp.ne.s32.totalorder %s24, %s25
    %p39 = scmp.eq.s32.totalorder %s17, 1
    %p40 = por %p38, %p39
    %p42 = scmp.ne.s32.totalorder %s25, %s41
    %p43 = scmp.eq.s32.totalorder %s17, 0
    %p44 = por %p42, %p43
    %s46 = sadd.s32 %s45, 1
    %p49 = scmp.eq.s32.totalorder %s11, 1
    %p50 = scmp.ne.s32.totalorder %s45, %s47
    %p51 = scmp.eq.s32.totalorder %s11, 0
    %p52 = por %p50, %p51
    %p53 = scmp.ne.s32.totalorder %s45, %s47
    %p54 = scmp.eq.s32.totalorder %s16, 1
    %p55 = por %p53, %p54
    %p56 = scmp.ne.s32.totalorder %s47, %s48
    %p57 = scmp.eq.s32.totalorder %s16, 0
    %p58 = por %p56, %p57
    %p59 = scmp.ne.s32.totalorder %s47, %s48
    %p60 = scmp.eq.s32.totalorder %s17, 1
    %p61 = por %p59, %p60
    %p63 = scmp.ne.s32.totalorder %s48, %s62
    %p64 = scmp.eq.s32.totalorder %s17, 0
    %p65 = por %p63, %p64
    %s67 = sadd.s32 %s66, 1
    %p70 = scmp.eq.s32.totalorder %s11, 1
    %p71 = scmp.ne.s32.totalorder %s66, %s68
    %p72 = scmp.eq.s32.totalorder %s11, 0
    %p73 = por %p71, %p72
    %p74 = scmp.ne.s32.totalorder %s66, %s68
    %p75 = scmp.eq.s32.totalorder %s16, 1
    %p76 = por %p74, %p75
    %p77 = scmp.ne.s32.totalorder %s68, %s69
    %p78 = scmp.eq.s32.totalorder %s16, 0
    %p79 = por %p77, %p78
    %p80 = scmp.ne.s32.totalorder %s68, %s69
    %p81 = scmp.eq.s32.totalorder %s17, 1
    %p82 = por %p80, %p81
    %p84 = scmp.ne.s32.totalorder %s69, %s83
    %p85 = scmp.eq.s32.totalorder %s17, 0
    %p86 = por %p84, %p85
    %s88 = sadd.s32 %s87, 1
    %p91 = scmp.eq.s32.totalorder %s11, 1
    %p92 = scmp.ne.s32.totalorder %s87, %s89
    %p93 = scmp.eq.s32.totalorder %s11, 0
    %p94 = por %p92, %p93
    %p95 = scmp.ne.s32.totalorder %s87, %s89
    %p96 = scmp.eq.s32.totalorder %s16, 1
    %p97 = por %p95, %p96
    %p98 = scmp.ne.s32.totalorder %s89, %s90
    %p99 = scmp.eq.s32.totalorder %s16, 0
    %p100 = por %p98, %p99
    %p101 = scmp.ne.s32.totalorder %s89, %s90
    %p102 = scmp.eq.s32.totalorder %s17, 1
    %p103 = por %p101, %p102
    %p105 = scmp.ne.s32.totalorder %s90, %s104
    %p106 = scmp.eq.s32.totalorder %s17, 0
    %p107 = por %p105, %p106
    %s109 = sadd.s32 %s108, 1
    %p112 = scmp.eq.s32.totalorder %s11, 1
    %p113 = scmp.ne.s32.totalorder %s108, %s110
    %p114 = scmp.eq.s32.totalorder %s11, 0
    %p115 = por %p113, %p114
    %p116 = scmp.ne.s32.totalorder %s108, %s110
    %p117 = scmp.eq.s32.totalorder %s16, 1
    %p118 = por %p116, %p117
    %p119 = scmp.ne.s32.totalorder %s110, %s111
    %p120 = scmp.eq.s32.totalorder %s16, 0
    %p121 = por %p119, %p120
    %p122 = scmp.ne.s32.totalorder %s110, %s111
    %p123 = scmp.eq.s32.totalorder %s17, 1
    %p124 = por %p122, %p123
    %p126 = scmp.ne.s32.totalorder %s111, %s125
    %p127 = scmp.eq.s32.totalorder %s17, 0
    %p128 = por %p126, %p127
    %s129 = ssub.s32 %s11, %s18
    %p130 = scmp.eq.s32.totalorder %s129, 0
    %s132 = sadd.s32 %s131, 1
    %s133 = scalar_select %p130, %s131, %s132
    %p136 = pneg %p130
    %p137 = scmp.eq.s32.totalorder %s11, 1
    %p138 = por %p136, %p137
    %p139 = scmp.ne.s32.totalorder %s131, %s134
    %p140 = scmp.eq.s32.totalorder %s11, 0
    %p141 = por %p139, %p140
    %p142 = scmp.ne.s32.totalorder %s131, %s134
    %p143 = scmp.eq.s32.totalorder %s16, 1
    %p144 = por %p142, %p143
    %p145 = scmp.ne.s32.totalorder %s134, %s135
    %p146 = scmp.eq.s32.totalorder %s16, 0
    %p147 = por %p145, %p146
    %p148 = scmp.ne.s32.totalorder %s134, %s135
    %p149 = scmp.eq.s32.totalorder %s17, 1
    %p150 = por %p148, %p149
    %p152 = scmp.ne.s32.totalorder %s135, %s151
    %p153 = scmp.eq.s32.totalorder %s17, 0
    %p154 = por %p152, %p153
    %p155 = scmp.le.s32.totalorder 1, %s11
    %p156 = scmp.lt.s32.totalorder %s11, 3
    %p157 = pnand %p155, %p156
    %p158 = pneg %p157
    // Predicated region
    $region9: #{_lambda_.3} parent=5 // pred_check
      _
    $region10: #{_lambda_.3} parent=5 // pred_check_branch
      %160 = sbr.rel (%p157) target = $region12
    $region11: #{_lambda_.3} parent=5 // pred_region
      %s161 = ssub.s32 %s11, 1
      // Predicated region
      $region13: #{_lambda_.3} parent=11 // pred_check
        %p162 = pneg %p58
      $region14: #{_lambda_.3} parent=11 // pred_check_branch
        %164 = sbr.rel (%p162) target = $region16
      $region15: #{_lambda_.3} parent=11 // pred_region
        _
      $region16: #{_lambda_.3} parent=11 // pred_fallthru
        _
      // Predicated region
      $region17: #{_lambda_.3} parent=11 // pred_check
        %p165 = pneg %p79
      $region18: #{_lambda_.3} parent=11 // pred_check_branch
        %167 = sbr.rel (%p165) target = $region20
      $region19: #{_lambda_.3} parent=11 // pred_region
        _
      $region20: #{_lambda_.3} parent=11 // pred_fallthru
        _
      // Predicated region
      $region21: #{_lambda_.3} parent=11 // pred_check
        %p168 = pneg %p100
      $region22: #{_lambda_.3} parent=11 // pred_check_branch
        %170 = sbr.rel (%p168) target = $region24
      $region23: #{_lambda_.3} parent=11 // pred_region
        _
      $region24: #{_lambda_.3} parent=11 // pred_fallthru
        _
      // Predicated region
      $region25: #{_lambda_.3} parent=11 // pred_check
        %p171 = pneg %p121
      $region26: #{_lambda_.3} parent=11 // pred_check_branch
        %173 = sbr.rel (%p171) target = $region28
      $region27: #{_lambda_.3} parent=11 // pred_region
        _
      $region28: #{_lambda_.3} parent=11 // pred_fallthru
        _
    $region12: #{_lambda_.3} parent=5 // pred_fallthru
      _
    %p174 = scmp.lt.s32.totalorder %s11, 2
    // Predicated region
    $region29: #{_lambda_.3} parent=5 // pred_check
      %p175 = pneg %p174
    $region30: #{_lambda_.3} parent=5 // pred_check_branch
      %177 = sbr.rel (%p175) target = $region32
    $region31: #{_lambda_.3} parent=5 // pred_region
      // Predicated region
      $region33: #{_lambda_.3} parent=31 // pred_check
        %p178 = pneg %p31
      $region34: #{_lambda_.3} parent=31 // pred_check_branch
        %180 = sbr.rel (%p178) target = $region36
      $region35: #{_lambda_.3} parent=31 // pred_region
        %s181 = smul.u32 10, %s11
        %p182 = scmp.lt.s32.totalorder %s181, 19
        %s183 = scalar_select %p182, %s181, 19
        %s184 = smul.addr %s183, 8
        %s185 = scalar_lea.vmem %s0, %s184
        %s186 = smul.u32 10, %s11
      $region36: #{_lambda_.3} parent=31 // pred_fallthru
        _
    $region32: #{_lambda_.3} parent=5 // pred_fallthru
      _
    %p187 = scmp.le.s32.totalorder 1, %s11
    %p188 = scmp.lt.s32.totalorder %s11, 3
    %p189 = pnand %p187, %p188
    %p190 = pneg %p189
    // Predicated region
    $region37: #{_lambda_.3} parent=5 // pred_check
      _
    $region38: #{_lambda_.3} parent=5 // pred_check_branch
      %192 = sbr.rel (%p189) target = $region40
    $region39: #{_lambda_.3} parent=5 // pred_region
      %s193 = ssub.s32 %s11, 1
      %s194 = smul.u32 10, %s16
      %p195 = scmp.lt.s32.totalorder %s194, 19
      %s196 = scalar_select %p195, %s194, 19
      %s197 = smul.addr %s196, 8
      %s198 = scalar_lea.vmem %s0, %s197
      %p199 = pneg %p37
      %p200 = pneg %p34
      %p201 = pneg %p58
      %p202 = pneg %p55
      %p203 = pneg %p79
      %p204 = pneg %p76
      %p205 = pneg %p100
      %p206 = pneg %p97
      %p207 = pneg %p121
      %p208 = pneg %p118
      %p209 = pneg %p147
      %p210 = pneg %p144
      %s211 = smul.u32 10, %s16
      %p212 = scmp.lt.s32.totalorder %s211, 19
      %s213 = scalar_select %p212, %s211, 19
      %s214 = smul.addr %s213, 8
      %s215 = scalar_lea.vmem %s5, %s214
      %s216 = smul.u32 10, %s16
      %p217 = scmp.lt.s32.totalorder %s216, 19
      %s218 = scalar_select %p217, %s216, 19
      %s219 = smul.addr %s218, 8
      %s220 = scalar_lea.vmem %s0, %s219
      %s221 = smul.u32 10, %s16
      %s222 = smul.u32 10, %s16
      %p223 = scmp.lt.s32.totalorder %s222, 19
      %s224 = scalar_select %p223, %s222, 19
      %s225 = smul.addr %s224, 8
      %s226 = scalar_lea.vmem %s5, %s225
      %s227 = smul.u32 10, %s16
      %v228 = vld [vmem:[%s220] sm:$0xff]
      %v229 = vld [vmem:[%s220 + $0x8] sm:$0xff]
      %v230 = vld [vmem:[%s220 + $0x10] sm:$0xff]
      %v231 = vld [vmem:[%s220 + $0x18] sm:$0xff]
      %v232 = vld [vmem:[%s220 + $0x20] sm:$0xff]
      %v233 = vld [vmem:[%s220 + $0x28] sm:$0xff]
      %v234 = vld [vmem:[%s220 + $0x30] sm:$0xff]
      %v235 = vld [vmem:[%s220 + $0x38] sm:$0xff]
      %v236 = vld [vmem:[%s220 + $0x40] sm:$0xff]
      %v237 = vld [vmem:[%s220 + $0x48] sm:$0xff]
      %v238 = vld [vmem:[%s1] sm:$0xff]
      %v239 = vld [vmem:[%s1 + $0x8] sm:$0x3]
      %v240 = vld [vmem:[%s2] sm:$0x1]
      %v242 = vperm.slane %v240, 0
      %vm244 = vcmask 80896
      %v246 = vsel %vm244, %v228, 0
      %v249 = vsel %vm244, %v229, 0
      %v252 = vsel %vm244, %v230, 0
      %v255 = vsel %vm244, %v231, 0
      %v258 = vsel %vm244, %v232, 0
      %v261 = vsel %vm244, %v233, 0
      %v264 = vsel %vm244, %v234, 0
      %v267 = vsel %vm244, %v235, 0
      %v270 = vsel %vm244, %v236, 0
      %v273 = vsel %vm244, %v237, 0
      %vm275 = vcmask 1041408
      %v277 = vsel %vm275, %v239, 0
      %279 = vmatpush.msra.mxu0 0.0
      %280 = vmatpush.msra.mxu0 0.0
      %281 = vmatpush.msra.mxu0 0.0
      %282 = vmatpush.msra.mxu0 0.0
      %283 = vmatpush.msra.mxu0 0.0
      %284 = vmatpush.msra.mxu0 0.0
      %285 = vmatpush.msra.mxu0 0.0
      %286 = vmatpush.msra.mxu0 0.0
      %287 = vmatpush.msra.mxu0 0.0
      %288 = vmatpush.msra.mxu0 0.0
      %289 = vmatpush.msra.mxu0 0.0
      %290 = vmatpush.msra.mxu0 0.0
      %291 = vmatpush.msra.mxu0 0.0
      %292 = vmatpush.msra.mxu0 0.0
      %293 = vmatpush.msra.mxu0 %v277
      %294 = vmatpush.msra.mxu0 %v238
      %295 = vmatmul.f32.gmra.mxu0 %v246
      %v296 = vpop.f32.mrf.mxu0
      %v297 = vadd.f32 %v242, %v296
      %298 = vmatmul.f32.gmra.mxu0 %v249
      %v299 = vpop.f32.mrf.mxu0
      %v300 = vadd.f32 %v242, %v299
      %301 = vmatmul.f32.gmra.mxu0 %v252
      %v302 = vpop.f32.mrf.mxu0
      %v303 = vadd.f32 %v242, %v302
      %304 = vmatmul.f32.gmra.mxu0 %v255
      %v305 = vpop.f32.mrf.mxu0
      %v306 = vadd.f32 %v242, %v305
      %307 = vmatmul.f32.gmra.mxu0 %v258
      %v308 = vpop.f32.mrf.mxu0
      %v309 = vadd.f32 %v242, %v308
      %310 = vmatmul.f32.gmra.mxu0 %v261
      %v311 = vpop.f32.mrf.mxu0
      %v312 = vadd.f32 %v242, %v311
      %313 = vmatmul.f32.gmra.mxu0 %v264
      %v314 = vpop.f32.mrf.mxu0
      %v315 = vadd.f32 %v242, %v314
      %316 = vmatmul.f32.gmra.mxu0 %v267
      %v317 = vpop.f32.mrf.mxu0
      %v318 = vadd.f32 %v242, %v317
      %319 = vmatmul.f32.gmra.mxu0 %v270
      %v320 = vpop.f32.mrf.mxu0
      %v321 = vadd.f32 %v242, %v320
      %322 = vmatmul.f32.gmra.mxu0 %v273
      %v323 = vpop.f32.mrf.mxu0
      %v324 = vadd.f32 %v242, %v323
      %325 = vdwg.mxu0
      %v326 = vld [vmem:[%s3] sm:$0x1]
      %v327 = vld [vmem:[%s4] sm:$0x1]
      %vm328 = vcmask 261120
      %v329 = vsel %vm328, %v297, 0.0
      %330 = vadd.xlane.f32.xlu0 %v329
      %v331 = vpop.xlane.xlu0 %330
      %v332 = vsel %vm328, %v300, 0.0
      %333 = vadd.xlane.f32.xlu0 %v332
      %v334 = vpop.xlane.xlu0 %333
      %v335 = vsel %vm328, %v303, 0.0
      %336 = vadd.xlane.f32.xlu0 %v335
      %v337 = vpop.xlane.xlu0 %336
      %v338 = vsel %vm328, %v306, 0.0
      %339 = vadd.xlane.f32.xlu0 %v338
      %v340 = vpop.xlane.xlu0 %339
      %v341 = vsel %vm328, %v309, 0.0
      %342 = vadd.xlane.f32.xlu0 %v341
      %v343 = vpop.xlane.xlu0 %342
      %v344 = vsel %vm328, %v312, 0.0
      %345 = vadd.xlane.f32.xlu0 %v344
      %v346 = vpop.xlane.xlu0 %345
      %v347 = vsel %vm328, %v315, 0.0
      %348 = vadd.xlane.f32.xlu0 %v347
      %v349 = vpop.xlane.xlu0 %348
      %v350 = vsel %vm328, %v318, 0.0
      %351 = vadd.xlane.f32.xlu0 %v350
      %v352 = vpop.xlane.xlu0 %351
      %v353 = vsel %vm328, %v321, 0.0
      %354 = vadd.xlane.f32.xlu0 %v353
      %v355 = vpop.xlane.xlu0 %354
      %v356 = vsel %vm328, %v324, 0.0
      %357 = vadd.xlane.f32.xlu0 %v356
      %v358 = vpop.xlane.xlu0 %357
      %v359 = vrcp.pop 32.0
      %v360 = vmul.f32 32.0, %v359
      %v361 = vsub.f32 1.0, %v360
      %v362 = vmul.f32 %v359, %v361
      %v363 = vadd.f32 %v359, %v362
      %vm364 = vweird.f32 %v359
      %v365 = vsel %vm364, %v359, %v363
      %v366 = vmul.f32 %v331, %v365
      %v367 = vmul.f32 %v334, %v365
      %v368 = vmul.f32 %v337, %v365
      %v369 = vmul.f32 %v340, %v365
      %v370 = vmul.f32 %v343, %v365
      %v371 = vmul.f32 %v346, %v365
      %v372 = vmul.f32 %v349, %v365
      %v373 = vmul.f32 %v352, %v365
      %v374 = vmul.f32 %v355, %v365
      %v375 = vmul.f32 %v358, %v365
      %v376 = vsub.f32 %v297, %v366
      %v377 = vsub.f32 %v300, %v367
      %v378 = vsub.f32 %v303, %v368
      %v379 = vsub.f32 %v306, %v369
      %v380 = vsub.f32 %v309, %v370
      %v381 = vsub.f32 %v312, %v371
      %v382 = vsub.f32 %v315, %v372
      %v383 = vsub.f32 %v318, %v373
      %v384 = vsub.f32 %v321, %v374
      %v385 = vsub.f32 %v324, %v375
      %v386 = vmul.f32 %v376, %v376
      %v387 = vmul.f32 %v377, %v377
      %v388 = vmul.f32 %v378, %v378
      %v389 = vmul.f32 %v379, %v379
      %v390 = vmul.f32 %v380, %v380
      %v391 = vmul.f32 %v381, %v381
      %v392 = vmul.f32 %v382, %v382
      %v393 = vmul.f32 %v383, %v383
      %v394 = vmul.f32 %v384, %v384
      %v395 = vmul.f32 %v385, %v385
      %v396 = vsel %vm328, %v386, 0.0
      %397 = vadd.xlane.f32.xlu0 %v396
      %v398 = vpop.xlane.xlu0 %397
      %v399 = vsel %vm328, %v387, 0.0
      %400 = vadd.xlane.f32.xlu0 %v399
      %v401 = vpop.xlane.xlu0 %400
      %v402 = vsel %vm328, %v388, 0.0
      %403 = vadd.xlane.f32.xlu0 %v402
      %v404 = vpop.xlane.xlu0 %403
      %v405 = vsel %vm328, %v389, 0.0
      %406 = vadd.xlane.f32.xlu0 %v405
      %v407 = vpop.xlane.xlu0 %406
      %v408 = vsel %vm328, %v390, 0.0
      %409 = vadd.xlane.f32.xlu0 %v408
      %v410 = vpop.xlane.xlu0 %409
      %v411 = vsel %vm328, %v391, 0.0
      %412 = vadd.xlane.f32.xlu0 %v411
      %v413 = vpop.xlane.xlu0 %412
      %v414 = vsel %vm328, %v392, 0.0
      %415 = vadd.xlane.f32.xlu0 %v414
      %v416 = vpop.xlane.xlu0 %415
      %v417 = vsel %vm328, %v393, 0.0
      %418 = vadd.xlane.f32.xlu0 %v417
      %v419 = vpop.xlane.xlu0 %418
      %v420 = vsel %vm328, %v394, 0.0
      %421 = vadd.xlane.f32.xlu0 %v420
      %v422 = vpop.xlane.xlu0 %421
      %v423 = vsel %vm328, %v395, 0.0
      %424 = vadd.xlane.f32.xlu0 %v423
      %v425 = vpop.xlane.xlu0 %424
      %v426 = vmul.f32 %v398, %v365
      %v427 = vmul.f32 %v401, %v365
      %v428 = vmul.f32 %v404, %v365
      %v429 = vmul.f32 %v407, %v365
      %v430 = vmul.f32 %v410, %v365
      %v431 = vmul.f32 %v413, %v365
      %v432 = vmul.f32 %v416, %v365
      %v433 = vmul.f32 %v419, %v365
      %v434 = vmul.f32 %v422, %v365
      %v435 = vmul.f32 %v425, %v365
      %v436 = vadd.f32 %v426, 1e-05
      %v437 = vadd.f32 %v427, 1e-05
      %v438 = vadd.f32 %v428, 1e-05
      %v439 = vadd.f32 %v429, 1e-05
      %v440 = vadd.f32 %v430, 1e-05
      %v441 = vadd.f32 %v431, 1e-05
      %v442 = vadd.f32 %v432, 1e-05
      %v443 = vadd.f32 %v433, 1e-05
      %v444 = vadd.f32 %v434, 1e-05
      %v445 = vadd.f32 %v435, 1e-05
      %v446 = vrsqrt.pop %v436
      %v447 = vmul.f32 %v446, %v436
      %v448 = vmul.f32 %v447, %v446
      %v449 = vmul.f32 0.5, %v448
      %v450 = vsub.f32 1.5, %v449
      %v451 = vmul.f32 %v446, %v450
      %vm452 = vweird.f32 %v436
      %vm453 = vweird.f32 %v446
      %vm454 = vmor %vm452, %vm453
      %v455 = vsel %vm454, %v446, %v451
      %v456 = vrsqrt.pop %v437
      %v457 = vmul.f32 %v456, %v437
      %v458 = vmul.f32 %v457, %v456
      %v459 = vmul.f32 0.5, %v458
      %v460 = vsub.f32 1.5, %v459
      %v461 = vmul.f32 %v456, %v460
      %vm462 = vweird.f32 %v437
      %vm463 = vweird.f32 %v456
      %vm464 = vmor %vm462, %vm463
      %v465 = vsel %vm464, %v456, %v461
      %v466 = vrsqrt.pop %v438
      %v467 = vmul.f32 %v466, %v438
      %v468 = vmul.f32 %v467, %v466
      %v469 = vmul.f32 0.5, %v468
      %v470 = vsub.f32 1.5, %v469
      %v471 = vmul.f32 %v466, %v470
      %vm472 = vweird.f32 %v438
      %vm473 = vweird.f32 %v466
      %vm474 = vmor %vm472, %vm473
      %v475 = vsel %vm474, %v466, %v471
      %v476 = vrsqrt.pop %v439
      %v477 = vmul.f32 %v476, %v439
      %v478 = vmul.f32 %v477, %v476
      %v479 = vmul.f32 0.5, %v478
      %v480 = vsub.f32 1.5, %v479
      %v481 = vmul.f32 %v476, %v480
      %vm482 = vweird.f32 %v439
      %vm483 = vweird.f32 %v476
      %vm484 = vmor %vm482, %vm483
      %v485 = vsel %vm484, %v476, %v481
      %v486 = vrsqrt.pop %v440
      %v487 = vmul.f32 %v486, %v440
      %v488 = vmul.f32 %v487, %v486
      %v489 = vmul.f32 0.5, %v488
      %v490 = vsub.f32 1.5, %v489
      %v491 = vmul.f32 %v486, %v490
      %vm492 = vweird.f32 %v440
      %vm493 = vweird.f32 %v486
      %vm494 = vmor %vm492, %vm493
      %v495 = vsel %vm494, %v486, %v491
      %v496 = vrsqrt.pop %v441
      %v497 = vmul.f32 %v496, %v441
      %v498 = vmul.f32 %v497, %v496
      %v499 = vmul.f32 0.5, %v498
      %v500 = vsub.f32 1.5, %v499
      %v501 = vmul.f32 %v496, %v500
      %vm502 = vweird.f32 %v441
      %vm503 = vweird.f32 %v496
      %vm504 = vmor %vm502, %vm503
      %v505 = vsel %vm504, %v496, %v501
      %v506 = vrsqrt.pop %v442
      %v507 = vmul.f32 %v506, %v442
      %v508 = vmul.f32 %v507, %v506
      %v509 = vmul.f32 0.5, %v508
      %v510 = vsub.f32 1.5, %v509
      %v511 = vmul.f32 %v506, %v510
      %vm512 = vweird.f32 %v442
      %vm513 = vweird.f32 %v506
      %vm514 = vmor %vm512, %vm513
      %v515 = vsel %vm514, %v506, %v511
      %v516 = vrsqrt.pop %v443
      %v517 = vmul.f32 %v516, %v443
      %v518 = vmul.f32 %v517, %v516
      %v519 = vmul.f32 0.5, %v518
      %v520 = vsub.f32 1.5, %v519
      %v521 = vmul.f32 %v516, %v520
      %vm522 = vweird.f32 %v443
      %vm523 = vweird.f32 %v516
      %vm524 = vmor %vm522, %vm523
      %v525 = vsel %vm524, %v516, %v521
      %v526 = vrsqrt.pop %v444
      %v527 = vmul.f32 %v526, %v444
      %v528 = vmul.f32 %v527, %v526
      %v529 = vmul.f32 0.5, %v528
      %v530 = vsub.f32 1.5, %v529
      %v531 = vmul.f32 %v526, %v530
      %vm532 = vweird.f32 %v444
      %vm533 = vweird.f32 %v526
      %vm534 = vmor %vm532, %vm533
      %v535 = vsel %vm534, %v526, %v531
      %v536 = vrsqrt.pop %v445
      %v537 = vmul.f32 %v536, %v445
      %v538 = vmul.f32 %v537, %v536
      %v539 = vmul.f32 0.5, %v538
      %v540 = vsub.f32 1.5, %v539
      %v541 = vmul.f32 %v536, %v540
      %vm542 = vweird.f32 %v445
      %vm543 = vweird.f32 %v536
      %vm544 = vmor %vm542, %vm543
      %v545 = vsel %vm544, %v536, %v541
      %v546 = vmul.f32 %v376, %v455
      %v547 = vmul.f32 %v377, %v465
      %v548 = vmul.f32 %v378, %v475
      %v549 = vmul.f32 %v379, %v485
      %v550 = vmul.f32 %v380, %v495
      %v551 = vmul.f32 %v381, %v505
      %v552 = vmul.f32 %v382, %v515
      %v553 = vmul.f32 %v383, %v525
      %v554 = vmul.f32 %v384, %v535
      %v555 = vmul.f32 %v385, %v545
      %v557 = vperm.slane %v326, 0
      %v559 = vmul.f32 %v546, %v557
      %v560 = vmul.f32 %v547, %v557
      %v561 = vmul.f32 %v548, %v557
      %v562 = vmul.f32 %v549, %v557
      %v563 = vmul.f32 %v550, %v557
      %v564 = vmul.f32 %v551, %v557
      %v565 = vmul.f32 %v552, %v557
      %v566 = vmul.f32 %v553, %v557
      %v567 = vmul.f32 %v554, %v557
      %v568 = vmul.f32 %v555, %v557
      %v570 = vperm.slane %v327, 0
      %v572 = vadd.f32 %v559, %v570
      %v573 = vadd.f32 %v560, %v570
      %v574 = vadd.f32 %v561, %v570
      %v575 = vadd.f32 %v562, %v570
      %v576 = vadd.f32 %v563, %v570
      %v577 = vadd.f32 %v564, %v570
      %v578 = vadd.f32 %v565, %v570
      %v579 = vadd.f32 %v566, %v570
      %v580 = vadd.f32 %v567, %v570
      %v581 = vadd.f32 %v568, %v570
      %v582 = vmul.f32 %v572, 0.5
      %v583 = vmul.f32 %v573, 0.5
      %v584 = vmul.f32 %v574, 0.5
      %v585 = vmul.f32 %v575, 0.5
      %v586 = vmul.f32 %v576, 0.5
      %v587 = vmul.f32 %v577, 0.5
      %v588 = vmul.f32 %v578, 0.5
      %v589 = vmul.f32 %v579, 0.5
      %v590 = vmul.f32 %v580, 0.5
      %v591 = vmul.f32 %v581, 0.5
      %v592 = vmul.f32 %v572, 0.044715
      %v593 = vmul.f32 %v573, 0.044715
      %v594 = vmul.f32 %v574, 0.044715
      %v595 = vmul.f32 %v575, 0.044715
      %v596 = vmul.f32 %v576, 0.044715
      %v597 = vmul.f32 %v577, 0.044715
      %v598 = vmul.f32 %v578, 0.044715
      %v599 = vmul.f32 %v579, 0.044715
      %v600 = vmul.f32 %v580, 0.044715
      %v601 = vmul.f32 %v581, 0.044715
      %v602 = vmul.f32 %v592, %v572
      %v603 = vmul.f32 %v593, %v573
      %v604 = vmul.f32 %v594, %v574
      %v605 = vmul.f32 %v595, %v575
      %v606 = vmul.f32 %v596, %v576
      %v607 = vmul.f32 %v597, %v577
      %v608 = vmul.f32 %v598, %v578
      %v609 = vmul.f32 %v599, %v579
      %v610 = vmul.f32 %v600, %v580
      %v611 = vmul.f32 %v601, %v581
      %v612 = vmul.f32 %v602, %v572
      %v613 = vmul.f32 %v603, %v573
      %v614 = vmul.f32 %v604, %v574
      %v615 = vmul.f32 %v605, %v575
      %v616 = vmul.f32 %v606, %v576
      %v617 = vmul.f32 %v607, %v577
      %v618 = vmul.f32 %v608, %v578
      %v619 = vmul.f32 %v609, %v579
      %v620 = vmul.f32 %v610, %v580
      %v621 = vmul.f32 %v611, %v581
      %v622 = vadd.f32 %v572, %v612
      %v623 = vadd.f32 %v573, %v613
      %v624 = vadd.f32 %v574, %v614
      %v625 = vadd.f32 %v575, %v615
      %v626 = vadd.f32 %v576, %v616
      %v627 = vadd.f32 %v577, %v617
      %v628 = vadd.f32 %v578, %v618
      %v629 = vadd.f32 %v579, %v619
      %v630 = vadd.f32 %v580, %v620
      %v631 = vadd.f32 %v581, %v621
      %v632 = vmul.f32 %v622, 0.7978846
      %v633 = vmul.f32 %v623, 0.7978846
      %v634 = vmul.f32 %v624, 0.7978846
      %v635 = vmul.f32 %v625, 0.7978846
      %v636 = vmul.f32 %v626, 0.7978846
      %v637 = vmul.f32 %v627, 0.7978846
      %v638 = vmul.f32 %v628, 0.7978846
      %v639 = vmul.f32 %v629, 0.7978846
      %v640 = vmul.f32 %v630, 0.7978846
      %v641 = vmul.f32 %v631, 0.7978846
      %v642 = vtanh.pop %v632
      %v643 = vtanh.pop %v633
      %v644 = vtanh.pop %v634
      %v645 = vtanh.pop %v635
      %v646 = vtanh.pop %v636
      %v647 = vtanh.pop %v637
      %v648 = vtanh.pop %v638
      %v649 = vtanh.pop %v639
      %v650 = vtanh.pop %v640
      %v651 = vtanh.pop %v641
      %v652 = vadd.f32 %v642, 1.0
      %v653 = vadd.f32 %v643, 1.0
      %v654 = vadd.f32 %v644, 1.0
      %v655 = vadd.f32 %v645, 1.0
      %v656 = vadd.f32 %v646, 1.0
      %v657 = vadd.f32 %v647, 1.0
      %v658 = vadd.f32 %v648, 1.0
      %v659 = vadd.f32 %v649, 1.0
      %v660 = vadd.f32 %v650, 1.0
      %v661 = vadd.f32 %v651, 1.0
      %v662 = vmul.f32 %v582, %v652
      %v663 = vmul.f32 %v583, %v653
      %v664 = vmul.f32 %v584, %v654
      %v665 = vmul.f32 %v585, %v655
      %v666 = vmul.f32 %v586, %v656
      %v667 = vmul.f32 %v587, %v657
      %v668 = vmul.f32 %v588, %v658
      %v669 = vmul.f32 %v589, %v659
      %v670 = vmul.f32 %v590, %v660
      %v671 = vmul.f32 %v591, %v661
      %672 = vst.msk [vmem:[%s226] sm:$0xff] %vm328, %v662
      %673 = vst.msk [vmem:[%s226 + $0x8] sm:$0xff] %vm328, %v663
      %674 = vst.msk [vmem:[%s226 + $0x10] sm:$0xff] %vm328, %v664
      %675 = vst.msk [vmem:[%s226 + $0x18] sm:$0xff] %vm328, %v665
      %676 = vst.msk [vmem:[%s226 + $0x20] sm:$0xff] %vm328, %v666
      %677 = vst.msk [vmem:[%s226 + $0x28] sm:$0xff] %vm328, %v667
      %678 = vst.msk [vmem:[%s226 + $0x30] sm:$0xff] %vm328, %v668
      %679 = vst.msk [vmem:[%s226 + $0x38] sm:$0xff] %vm328, %v669
      %680 = vst.msk [vmem:[%s226 + $0x40] sm:$0xff] %vm328, %v670
      %681 = vst.msk [vmem:[%s226 + $0x48] sm:$0xff] %vm328, %v671
      %s682 = smul.u32 10, %s16
      %p683 = scmp.lt.s32.totalorder %s682, 19
      %s684 = scalar_select %p683, %s682, 19
      %s685 = smul.addr %s684, 8
      %s686 = scalar_lea.vmem %s5, %s685
      // Predicated region
      $region41: #{_lambda_.3} parent=39 // pred_check
        %p687 = pneg %p144
      $region42: #{_lambda_.3} parent=39 // pred_check_branch
        %689 = sbr.rel (%p687) target = $region44
      $region43: #{_lambda_.3} parent=39 // pred_region
        %s690 = smul.u32 10, %s16
      $region44: #{_lambda_.3} parent=39 // pred_fallthru
        _
    $region40: #{_lambda_.3} parent=5 // pred_fallthru
      _
    %p691 = scmp.le.s32.totalorder 2, %s11
    // Predicated region
    $region45: #{_lambda_.3} parent=5 // pred_check
      %p692 = pneg %p691
    $region46: #{_lambda_.3} parent=5 // pred_check_branch
      %694 = sbr.rel (%p692) target = $region48
    $region47: #{_lambda_.3} parent=5 // pred_region
      %s695 = ssub.s32 %s11, 2
      // Predicated region
      $region49: #{_lambda_.3} parent=47 // pred_check
        %p696 = pneg %p150
      $region50: #{_lambda_.3} parent=47 // pred_check_branch
        %698 = sbr.rel (%p696) target = $region52
      $region51: #{_lambda_.3} parent=47 // pred_region
        %s699 = smul.u32 10, %s17
        %p700 = scmp.lt.s32.totalorder %s699, 19
        %s701 = scalar_select %p700, %s699, 19
        %s702 = smul.addr %s701, 8
        %s703 = scalar_lea.vmem %s5, %s702
      $region52: #{_lambda_.3} parent=47 // pred_fallthru
        _
    $region48: #{_lambda_.3} parent=5 // pred_fallthru
      _
  $region6: #{_lambda_.3} parent=0 // loop_footer
    %s15 = sadd.s32 1, %s11
  $region7: #{_lambda_.3} parent=0 // loop_footer_branch
    %10 = sbr.rel target = $region3
  $region8: #{_lambda_.3} parent=0 // loop_exit
    _

// kernel: _lambda_.4
$region0: #{_lambda_.4}
  #allocation0 [shape = 'u32[]', space=smem, size = 0x4, offset = 0x4, fixed_abs, tag = 'smem constant byte address 0x4 - core index']
  #allocation1 [shape = 'u32[72,128]{1,0:T(1,128)}', space=vmem, size = 0x9000, scoped, tag = 'internal scratch']
  %s0 = inlined_call_operand.vmem [shape: f32[80,96], index: 0, kind: input, shape index: {}]
  %s1 = inlined_call_operand.vmem [shape: f32[96,32], index: 1, kind: input, shape index: {}]
  %s2 = inlined_call_operand.vmem [shape: f32[1,32], index: 2, kind: input, shape index: {}]
  %s3 = inlined_call_operand.vmem [shape: f32[1,32], index: 3, kind: input, shape index: {}]
  %s4 = inlined_call_operand.vmem [shape: f32[1,32], index: 4, kind: input, shape index: {}]
  %s5 = inlined_call_operand.vmem [shape: f32[80,32], index: 5, kind: output, shape index: {}]
  %s6 = sld [smem:[#allocation0]]
  $region53: #{_lambda_.4} parent=0
    _
  %s8 = ssub.s32 1, %s6
  %s9 = scalar_select 0, %s8, %s6
  loop: start=0, step=1, limit=4
  $region2: #{_lambda_.4} parent=0 // loop_pre_header
    _
  $region3: #{_lambda_.4} parent=0 // loop_header
    %s11 = sphi 0, %s15
    %p12 = scmp.ge.s32.totalorder %s11, 4
    %s21 = sphi 0, %s23
    %s24 = sphi 0, %s21
    %s25 = sphi 0, %s24
    %s41 = sphi 0, %s25
    %s45 = sphi 0, %s45
    %s47 = sphi 0, %s45
    %s48 = sphi 0, %s47
    %s62 = sphi 0, %s48
    %s66 = sphi 0, %s66
    %s68 = sphi 0, %s66
    %s69 = sphi 0, %s68
    %s83 = sphi 0, %s69
    %s87 = sphi 0, %s87
    %s89 = sphi 0, %s87
    %s90 = sphi 0, %s89
    %s104 = sphi 0, %s90
    %s108 = sphi 0, %s108
    %s110 = sphi 0, %s108
    %s111 = sphi 0, %s110
    %s125 = sphi 0, %s111
    %s131 = sphi 0, %s133
    %s134 = sphi 0, %s131
    %s135 = sphi 0, %s134
    %s151 = sphi 0, %s135
  $region4: #{_lambda_.4} parent=0 // loop_header_branch
    %14 = sbr.rel (%p12) target = $region8
  $region5: #{_lambda_.4} parent=0 // loop_body
    %s16 = ssub.s32 %s11, 1
    %s17 = ssub.s32 %s11, 2
    %s18 = sadd.s32 %s11, 1
    %s19 = ssub.s32 %s11, %s18
    %p20 = scmp.eq.s32.totalorder %s19, 0
    %s22 = sadd.s32 %s21, 1
    %s23 = scalar_select %p20, %s21, %s22
    %p26 = pneg %p20
    %p27 = scmp.eq.s32.totalorder %s11, 1
    %p28 = por %p26, %p27
    %p29 = scmp.ne.s32.totalorder %s21, %s24
    %p30 = scmp.eq.s32.totalorder %s11, 0
    %p31 = por %p29, %p30
    %p32 = scmp.ne.s32.totalorder %s21, %s24
    %p33 = scmp.eq.s32.totalorder %s16, 1
    %p34 = por %p32, %p33
    %p35 = scmp.ne.s32.totalorder %s24, %s25
    %p36 = scmp.eq.s32.totalorder %s16, 0
    %p37 = por %p35, %p36
    %p38 = scmp.ne.s32.totalorder %s24, %s25
    %p39 = scmp.eq.s32.totalorder %s17, 1
    %p40 = por %p38, %p39
    %p42 = scmp.ne.s32.totalorder %s25, %s41
    %p43 = scmp.eq.s32.totalorder %s17, 0
    %p44 = por %p42, %p43
    %s46 = sadd.s32 %s45, 1
    %p49 = scmp.eq.s32.totalorder %s11, 1
    %p50 = scmp.ne.s32.totalorder %s45, %s47
    %p51 = scmp.eq.s32.totalorder %s11, 0
    %p52 = por %p50, %p51
    %p53 = scmp.ne.s32.totalorder %s45, %s47
    %p54 = scmp.eq.s32.totalorder %s16, 1
    %p55 = por %p53, %p54
    %p56 = scmp.ne.s32.totalorder %s47, %s48
    %p57 = scmp.eq.s32.totalorder %s16, 0
    %p58 = por %p56, %p57
    %p59 = scmp.ne.s32.totalorder %s47, %s48
    %p60 = scmp.eq.s32.totalorder %s17, 1
    %p61 = por %p59, %p60
    %p63 = scmp.ne.s32.totalorder %s48, %s62
    %p64 = scmp.eq.s32.totalorder %s17, 0
    %p65 = por %p63, %p64
    %s67 = sadd.s32 %s66, 1
    %p70 = scmp.eq.s32.totalorder %s11, 1
    %p71 = scmp.ne.s32.totalorder %s66, %s68
    %p72 = scmp.eq.s32.totalorder %s11, 0
    %p73 = por %p71, %p72
    %p74 = scmp.ne.s32.totalorder %s66, %s68
    %p75 = scmp.eq.s32.totalorder %s16, 1
    %p76 = por %p74, %p75
    %p77 = scmp.ne.s32.totalorder %s68, %s69
    %p78 = scmp.eq.s32.totalorder %s16, 0
    %p79 = por %p77, %p78
    %p80 = scmp.ne.s32.totalorder %s68, %s69
    %p81 = scmp.eq.s32.totalorder %s17, 1
    %p82 = por %p80, %p81
    %p84 = scmp.ne.s32.totalorder %s69, %s83
    %p85 = scmp.eq.s32.totalorder %s17, 0
    %p86 = por %p84, %p85
    %s88 = sadd.s32 %s87, 1
    %p91 = scmp.eq.s32.totalorder %s11, 1
    %p92 = scmp.ne.s32.totalorder %s87, %s89
    %p93 = scmp.eq.s32.totalorder %s11, 0
    %p94 = por %p92, %p93
    %p95 = scmp.ne.s32.totalorder %s87, %s89
    %p96 = scmp.eq.s32.totalorder %s16, 1
    %p97 = por %p95, %p96
    %p98 = scmp.ne.s32.totalorder %s89, %s90
    %p99 = scmp.eq.s32.totalorder %s16, 0
    %p100 = por %p98, %p99
    %p101 = scmp.ne.s32.totalorder %s89, %s90
    %p102 = scmp.eq.s32.totalorder %s17, 1
    %p103 = por %p101, %p102
    %p105 = scmp.ne.s32.totalorder %s90, %s104
    %p106 = scmp.eq.s32.totalorder %s17, 0
    %p107 = por %p105, %p106
    %s109 = sadd.s32 %s108, 1
    %p112 = scmp.eq.s32.totalorder %s11, 1
    %p113 = scmp.ne.s32.totalorder %s108, %s110
    %p114 = scmp.eq.s32.totalorder %s11, 0
    %p115 = por %p113, %p114
    %p116 = scmp.ne.s32.totalorder %s108, %s110
    %p117 = scmp.eq.s32.totalorder %s16, 1
    %p118 = por %p116, %p117
    %p119 = scmp.ne.s32.totalorder %s110, %s111
    %p120 = scmp.eq.s32.totalorder %s16, 0
    %p121 = por %p119, %p120
    %p122 = scmp.ne.s32.totalorder %s110, %s111
    %p123 = scmp.eq.s32.totalorder %s17, 1
    %p124 = por %p122, %p123
    %p126 = scmp.ne.s32.totalorder %s111, %s125
    %p127 = scmp.eq.s32.totalorder %s17, 0
    %p128 = por %p126, %p127
    %s129 = ssub.s32 %s11, %s18
    %p130 = scmp.eq.s32.totalorder %s129, 0
    %s132 = sadd.s32 %s131, 1
    %s133 = scalar_select %p130, %s131, %s132
    %p136 = pneg %p130
    %p137 = scmp.eq.s32.totalorder %s11, 1
    %p138 = por %p136, %p137
    %p139 = scmp.ne.s32.totalorder %s131, %s134
    %p140 = scmp.eq.s32.totalorder %s11, 0
    %p141 = por %p139, %p140
    %p142 = scmp.ne.s32.totalorder %s131, %s134
    %p143 = scmp.eq.s32.totalorder %s16, 1
    %p144 = por %p142, %p143
    %p145 = scmp.ne.s32.totalorder %s134, %s135
    %p146 = scmp.eq.s32.totalorder %s16, 0
    %p147 = por %p145, %p146
    %p148 = scmp.ne.s32.totalorder %s134, %s135
    %p149 = scmp.eq.s32.totalorder %s17, 1
    %p150 = por %p148, %p149
    %p152 = scmp.ne.s32.totalorder %s135, %s151
    %p153 = scmp.eq.s32.totalorder %s17, 0
    %p154 = por %p152, %p153
    %p155 = scmp.le.s32.totalorder 1, %s11
    %p156 = scmp.lt.s32.totalorder %s11, 3
    %p157 = pnand %p155, %p156
    %p158 = pneg %p157
    // Predicated region
    $region9: #{_lambda_.4} parent=5 // pred_check
      _
    $region10: #{_lambda_.4} parent=5 // pred_check_branch
      %160 = sbr.rel (%p157) target = $region12
    $region11: #{_lambda_.4} parent=5 // pred_region
      %s161 = ssub.s32 %s11, 1
      // Predicated region
      $region13: #{_lambda_.4} parent=11 // pred_check
        %p162 = pneg %p58
      $region14: #{_lambda_.4} parent=11 // pred_check_branch
        %164 = sbr.rel (%p162) target = $region16
      $region15: #{_lambda_.4} parent=11 // pred_region
        _
      $region16: #{_lambda_.4} parent=11 // pred_fallthru
        _
      // Predicated region
      $region17: #{_lambda_.4} parent=11 // pred_check
        %p165 = pneg %p79
      $region18: #{_lambda_.4} parent=11 // pred_check_branch
        %167 = sbr.rel (%p165) target = $region20
      $region19: #{_lambda_.4} parent=11 // pred_region
        _
      $region20: #{_lambda_.4} parent=11 // pred_fallthru
        _
      // Predicated region
      $region21: #{_lambda_.4} parent=11 // pred_check
        %p168 = pneg %p100
      $region22: #{_lambda_.4} parent=11 // pred_check_branch
        %170 = sbr.rel (%p168) target = $region24
      $region23: #{_lambda_.4} parent=11 // pred_region
        _
      $region24: #{_lambda_.4} parent=11 // pred_fallthru
        _
      // Predicated region
      $region25: #{_lambda_.4} parent=11 // pred_check
        %p171 = pneg %p121
      $region26: #{_lambda_.4} parent=11 // pred_check_branch
        %173 = sbr.rel (%p171) target = $region28
      $region27: #{_lambda_.4} parent=11 // pred_region
        _
      $region28: #{_lambda_.4} parent=11 // pred_fallthru
        _
    $region12: #{_lambda_.4} parent=5 // pred_fallthru
      _
    %p174 = scmp.lt.s32.totalorder %s11, 2
    // Predicated region
    $region29: #{_lambda_.4} parent=5 // pred_check
      %p175 = pneg %p174
    $region30: #{_lambda_.4} parent=5 // pred_check_branch
      %177 = sbr.rel (%p175) target = $region32
    $region31: #{_lambda_.4} parent=5 // pred_region
      // Predicated region
      $region33: #{_lambda_.4} parent=31 // pred_check
        %p178 = pneg %p31
      $region34: #{_lambda_.4} parent=31 // pred_check_branch
        %180 = sbr.rel (%p178) target = $region36
      $region35: #{_lambda_.4} parent=31 // pred_region
        %s181 = smul.u32 5, %s11
        %p182 = scmp.lt.s32.totalorder %s181, 9
        %s183 = scalar_select %p182, %s181, 9
        %s184 = smul.addr %s183, 8
        %s185 = scalar_lea.vmem %s0, %s184
        %s186 = smul.u32 5, %s11
      $region36: #{_lambda_.4} parent=31 // pred_fallthru
        _
    $region32: #{_lambda_.4} parent=5 // pred_fallthru
      _
    %p187 = scmp.le.s32.totalorder 1, %s11
    %p188 = scmp.lt.s32.totalorder %s11, 3
    %p189 = pnand %p187, %p188
    %p190 = pneg %p189
    // Predicated region
    $region37: #{_lambda_.4} parent=5 // pred_check
      _
    $region38: #{_lambda_.4} parent=5 // pred_check_branch
      %192 = sbr.rel (%p189) target = $region40
    $region39: #{_lambda_.4} parent=5 // pred_region
      %s193 = ssub.s32 %s11, 1
      %s194 = smul.u32 5, %s16
      %p195 = scmp.lt.s32.totalorder %s194, 9
      %s196 = scalar_select %p195, %s194, 9
      %s197 = smul.addr %s196, 8
      %s198 = scalar_lea.vmem %s0, %s197
      %p199 = pneg %p37
      %p200 = pneg %p34
      %p201 = pneg %p58
      %p202 = pneg %p55
      %p203 = pneg %p79
      %p204 = pneg %p76
      %p205 = pneg %p100
      %p206 = pneg %p97
      %p207 = pneg %p121
      %p208 = pneg %p118
      %p209 = pneg %p147
      %p210 = pneg %p144
      %s211 = smul.u32 5, %s16
      %p212 = scmp.lt.s32.totalorder %s211, 9
      %s213 = scalar_select %p212, %s211, 9
      %s214 = smul.addr %s213, 8
      %s215 = scalar_lea.vmem %s5, %s214
      %s216 = smul.u32 5, %s16
      %p217 = scmp.lt.s32.totalorder %s216, 9
      %s218 = scalar_select %p217, %s216, 9
      %s219 = smul.addr %s218, 8
      %s220 = scalar_lea.vmem %s0, %s219
      %s221 = smul.u32 5, %s16
      %s222 = smul.u32 5, %s16
      %p223 = scmp.lt.s32.totalorder %s222, 9
      %s224 = scalar_select %p223, %s222, 9
      %s225 = smul.addr %s224, 8
      %s226 = scalar_lea.vmem %s5, %s225
      %s227 = smul.u32 5, %s16
      %v228 = vld [vmem:[%s220] sm:$0xff]
      %v229 = vld [vmem:[%s220 + $0x8] sm:$0xff]
      %v230 = vld [vmem:[%s220 + $0x10] sm:$0xff]
      %v231 = vld [vmem:[%s220 + $0x18] sm:$0xff]
      %v232 = vld [vmem:[%s220 + $0x20] sm:$0xff]
      %v233 = vld [vmem:[%s1] sm:$0xff]
      %v234 = vld [vmem:[%s1 + $0x8] sm:$0xff]
      %v235 = vld [vmem:[%s1 + $0x10] sm:$0xff]
      %v236 = vld [vmem:[%s1 + $0x18] sm:$0xff]
      %v237 = vld [vmem:[%s1 + $0x20] sm:$0xff]
      %v238 = vld [vmem:[%s1 + $0x28] sm:$0xff]
      %v239 = vld [vmem:[%s1 + $0x30] sm:$0xff]
      %v240 = vld [vmem:[%s1 + $0x38] sm:$0xff]
      %v241 = vld [vmem:[%s1 + $0x40] sm:$0xff]
      %v242 = vld [vmem:[%s1 + $0x48] sm:$0xff]
      %v243 = vld [vmem:[%s1 + $0x50] sm:$0xff]
      %v244 = vld [vmem:[%s1 + $0x58] sm:$0xff]
      %v245 = vld [vmem:[%s2] sm:$0x1]
      %v247 = vperm.slane %v245, 0
      %vm249 = vcmask 785408
      %v251 = vsel %vm249, %v228, 0
      %v254 = vsel %vm249, %v229, 0
      %v257 = vsel %vm249, %v230, 0
      %v260 = vsel %vm249, %v231, 0
      %v263 = vsel %vm249, %v232, 0
      %265 = vmatpush.msra.mxu0 0.0
      %266 = vmatpush.msra.mxu0 0.0
      %267 = vmatpush.msra.mxu0 0.0
      %268 = vmatpush.msra.mxu0 0.0
      %269 = vmatpush.msra.mxu0 %v244
      %270 = vmatpush.msra.mxu0 %v243
      %271 = vmatpush.msra.mxu0 %v242
      %272 = vmatpush.msra.mxu0 %v241
      %273 = vmatpush.msra.mxu0 %v240
      %274 = vmatpush.msra.mxu0 %v239
      %275 = vmatpush.msra.mxu0 %v238
      %276 = vmatpush.msra.mxu0 %v237
      %277 = vmatpush.msra.mxu0 %v236
      %278 = vmatpush.msra.mxu0 %v235
      %279 = vmatpush.msra.mxu0 %v234
      %280 = vmatpush.msra.mxu0 %v233
      %281 = vmatmul.f32.gmra.mxu0 %v251
      %v282 = vpop.f32.mrf.mxu0
      %v283 = vadd.f32 %v247, %v282
      %284 = vmatmul.f32.gmra.mxu0 %v254
      %v285 = vpop.f32.mrf.mxu0
      %v286 = vadd.f32 %v247, %v285
      %287 = vmatmul.f32.gmra.mxu0 %v257
      %v288 = vpop.f32.mrf.mxu0
      %v289 = vadd.f32 %v247, %v288
      %290 = vmatmul.f32.gmra.mxu0 %v260
      %v291 = vpop.f32.mrf.mxu0
      %v292 = vadd.f32 %v247, %v291
      %293 = vmatmul.f32.gmra.mxu0 %v263
      %v294 = vpop.f32.mrf.mxu0
      %v295 = vadd.f32 %v247, %v294
      %296 = vdwg.mxu0
      %v297 = vld [vmem:[%s3] sm:$0x1]
      %v298 = vld [vmem:[%s4] sm:$0x1]
      %vm299 = vcmask 261120
      %v300 = vsel %vm299, %v283, 0.0
      %301 = vadd.xlane.f32.xlu0 %v300
      %v302 = vpop.xlane.xlu0 %301
      %v303 = vsel %vm299, %v286, 0.0
      %304 = vadd.xlane.f32.xlu0 %v303
      %v305 = vpop.xlane.xlu0 %304
      %v306 = vsel %vm299, %v289, 0.0
      %307 = vadd.xlane.f32.xlu0 %v306
      %v308 = vpop.xlane.xlu0 %307
      %v309 = vsel %vm299, %v292, 0.0
      %310 = vadd.xlane.f32.xlu0 %v309
      %v311 = vpop.xlane.xlu0 %310
      %v312 = vsel %vm299, %v295, 0.0
      %313 = vadd.xlane.f32.xlu0 %v312
      %v314 = vpop.xlane.xlu0 %313
      %v315 = vrcp.pop 32.0
      %v316 = vmul.f32 32.0, %v315
      %v317 = vsub.f32 1.0, %v316
      %v318 = vmul.f32 %v315, %v317
      %v319 = vadd.f32 %v315, %v318
      %vm320 = vweird.f32 %v315
      %v321 = vsel %vm320, %v315, %v319
      %v322 = vmul.f32 %v302, %v321
      %v323 = vmul.f32 %v305, %v321
      %v324 = vmul.f32 %v308, %v321
      %v325 = vmul.f32 %v311, %v321
      %v326 = vmul.f32 %v314, %v321
      %v327 = vsub.f32 %v283, %v322
      %v328 = vsub.f32 %v286, %v323
      %v329 = vsub.f32 %v289, %v324
      %v330 = vsub.f32 %v292, %v325
      %v331 = vsub.f32 %v295, %v326
      %v332 = vmul.f32 %v327, %v327
      %v333 = vmul.f32 %v328, %v328
      %v334 = vmul.f32 %v329, %v329
      %v335 = vmul.f32 %v330, %v330
      %v336 = vmul.f32 %v331, %v331
      %v337 = vsel %vm299, %v332, 0.0
      %338 = vadd.xlane.f32.xlu0 %v337
      %v339 = vpop.xlane.xlu0 %338
      %v340 = vsel %vm299, %v333, 0.0
      %341 = vadd.xlane.f32.xlu0 %v340
      %v342 = vpop.xlane.xlu0 %341
      %v343 = vsel %vm299, %v334, 0.0
      %344 = vadd.xlane.f32.xlu0 %v343
      %v345 = vpop.xlane.xlu0 %344
      %v346 = vsel %vm299, %v335, 0.0
      %347 = vadd.xlane.f32.xlu0 %v346
      %v348 = vpop.xlane.xlu0 %347
      %v349 = vsel %vm299, %v336, 0.0
      %350 = vadd.xlane.f32.xlu0 %v349
      %v351 = vpop.xlane.xlu0 %350
      %v352 = vmul.f32 %v339, %v321
      %v353 = vmul.f32 %v342, %v321
      %v354 = vmul.f32 %v345, %v321
      %v355 = vmul.f32 %v348, %v321
      %v356 = vmul.f32 %v351, %v321
      %v357 = vadd.f32 %v352, 1e-05
      %v358 = vadd.f32 %v353, 1e-05
      %v359 = vadd.f32 %v354, 1e-05
      %v360 = vadd.f32 %v355, 1e-05
      %v361 = vadd.f32 %v356, 1e-05
      %v362 = vrsqrt.pop %v357
      %v363 = vmul.f32 %v362, %v357
      %v364 = vmul.f32 %v363, %v362
      %v365 = vmul.f32 0.5, %v364
      %v366 = vsub.f32 1.5, %v365
      %v367 = vmul.f32 %v362, %v366
      %vm368 = vweird.f32 %v357
      %vm369 = vweird.f32 %v362
      %vm370 = vmor %vm368, %vm369
      %v371 = vsel %vm370, %v362, %v367
      %v372 = vrsqrt.pop %v358
      %v373 = vmul.f32 %v372, %v358
      %v374 = vmul.f32 %v373, %v372
      %v375 = vmul.f32 0.5, %v374
      %v376 = vsub.f32 1.5, %v375
      %v377 = vmul.f32 %v372, %v376
      %vm378 = vweird.f32 %v358
      %vm379 = vweird.f32 %v372
      %vm380 = vmor %vm378, %vm379
      %v381 = vsel %vm380, %v372, %v377
      %v382 = vrsqrt.pop %v359
      %v383 = vmul.f32 %v382, %v359
      %v384 = vmul.f32 %v383, %v382
      %v385 = vmul.f32 0.5, %v384
      %v386 = vsub.f32 1.5, %v385
      %v387 = vmul.f32 %v382, %v386
      %vm388 = vweird.f32 %v359
      %vm389 = vweird.f32 %v382
      %vm390 = vmor %vm388, %vm389
      %v391 = vsel %vm390, %v382, %v387
      %v392 = vrsqrt.pop %v360
      %v393 = vmul.f32 %v392, %v360
      %v394 = vmul.f32 %v393, %v392
      %v395 = vmul.f32 0.5, %v394
      %v396 = vsub.f32 1.5, %v395
      %v397 = vmul.f32 %v392, %v396
      %vm398 = vweird.f32 %v360
      %vm399 = vweird.f32 %v392
      %vm400 = vmor %vm398, %vm399
      %v401 = vsel %vm400, %v392, %v397
      %v402 = vrsqrt.pop %v361
      %v403 = vmul.f32 %v402, %v361
      %v404 = vmul.f32 %v403, %v402
      %v405 = vmul.f32 0.5, %v404
      %v406 = vsub.f32 1.5, %v405
      %v407 = vmul.f32 %v402, %v406
      %vm408 = vweird.f32 %v361
      %vm409 = vweird.f32 %v402
      %vm410 = vmor %vm408, %vm409
      %v411 = vsel %vm410, %v402, %v407
      %v412 = vmul.f32 %v327, %v371
      %v413 = vmul.f32 %v328, %v381
      %v414 = vmul.f32 %v329, %v391
      %v415 = vmul.f32 %v330, %v401
      %v416 = vmul.f32 %v331, %v411
      %v418 = vperm.slane %v297, 0
      %v420 = vmul.f32 %v412, %v418
      %v421 = vmul.f32 %v413, %v418
      %v422 = vmul.f32 %v414, %v418
      %v423 = vmul.f32 %v415, %v418
      %v424 = vmul.f32 %v416, %v418
      %v426 = vperm.slane %v298, 0
      %v428 = vadd.f32 %v420, %v426
      %v429 = vadd.f32 %v421, %v426
      %v430 = vadd.f32 %v422, %v426
      %v431 = vadd.f32 %v423, %v426
      %v432 = vadd.f32 %v424, %v426
      %v433 = vmul.f32 %v428, 0.5
      %v434 = vmul.f32 %v429, 0.5
      %v435 = vmul.f32 %v430, 0.5
      %v436 = vmul.f32 %v431, 0.5
      %v437 = vmul.f32 %v432, 0.5
      %v438 = vmul.f32 %v428, 0.044715
      %v439 = vmul.f32 %v429, 0.044715
      %v440 = vmul.f32 %v430, 0.044715
      %v441 = vmul.f32 %v431, 0.044715
      %v442 = vmul.f32 %v432, 0.044715
      %v443 = vmul.f32 %v438, %v428
      %v444 = vmul.f32 %v439, %v429
      %v445 = vmul.f32 %v440, %v430
      %v446 = vmul.f32 %v441, %v431
      %v447 = vmul.f32 %v442, %v432
      %v448 = vmul.f32 %v443, %v428
      %v449 = vmul.f32 %v444, %v429
      %v450 = vmul.f32 %v445, %v430
      %v451 = vmul.f32 %v446, %v431
      %v452 = vmul.f32 %v447, %v432
      %v453 = vadd.f32 %v428, %v448
      %v454 = vadd.f32 %v429, %v449
      %v455 = vadd.f32 %v430, %v450
      %v456 = vadd.f32 %v431, %v451
      %v457 = vadd.f32 %v432, %v452
      %v458 = vmul.f32 %v453, 0.7978846
      %v459 = vmul.f32 %v454, 0.7978846
      %v460 = vmul.f32 %v455, 0.7978846
      %v461 = vmul.f32 %v456, 0.7978846
      %v462 = vmul.f32 %v457, 0.7978846
      %v463 = vtanh.pop %v458
      %v464 = vtanh.pop %v459
      %v465 = vtanh.pop %v460
      %v466 = vtanh.pop %v461
      %v467 = vtanh.pop %v462
      %v468 = vadd.f32 %v463, 1.0
      %v469 = vadd.f32 %v464, 1.0
      %v470 = vadd.f32 %v465, 1.0
      %v471 = vadd.f32 %v466, 1.0
      %v472 = vadd.f32 %v467, 1.0
      %v473 = vmul.f32 %v433, %v468
      %v474 = vmul.f32 %v434, %v469
      %v475 = vmul.f32 %v435, %v470
      %v476 = vmul.f32 %v436, %v471
      %v477 = vmul.f32 %v437, %v472
      %478 = vst.msk [vmem:[%s226] sm:$0xff] %vm299, %v473
      %479 = vst.msk [vmem:[%s226 + $0x8] sm:$0xff] %vm299, %v474
      %480 = vst.msk [vmem:[%s226 + $0x10] sm:$0xff] %vm299, %v475
      %481 = vst.msk [vmem:[%s226 + $0x18] sm:$0xff] %vm299, %v476
      %482 = vst.msk [vmem:[%s226 + $0x20] sm:$0xff] %vm299, %v477
      %s483 = smul.u32 5, %s16
      %p484 = scmp.lt.s32.totalorder %s483, 9
      %s485 = scalar_select %p484, %s483, 9
      %s486 = smul.addr %s485, 8
      %s487 = scalar_lea.vmem %s5, %s486
      // Predicated region
      $region41: #{_lambda_.4} parent=39 // pred_check
        %p488 = pneg %p144
      $region42: #{_lambda_.4} parent=39 // pred_check_branch
        %490 = sbr.rel (%p488) target = $region44
      $region43: #{_lambda_.4} parent=39 // pred_region
        %s491 = smul.u32 5, %s16
      $region44: #{_lambda_.4} parent=39 // pred_fallthru
        _
    $region40: #{_lambda_.4} parent=5 // pred_fallthru
      _
    %p492 = scmp.le.s32.totalorder 2, %s11
    // Predicated region
    $region45: #{_lambda_.4} parent=5 // pred_check
      %p493 = pneg %p492
    $region46: #{_lambda_.4} parent=5 // pred_check_branch
      %495 = sbr.rel (%p493) target = $region48
    $region47: #{_lambda_.4} parent=5 // pred_region
      %s496 = ssub.s32 %s11, 2
      // Predicated region
      $region49: #{_lambda_.4} parent=47 // pred_check
        %p497 = pneg %p150
      $region50: #{_lambda_.4} parent=47 // pred_check_branch
        %499 = sbr.rel (%p497) target = $region52
      $region51: #{_lambda_.4} parent=47 // pred_region
        %s500 = smul.u32 5, %s17
        %p501 = scmp.lt.s32.totalorder %s500, 9
        %s502 = scalar_select %p501, %s500, 9
        %s503 = smul.addr %s502, 8
        %s504 = scalar_lea.vmem %s5, %s503
      $region52: #{_lambda_.4} parent=47 // pred_fallthru
        _
    $region48: #{_lambda_.4} parent=5 // pred_fallthru
      _
  $region6: #{_lambda_.4} parent=0 // loop_footer
    %s15 = sadd.s32 1, %s11
  $region7: #{_lambda_.4} parent=0 // loop_footer_branch
    %10 = sbr.rel target = $region3
  $region8: #{_lambda_.4} parent=0 // loop_exit
    _

// kernel: _lambda_.5
$region0: #{_lambda_.5}
  #allocation0 [shape = 'u32[]', space=smem, size = 0x4, offset = 0x4, fixed_abs, tag = 'smem constant byte address 0x4 - core index']
  #allocation1 [shape = 'u32[72,128]{1,0:T(1,128)}', space=vmem, size = 0x9000, scoped, tag = 'internal scratch']
  #allocation2 [shape = 'f32[80,32]{1,0:T(8,128)}', space=vmem, size = 0xa000, scoped, tag = 'scratch operand']
  #allocation3 [shape = 'f32[56,32]{1,0:T(8,128)}', space=vmem, size = 0x7000, scoped, tag = 'scratch operand']
  %s0 = inlined_call_operand.vmem [shape: f32[2,40,32], index: 0, kind: input, shape index: {}]
  %s1 = inlined_call_operand.vmem [shape: f32[1,32], index: 1, kind: input, shape index: {}]
  %s2 = inlined_call_operand.vmem [shape: f32[1,32], index: 2, kind: input, shape index: {}]
  %s3 = inlined_call_operand.vmem [shape: f32[32,32], index: 3, kind: input, shape index: {}]
  %s4 = inlined_call_operand.vmem [shape: f32[1,32], index: 4, kind: input, shape index: {}]
  %s5 = inlined_call_operand.vmem [shape: f32[16,32,32], index: 5, kind: input, shape index: {}]
  %s6 = inlined_call_operand.vmem [shape: f32[1,32], index: 6, kind: input, shape index: {}]
  %s7 = inlined_call_operand.vmem [shape: f32[7,1,32], index: 7, kind: input, shape index: {}]
  %s8 = inlined_call_operand.vmem [shape: f32[7,1,32], index: 8, kind: input, shape index: {}]
  %s9 = inlined_call_operand.vmem [shape: f32[7,32,96], index: 9, kind: input, shape index: {}]
  %s10 = inlined_call_operand.vmem [shape: f32[7,1,96], index: 10, kind: input, shape index: {}]
  %s11 = inlined_call_operand.vmem [shape: f32[7,32,32], index: 11, kind: input, shape index: {}]
  %s12 = inlined_call_operand.vmem [shape: f32[7,1,32], index: 12, kind: input, shape index: {}]
  %s13 = inlined_call_operand.vmem [shape: f32[7,1,32], index: 13, kind: input, shape index: {}]
  %s14 = inlined_call_operand.vmem [shape: f32[7,1,32], index: 14, kind: input, shape index: {}]
  %s15 = inlined_call_operand.vmem [shape: f32[7,32,64], index: 15, kind: input, shape index: {}]
  %s16 = inlined_call_operand.vmem [shape: f32[7,1,64], index: 16, kind: input, shape index: {}]
  %s17 = inlined_call_operand.vmem [shape: f32[7,64,32], index: 17, kind: input, shape index: {}]
  %s18 = inlined_call_operand.vmem [shape: f32[7,1,32], index: 18, kind: input, shape index: {}]
  %s19 = inlined_call_operand.vmem [shape: f32[80,32], index: 19, kind: output, shape index: {}]
  %s20 = sld [smem:[#allocation0]]
  $region117: #{_lambda_.5} parent=0
    _
  %s22 = ssub.s32 1, %s20
  %s23 = scalar_select 0, %s22, %s20
  loop: start=0, step=1, limit=9
  $region2: #{_lambda_.5} parent=0 // loop_pre_header
    _
  $region3: #{_lambda_.5} parent=0 // loop_header
    %s25 = sphi 0, %s29
    %p26 = scmp.ge.s32.totalorder %s25, 9
    %s33 = sphi 0, %s33
    %s35 = sphi 0, %s33
    %s36 = sphi 0, %s35
    %s50 = sphi 0, %s36
    %s54 = sphi 0, %s54
    %s56 = sphi 0, %s54
    %s57 = sphi 0, %s56
    %s71 = sphi 0, %s57
    %s75 = sphi 0, %s75
    %s77 = sphi 0, %s75
    %s78 = sphi 0, %s77
    %s92 = sphi 0, %s78
    %s96 = sphi 0, %s96
    %s98 = sphi 0, %s96
    %s99 = sphi 0, %s98
    %s113 = sphi 0, %s99
    %s117 = sphi 0, %s117
    %s119 = sphi 0, %s117
    %s120 = sphi 0, %s119
    %s134 = sphi 0, %s120
    %s138 = sphi 0, %s138
    %s140 = sphi 0, %s138
    %s141 = sphi 0, %s140
    %s155 = sphi 0, %s141
    %s159 = sphi 0, %s159
    %s161 = sphi 0, %s159
    %s162 = sphi 0, %s161
    %s176 = sphi 0, %s162
    %s180 = sphi 0, %s180
    %s182 = sphi 0, %s180
    %s183 = sphi 0, %s182
    %s197 = sphi 0, %s183
    %s201 = sphi 0, %s201
    %s203 = sphi 0, %s201
    %s204 = sphi 0, %s203
    %s218 = sphi 0, %s204
    %s222 = sphi 0, %s222
    %s224 = sphi 0, %s222
    %s225 = sphi 0, %s224
    %s239 = sphi 0, %s225
    %s243 = sphi 0, %s243
    %s245 = sphi 0, %s243
    %s246 = sphi 0, %s245
    %s260 = sphi 0, %s246
    %s264 = sphi 0, %s264
    %s266 = sphi 0, %s264
    %s267 = sphi 0, %s266
    %s281 = sphi 0, %s267
    %s285 = sphi 0, %s285
    %s287 = sphi 0, %s285
    %s288 = sphi 0, %s287
    %s302 = sphi 0, %s288
    %s306 = sphi 0, %s306
    %s308 = sphi 0, %s306
    %s309 = sphi 0, %s308
    %s323 = sphi 0, %s309
    %s327 = sphi 0, %s327
    %s329 = sphi 0, %s327
    %s330 = sphi 0, %s329
    %s344 = sphi 0, %s330
    %s348 = sphi 0, %s348
    %s350 = sphi 0, %s348
    %s351 = sphi 0, %s350
    %s365 = sphi 0, %s351
    %s369 = sphi 0, %s369
    %s371 = sphi 0, %s369
    %s372 = sphi 0, %s371
    %s386 = sphi 0, %s372
    %s390 = sphi 0, %s390
    %s392 = sphi 0, %s390
    %s393 = sphi 0, %s392
    %s407 = sphi 0, %s393
    %s411 = sphi 0, %s411
    %s413 = sphi 0, %s411
    %s414 = sphi 0, %s413
    %s428 = sphi 0, %s414
    %s432 = sphi 0, %s432
    %s434 = sphi 0, %s432
    %s435 = sphi 0, %s434
    %s449 = sphi 0, %s435
  $region4: #{_lambda_.5} parent=0 // loop_header_branch
    %28 = sbr.rel (%p26) target = $region8
  $region5: #{_lambda_.5} parent=0 // loop_body
    %s30 = ssub.s32 %s25, 1
    %s31 = ssub.s32 %s25, 2
    %s32 = sadd.s32 %s25, 1
    %s34 = sadd.s32 %s33, 1
    %p37 = scmp.eq.s32.totalorder %s25, 6
    %p38 = scmp.ne.s32.totalorder %s33, %s35
    %p39 = scmp.eq.s32.totalorder %s25, 0
    %p40 = por %p38, %p39
    %p41 = scmp.ne.s32.totalorder %s33, %s35
    %p42 = scmp.eq.s32.totalorder %s30, 6
    %p43 = por %p41, %p42
    %p44 = scmp.ne.s32.totalorder %s35, %s36
    %p45 = scmp.eq.s32.totalorder %s30, 0
    %p46 = por %p44, %p45
    %p47 = scmp.ne.s32.totalorder %s35, %s36
    %p48 = scmp.eq.s32.totalorder %s31, 6
    %p49 = por %p47, %p48
    %p51 = scmp.ne.s32.totalorder %s36, %s50
    %p52 = scmp.eq.s32.totalorder %s31, 0
    %p53 = por %p51, %p52
    %s55 = sadd.s32 %s54, 1
    %p58 = scmp.eq.s32.totalorder %s25, 6
    %p59 = scmp.ne.s32.totalorder %s54, %s56
    %p60 = scmp.eq.s32.totalorder %s25, 0
    %p61 = por %p59, %p60
    %p62 = scmp.ne.s32.totalorder %s54, %s56
    %p63 = scmp.eq.s32.totalorder %s30, 6
    %p64 = por %p62, %p63
    %p65 = scmp.ne.s32.totalorder %s56, %s57
    %p66 = scmp.eq.s32.totalorder %s30, 0
    %p67 = por %p65, %p66
    %p68 = scmp.ne.s32.totalorder %s56, %s57
    %p69 = scmp.eq.s32.totalorder %s31, 6
    %p70 = por %p68, %p69
    %p72 = scmp.ne.s32.totalorder %s57, %s71
    %p73 = scmp.eq.s32.totalorder %s31, 0
    %p74 = por %p72, %p73
    %s76 = sadd.s32 %s75, 1
    %p79 = scmp.eq.s32.totalorder %s25, 6
    %p80 = scmp.ne.s32.totalorder %s75, %s77
    %p81 = scmp.eq.s32.totalorder %s25, 0
    %p82 = por %p80, %p81
    %p83 = scmp.ne.s32.totalorder %s75, %s77
    %p84 = scmp.eq.s32.totalorder %s30, 6
    %p85 = por %p83, %p84
    %p86 = scmp.ne.s32.totalorder %s77, %s78
    %p87 = scmp.eq.s32.totalorder %s30, 0
    %p88 = por %p86, %p87
    %p89 = scmp.ne.s32.totalorder %s77, %s78
    %p90 = scmp.eq.s32.totalorder %s31, 6
    %p91 = por %p89, %p90
    %p93 = scmp.ne.s32.totalorder %s78, %s92
    %p94 = scmp.eq.s32.totalorder %s31, 0
    %p95 = por %p93, %p94
    %s97 = sadd.s32 %s96, 1
    %p100 = scmp.eq.s32.totalorder %s25, 6
    %p101 = scmp.ne.s32.totalorder %s96, %s98
    %p102 = scmp.eq.s32.totalorder %s25, 0
    %p103 = por %p101, %p102
    %p104 = scmp.ne.s32.totalorder %s96, %s98
    %p105 = scmp.eq.s32.totalorder %s30, 6
    %p106 = por %p104, %p105
    %p107 = scmp.ne.s32.totalorder %s98, %s99
    %p108 = scmp.eq.s32.totalorder %s30, 0
    %p109 = por %p107, %p108
    %p110 = scmp.ne.s32.totalorder %s98, %s99
    %p111 = scmp.eq.s32.totalorder %s31, 6
    %p112 = por %p110, %p111
    %p114 = scmp.ne.s32.totalorder %s99, %s113
    %p115 = scmp.eq.s32.totalorder %s31, 0
    %p116 = por %p114, %p115
    %s118 = sadd.s32 %s117, 1
    %p121 = scmp.eq.s32.totalorder %s25, 6
    %p122 = scmp.ne.s32.totalorder %s117, %s119
    %p123 = scmp.eq.s32.totalorder %s25, 0
    %p124 = por %p122, %p123
    %p125 = scmp.ne.s32.totalorder %s117, %s119
    %p126 = scmp.eq.s32.totalorder %s30, 6
    %p127 = por %p125, %p126
    %p128 = scmp.ne.s32.totalorder %s119, %s120
    %p129 = scmp.eq.s32.totalorder %s30, 0
    %p130 = por %p128, %p129
    %p131 = scmp.ne.s32.totalorder %s119, %s120
    %p132 = scmp.eq.s32.totalorder %s31, 6
    %p133 = por %p131, %p132
    %p135 = scmp.ne.s32.totalorder %s120, %s134
    %p136 = scmp.eq.s32.totalorder %s31, 0
    %p137 = por %p135, %p136
    %s139 = sadd.s32 %s138, 1
    %p142 = scmp.eq.s32.totalorder %s25, 6
    %p143 = scmp.ne.s32.totalorder %s138, %s140
    %p144 = scmp.eq.s32.totalorder %s25, 0
    %p145 = por %p143, %p144
    %p146 = scmp.ne.s32.totalorder %s138, %s140
    %p147 = scmp.eq.s32.totalorder %s30, 6
    %p148 = por %p146, %p147
    %p149 = scmp.ne.s32.totalorder %s140, %s141
    %p150 = scmp.eq.s32.totalorder %s30, 0
    %p151 = por %p149, %p150
    %p152 = scmp.ne.s32.totalorder %s140, %s141
    %p153 = scmp.eq.s32.totalorder %s31, 6
    %p154 = por %p152, %p153
    %p156 = scmp.ne.s32.totalorder %s141, %s155
    %p157 = scmp.eq.s32.totalorder %s31, 0
    %p158 = por %p156, %p157
    %s160 = sadd.s32 %s159, 1
    %p163 = scmp.eq.s32.totalorder %s25, 6
    %p164 = scmp.ne.s32.totalorder %s159, %s161
    %p165 = scmp.eq.s32.totalorder %s25, 0
    %p166 = por %p164, %p165
    %p167 = scmp.ne.s32.totalorder %s159, %s161
    %p168 = scmp.eq.s32.totalorder %s30, 6
    %p169 = por %p167, %p168
    %p170 = scmp.ne.s32.totalorder %s161, %s162
    %p171 = scmp.eq.s32.totalorder %s30, 0
    %p172 = por %p170, %p171
    %p173 = scmp.ne.s32.totalorder %s161, %s162
    %p174 = scmp.eq.s32.totalorder %s31, 6
    %p175 = por %p173, %p174
    %p177 = scmp.ne.s32.totalorder %s162, %s176
    %p178 = scmp.eq.s32.totalorder %s31, 0
    %p179 = por %p177, %p178
    %s181 = sadd.s32 %s180, 1
    %p184 = scmp.eq.s32.totalorder %s25, 6
    %p185 = scmp.ne.s32.totalorder %s180, %s182
    %p186 = scmp.eq.s32.totalorder %s25, 0
    %p187 = por %p185, %p186
    %p188 = scmp.ne.s32.totalorder %s180, %s182
    %p189 = scmp.eq.s32.totalorder %s30, 6
    %p190 = por %p188, %p189
    %p191 = scmp.ne.s32.totalorder %s182, %s183
    %p192 = scmp.eq.s32.totalorder %s30, 0
    %p193 = por %p191, %p192
    %p194 = scmp.ne.s32.totalorder %s182, %s183
    %p195 = scmp.eq.s32.totalorder %s31, 6
    %p196 = por %p194, %p195
    %p198 = scmp.ne.s32.totalorder %s183, %s197
    %p199 = scmp.eq.s32.totalorder %s31, 0
    %p200 = por %p198, %p199
    %s202 = sadd.s32 %s201, 1
    %p205 = scmp.eq.s32.totalorder %s25, 6
    %p206 = scmp.ne.s32.totalorder %s201, %s203
    %p207 = scmp.eq.s32.totalorder %s25, 0
    %p208 = por %p206, %p207
    %p209 = scmp.ne.s32.totalorder %s201, %s203
    %p210 = scmp.eq.s32.totalorder %s30, 6
    %p211 = por %p209, %p210
    %p212 = scmp.ne.s32.totalorder %s203, %s204
    %p213 = scmp.eq.s32.totalorder %s30, 0
    %p214 = por %p212, %p213
    %p215 = scmp.ne.s32.totalorder %s203, %s204
    %p216 = scmp.eq.s32.totalorder %s31, 6
    %p217 = por %p215, %p216
    %p219 = scmp.ne.s32.totalorder %s204, %s218
    %p220 = scmp.eq.s32.totalorder %s31, 0
    %p221 = por %p219, %p220
    %s223 = sadd.s32 %s222, 1
    %p226 = scmp.eq.s32.totalorder %s25, 6
    %p227 = scmp.ne.s32.totalorder %s222, %s224
    %p228 = scmp.eq.s32.totalorder %s25, 0
    %p229 = por %p227, %p228
    %p230 = scmp.ne.s32.totalorder %s222, %s224
    %p231 = scmp.eq.s32.totalorder %s30, 6
    %p232 = por %p230, %p231
    %p233 = scmp.ne.s32.totalorder %s224, %s225
    %p234 = scmp.eq.s32.totalorder %s30, 0
    %p235 = por %p233, %p234
    %p236 = scmp.ne.s32.totalorder %s224, %s225
    %p237 = scmp.eq.s32.totalorder %s31, 6
    %p238 = por %p236, %p237
    %p240 = scmp.ne.s32.totalorder %s225, %s239
    %p241 = scmp.eq.s32.totalorder %s31, 0
    %p242 = por %p240, %p241
    %s244 = sadd.s32 %s243, 1
    %p247 = scmp.eq.s32.totalorder %s25, 6
    %p248 = scmp.ne.s32.totalorder %s243, %s245
    %p249 = scmp.eq.s32.totalorder %s25, 0
    %p250 = por %p248, %p249
    %p251 = scmp.ne.s32.totalorder %s243, %s245
    %p252 = scmp.eq.s32.totalorder %s30, 6
    %p253 = por %p251, %p252
    %p254 = scmp.ne.s32.totalorder %s245, %s246
    %p255 = scmp.eq.s32.totalorder %s30, 0
    %p256 = por %p254, %p255
    %p257 = scmp.ne.s32.totalorder %s245, %s246
    %p258 = scmp.eq.s32.totalorder %s31, 6
    %p259 = por %p257, %p258
    %p261 = scmp.ne.s32.totalorder %s246, %s260
    %p262 = scmp.eq.s32.totalorder %s31, 0
    %p263 = por %p261, %p262
    %s265 = sadd.s32 %s264, 1
    %p268 = scmp.eq.s32.totalorder %s25, 6
    %p269 = scmp.ne.s32.totalorder %s264, %s266
    %p270 = scmp.eq.s32.totalorder %s25, 0
    %p271 = por %p269, %p270
    %p272 = scmp.ne.s32.totalorder %s264, %s266
    %p273 = scmp.eq.s32.totalorder %s30, 6
    %p274 = por %p272, %p273
    %p275 = scmp.ne.s32.totalorder %s266, %s267
    %p276 = scmp.eq.s32.totalorder %s30, 0
    %p277 = por %p275, %p276
    %p278 = scmp.ne.s32.totalorder %s266, %s267
    %p279 = scmp.eq.s32.totalorder %s31, 6
    %p280 = por %p278, %p279
    %p282 = scmp.ne.s32.totalorder %s267, %s281
    %p283 = scmp.eq.s32.totalorder %s31, 0
    %p284 = por %p282, %p283
    %s286 = sadd.s32 %s285, 1
    %p289 = scmp.eq.s32.totalorder %s25, 6
    %p290 = scmp.ne.s32.totalorder %s285, %s287
    %p291 = scmp.eq.s32.totalorder %s25, 0
    %p292 = por %p290, %p291
    %p293 = scmp.ne.s32.totalorder %s285, %s287
    %p294 = scmp.eq.s32.totalorder %s30, 6
    %p295 = por %p293, %p294
    %p296 = scmp.ne.s32.totalorder %s287, %s288
    %p297 = scmp.eq.s32.totalorder %s30, 0
    %p298 = por %p296, %p297
    %p299 = scmp.ne.s32.totalorder %s287, %s288
    %p300 = scmp.eq.s32.totalorder %s31, 6
    %p301 = por %p299, %p300
    %p303 = scmp.ne.s32.totalorder %s288, %s302
    %p304 = scmp.eq.s32.totalorder %s31, 0
    %p305 = por %p303, %p304
    %s307 = sadd.s32 %s306, 1
    %p310 = scmp.eq.s32.totalorder %s25, 6
    %p311 = scmp.ne.s32.totalorder %s306, %s308
    %p312 = scmp.eq.s32.totalorder %s25, 0
    %p313 = por %p311, %p312
    %p314 = scmp.ne.s32.totalorder %s306, %s308
    %p315 = scmp.eq.s32.totalorder %s30, 6
    %p316 = por %p314, %p315
    %p317 = scmp.ne.s32.totalorder %s308, %s309
    %p318 = scmp.eq.s32.totalorder %s30, 0
    %p319 = por %p317, %p318
    %p320 = scmp.ne.s32.totalorder %s308, %s309
    %p321 = scmp.eq.s32.totalorder %s31, 6
    %p322 = por %p320, %p321
    %p324 = scmp.ne.s32.totalorder %s309, %s323
    %p325 = scmp.eq.s32.totalorder %s31, 0
    %p326 = por %p324, %p325
    %s328 = sadd.s32 %s327, 1
    %p331 = scmp.eq.s32.totalorder %s25, 6
    %p332 = scmp.ne.s32.totalorder %s327, %s329
    %p333 = scmp.eq.s32.totalorder %s25, 0
    %p334 = por %p332, %p333
    %p335 = scmp.ne.s32.totalorder %s327, %s329
    %p336 = scmp.eq.s32.totalorder %s30, 6
    %p337 = por %p335, %p336
    %p338 = scmp.ne.s32.totalorder %s329, %s330
    %p339 = scmp.eq.s32.totalorder %s30, 0
    %p340 = por %p338, %p339
    %p341 = scmp.ne.s32.totalorder %s329, %s330
    %p342 = scmp.eq.s32.totalorder %s31, 6
    %p343 = por %p341, %p342
    %p345 = scmp.ne.s32.totalorder %s330, %s344
    %p346 = scmp.eq.s32.totalorder %s31, 0
    %p347 = por %p345, %p346
    %s349 = sadd.s32 %s348, 1
    %p352 = scmp.eq.s32.totalorder %s25, 6
    %p353 = scmp.ne.s32.totalorder %s348, %s350
    %p354 = scmp.eq.s32.totalorder %s25, 0
    %p355 = por %p353, %p354
    %p356 = scmp.ne.s32.totalorder %s348, %s350
    %p357 = scmp.eq.s32.totalorder %s30, 6
    %p358 = por %p356, %p357
    %p359 = scmp.ne.s32.totalorder %s350, %s351
    %p360 = scmp.eq.s32.totalorder %s30, 0
    %p361 = por %p359, %p360
    %p362 = scmp.ne.s32.totalorder %s350, %s351
    %p363 = scmp.eq.s32.totalorder %s31, 6
    %p364 = por %p362, %p363
    %p366 = scmp.ne.s32.totalorder %s351, %s365
    %p367 = scmp.eq.s32.totalorder %s31, 0
    %p368 = por %p366, %p367
    %s370 = sadd.s32 %s369, 1
    %p373 = scmp.eq.s32.totalorder %s25, 6
    %p374 = scmp.ne.s32.totalorder %s369, %s371
    %p375 = scmp.eq.s32.totalorder %s25, 0
    %p376 = por %p374, %p375
    %p377 = scmp.ne.s32.totalorder %s369, %s371
    %p378 = scmp.eq.s32.totalorder %s30, 6
    %p379 = por %p377, %p378
    %p380 = scmp.ne.s32.totalorder %s371, %s372
    %p381 = scmp.eq.s32.totalorder %s30, 0
    %p382 = por %p380, %p381
    %p383 = scmp.ne.s32.totalorder %s371, %s372
    %p384 = scmp.eq.s32.totalorder %s31, 6
    %p385 = por %p383, %p384
    %p387 = scmp.ne.s32.totalorder %s372, %s386
    %p388 = scmp.eq.s32.totalorder %s31, 0
    %p389 = por %p387, %p388
    %s391 = sadd.s32 %s390, 1
    %p394 = scmp.eq.s32.totalorder %s25, 6
    %p395 = scmp.ne.s32.totalorder %s390, %s392
    %p396 = scmp.eq.s32.totalorder %s25, 0
    %p397 = por %p395, %p396
    %p398 = scmp.ne.s32.totalorder %s390, %s392
    %p399 = scmp.eq.s32.totalorder %s30, 6
    %p400 = por %p398, %p399
    %p401 = scmp.ne.s32.totalorder %s392, %s393
    %p402 = scmp.eq.s32.totalorder %s30, 0
    %p403 = por %p401, %p402
    %p404 = scmp.ne.s32.totalorder %s392, %s393
    %p405 = scmp.eq.s32.totalorder %s31, 6
    %p406 = por %p404, %p405
    %p408 = scmp.ne.s32.totalorder %s393, %s407
    %p409 = scmp.eq.s32.totalorder %s31, 0
    %p410 = por %p408, %p409
    %s412 = sadd.s32 %s411, 1
    %p415 = scmp.eq.s32.totalorder %s25, 6
    %p416 = scmp.ne.s32.totalorder %s411, %s413
    %p417 = scmp.eq.s32.totalorder %s25, 0
    %p418 = por %p416, %p417
    %p419 = scmp.ne.s32.totalorder %s411, %s413
    %p420 = scmp.eq.s32.totalorder %s30, 6
    %p421 = por %p419, %p420
    %p422 = scmp.ne.s32.totalorder %s413, %s414
    %p423 = scmp.eq.s32.totalorder %s30, 0
    %p424 = por %p422, %p423
    %p425 = scmp.ne.s32.totalorder %s413, %s414
    %p426 = scmp.eq.s32.totalorder %s31, 6
    %p427 = por %p425, %p426
    %p429 = scmp.ne.s32.totalorder %s414, %s428
    %p430 = scmp.eq.s32.totalorder %s31, 0
    %p431 = por %p429, %p430
    %s433 = sadd.s32 %s432, 1
    %p436 = scmp.eq.s32.totalorder %s25, 6
    %p437 = scmp.ne.s32.totalorder %s432, %s434
    %p438 = scmp.eq.s32.totalorder %s25, 0
    %p439 = por %p437, %p438
    %p440 = scmp.ne.s32.totalorder %s432, %s434
    %p441 = scmp.eq.s32.totalorder %s30, 6
    %p442 = por %p440, %p441
    %p443 = scmp.ne.s32.totalorder %s434, %s435
    %p444 = scmp.eq.s32.totalorder %s30, 0
    %p445 = por %p443, %p444
    %p446 = scmp.ne.s32.totalorder %s434, %s435
    %p447 = scmp.eq.s32.totalorder %s31, 6
    %p448 = por %p446, %p447
    %p450 = scmp.ne.s32.totalorder %s435, %s449
    %p451 = scmp.eq.s32.totalorder %s31, 0
    %p452 = por %p450, %p451
    %p453 = scmp.le.s32.totalorder 1, %s25
    %p454 = scmp.lt.s32.totalorder %s25, 8
    %p455 = pnand %p453, %p454
    %p456 = pneg %p455
    // Predicated region
    $region9: #{_lambda_.5} parent=5 // pred_check
      _
    $region10: #{_lambda_.5} parent=5 // pred_check_branch
      %458 = sbr.rel (%p455) target = $region12
    $region11: #{_lambda_.5} parent=5 // pred_region
      %s459 = ssub.s32 %s25, 1
      // Predicated region
      $region13: #{_lambda_.5} parent=11 // pred_check
        %p460 = pneg %p46
      $region14: #{_lambda_.5} parent=11 // pred_check_branch
        %462 = sbr.rel (%p460) target = $region16
      $region15: #{_lambda_.5} parent=11 // pred_region
        _
      $region16: #{_lambda_.5} parent=11 // pred_fallthru
        _
      // Predicated region
      $region17: #{_lambda_.5} parent=11 // pred_check
        %p463 = pneg %p67
      $region18: #{_lambda_.5} parent=11 // pred_check_branch
        %465 = sbr.rel (%p463) target = $region20
      $region19: #{_lambda_.5} parent=11 // pred_region
        _
      $region20: #{_lambda_.5} parent=11 // pred_fallthru
        _
      // Predicated region
      $region21: #{_lambda_.5} parent=11 // pred_check
        %p466 = pneg %p88
      $region22: #{_lambda_.5} parent=11 // pred_check_branch
        %468 = sbr.rel (%p466) target = $region24
      $region23: #{_lambda_.5} parent=11 // pred_region
        _
      $region24: #{_lambda_.5} parent=11 // pred_fallthru
        _
      // Predicated region
      $region25: #{_lambda_.5} parent=11 // pred_check
        %p469 = pneg %p109
      $region26: #{_lambda_.5} parent=11 // pred_check_branch
        %471 = sbr.rel (%p469) target = $region28
      $region27: #{_lambda_.5} parent=11 // pred_region
        _
      $region28: #{_lambda_.5} parent=11 // pred_fallthru
        _
      // Predicated region
      $region29: #{_lambda_.5} parent=11 // pred_check
        %p472 = pneg %p130
      $region30: #{_lambda_.5} parent=11 // pred_check_branch
        %474 = sbr.rel (%p472) target = $region32
      $region31: #{_lambda_.5} parent=11 // pred_region
        _
      $region32: #{_lambda_.5} parent=11 // pred_fallthru
        _
      // Predicated region
      $region33: #{_lambda_.5} parent=11 // pred_check
        %p475 = pneg %p151
      $region34: #{_lambda_.5} parent=11 // pred_check_branch
        %477 = sbr.rel (%p475) target = $region36
      $region35: #{_lambda_.5} parent=11 // pred_region
        _
      $region36: #{_lambda_.5} parent=11 // pred_fallthru
        _
      // Predicated region
      $region37: #{_lambda_.5} parent=11 // pred_check
        %p478 = pneg %p172
      $region38: #{_lambda_.5} parent=11 // pred_check_branch
        %480 = sbr.rel (%p478) target = $region40
      $region39: #{_lambda_.5} parent=11 // pred_region
        _
      $region40: #{_lambda_.5} parent=11 // pred_fallthru
        _
      // Predicated region
      $region41: #{_lambda_.5} parent=11 // pred_check
        %p481 = pneg %p193
      $region42: #{_lambda_.5} parent=11 // pred_check_branch
        %483 = sbr.rel (%p481) target = $region44
      $region43: #{_lambda_.5} parent=11 // pred_region
        _
      $region44: #{_lambda_.5} parent=11 // pred_fallthru
        _
      // Predicated region
      $region45: #{_lambda_.5} parent=11 // pred_check
        %p484 = pneg %p214
      $region46: #{_lambda_.5} parent=11 // pred_check_branch
        %486 = sbr.rel (%p484) target = $region48
      $region47: #{_lambda_.5} parent=11 // pred_region
        _
      $region48: #{_lambda_.5} parent=11 // pred_fallthru
        _
      // Predicated region
      $region49: #{_lambda_.5} parent=11 // pred_check
        %p487 = pneg %p235
      $region50: #{_lambda_.5} parent=11 // pred_check_branch
        %489 = sbr.rel (%p487) target = $region52
      $region51: #{_lambda_.5} parent=11 // pred_region
        _
      $region52: #{_lambda_.5} parent=11 // pred_fallthru
        _
      // Predicated region
      $region53: #{_lambda_.5} parent=11 // pred_check
        %p490 = pneg %p256
      $region54: #{_lambda_.5} parent=11 // pred_check_branch
        %492 = sbr.rel (%p490) target = $region56
      $region55: #{_lambda_.5} parent=11 // pred_region
        _
      $region56: #{_lambda_.5} parent=11 // pred_fallthru
        _
      // Predicated region
      $region57: #{_lambda_.5} parent=11 // pred_check
        %p493 = pneg %p277
      $region58: #{_lambda_.5} parent=11 // pred_check_branch
        %495 = sbr.rel (%p493) target = $region60
      $region59: #{_lambda_.5} parent=11 // pred_region
        _
      $region60: #{_lambda_.5} parent=11 // pred_fallthru
        _
      // Predicated region
      $region61: #{_lambda_.5} parent=11 // pred_check
        %p496 = pneg %p298
      $region62: #{_lambda_.5} parent=11 // pred_check_branch
        %498 = sbr.rel (%p496) target = $region64
      $region63: #{_lambda_.5} parent=11 // pred_region
        _
      $region64: #{_lambda_.5} parent=11 // pred_fallthru
        _
      // Predicated region
      $region65: #{_lambda_.5} parent=11 // pred_check
        %p499 = pneg %p319
      $region66: #{_lambda_.5} parent=11 // pred_check_branch
        %501 = sbr.rel (%p499) target = $region68
      $region67: #{_lambda_.5} parent=11 // pred_region
        _
      $region68: #{_lambda_.5} parent=11 // pred_fallthru
        _
      // Predicated region
      $region69: #{_lambda_.5} parent=11 // pred_check
        %p502 = pneg %p340
      $region70: #{_lambda_.5} parent=11 // pred_check_branch
        %504 = sbr.rel (%p502) target = $region72
      $region71: #{_lambda_.5} parent=11 // pred_region
        _
      $region72: #{_lambda_.5} parent=11 // pred_fallthru
        _
      // Predicated region
      $region73: #{_lambda_.5} parent=11 // pred_check
        %p505 = pneg %p361
      $region74: #{_lambda_.5} parent=11 // pred_check_branch
        %507 = sbr.rel (%p505) target = $region76
      $region75: #{_lambda_.5} parent=11 // pred_region
        _
      $region76: #{_lambda_.5} parent=11 // pred_fallthru
        _
      // Predicated region
      $region77: #{_lambda_.5} parent=11 // pred_check
        %p508 = pneg %p382
      $region78: #{_lambda_.5} parent=11 // pred_check_branch
        %510 = sbr.rel (%p508) target = $region80
      $region79: #{_lambda_.5} parent=11 // pred_region
        _
      $region80: #{_lambda_.5} parent=11 // pred_fallthru
        _
      // Predicated region
      $region81: #{_lambda_.5} parent=11 // pred_check
        %p511 = pneg %p403
      $region82: #{_lambda_.5} parent=11 // pred_check_branch
        %513 = sbr.rel (%p511) target = $region84
      $region83: #{_lambda_.5} parent=11 // pred_region
        _
      $region84: #{_lambda_.5} parent=11 // pred_fallthru
        _
      // Predicated region
      $region85: #{_lambda_.5} parent=11 // pred_check
        %p514 = pneg %p424
      $region86: #{_lambda_.5} parent=11 // pred_check_branch
        %516 = sbr.rel (%p514) target = $region88
      $region87: #{_lambda_.5} parent=11 // pred_region
        _
      $region88: #{_lambda_.5} parent=11 // pred_fallthru
        _
    $region12: #{_lambda_.5} parent=5 // pred_fallthru
      _
    %p517 = scmp.lt.s32.totalorder %s25, 7
    // Predicated region
    $region89: #{_lambda_.5} parent=5 // pred_check
      %p518 = pneg %p517
    $region90: #{_lambda_.5} parent=5 // pred_check_branch
      %520 = sbr.rel (%p518) target = $region92
    $region91: #{_lambda_.5} parent=5 // pred_region
      _
    $region92: #{_lambda_.5} parent=5 // pred_fallthru
      _
    %p521 = scmp.le.s32.totalorder 1, %s25
    %p522 = scmp.lt.s32.totalorder %s25, 8
    %p523 = pnand %p521, %p522
    %p524 = pneg %p523
    // Predicated region
    $region93: #{_lambda_.5} parent=5 // pred_check
      _
    $region94: #{_lambda_.5} parent=5 // pred_check_branch
      %526 = sbr.rel (%p523) target = $region96
    $region95: #{_lambda_.5} parent=5 // pred_region
      %s527 = ssub.s32 %s25, 1
      %p528 = pneg %p46
      %p529 = pneg %p43
      %p530 = pneg %p67
      %p531 = pneg %p64
      %p532 = pneg %p88
      %p533 = pneg %p85
      %p534 = pneg %p109
      %p535 = pneg %p106
      %p536 = pneg %p130
      %p537 = pneg %p127
      %p538 = pneg %p151
      %p539 = pneg %p148
      %p540 = pneg %p172
      %p541 = pneg %p169
      %p542 = pneg %p193
      %p543 = pneg %p190
      %p544 = pneg %p214
      %p545 = pneg %p211
      %p546 = pneg %p235
      %p547 = pneg %p232
      %p548 = pneg %p256
      %p549 = pneg %p253
      %p550 = pneg %p277
      %p551 = pneg %p274
      %p552 = pneg %p298
      %p553 = pneg %p295
      %p554 = pneg %p319
      %p555 = pneg %p316
      %p556 = pneg %p340
      %p557 = pneg %p337
      %p558 = pneg %p361
      %p559 = pneg %p358
      %p560 = pneg %p382
      %p561 = pneg %p379
      %p562 = pneg %p403
      %p563 = pneg %p400
      %p564 = pneg %p424
      %p565 = pneg %p421
      %p566 = pneg %p445
      %p567 = pneg %p442
      %p568 = scmp.eq.s32.totalorder %s30, 0
      // Predicated region
      $region97: #{_lambda_.5} parent=95 // pred_check
        %p569 = pneg %p568
      $region98: #{_lambda_.5} parent=95 // pred_check_branch
        %571 = sbr.rel (%p569) target = $region100
      $region99: #{_lambda_.5} parent=95 // pred_region
        %v572 = vlaneseq
        %v573 = vshrl.u32 %v572, 7
        %v574 = vadd.s32 %v573, 8
        %v575 = vadd.s32 %v573, 16
        %v576 = vadd.s32 %v573, 24
        %v577 = vadd.s32 %v573, 32
        %vm578 = vcmp.lt.s32.totalorder %v573, 39
        %vm579 = vcmp.lt.s32.totalorder %v574, 39
        %vm580 = vcmp.lt.s32.totalorder %v575, 39
        %vm581 = vcmp.lt.s32.totalorder %v576, 39
        %vm582 = vcmp.lt.s32.totalorder %v577, 39
        %v583 = vsel %vm578, 1, 0
        %v584 = vsel %vm579, 1, 0
        %v585 = vsel %vm580, 1, 0
        %v586 = vsel %vm581, 1, 0
        %v587 = vsel %vm582, 1, 0
        %v588 = vcvt.s32.f32 %v583
        %v589 = vcvt.s32.f32 %v584
        %v590 = vcvt.s32.f32 %v585
        %v591 = vcvt.s32.f32 %v586
        %v592 = vcvt.s32.f32 %v587
        %vm593 = vcmask 261120
        %594 = vst.msk [vmem:[#allocation3] sm:$0xff] %vm593, 0.0
        %595 = vst.msk [vmem:[#allocation3 + $0x30] sm:$0xff] %vm593, 0.0
        %v596 = vld [vmem:[%s0] sm:$0xff]
        %v597 = vld [vmem:[%s0 + $0x8] sm:$0xff]
        %v598 = vld [vmem:[%s0 + $0x10] sm:$0xff]
        %v599 = vld [vmem:[%s0 + $0x18] sm:$0xff]
        %v600 = vld [vmem:[%s0 + $0x20] sm:$0xff]
        %v601 = vld [vmem:[%s1] sm:$0x1]
        %v602 = vld [vmem:[%s2] sm:$0x1]
        %v603 = vsel %vm593, %v596, 0.0
        %604 = vadd.xlane.f32.xlu0 %v603
        %v605 = vpop.xlane.xlu0 %604
        %v606 = vsel %vm593, %v597, 0.0
        %607 = vadd.xlane.f32.xlu0 %v606
        %v608 = vpop.xlane.xlu0 %607
        %v609 = vsel %vm593, %v598, 0.0
        %610 = vadd.xlane.f32.xlu0 %v609
        %v611 = vpop.xlane.xlu0 %610
        %v612 = vsel %vm593, %v599, 0.0
        %613 = vadd.xlane.f32.xlu0 %v612
        %v614 = vpop.xlane.xlu0 %613
        %v615 = vsel %vm593, %v600, 0.0
        %616 = vadd.xlane.f32.xlu0 %v615
        %v617 = vpop.xlane.xlu0 %616
        %v618 = vrcp.pop 32.0
        %v619 = vmul.f32 32.0, %v618
        %v620 = vsub.f32 1.0, %v619
        %v621 = vmul.f32 %v618, %v620
        %v622 = vadd.f32 %v618, %v621
        %vm623 = vweird.f32 %v618
        %v624 = vsel %vm623, %v618, %v622
        %v625 = vmul.f32 %v605, %v624
        %v626 = vmul.f32 %v608, %v624
        %v627 = vmul.f32 %v611, %v624
        %v628 = vmul.f32 %v614, %v624
        %v629 = vmul.f32 %v617, %v624
        %v630 = vsub.f32 %v596, %v625
        %v631 = vsub.f32 %v597, %v626
        %v632 = vsub.f32 %v598, %v627
        %v633 = vsub.f32 %v599, %v628
        %v634 = vsub.f32 %v600, %v629
        %v635 = vmul.f32 %v630, %v630
        %v636 = vmul.f32 %v631, %v631
        %v637 = vmul.f32 %v632, %v632
        %v638 = vmul.f32 %v633, %v633
        %v639 = vmul.f32 %v634, %v634
        %v640 = vsel %vm593, %v635, 0.0
        %641 = vadd.xlane.f32.xlu0 %v640
        %v642 = vpop.xlane.xlu0 %641
        %v643 = vsel %vm593, %v636, 0.0
        %644 = vadd.xlane.f32.xlu0 %v643
        %v645 = vpop.xlane.xlu0 %644
        %v646 = vsel %vm593, %v637, 0.0
        %647 = vadd.xlane.f32.xlu0 %v646
        %v648 = vpop.xlane.xlu0 %647
        %v649 = vsel %vm593, %v638, 0.0
        %650 = vadd.xlane.f32.xlu0 %v649
        %v651 = vpop.xlane.xlu0 %650
        %v652 = vsel %vm593, %v639, 0.0
        %653 = vadd.xlane.f32.xlu0 %v652
        %v654 = vpop.xlane.xlu0 %653
        %v655 = vmul.f32 %v642, %v624
        %v656 = vmul.f32 %v645, %v624
        %v657 = vmul.f32 %v648, %v624
        %v658 = vmul.f32 %v651, %v624
        %v659 = vmul.f32 %v654, %v624
        %v660 = vadd.f32 %v655, 1e-05
        %v661 = vadd.f32 %v656, 1e-05
        %v662 = vadd.f32 %v657, 1e-05
        %v663 = vadd.f32 %v658, 1e-05
        %v664 = vadd.f32 %v659, 1e-05
        %v665 = vrsqrt.pop %v660
        %v666 = vmul.f32 %v665, %v660
        %v667 = vmul.f32 %v666, %v665
        %v668 = vmul.f32 0.5, %v667
        %v669 = vsub.f32 1.5, %v668
        %v670 = vmul.f32 %v665, %v669
        %vm671 = vweird.f32 %v660
        %vm672 = vweird.f32 %v665
        %vm673 = vmor %vm671, %vm672
        %v674 = vsel %vm673, %v665, %v670
        %v675 = vrsqrt.pop %v661
        %v676 = vmul.f32 %v675, %v661
        %v677 = vmul.f32 %v676, %v675
        %v678 = vmul.f32 0.5, %v677
        %v679 = vsub.f32 1.5, %v678
        %v680 = vmul.f32 %v675, %v679
        %vm681 = vweird.f32 %v661
        %vm682 = vweird.f32 %v675
        %vm683 = vmor %vm681, %vm682
        %v684 = vsel %vm683, %v675, %v680
        %v685 = vrsqrt.pop %v662
        %v686 = vmul.f32 %v685, %v662
        %v687 = vmul.f32 %v686, %v685
        %v688 = vmul.f32 0.5, %v687
        %v689 = vsub.f32 1.5, %v688
        %v690 = vmul.f32 %v685, %v689
        %vm691 = vweird.f32 %v662
        %vm692 = vweird.f32 %v685
        %vm693 = vmor %vm691, %vm692
        %v694 = vsel %vm693, %v685, %v690
        %v695 = vrsqrt.pop %v663
        %v696 = vmul.f32 %v695, %v663
        %v697 = vmul.f32 %v696, %v695
        %v698 = vmul.f32 0.5, %v697
        %v699 = vsub.f32 1.5, %v698
        %v700 = vmul.f32 %v695, %v699
        %vm701 = vweird.f32 %v663
        %vm702 = vweird.f32 %v695
        %vm703 = vmor %vm701, %vm702
        %v704 = vsel %vm703, %v695, %v700
        %v705 = vrsqrt.pop %v664
        %v706 = vmul.f32 %v705, %v664
        %v707 = vmul.f32 %v706, %v705
        %v708 = vmul.f32 0.5, %v707
        %v709 = vsub.f32 1.5, %v708
        %v710 = vmul.f32 %v705, %v709
        %vm711 = vweird.f32 %v664
        %vm712 = vweird.f32 %v705
        %vm713 = vmor %vm711, %vm712
        %v714 = vsel %vm713, %v705, %v710
        %v715 = vmul.f32 %v630, %v674
        %v716 = vmul.f32 %v631, %v684
        %v717 = vmul.f32 %v632, %v694
        %v718 = vmul.f32 %v633, %v704
        %v719 = vmul.f32 %v634, %v714
        %v721 = vperm.slane %v601, 0
        %v723 = vmul.f32 %v715, %v721
        %v724 = vmul.f32 %v716, %v721
        %v725 = vmul.f32 %v717, %v721
        %v726 = vmul.f32 %v718, %v721
        %v727 = vmul.f32 %v719, %v721
        %v729 = vperm.slane %v602, 0
        %v731 = vadd.f32 %v723, %v729
        %v732 = vadd.f32 %v724, %v729
        %v733 = vadd.f32 %v725, %v729
        %v734 = vadd.f32 %v726, %v729
        %v735 = vadd.f32 %v727, %v729
        %v736 = vld [vmem:[%s3] sm:$0xff]
        %v737 = vld [vmem:[%s3 + $0x8] sm:$0xff]
        %v738 = vld [vmem:[%s3 + $0x10] sm:$0xff]
        %v739 = vld [vmem:[%s3 + $0x18] sm:$0xff]
        %v740 = vld [vmem:[%s4] sm:$0x1]
        %v742 = vperm.slane %v740, 0
        %v745 = vsel %vm593, %v731, 0
        %v748 = vsel %vm593, %v732, 0
        %v751 = vsel %vm593, %v733, 0
        %v754 = vsel %vm593, %v734, 0
        %v757 = vsel %vm593, %v735, 0
        %759 = vmatpush.msra.mxu0 0.0
        %760 = vmatpush.msra.mxu0 0.0
        %761 = vmatpush.msra.mxu0 0.0
        %762 = vmatpush.msra.mxu0 0.0
        %763 = vmatpush.msra.mxu0 0.0
        %764 = vmatpush.msra.mxu0 0.0
        %765 = vmatpush.msra.mxu0 0.0
        %766 = vmatpush.msra.mxu0 0.0
        %767 = vmatpush.msra.mxu0 0.0
        %768 = vmatpush.msra.mxu0 0.0
        %769 = vmatpush.msra.mxu0 0.0
        %770 = vmatpush.msra.mxu0 0.0
        %771 = vmatpush.msra.mxu0 %v739
        %772 = vmatpush.msra.mxu0 %v738
        %773 = vmatpush.msra.mxu0 %v737
        %774 = vmatpush.msra.mxu0 %v736
        %775 = vmatmul.f32.gmra.mxu0 %v745
        %v776 = vpop.f32.mrf.mxu0
        %v777 = vadd.f32 %v742, %v776
        %778 = vmatmul.f32.gmra.mxu0 %v748
        %v779 = vpop.f32.mrf.mxu0
        %v780 = vadd.f32 %v742, %v779
        %781 = vmatmul.f32.gmra.mxu0 %v751
        %v782 = vpop.f32.mrf.mxu0
        %v783 = vadd.f32 %v742, %v782
        %784 = vmatmul.f32.gmra.mxu0 %v754
        %v785 = vpop.f32.mrf.mxu0
        %v786 = vadd.f32 %v742, %v785
        %787 = vmatmul.f32.gmra.mxu0 %v757
        %v788 = vpop.f32.mrf.mxu0
        %v789 = vadd.f32 %v742, %v788
        %790 = vdwg.mxu0
        %v791 = vmul.f32 %v777, %v588
        %v792 = vmul.f32 %v780, %v589
        %v793 = vmul.f32 %v783, %v590
        %v794 = vmul.f32 %v786, %v591
        %v795 = vmul.f32 %v789, %v592
        %796 = vst.msk [vmem:[#allocation3 + $0x8] sm:$0xff] %vm593, %v791
        %797 = vst.msk [vmem:[#allocation3 + $0x10] sm:$0xff] %vm593, %v792
        %798 = vst.msk [vmem:[#allocation3 + $0x18] sm:$0xff] %vm593, %v793
        %799 = vst.msk [vmem:[#allocation3 + $0x20] sm:$0xff] %vm593, %v794
        %800 = vst.msk [vmem:[#allocation3 + $0x28] sm:$0xff] %vm593, %v795
        %v801 = vld [vmem:[#allocation3] sm:$0xff]
        %v802 = vld [vmem:[#allocation3 + $0x8] sm:$0xff]
        %v803 = vld [vmem:[#allocation3 + $0x10] sm:$0xff]
        %v804 = vld [vmem:[#allocation3 + $0x18] sm:$0xff]
        %v805 = vld [vmem:[#allocation3 + $0x20] sm:$0xff]
        %v806 = vld [vmem:[%s5] sm:$0xff]
        %v807 = vld [vmem:[%s5 + $0x8] sm:$0xff]
        %v808 = vld [vmem:[%s5 + $0x10] sm:$0xff]
        %v809 = vld [vmem:[%s5 + $0x18] sm:$0xff]
        %v810 = vld [vmem:[#allocation3 + $0x1] sm:$0xff]
        %v811 = vld [vmem:[#allocation3 + $0x9] sm:$0xff]
        %v812 = vld [vmem:[#allocation3 + $0x11] sm:$0xff]
        %v813 = vld [vmem:[#allocation3 + $0x19] sm:$0xff]
        %v814 = vld [vmem:[#allocation3 + $0x21] sm:$0xff]
        %s815 = scalar_lea.vmem %s5, 32
        %v816 = vld [vmem:[%s815] sm:$0xff]
        %v817 = vld [vmem:[%s815 + $0x8] sm:$0xff]
        %v818 = vld [vmem:[%s815 + $0x10] sm:$0xff]
        %v819 = vld [vmem:[%s815 + $0x18] sm:$0xff]
        %v821 = vsel %vm593, %v810, 0
        %v824 = vsel %vm593, %v811, 0
        %v827 = vsel %vm593, %v812, 0
        %v830 = vsel %vm593, %v813, 0
        %v833 = vsel %vm593, %v814, 0
        %835 = vmatpush.msra.mxu0 0.0
        %836 = vmatpush.msra.mxu0 0.0
        %837 = vmatpush.msra.mxu0 0.0
        %838 = vmatpush.msra.mxu0 0.0
        %839 = vmatpush.msra.mxu0 0.0
        %840 = vmatpush.msra.mxu0 0.0
        %841 = vmatpush.msra.mxu0 0.0
        %842 = vmatpush.msra.mxu0 0.0
        %843 = vmatpush.msra.mxu0 0.0
        %844 = vmatpush.msra.mxu0 0.0
        %845 = vmatpush.msra.mxu0 0.0
        %846 = vmatpush.msra.mxu0 0.0
        %847 = vmatpush.msra.mxu0 %v819
        %848 = vmatpush.msra.mxu0 %v818
        %849 = vmatpush.msra.mxu0 %v817
        %850 = vmatpush.msra.mxu0 %v816
        %851 = vmatmul.f32.gmra.mxu0 %v821
        %v852 = vpop.f32.mrf.mxu0
        %v853 = vadd.f32 0.0, %v852
        %854 = vmatmul.f32.gmra.mxu0 %v824
        %v855 = vpop.f32.mrf.mxu0
        %v856 = vadd.f32 0.0, %v855
        %857 = vmatmul.f32.gmra.mxu0 %v827
        %v858 = vpop.f32.mrf.mxu0
        %v859 = vadd.f32 0.0, %v858
        %860 = vmatmul.f32.gmra.mxu0 %v830
        %v861 = vpop.f32.mrf.mxu0
        %v862 = vadd.f32 0.0, %v861
        %863 = vmatmul.f32.gmra.mxu0 %v833
        %v864 = vpop.f32.mrf.mxu0
        %v865 = vadd.f32 0.0, %v864
        %866 = vdwg.mxu0
        %v868 = vsel %vm593, %v801, 0
        %v871 = vsel %vm593, %v802, 0
        %v874 = vsel %vm593, %v803, 0
        %v877 = vsel %vm593, %v804, 0
        %v880 = vsel %vm593, %v805, 0
        %882 = vmatpush.msra.mxu0 0.0
        %883 = vmatpush.msra.mxu0 0.0
        %884 = vmatpush.msra.mxu0 0.0
        %885 = vmatpush.msra.mxu0 0.0
        %886 = vmatpush.msra.mxu0 0.0
        %887 = vmatpush.msra.mxu0 0.0
        %888 = vmatpush.msra.mxu0 0.0
        %889 = vmatpush.msra.mxu0 0.0
        %890 = vmatpush.msra.mxu0 0.0
        %891 = vmatpush.msra.mxu0 0.0
        %892 = vmatpush.msra.mxu0 0.0
        %893 = vmatpush.msra.mxu0 0.0
        %894 = vmatpush.msra.mxu0 %v809
        %895 = vmatpush.msra.mxu0 %v808
        %896 = vmatpush.msra.mxu0 %v807
        %897 = vmatpush.msra.mxu0 %v806
        %898 = vmatmul.f32.gmra.mxu0 %v868
        %v899 = vpop.f32.mrf.mxu0
        %v900 = vadd.f32 %v853, %v899
        %901 = vmatmul.f32.gmra.mxu0 %v871
        %v902 = vpop.f32.mrf.mxu0
        %v903 = vadd.f32 %v856, %v902
        %904 = vmatmul.f32.gmra.mxu0 %v874
        %v905 = vpop.f32.mrf.mxu0
        %v906 = vadd.f32 %v859, %v905
        %907 = vmatmul.f32.gmra.mxu0 %v877
        %v908 = vpop.f32.mrf.mxu0
        %v909 = vadd.f32 %v862, %v908
        %910 = vmatmul.f32.gmra.mxu0 %v880
        %v911 = vpop.f32.mrf.mxu0
        %v912 = vadd.f32 %v865, %v911
        %913 = vdwg.mxu0
        %v914 = vld [vmem:[#allocation3 + $0x2] sm:$0xff]
        %v915 = vld [vmem:[#allocation3 + $0xa] sm:$0xff]
        %v916 = vld [vmem:[#allocation3 + $0x12] sm:$0xff]
        %v917 = vld [vmem:[#allocation3 + $0x1a] sm:$0xff]
        %v918 = vld [vmem:[#allocation3 + $0x22] sm:$0xff]
        %s919 = scalar_lea.vmem %s5, 64
        %v920 = vld [vmem:[%s919] sm:$0xff]
        %v921 = vld [vmem:[%s919 + $0x8] sm:$0xff]
        %v922 = vld [vmem:[%s919 + $0x10] sm:$0xff]
        %v923 = vld [vmem:[%s919 + $0x18] sm:$0xff]
        %v925 = vsel %vm593, %v914, 0
        %v928 = vsel %vm593, %v915, 0
        %v931 = vsel %vm593, %v916, 0
        %v934 = vsel %vm593, %v917, 0
        %v937 = vsel %vm593, %v918, 0
        %939 = vmatpush.msra.mxu0 0.0
        %940 = vmatpush.msra.mxu0 0.0
        %941 = vmatpush.msra.mxu0 0.0
        %942 = vmatpush.msra.mxu0 0.0
        %943 = vmatpush.msra.mxu0 0.0
        %944 = vmatpush.msra.mxu0 0.0
        %945 = vmatpush.msra.mxu0 0.0
        %946 = vmatpush.msra.mxu0 0.0
        %947 = vmatpush.msra.mxu0 0.0
        %948 = vmatpush.msra.mxu0 0.0
        %949 = vmatpush.msra.mxu0 0.0
        %950 = vmatpush.msra.mxu0 0.0
        %951 = vmatpush.msra.mxu0 %v923
        %952 = vmatpush.msra.mxu0 %v922
        %953 = vmatpush.msra.mxu0 %v921
        %954 = vmatpush.msra.mxu0 %v920
        %955 = vmatmul.f32.gmra.mxu0 %v925
        %v956 = vpop.f32.mrf.mxu0
        %v957 = vadd.f32 0.0, %v956
        %958 = vmatmul.f32.gmra.mxu0 %v928
        %v959 = vpop.f32.mrf.mxu0
        %v960 = vadd.f32 0.0, %v959
        %961 = vmatmul.f32.gmra.mxu0 %v931
        %v962 = vpop.f32.mrf.mxu0
        %v963 = vadd.f32 0.0, %v962
        %964 = vmatmul.f32.gmra.mxu0 %v934
        %v965 = vpop.f32.mrf.mxu0
        %v966 = vadd.f32 0.0, %v965
        %967 = vmatmul.f32.gmra.mxu0 %v937
        %v968 = vpop.f32.mrf.mxu0
        %v969 = vadd.f32 0.0, %v968
        %970 = vdwg.mxu0
        %v971 = vadd.f32 %v900, %v957
        %v972 = vadd.f32 %v903, %v960
        %v973 = vadd.f32 %v906, %v963
        %v974 = vadd.f32 %v909, %v966
        %v975 = vadd.f32 %v912, %v969
        %v976 = vld [vmem:[#allocation3 + $0x3] sm:$0xff]
        %v977 = vld [vmem:[#allocation3 + $0xb] sm:$0xff]
        %v978 = vld [vmem:[#allocation3 + $0x13] sm:$0xff]
        %v979 = vld [vmem:[#allocation3 + $0x1b] sm:$0xff]
        %v980 = vld [vmem:[#allocation3 + $0x23] sm:$0xff]
        %s981 = scalar_lea.vmem %s5, 96
        %v982 = vld [vmem:[%s981] sm:$0xff]
        %v983 = vld [vmem:[%s981 + $0x8] sm:$0xff]
        %v984 = vld [vmem:[%s981 + $0x10] sm:$0xff]
        %v985 = vld [vmem:[%s981 + $0x18] sm:$0xff]
        %v987 = vsel %vm593, %v976, 0
        %v990 = vsel %vm593, %v977, 0
        %v993 = vsel %vm593, %v978, 0
        %v996 = vsel %vm593, %v979, 0
        %v999 = vsel %vm593, %v980, 0
        %1001 = vmatpush.msra.mxu0 0.0
        %1002 = vmatpush.msra.mxu0 0.0
        %1003 = vmatpush.msra.mxu0 0.0
        %1004 = vmatpush.msra.mxu0 0.0
        %1005 = vmatpush.msra.mxu0 0.0
        %1006 = vmatpush.msra.mxu0 0.0
        %1007 = vmatpush.msra.mxu0 0.0
        %1008 = vmatpush.msra.mxu0 0.0
        %1009 = vmatpush.msra.mxu0 0.0
        %1010 = vmatpush.msra.mxu0 0.0
        %1011 = vmatpush.msra.mxu0 0.0
        %1012 = vmatpush.msra.mxu0 0.0
        %1013 = vmatpush.msra.mxu0 %v985
        %1014 = vmatpush.msra.mxu0 %v984
        %1015 = vmatpush.msra.mxu0 %v983
        %1016 = vmatpush.msra.mxu0 %v982
        %1017 = vmatmul.f32.gmra.mxu0 %v987
        %v1018 = vpop.f32.mrf.mxu0
        %v1019 = vadd.f32 0.0, %v1018
        %1020 = vmatmul.f32.gmra.mxu0 %v990
        %v1021 = vpop.f32.mrf.mxu0
        %v1022 = vadd.f32 0.0, %v1021
        %1023 = vmatmul.f32.gmra.mxu0 %v993
        %v1024 = vpop.f32.mrf.mxu0
        %v1025 = vadd.f32 0.0, %v1024
        %1026 = vmatmul.f32.gmra.mxu0 %v996
        %v1027 = vpop.f32.mrf.mxu0
        %v1028 = vadd.f32 0.0, %v1027
        %1029 = vmatmul.f32.gmra.mxu0 %v999
        %v1030 = vpop.f32.mrf.mxu0
        %v1031 = vadd.f32 0.0, %v1030
        %1032 = vdwg.mxu0
        %v1033 = vadd.f32 %v971, %v1019
        %v1034 = vadd.f32 %v972, %v1022
        %v1035 = vadd.f32 %v973, %v1025
        %v1036 = vadd.f32 %v974, %v1028
        %v1037 = vadd.f32 %v975, %v1031
        %v1038 = vld [vmem:[#allocation3 + $0x4] sm:$0xff]
        %v1039 = vld [vmem:[#allocation3 + $0xc] sm:$0xff]
        %v1040 = vld [vmem:[#allocation3 + $0x14] sm:$0xff]
        %v1041 = vld [vmem:[#allocation3 + $0x1c] sm:$0xff]
        %v1042 = vld [vmem:[#allocation3 + $0x24] sm:$0xff]
        %s1043 = scalar_lea.vmem %s5, 128
        %v1044 = vld [vmem:[%s1043] sm:$0xff]
        %v1045 = vld [vmem:[%s1043 + $0x8] sm:$0xff]
        %v1046 = vld [vmem:[%s1043 + $0x10] sm:$0xff]
        %v1047 = vld [vmem:[%s1043 + $0x18] sm:$0xff]
        %v1049 = vsel %vm593, %v1038, 0
        %v1052 = vsel %vm593, %v1039, 0
        %v1055 = vsel %vm593, %v1040, 0
        %v1058 = vsel %vm593, %v1041, 0
        %v1061 = vsel %vm593, %v1042, 0
        %1063 = vmatpush.msra.mxu0 0.0
        %1064 = vmatpush.msra.mxu0 0.0
        %1065 = vmatpush.msra.mxu0 0.0
        %1066 = vmatpush.msra.mxu0 0.0
        %1067 = vmatpush.msra.mxu0 0.0
        %1068 = vmatpush.msra.mxu0 0.0
        %1069 = vmatpush.msra.mxu0 0.0
        %1070 = vmatpush.msra.mxu0 0.0
        %1071 = vmatpush.msra.mxu0 0.0
        %1072 = vmatpush.msra.mxu0 0.0
        %1073 = vmatpush.msra.mxu0 0.0
        %1074 = vmatpush.msra.mxu0 0.0
        %1075 = vmatpush.msra.mxu0 %v1047
        %1076 = vmatpush.msra.mxu0 %v1046
        %1077 = vmatpush.msra.mxu0 %v1045
        %1078 = vmatpush.msra.mxu0 %v1044
        %1079 = vmatmul.f32.gmra.mxu0 %v1049
        %v1080 = vpop.f32.mrf.mxu0
        %v1081 = vadd.f32 0.0, %v1080
        %1082 = vmatmul.f32.gmra.mxu0 %v1052
        %v1083 = vpop.f32.mrf.mxu0
        %v1084 = vadd.f32 0.0, %v1083
        %1085 = vmatmul.f32.gmra.mxu0 %v1055
        %v1086 = vpop.f32.mrf.mxu0
        %v1087 = vadd.f32 0.0, %v1086
        %1088 = vmatmul.f32.gmra.mxu0 %v1058
        %v1089 = vpop.f32.mrf.mxu0
        %v1090 = vadd.f32 0.0, %v1089
        %1091 = vmatmul.f32.gmra.mxu0 %v1061
        %v1092 = vpop.f32.mrf.mxu0
        %v1093 = vadd.f32 0.0, %v1092
        %1094 = vdwg.mxu0
        %v1095 = vadd.f32 %v1033, %v1081
        %v1096 = vadd.f32 %v1034, %v1084
        %v1097 = vadd.f32 %v1035, %v1087
        %v1098 = vadd.f32 %v1036, %v1090
        %v1099 = vadd.f32 %v1037, %v1093
        %v1100 = vld [vmem:[#allocation3 + $0x5] sm:$0xff]
        %v1101 = vld [vmem:[#allocation3 + $0xd] sm:$0xff]
        %v1102 = vld [vmem:[#allocation3 + $0x15] sm:$0xff]
        %v1103 = vld [vmem:[#allocation3 + $0x1d] sm:$0xff]
        %v1104 = vld [vmem:[#allocation3 + $0x25] sm:$0xff]
        %s1105 = scalar_lea.vmem %s5, 160
        %v1106 = vld [vmem:[%s1105] sm:$0xff]
        %v1107 = vld [vmem:[%s1105 + $0x8] sm:$0xff]
        %v1108 = vld [vmem:[%s1105 + $0x10] sm:$0xff]
        %v1109 = vld [vmem:[%s1105 + $0x18] sm:$0xff]
        %v1111 = vsel %vm593, %v1100, 0
        %v1114 = vsel %vm593, %v1101, 0
        %v1117 = vsel %vm593, %v1102, 0
        %v1120 = vsel %vm593, %v1103, 0
        %v1123 = vsel %vm593, %v1104, 0
        %1125 = vmatpush.msra.mxu0 0.0
        %1126 = vmatpush.msra.mxu0 0.0
        %1127 = vmatpush.msra.mxu0 0.0
        %1128 = vmatpush.msra.mxu0 0.0
        %1129 = vmatpush.msra.mxu0 0.0
        %1130 = vmatpush.msra.mxu0 0.0
        %1131 = vmatpush.msra.mxu0 0.0
        %1132 = vmatpush.msra.mxu0 0.0
        %1133 = vmatpush.msra.mxu0 0.0
        %1134 = vmatpush.msra.mxu0 0.0
        %1135 = vmatpush.msra.mxu0 0.0
        %1136 = vmatpush.msra.mxu0 0.0
        %1137 = vmatpush.msra.mxu0 %v1109
        %1138 = vmatpush.msra.mxu0 %v1108
        %1139 = vmatpush.msra.mxu0 %v1107
        %1140 = vmatpush.msra.mxu0 %v1106
        %1141 = vmatmul.f32.gmra.mxu0 %v1111
        %v1142 = vpop.f32.mrf.mxu0
        %v1143 = vadd.f32 0.0, %v1142
        %1144 = vmatmul.f32.gmra.mxu0 %v1114
        %v1145 = vpop.f32.mrf.mxu0
        %v1146 = vadd.f32 0.0, %v1145
        %1147 = vmatmul.f32.gmra.mxu0 %v1117
        %v1148 = vpop.f32.mrf.mxu0
        %v1149 = vadd.f32 0.0, %v1148
        %1150 = vmatmul.f32.gmra.mxu0 %v1120
        %v1151 = vpop.f32.mrf.mxu0
        %v1152 = vadd.f32 0.0, %v1151
        %1153 = vmatmul.f32.gmra.mxu0 %v1123
        %v1154 = vpop.f32.mrf.mxu0
        %v1155 = vadd.f32 0.0, %v1154
        %1156 = vdwg.mxu0
        %v1157 = vadd.f32 %v1095, %v1143
        %v1158 = vadd.f32 %v1096, %v1146
        %v1159 = vadd.f32 %v1097, %v1149
        %v1160 = vadd.f32 %v1098, %v1152
        %v1161 = vadd.f32 %v1099, %v1155
        %v1162 = vld [vmem:[#allocation3 + $0x6] sm:$0xff]
        %v1163 = vld [vmem:[#allocation3 + $0xe] sm:$0xff]
        %v1164 = vld [vmem:[#allocation3 + $0x16] sm:$0xff]
        %v1165 = vld [vmem:[#allocation3 + $0x1e] sm:$0xff]
        %v1166 = vld [vmem:[#allocation3 + $0x26] sm:$0xff]
        %s1167 = scalar_lea.vmem %s5, 192
        %v1168 = vld [vmem:[%s1167] sm:$0xff]
        %v1169 = vld [vmem:[%s1167 + $0x8] sm:$0xff]
        %v1170 = vld [vmem:[%s1167 + $0x10] sm:$0xff]
        %v1171 = vld [vmem:[%s1167 + $0x18] sm:$0xff]
        %v1173 = vsel %vm593, %v1162, 0
        %v1176 = vsel %vm593, %v1163, 0
        %v1179 = vsel %vm593, %v1164, 0
        %v1182 = vsel %vm593, %v1165, 0
        %v1185 = vsel %vm593, %v1166, 0
        %1187 = vmatpush.msra.mxu0 0.0
        %1188 = vmatpush.msra.mxu0 0.0
        %1189 = vmatpush.msra.mxu0 0.0
        %1190 = vmatpush.msra.mxu0 0.0
        %1191 = vmatpush.msra.mxu0 0.0
        %1192 = vmatpush.msra.mxu0 0.0
        %1193 = vmatpush.msra.mxu0 0.0
        %1194 = vmatpush.msra.mxu0 0.0
        %1195 = vmatpush.msra.mxu0 0.0
        %1196 = vmatpush.msra.mxu0 0.0
        %1197 = vmatpush.msra.mxu0 0.0
        %1198 = vmatpush.msra.mxu0 0.0
        %1199 = vmatpush.msra.mxu0 %v1171
        %1200 = vmatpush.msra.mxu0 %v1170
        %1201 = vmatpush.msra.mxu0 %v1169
        %1202 = vmatpush.msra.mxu0 %v1168
        %1203 = vmatmul.f32.gmra.mxu0 %v1173
        %v1204 = vpop.f32.mrf.mxu0
        %v1205 = vadd.f32 0.0, %v1204
        %1206 = vmatmul.f32.gmra.mxu0 %v1176
        %v1207 = vpop.f32.mrf.mxu0
        %v1208 = vadd.f32 0.0, %v1207
        %1209 = vmatmul.f32.gmra.mxu0 %v1179
        %v1210 = vpop.f32.mrf.mxu0
        %v1211 = vadd.f32 0.0, %v1210
        %1212 = vmatmul.f32.gmra.mxu0 %v1182
        %v1213 = vpop.f32.mrf.mxu0
        %v1214 = vadd.f32 0.0, %v1213
        %1215 = vmatmul.f32.gmra.mxu0 %v1185
        %v1216 = vpop.f32.mrf.mxu0
        %v1217 = vadd.f32 0.0, %v1216
        %1218 = vdwg.mxu0
        %v1219 = vadd.f32 %v1157, %v1205
        %v1220 = vadd.f32 %v1158, %v1208
        %v1221 = vadd.f32 %v1159, %v1211
        %v1222 = vadd.f32 %v1160, %v1214
        %v1223 = vadd.f32 %v1161, %v1217
        %v1224 = vld [vmem:[#allocation3 + $0x7] sm:$0xff]
        %v1225 = vld [vmem:[#allocation3 + $0xf] sm:$0xff]
        %v1226 = vld [vmem:[#allocation3 + $0x17] sm:$0xff]
        %v1227 = vld [vmem:[#allocation3 + $0x1f] sm:$0xff]
        %v1228 = vld [vmem:[#allocation3 + $0x27] sm:$0xff]
        %s1229 = scalar_lea.vmem %s5, 224
        %v1230 = vld [vmem:[%s1229] sm:$0xff]
        %v1231 = vld [vmem:[%s1229 + $0x8] sm:$0xff]
        %v1232 = vld [vmem:[%s1229 + $0x10] sm:$0xff]
        %v1233 = vld [vmem:[%s1229 + $0x18] sm:$0xff]
        %v1235 = vsel %vm593, %v1224, 0
        %v1238 = vsel %vm593, %v1225, 0
        %v1241 = vsel %vm593, %v1226, 0
        %v1244 = vsel %vm593, %v1227, 0
        %v1247 = vsel %vm593, %v1228, 0
        %1249 = vmatpush.msra.mxu0 0.0
        %1250 = vmatpush.msra.mxu0 0.0
        %1251 = vmatpush.msra.mxu0 0.0
        %1252 = vmatpush.msra.mxu0 0.0
        %1253 = vmatpush.msra.mxu0 0.0
        %1254 = vmatpush.msra.mxu0 0.0
        %1255 = vmatpush.msra.mxu0 0.0
        %1256 = vmatpush.msra.mxu0 0.0
        %1257 = vmatpush.msra.mxu0 0.0
        %1258 = vmatpush.msra.mxu0 0.0
        %1259 = vmatpush.msra.mxu0 0.0
        %1260 = vmatpush.msra.mxu0 0.0
        %1261 = vmatpush.msra.mxu0 %v1233
        %1262 = vmatpush.msra.mxu0 %v1232
        %1263 = vmatpush.msra.mxu0 %v1231
        %1264 = vmatpush.msra.mxu0 %v1230
        %1265 = vmatmul.f32.gmra.mxu0 %v1235
        %v1266 = vpop.f32.mrf.mxu0
        %v1267 = vadd.f32 0.0, %v1266
        %1268 = vmatmul.f32.gmra.mxu0 %v1238
        %v1269 = vpop.f32.mrf.mxu0
        %v1270 = vadd.f32 0.0, %v1269
        %1271 = vmatmul.f32.gmra.mxu0 %v1241
        %v1272 = vpop.f32.mrf.mxu0
        %v1273 = vadd.f32 0.0, %v1272
        %1274 = vmatmul.f32.gmra.mxu0 %v1244
        %v1275 = vpop.f32.mrf.mxu0
        %v1276 = vadd.f32 0.0, %v1275
        %1277 = vmatmul.f32.gmra.mxu0 %v1247
        %v1278 = vpop.f32.mrf.mxu0
        %v1279 = vadd.f32 0.0, %v1278
        %1280 = vdwg.mxu0
        %v1281 = vadd.f32 %v1219, %v1267
        %v1282 = vadd.f32 %v1220, %v1270
        %v1283 = vadd.f32 %v1221, %v1273
        %v1284 = vadd.f32 %v1222, %v1276
        %v1285 = vadd.f32 %v1223, %v1279
        %v1286 = vld [vmem:[#allocation3 + $0x8] sm:$0xff]
        %v1287 = vld [vmem:[#allocation3 + $0x10] sm:$0xff]
        %v1288 = vld [vmem:[#allocation3 + $0x18] sm:$0xff]
        %v1289 = vld [vmem:[#allocation3 + $0x20] sm:$0xff]
        %v1290 = vld [vmem:[#allocation3 + $0x28] sm:$0xff]
        %s1291 = scalar_lea.vmem %s5, 256
        %v1292 = vld [vmem:[%s1291] sm:$0xff]
        %v1293 = vld [vmem:[%s1291 + $0x8] sm:$0xff]
        %v1294 = vld [vmem:[%s1291 + $0x10] sm:$0xff]
        %v1295 = vld [vmem:[%s1291 + $0x18] sm:$0xff]
        %v1297 = vsel %vm593, %v1286, 0
        %v1300 = vsel %vm593, %v1287, 0
        %v1303 = vsel %vm593, %v1288, 0
        %v1306 = vsel %vm593, %v1289, 0
        %v1309 = vsel %vm593, %v1290, 0
        %1311 = vmatpush.msra.mxu0 0.0
        %1312 = vmatpush.msra.mxu0 0.0
        %1313 = vmatpush.msra.mxu0 0.0
        %1314 = vmatpush.msra.mxu0 0.0
        %1315 = vmatpush.msra.mxu0 0.0
        %1316 = vmatpush.msra.mxu0 0.0
        %1317 = vmatpush.msra.mxu0 0.0
        %1318 = vmatpush.msra.mxu0 0.0
        %1319 = vmatpush.msra.mxu0 0.0
        %1320 = vmatpush.msra.mxu0 0.0
        %1321 = vmatpush.msra.mxu0 0.0
        %1322 = vmatpush.msra.mxu0 0.0
        %1323 = vmatpush.msra.mxu0 %v1295
        %1324 = vmatpush.msra.mxu0 %v1294
        %1325 = vmatpush.msra.mxu0 %v1293
        %1326 = vmatpush.msra.mxu0 %v1292
        %1327 = vmatmul.f32.gmra.mxu0 %v1297
        %v1328 = vpop.f32.mrf.mxu0
        %v1329 = vadd.f32 0.0, %v1328
        %1330 = vmatmul.f32.gmra.mxu0 %v1300
        %v1331 = vpop.f32.mrf.mxu0
        %v1332 = vadd.f32 0.0, %v1331
        %1333 = vmatmul.f32.gmra.mxu0 %v1303
        %v1334 = vpop.f32.mrf.mxu0
        %v1335 = vadd.f32 0.0, %v1334
        %1336 = vmatmul.f32.gmra.mxu0 %v1306
        %v1337 = vpop.f32.mrf.mxu0
        %v1338 = vadd.f32 0.0, %v1337
        %1339 = vmatmul.f32.gmra.mxu0 %v1309
        %v1340 = vpop.f32.mrf.mxu0
        %v1341 = vadd.f32 0.0, %v1340
        %1342 = vdwg.mxu0
        %v1343 = vadd.f32 %v1281, %v1329
        %v1344 = vadd.f32 %v1282, %v1332
        %v1345 = vadd.f32 %v1283, %v1335
        %v1346 = vadd.f32 %v1284, %v1338
        %v1347 = vadd.f32 %v1285, %v1341
        %v1348 = vld [vmem:[#allocation3 + $0x9] sm:$0xff]
        %v1349 = vld [vmem:[#allocation3 + $0x11] sm:$0xff]
        %v1350 = vld [vmem:[#allocation3 + $0x19] sm:$0xff]
        %v1351 = vld [vmem:[#allocation3 + $0x21] sm:$0xff]
        %v1352 = vld [vmem:[#allocation3 + $0x29] sm:$0xff]
        %s1353 = scalar_lea.vmem %s5, 288
        %v1354 = vld [vmem:[%s1353] sm:$0xff]
        %v1355 = vld [vmem:[%s1353 + $0x8] sm:$0xff]
        %v1356 = vld [vmem:[%s1353 + $0x10] sm:$0xff]
        %v1357 = vld [vmem:[%s1353 + $0x18] sm:$0xff]
        %v1359 = vsel %vm593, %v1348, 0
        %v1362 = vsel %vm593, %v1349, 0
        %v1365 = vsel %vm593, %v1350, 0
        %v1368 = vsel %vm593, %v1351, 0
        %v1371 = vsel %vm593, %v1352, 0
        %1373 = vmatpush.msra.mxu0 0.0
        %1374 = vmatpush.msra.mxu0 0.0
        %1375 = vmatpush.msra.mxu0 0.0
        %1376 = vmatpush.msra.mxu0 0.0
        %1377 = vmatpush.msra.mxu0 0.0
        %1378 = vmatpush.msra.mxu0 0.0
        %1379 = vmatpush.msra.mxu0 0.0
        %1380 = vmatpush.msra.mxu0 0.0
        %1381 = vmatpush.msra.mxu0 0.0
        %1382 = vmatpush.msra.mxu0 0.0
        %1383 = vmatpush.msra.mxu0 0.0
        %1384 = vmatpush.msra.mxu0 0.0
        %1385 = vmatpush.msra.mxu0 %v1357
        %1386 = vmatpush.msra.mxu0 %v1356
        %1387 = vmatpush.msra.mxu0 %v1355
        %1388 = vmatpush.msra.mxu0 %v1354
        %1389 = vmatmul.f32.gmra.mxu0 %v1359
        %v1390 = vpop.f32.mrf.mxu0
        %v1391 = vadd.f32 0.0, %v1390
        %1392 = vmatmul.f32.gmra.mxu0 %v1362
        %v1393 = vpop.f32.mrf.mxu0
        %v1394 = vadd.f32 0.0, %v1393
        %1395 = vmatmul.f32.gmra.mxu0 %v1365
        %v1396 = vpop.f32.mrf.mxu0
        %v1397 = vadd.f32 0.0, %v1396
        %1398 = vmatmul.f32.gmra.mxu0 %v1368
        %v1399 = vpop.f32.mrf.mxu0
        %v1400 = vadd.f32 0.0, %v1399
        %1401 = vmatmul.f32.gmra.mxu0 %v1371
        %v1402 = vpop.f32.mrf.mxu0
        %v1403 = vadd.f32 0.0, %v1402
        %1404 = vdwg.mxu0
        %v1405 = vadd.f32 %v1343, %v1391
        %v1406 = vadd.f32 %v1344, %v1394
        %v1407 = vadd.f32 %v1345, %v1397
        %v1408 = vadd.f32 %v1346, %v1400
        %v1409 = vadd.f32 %v1347, %v1403
        %v1410 = vld [vmem:[#allocation3 + $0xa] sm:$0xff]
        %v1411 = vld [vmem:[#allocation3 + $0x12] sm:$0xff]
        %v1412 = vld [vmem:[#allocation3 + $0x1a] sm:$0xff]
        %v1413 = vld [vmem:[#allocation3 + $0x22] sm:$0xff]
        %v1414 = vld [vmem:[#allocation3 + $0x2a] sm:$0xff]
        %s1415 = scalar_lea.vmem %s5, 320
        %v1416 = vld [vmem:[%s1415] sm:$0xff]
        %v1417 = vld [vmem:[%s1415 + $0x8] sm:$0xff]
        %v1418 = vld [vmem:[%s1415 + $0x10] sm:$0xff]
        %v1419 = vld [vmem:[%s1415 + $0x18] sm:$0xff]
        %v1421 = vsel %vm593, %v1410, 0
        %v1424 = vsel %vm593, %v1411, 0
        %v1427 = vsel %vm593, %v1412, 0
        %v1430 = vsel %vm593, %v1413, 0
        %v1433 = vsel %vm593, %v1414, 0
        %1435 = vmatpush.msra.mxu0 0.0
        %1436 = vmatpush.msra.mxu0 0.0
        %1437 = vmatpush.msra.mxu0 0.0
        %1438 = vmatpush.msra.mxu0 0.0
        %1439 = vmatpush.msra.mxu0 0.0
        %1440 = vmatpush.msra.mxu0 0.0
        %1441 = vmatpush.msra.mxu0 0.0
        %1442 = vmatpush.msra.mxu0 0.0
        %1443 = vmatpush.msra.mxu0 0.0
        %1444 = vmatpush.msra.mxu0 0.0
        %1445 = vmatpush.msra.mxu0 0.0
        %1446 = vmatpush.msra.mxu0 0.0
        %1447 = vmatpush.msra.mxu0 %v1419
        %1448 = vmatpush.msra.mxu0 %v1418
        %1449 = vmatpush.msra.mxu0 %v1417
        %1450 = vmatpush.msra.mxu0 %v1416
        %1451 = vmatmul.f32.gmra.mxu0 %v1421
        %v1452 = vpop.f32.mrf.mxu0
        %v1453 = vadd.f32 0.0, %v1452
        %1454 = vmatmul.f32.gmra.mxu0 %v1424
        %v1455 = vpop.f32.mrf.mxu0
        %v1456 = vadd.f32 0.0, %v1455
        %1457 = vmatmul.f32.gmra.mxu0 %v1427
        %v1458 = vpop.f32.mrf.mxu0
        %v1459 = vadd.f32 0.0, %v1458
        %1460 = vmatmul.f32.gmra.mxu0 %v1430
        %v1461 = vpop.f32.mrf.mxu0
        %v1462 = vadd.f32 0.0, %v1461
        %1463 = vmatmul.f32.gmra.mxu0 %v1433
        %v1464 = vpop.f32.mrf.mxu0
        %v1465 = vadd.f32 0.0, %v1464
        %1466 = vdwg.mxu0
        %v1467 = vadd.f32 %v1405, %v1453
        %v1468 = vadd.f32 %v1406, %v1456
        %v1469 = vadd.f32 %v1407, %v1459
        %v1470 = vadd.f32 %v1408, %v1462
        %v1471 = vadd.f32 %v1409, %v1465
        %v1472 = vld [vmem:[#allocation3 + $0xb] sm:$0xff]
        %v1473 = vld [vmem:[#allocation3 + $0x13] sm:$0xff]
        %v1474 = vld [vmem:[#allocation3 + $0x1b] sm:$0xff]
        %v1475 = vld [vmem:[#allocation3 + $0x23] sm:$0xff]
        %v1476 = vld [vmem:[#allocation3 + $0x2b] sm:$0xff]
        %s1477 = scalar_lea.vmem %s5, 352
        %v1478 = vld [vmem:[%s1477] sm:$0xff]
        %v1479 = vld [vmem:[%s1477 + $0x8] sm:$0xff]
        %v1480 = vld [vmem:[%s1477 + $0x10] sm:$0xff]
        %v1481 = vld [vmem:[%s1477 + $0x18] sm:$0xff]
        %v1483 = vsel %vm593, %v1472, 0
        %v1486 = vsel %vm593, %v1473, 0
        %v1489 = vsel %vm593, %v1474, 0
        %v1492 = vsel %vm593, %v1475, 0
        %v1495 = vsel %vm593, %v1476, 0
        %1497 = vmatpush.msra.mxu0 0.0
        %1498 = vmatpush.msra.mxu0 0.0
        %1499 = vmatpush.msra.mxu0 0.0
        %1500 = vmatpush.msra.mxu0 0.0
        %1501 = vmatpush.msra.mxu0 0.0
        %1502 = vmatpush.msra.mxu0 0.0
        %1503 = vmatpush.msra.mxu0 0.0
        %1504 = vmatpush.msra.mxu0 0.0
        %1505 = vmatpush.msra.mxu0 0.0
        %1506 = vmatpush.msra.mxu0 0.0
        %1507 = vmatpush.msra.mxu0 0.0
        %1508 = vmatpush.msra.mxu0 0.0
        %1509 = vmatpush.msra.mxu0 %v1481
        %1510 = vmatpush.msra.mxu0 %v1480
        %1511 = vmatpush.msra.mxu0 %v1479
        %1512 = vmatpush.msra.mxu0 %v1478
        %1513 = vmatmul.f32.gmra.mxu0 %v1483
        %v1514 = vpop.f32.mrf.mxu0
        %v1515 = vadd.f32 0.0, %v1514
        %1516 = vmatmul.f32.gmra.mxu0 %v1486
        %v1517 = vpop.f32.mrf.mxu0
        %v1518 = vadd.f32 0.0, %v1517
        %1519 = vmatmul.f32.gmra.mxu0 %v1489
        %v1520 = vpop.f32.mrf.mxu0
        %v1521 = vadd.f32 0.0, %v1520
        %1522 = vmatmul.f32.gmra.mxu0 %v1492
        %v1523 = vpop.f32.mrf.mxu0
        %v1524 = vadd.f32 0.0, %v1523
        %1525 = vmatmul.f32.gmra.mxu0 %v1495
        %v1526 = vpop.f32.mrf.mxu0
        %v1527 = vadd.f32 0.0, %v1526
        %1528 = vdwg.mxu0
        %v1529 = vadd.f32 %v1467, %v1515
        %v1530 = vadd.f32 %v1468, %v1518
        %v1531 = vadd.f32 %v1469, %v1521
        %v1532 = vadd.f32 %v1470, %v1524
        %v1533 = vadd.f32 %v1471, %v1527
        %v1534 = vld [vmem:[#allocation3 + $0xc] sm:$0xff]
        %v1535 = vld [vmem:[#allocation3 + $0x14] sm:$0xff]
        %v1536 = vld [vmem:[#allocation3 + $0x1c] sm:$0xff]
        %v1537 = vld [vmem:[#allocation3 + $0x24] sm:$0xff]
        %v1538 = vld [vmem:[#allocation3 + $0x2c] sm:$0xff]
        %s1539 = scalar_lea.vmem %s5, 384
        %v1540 = vld [vmem:[%s1539] sm:$0xff]
        %v1541 = vld [vmem:[%s1539 + $0x8] sm:$0xff]
        %v1542 = vld [vmem:[%s1539 + $0x10] sm:$0xff]
        %v1543 = vld [vmem:[%s1539 + $0x18] sm:$0xff]
        %v1545 = vsel %vm593, %v1534, 0
        %v1548 = vsel %vm593, %v1535, 0
        %v1551 = vsel %vm593, %v1536, 0
        %v1554 = vsel %vm593, %v1537, 0
        %v1557 = vsel %vm593, %v1538, 0
        %1559 = vmatpush.msra.mxu0 0.0
        %1560 = vmatpush.msra.mxu0 0.0
        %1561 = vmatpush.msra.mxu0 0.0
        %1562 = vmatpush.msra.mxu0 0.0
        %1563 = vmatpush.msra.mxu0 0.0
        %1564 = vmatpush.msra.mxu0 0.0
        %1565 = vmatpush.msra.mxu0 0.0
        %1566 = vmatpush.msra.mxu0 0.0
        %1567 = vmatpush.msra.mxu0 0.0
        %1568 = vmatpush.msra.mxu0 0.0
        %1569 = vmatpush.msra.mxu0 0.0
        %1570 = vmatpush.msra.mxu0 0.0
        %1571 = vmatpush.msra.mxu0 %v1543
        %1572 = vmatpush.msra.mxu0 %v1542
        %1573 = vmatpush.msra.mxu0 %v1541
        %1574 = vmatpush.msra.mxu0 %v1540
        %1575 = vmatmul.f32.gmra.mxu0 %v1545
        %v1576 = vpop.f32.mrf.mxu0
        %v1577 = vadd.f32 0.0, %v1576
        %1578 = vmatmul.f32.gmra.mxu0 %v1548
        %v1579 = vpop.f32.mrf.mxu0
        %v1580 = vadd.f32 0.0, %v1579
        %1581 = vmatmul.f32.gmra.mxu0 %v1551
        %v1582 = vpop.f32.mrf.mxu0
        %v1583 = vadd.f32 0.0, %v1582
        %1584 = vmatmul.f32.gmra.mxu0 %v1554
        %v1585 = vpop.f32.mrf.mxu0
        %v1586 = vadd.f32 0.0, %v1585
        %1587 = vmatmul.f32.gmra.mxu0 %v1557
        %v1588 = vpop.f32.mrf.mxu0
        %v1589 = vadd.f32 0.0, %v1588
        %1590 = vdwg.mxu0
        %v1591 = vadd.f32 %v1529, %v1577
        %v1592 = vadd.f32 %v1530, %v1580
        %v1593 = vadd.f32 %v1531, %v1583
        %v1594 = vadd.f32 %v1532, %v1586
        %v1595 = vadd.f32 %v1533, %v1589
        %v1596 = vld [vmem:[#allocation3 + $0xd] sm:$0xff]
        %v1597 = vld [vmem:[#allocation3 + $0x15] sm:$0xff]
        %v1598 = vld [vmem:[#allocation3 + $0x1d] sm:$0xff]
        %v1599 = vld [vmem:[#allocation3 + $0x25] sm:$0xff]
        %v1600 = vld [vmem:[#allocation3 + $0x2d] sm:$0xff]
        %s1601 = scalar_lea.vmem %s5, 416
        %v1602 = vld [vmem:[%s1601] sm:$0xff]
        %v1603 = vld [vmem:[%s1601 + $0x8] sm:$0xff]
        %v1604 = vld [vmem:[%s1601 + $0x10] sm:$0xff]
        %v1605 = vld [vmem:[%s1601 + $0x18] sm:$0xff]
        %v1607 = vsel %vm593, %v1596, 0
        %v1610 = vsel %vm593, %v1597, 0
        %v1613 = vsel %vm593, %v1598, 0
        %v1616 = vsel %vm593, %v1599, 0
        %v1619 = vsel %vm593, %v1600, 0
        %1621 = vmatpush.msra.mxu0 0.0
        %1622 = vmatpush.msra.mxu0 0.0
        %1623 = vmatpush.msra.mxu0 0.0
        %1624 = vmatpush.msra.mxu0 0.0
        %1625 = vmatpush.msra.mxu0 0.0
        %1626 = vmatpush.msra.mxu0 0.0
        %1627 = vmatpush.msra.mxu0 0.0
        %1628 = vmatpush.msra.mxu0 0.0
        %1629 = vmatpush.msra.mxu0 0.0
        %1630 = vmatpush.msra.mxu0 0.0
        %1631 = vmatpush.msra.mxu0 0.0
        %1632 = vmatpush.msra.mxu0 0.0
        %1633 = vmatpush.msra.mxu0 %v1605
        %1634 = vmatpush.msra.mxu0 %v1604
        %1635 = vmatpush.msra.mxu0 %v1603
        %1636 = vmatpush.msra.mxu0 %v1602
        %1637 = vmatmul.f32.gmra.mxu0 %v1607
        %v1638 = vpop.f32.mrf.mxu0
        %v1639 = vadd.f32 0.0, %v1638
        %1640 = vmatmul.f32.gmra.mxu0 %v1610
        %v1641 = vpop.f32.mrf.mxu0
        %v1642 = vadd.f32 0.0, %v1641
        %1643 = vmatmul.f32.gmra.mxu0 %v1613
        %v1644 = vpop.f32.mrf.mxu0
        %v1645 = vadd.f32 0.0, %v1644
        %1646 = vmatmul.f32.gmra.mxu0 %v1616
        %v1647 = vpop.f32.mrf.mxu0
        %v1648 = vadd.f32 0.0, %v1647
        %1649 = vmatmul.f32.gmra.mxu0 %v1619
        %v1650 = vpop.f32.mrf.mxu0
        %v1651 = vadd.f32 0.0, %v1650
        %1652 = vdwg.mxu0
        %v1653 = vadd.f32 %v1591, %v1639
        %v1654 = vadd.f32 %v1592, %v1642
        %v1655 = vadd.f32 %v1593, %v1645
        %v1656 = vadd.f32 %v1594, %v1648
        %v1657 = vadd.f32 %v1595, %v1651
        %v1658 = vld [vmem:[#allocation3 + $0xe] sm:$0xff]
        %v1659 = vld [vmem:[#allocation3 + $0x16] sm:$0xff]
        %v1660 = vld [vmem:[#allocation3 + $0x1e] sm:$0xff]
        %v1661 = vld [vmem:[#allocation3 + $0x26] sm:$0xff]
        %v1662 = vld [vmem:[#allocation3 + $0x2e] sm:$0xff]
        %s1663 = scalar_lea.vmem %s5, 448
        %v1664 = vld [vmem:[%s1663] sm:$0xff]
        %v1665 = vld [vmem:[%s1663 + $0x8] sm:$0xff]
        %v1666 = vld [vmem:[%s1663 + $0x10] sm:$0xff]
        %v1667 = vld [vmem:[%s1663 + $0x18] sm:$0xff]
        %v1669 = vsel %vm593, %v1658, 0
        %v1672 = vsel %vm593, %v1659, 0
        %v1675 = vsel %vm593, %v1660, 0
        %v1678 = vsel %vm593, %v1661, 0
        %v1681 = vsel %vm593, %v1662, 0
        %1683 = vmatpush.msra.mxu0 0.0
        %1684 = vmatpush.msra.mxu0 0.0
        %1685 = vmatpush.msra.mxu0 0.0
        %1686 = vmatpush.msra.mxu0 0.0
        %1687 = vmatpush.msra.mxu0 0.0
        %1688 = vmatpush.msra.mxu0 0.0
        %1689 = vmatpush.msra.mxu0 0.0
        %1690 = vmatpush.msra.mxu0 0.0
        %1691 = vmatpush.msra.mxu0 0.0
        %1692 = vmatpush.msra.mxu0 0.0
        %1693 = vmatpush.msra.mxu0 0.0
        %1694 = vmatpush.msra.mxu0 0.0
        %1695 = vmatpush.msra.mxu0 %v1667
        %1696 = vmatpush.msra.mxu0 %v1666
        %1697 = vmatpush.msra.mxu0 %v1665
        %1698 = vmatpush.msra.mxu0 %v1664
        %1699 = vmatmul.f32.gmra.mxu0 %v1669
        %v1700 = vpop.f32.mrf.mxu0
        %v1701 = vadd.f32 0.0, %v1700
        %1702 = vmatmul.f32.gmra.mxu0 %v1672
        %v1703 = vpop.f32.mrf.mxu0
        %v1704 = vadd.f32 0.0, %v1703
        %1705 = vmatmul.f32.gmra.mxu0 %v1675
        %v1706 = vpop.f32.mrf.mxu0
        %v1707 = vadd.f32 0.0, %v1706
        %1708 = vmatmul.f32.gmra.mxu0 %v1678
        %v1709 = vpop.f32.mrf.mxu0
        %v1710 = vadd.f32 0.0, %v1709
        %1711 = vmatmul.f32.gmra.mxu0 %v1681
        %v1712 = vpop.f32.mrf.mxu0
        %v1713 = vadd.f32 0.0, %v1712
        %1714 = vdwg.mxu0
        %v1715 = vadd.f32 %v1653, %v1701
        %v1716 = vadd.f32 %v1654, %v1704
        %v1717 = vadd.f32 %v1655, %v1707
        %v1718 = vadd.f32 %v1656, %v1710
        %v1719 = vadd.f32 %v1657, %v1713
        %v1720 = vld [vmem:[#allocation3 + $0xf] sm:$0xff]
        %v1721 = vld [vmem:[#allocation3 + $0x17] sm:$0xff]
        %v1722 = vld [vmem:[#allocation3 + $0x1f] sm:$0xff]
        %v1723 = vld [vmem:[#allocation3 + $0x27] sm:$0xff]
        %v1724 = vld [vmem:[#allocation3 + $0x2f] sm:$0xff]
        %s1725 = scalar_lea.vmem %s5, 480
        %v1726 = vld [vmem:[%s1725] sm:$0xff]
        %v1727 = vld [vmem:[%s1725 + $0x8] sm:$0xff]
        %v1728 = vld [vmem:[%s1725 + $0x10] sm:$0xff]
        %v1729 = vld [vmem:[%s1725 + $0x18] sm:$0xff]
        %v1731 = vsel %vm593, %v1720, 0
        %v1734 = vsel %vm593, %v1721, 0
        %v1737 = vsel %vm593, %v1722, 0
        %v1740 = vsel %vm593, %v1723, 0
        %v1743 = vsel %vm593, %v1724, 0
        %1745 = vmatpush.msra.mxu0 0.0
        %1746 = vmatpush.msra.mxu0 0.0
        %1747 = vmatpush.msra.mxu0 0.0
        %1748 = vmatpush.msra.mxu0 0.0
        %1749 = vmatpush.msra.mxu0 0.0
        %1750 = vmatpush.msra.mxu0 0.0
        %1751 = vmatpush.msra.mxu0 0.0
        %1752 = vmatpush.msra.mxu0 0.0
        %1753 = vmatpush.msra.mxu0 0.0
        %1754 = vmatpush.msra.mxu0 0.0
        %1755 = vmatpush.msra.mxu0 0.0
        %1756 = vmatpush.msra.mxu0 0.0
        %1757 = vmatpush.msra.mxu0 %v1729
        %1758 = vmatpush.msra.mxu0 %v1728
        %1759 = vmatpush.msra.mxu0 %v1727
        %1760 = vmatpush.msra.mxu0 %v1726
        %1761 = vmatmul.f32.gmra.mxu0 %v1731
        %v1762 = vpop.f32.mrf.mxu0
        %v1763 = vadd.f32 0.0, %v1762
        %1764 = vmatmul.f32.gmra.mxu0 %v1734
        %v1765 = vpop.f32.mrf.mxu0
        %v1766 = vadd.f32 0.0, %v1765
        %1767 = vmatmul.f32.gmra.mxu0 %v1737
        %v1768 = vpop.f32.mrf.mxu0
        %v1769 = vadd.f32 0.0, %v1768
        %1770 = vmatmul.f32.gmra.mxu0 %v1740
        %v1771 = vpop.f32.mrf.mxu0
        %v1772 = vadd.f32 0.0, %v1771
        %1773 = vmatmul.f32.gmra.mxu0 %v1743
        %v1774 = vpop.f32.mrf.mxu0
        %v1775 = vadd.f32 0.0, %v1774
        %1776 = vdwg.mxu0
        %v1777 = vadd.f32 %v1715, %v1763
        %v1778 = vadd.f32 %v1716, %v1766
        %v1779 = vadd.f32 %v1717, %v1769
        %v1780 = vadd.f32 %v1718, %v1772
        %v1781 = vadd.f32 %v1719, %v1775
        %v1782 = vld [vmem:[%s6] sm:$0x1]
        %v1784 = vperm.slane %v1782, 0
        %v1786 = vadd.f32 %v1777, %v1784
        %v1787 = vadd.f32 %v1778, %v1784
        %v1788 = vadd.f32 %v1779, %v1784
        %v1789 = vadd.f32 %v1780, %v1784
        %v1790 = vadd.f32 %v1781, %v1784
        %v1791 = vmul.f32 %v1786, 0.5
        %v1792 = vmul.f32 %v1787, 0.5
        %v1793 = vmul.f32 %v1788, 0.5
        %v1794 = vmul.f32 %v1789, 0.5
        %v1795 = vmul.f32 %v1790, 0.5
        %v1796 = vmul.f32 %v1786, 0.044715
        %v1797 = vmul.f32 %v1787, 0.044715
        %v1798 = vmul.f32 %v1788, 0.044715
        %v1799 = vmul.f32 %v1789, 0.044715
        %v1800 = vmul.f32 %v1790, 0.044715
        %v1801 = vmul.f32 %v1796, %v1786
        %v1802 = vmul.f32 %v1797, %v1787
        %v1803 = vmul.f32 %v1798, %v1788
        %v1804 = vmul.f32 %v1799, %v1789
        %v1805 = vmul.f32 %v1800, %v1790
        %v1806 = vmul.f32 %v1801, %v1786
        %v1807 = vmul.f32 %v1802, %v1787
        %v1808 = vmul.f32 %v1803, %v1788
        %v1809 = vmul.f32 %v1804, %v1789
        %v1810 = vmul.f32 %v1805, %v1790
        %v1811 = vadd.f32 %v1786, %v1806
        %v1812 = vadd.f32 %v1787, %v1807
        %v1813 = vadd.f32 %v1788, %v1808
        %v1814 = vadd.f32 %v1789, %v1809
        %v1815 = vadd.f32 %v1790, %v1810
        %v1816 = vmul.f32 %v1811, 0.7978846
        %v1817 = vmul.f32 %v1812, 0.7978846
        %v1818 = vmul.f32 %v1813, 0.7978846
        %v1819 = vmul.f32 %v1814, 0.7978846
        %v1820 = vmul.f32 %v1815, 0.7978846
        %v1821 = vtanh.pop %v1816
        %v1822 = vtanh.pop %v1817
        %v1823 = vtanh.pop %v1818
        %v1824 = vtanh.pop %v1819
        %v1825 = vtanh.pop %v1820
        %v1826 = vadd.f32 %v1821, 1.0
        %v1827 = vadd.f32 %v1822, 1.0
        %v1828 = vadd.f32 %v1823, 1.0
        %v1829 = vadd.f32 %v1824, 1.0
        %v1830 = vadd.f32 %v1825, 1.0
        %v1831 = vmul.f32 %v1791, %v1826
        %v1832 = vmul.f32 %v1792, %v1827
        %v1833 = vmul.f32 %v1793, %v1828
        %v1834 = vmul.f32 %v1794, %v1829
        %v1835 = vmul.f32 %v1795, %v1830
        %v1836 = vadd.f32 %v791, %v1831
        %v1837 = vadd.f32 %v792, %v1832
        %v1838 = vadd.f32 %v793, %v1833
        %v1839 = vadd.f32 %v794, %v1834
        %v1840 = vadd.f32 %v795, %v1835
        %1841 = vst.msk [vmem:[#allocation2] sm:$0xff] %vm593, %v1836
        %1842 = vst.msk [vmem:[#allocation2 + $0x8] sm:$0xff] %vm593, %v1837
        %1843 = vst.msk [vmem:[#allocation2 + $0x10] sm:$0xff] %vm593, %v1838
        %1844 = vst.msk [vmem:[#allocation2 + $0x18] sm:$0xff] %vm593, %v1839
        %1845 = vst.msk [vmem:[#allocation2 + $0x20] sm:$0xff] %vm593, %v1840
        %s1846 = scalar_lea.vmem %s0, 40
        %v1847 = vld [vmem:[%s1846] sm:$0xff]
        %v1848 = vld [vmem:[%s1846 + $0x8] sm:$0xff]
        %v1849 = vld [vmem:[%s1846 + $0x10] sm:$0xff]
        %v1850 = vld [vmem:[%s1846 + $0x18] sm:$0xff]
        %v1851 = vld [vmem:[%s1846 + $0x20] sm:$0xff]
        %v1852 = vld [vmem:[%s1] sm:$0x1]
        %v1853 = vld [vmem:[%s2] sm:$0x1]
        %v1854 = vsel %vm593, %v1847, 0.0
        %1855 = vadd.xlane.f32.xlu0 %v1854
        %v1856 = vpop.xlane.xlu0 %1855
        %v1857 = vsel %vm593, %v1848, 0.0
        %1858 = vadd.xlane.f32.xlu0 %v1857
        %v1859 = vpop.xlane.xlu0 %1858
        %v1860 = vsel %vm593, %v1849, 0.0
        %1861 = vadd.xlane.f32.xlu0 %v1860
        %v1862 = vpop.xlane.xlu0 %1861
        %v1863 = vsel %vm593, %v1850, 0.0
        %1864 = vadd.xlane.f32.xlu0 %v1863
        %v1865 = vpop.xlane.xlu0 %1864
        %v1866 = vsel %vm593, %v1851, 0.0
        %1867 = vadd.xlane.f32.xlu0 %v1866
        %v1868 = vpop.xlane.xlu0 %1867
        %v1869 = vmul.f32 %v1856, %v624
        %v1870 = vmul.f32 %v1859, %v624
        %v1871 = vmul.f32 %v1862, %v624
        %v1872 = vmul.f32 %v1865, %v624
        %v1873 = vmul.f32 %v1868, %v624
        %v1874 = vsub.f32 %v1847, %v1869
        %v1875 = vsub.f32 %v1848, %v1870
        %v1876 = vsub.f32 %v1849, %v1871
        %v1877 = vsub.f32 %v1850, %v1872
        %v1878 = vsub.f32 %v1851, %v1873
        %v1879 = vmul.f32 %v1874, %v1874
        %v1880 = vmul.f32 %v1875, %v1875
        %v1881 = vmul.f32 %v1876, %v1876
        %v1882 = vmul.f32 %v1877, %v1877
        %v1883 = vmul.f32 %v1878, %v1878
        %v1884 = vsel %vm593, %v1879, 0.0
        %1885 = vadd.xlane.f32.xlu0 %v1884
        %v1886 = vpop.xlane.xlu0 %1885
        %v1887 = vsel %vm593, %v1880, 0.0
        %1888 = vadd.xlane.f32.xlu0 %v1887
        %v1889 = vpop.xlane.xlu0 %1888
        %v1890 = vsel %vm593, %v1881, 0.0
        %1891 = vadd.xlane.f32.xlu0 %v1890
        %v1892 = vpop.xlane.xlu0 %1891
        %v1893 = vsel %vm593, %v1882, 0.0
        %1894 = vadd.xlane.f32.xlu0 %v1893
        %v1895 = vpop.xlane.xlu0 %1894
        %v1896 = vsel %vm593, %v1883, 0.0
        %1897 = vadd.xlane.f32.xlu0 %v1896
        %v1898 = vpop.xlane.xlu0 %1897
        %v1899 = vmul.f32 %v1886, %v624
        %v1900 = vmul.f32 %v1889, %v624
        %v1901 = vmul.f32 %v1892, %v624
        %v1902 = vmul.f32 %v1895, %v624
        %v1903 = vmul.f32 %v1898, %v624
        %v1904 = vadd.f32 %v1899, 1e-05
        %v1905 = vadd.f32 %v1900, 1e-05
        %v1906 = vadd.f32 %v1901, 1e-05
        %v1907 = vadd.f32 %v1902, 1e-05
        %v1908 = vadd.f32 %v1903, 1e-05
        %v1909 = vrsqrt.pop %v1904
        %v1910 = vmul.f32 %v1909, %v1904
        %v1911 = vmul.f32 %v1910, %v1909
        %v1912 = vmul.f32 0.5, %v1911
        %v1913 = vsub.f32 1.5, %v1912
        %v1914 = vmul.f32 %v1909, %v1913
        %vm1915 = vweird.f32 %v1904
        %vm1916 = vweird.f32 %v1909
        %vm1917 = vmor %vm1915, %vm1916
        %v1918 = vsel %vm1917, %v1909, %v1914
        %v1919 = vrsqrt.pop %v1905
        %v1920 = vmul.f32 %v1919, %v1905
        %v1921 = vmul.f32 %v1920, %v1919
        %v1922 = vmul.f32 0.5, %v1921
        %v1923 = vsub.f32 1.5, %v1922
        %v1924 = vmul.f32 %v1919, %v1923
        %vm1925 = vweird.f32 %v1905
        %vm1926 = vweird.f32 %v1919
        %vm1927 = vmor %vm1925, %vm1926
        %v1928 = vsel %vm1927, %v1919, %v1924
        %v1929 = vrsqrt.pop %v1906
        %v1930 = vmul.f32 %v1929, %v1906
        %v1931 = vmul.f32 %v1930, %v1929
        %v1932 = vmul.f32 0.5, %v1931
        %v1933 = vsub.f32 1.5, %v1932
        %v1934 = vmul.f32 %v1929, %v1933
        %vm1935 = vweird.f32 %v1906
        %vm1936 = vweird.f32 %v1929
        %vm1937 = vmor %vm1935, %vm1936
        %v1938 = vsel %vm1937, %v1929, %v1934
        %v1939 = vrsqrt.pop %v1907
        %v1940 = vmul.f32 %v1939, %v1907
        %v1941 = vmul.f32 %v1940, %v1939
        %v1942 = vmul.f32 0.5, %v1941
        %v1943 = vsub.f32 1.5, %v1942
        %v1944 = vmul.f32 %v1939, %v1943
        %vm1945 = vweird.f32 %v1907
        %vm1946 = vweird.f32 %v1939
        %vm1947 = vmor %vm1945, %vm1946
        %v1948 = vsel %vm1947, %v1939, %v1944
        %v1949 = vrsqrt.pop %v1908
        %v1950 = vmul.f32 %v1949, %v1908
        %v1951 = vmul.f32 %v1950, %v1949
        %v1952 = vmul.f32 0.5, %v1951
        %v1953 = vsub.f32 1.5, %v1952
        %v1954 = vmul.f32 %v1949, %v1953
        %vm1955 = vweird.f32 %v1908
        %vm1956 = vweird.f32 %v1949
        %vm1957 = vmor %vm1955, %vm1956
        %v1958 = vsel %vm1957, %v1949, %v1954
        %v1959 = vmul.f32 %v1874, %v1918
        %v1960 = vmul.f32 %v1875, %v1928
        %v1961 = vmul.f32 %v1876, %v1938
        %v1962 = vmul.f32 %v1877, %v1948
        %v1963 = vmul.f32 %v1878, %v1958
        %v1965 = vperm.slane %v1852, 0
        %v1967 = vmul.f32 %v1959, %v1965
        %v1968 = vmul.f32 %v1960, %v1965
        %v1969 = vmul.f32 %v1961, %v1965
        %v1970 = vmul.f32 %v1962, %v1965
        %v1971 = vmul.f32 %v1963, %v1965
        %v1973 = vperm.slane %v1853, 0
        %v1975 = vadd.f32 %v1967, %v1973
        %v1976 = vadd.f32 %v1968, %v1973
        %v1977 = vadd.f32 %v1969, %v1973
        %v1978 = vadd.f32 %v1970, %v1973
        %v1979 = vadd.f32 %v1971, %v1973
        %v1980 = vld [vmem:[%s3] sm:$0xff]
        %v1981 = vld [vmem:[%s3 + $0x8] sm:$0xff]
        %v1982 = vld [vmem:[%s3 + $0x10] sm:$0xff]
        %v1983 = vld [vmem:[%s3 + $0x18] sm:$0xff]
        %v1984 = vld [vmem:[%s4] sm:$0x1]
        %v1986 = vperm.slane %v1984, 0
        %v1989 = vsel %vm593, %v1975, 0
        %v1992 = vsel %vm593, %v1976, 0
        %v1995 = vsel %vm593, %v1977, 0
        %v1998 = vsel %vm593, %v1978, 0
        %v2001 = vsel %vm593, %v1979, 0
        %2003 = vmatpush.msra.mxu0 0.0
        %2004 = vmatpush.msra.mxu0 0.0
        %2005 = vmatpush.msra.mxu0 0.0
        %2006 = vmatpush.msra.mxu0 0.0
        %2007 = vmatpush.msra.mxu0 0.0
        %2008 = vmatpush.msra.mxu0 0.0
        %2009 = vmatpush.msra.mxu0 0.0
        %2010 = vmatpush.msra.mxu0 0.0
        %2011 = vmatpush.msra.mxu0 0.0
        %2012 = vmatpush.msra.mxu0 0.0
        %2013 = vmatpush.msra.mxu0 0.0
        %2014 = vmatpush.msra.mxu0 0.0
        %2015 = vmatpush.msra.mxu0 %v1983
        %2016 = vmatpush.msra.mxu0 %v1982
        %2017 = vmatpush.msra.mxu0 %v1981
        %2018 = vmatpush.msra.mxu0 %v1980
        %2019 = vmatmul.f32.gmra.mxu0 %v1989
        %v2020 = vpop.f32.mrf.mxu0
        %v2021 = vadd.f32 %v1986, %v2020
        %2022 = vmatmul.f32.gmra.mxu0 %v1992
        %v2023 = vpop.f32.mrf.mxu0
        %v2024 = vadd.f32 %v1986, %v2023
        %2025 = vmatmul.f32.gmra.mxu0 %v1995
        %v2026 = vpop.f32.mrf.mxu0
        %v2027 = vadd.f32 %v1986, %v2026
        %2028 = vmatmul.f32.gmra.mxu0 %v1998
        %v2029 = vpop.f32.mrf.mxu0
        %v2030 = vadd.f32 %v1986, %v2029
        %2031 = vmatmul.f32.gmra.mxu0 %v2001
        %v2032 = vpop.f32.mrf.mxu0
        %v2033 = vadd.f32 %v1986, %v2032
        %2034 = vdwg.mxu0
        %v2035 = vmul.f32 %v2021, %v588
        %v2036 = vmul.f32 %v2024, %v589
        %v2037 = vmul.f32 %v2027, %v590
        %v2038 = vmul.f32 %v2030, %v591
        %v2039 = vmul.f32 %v2033, %v592
        %2040 = vst.msk [vmem:[#allocation3 + $0x8] sm:$0xff] %vm593, %v2035
        %2041 = vst.msk [vmem:[#allocation3 + $0x10] sm:$0xff] %vm593, %v2036
        %2042 = vst.msk [vmem:[#allocation3 + $0x18] sm:$0xff] %vm593, %v2037
        %2043 = vst.msk [vmem:[#allocation3 + $0x20] sm:$0xff] %vm593, %v2038
        %2044 = vst.msk [vmem:[#allocation3 + $0x28] sm:$0xff] %vm593, %v2039
        %v2045 = vld [vmem:[#allocation3] sm:$0xff]
        %v2046 = vld [vmem:[#allocation3 + $0x8] sm:$0xff]
        %v2047 = vld [vmem:[#allocation3 + $0x10] sm:$0xff]
        %v2048 = vld [vmem:[#allocation3 + $0x18] sm:$0xff]
        %v2049 = vld [vmem:[#allocation3 + $0x20] sm:$0xff]
        %v2050 = vld [vmem:[%s5] sm:$0xff]
        %v2051 = vld [vmem:[%s5 + $0x8] sm:$0xff]
        %v2052 = vld [vmem:[%s5 + $0x10] sm:$0xff]
        %v2053 = vld [vmem:[%s5 + $0x18] sm:$0xff]
        %v2054 = vld [vmem:[#allocation3 + $0x1] sm:$0xff]
        %v2055 = vld [vmem:[#allocation3 + $0x9] sm:$0xff]
        %v2056 = vld [vmem:[#allocation3 + $0x11] sm:$0xff]
        %v2057 = vld [vmem:[#allocation3 + $0x19] sm:$0xff]
        %v2058 = vld [vmem:[#allocation3 + $0x21] sm:$0xff]
        %v2059 = vld [vmem:[%s815] sm:$0xff]
        %v2060 = vld [vmem:[%s815 + $0x8] sm:$0xff]
        %v2061 = vld [vmem:[%s815 + $0x10] sm:$0xff]
        %v2062 = vld [vmem:[%s815 + $0x18] sm:$0xff]
        %v2064 = vsel %vm593, %v2054, 0
        %v2067 = vsel %vm593, %v2055, 0
        %v2070 = vsel %vm593, %v2056, 0
        %v2073 = vsel %vm593, %v2057, 0
        %v2076 = vsel %vm593, %v2058, 0
        %2078 = vmatpush.msra.mxu0 0.0
        %2079 = vmatpush.msra.mxu0 0.0
        %2080 = vmatpush.msra.mxu0 0.0
        %2081 = vmatpush.msra.mxu0 0.0
        %2082 = vmatpush.msra.mxu0 0.0
        %2083 = vmatpush.msra.mxu0 0.0
        %2084 = vmatpush.msra.mxu0 0.0
        %2085 = vmatpush.msra.mxu0 0.0
        %2086 = vmatpush.msra.mxu0 0.0
        %2087 = vmatpush.msra.mxu0 0.0
        %2088 = vmatpush.msra.mxu0 0.0
        %2089 = vmatpush.msra.mxu0 0.0
        %2090 = vmatpush.msra.mxu0 %v2062
        %2091 = vmatpush.msra.mxu0 %v2061
        %2092 = vmatpush.msra.mxu0 %v2060
        %2093 = vmatpush.msra.mxu0 %v2059
        %2094 = vmatmul.f32.gmra.mxu0 %v2064
        %v2095 = vpop.f32.mrf.mxu0
        %v2096 = vadd.f32 0.0, %v2095
        %2097 = vmatmul.f32.gmra.mxu0 %v2067
        %v2098 = vpop.f32.mrf.mxu0
        %v2099 = vadd.f32 0.0, %v2098
        %2100 = vmatmul.f32.gmra.mxu0 %v2070
        %v2101 = vpop.f32.mrf.mxu0
        %v2102 = vadd.f32 0.0, %v2101
        %2103 = vmatmul.f32.gmra.mxu0 %v2073
        %v2104 = vpop.f32.mrf.mxu0
        %v2105 = vadd.f32 0.0, %v2104
        %2106 = vmatmul.f32.gmra.mxu0 %v2076
        %v2107 = vpop.f32.mrf.mxu0
        %v2108 = vadd.f32 0.0, %v2107
        %2109 = vdwg.mxu0
        %v2111 = vsel %vm593, %v2045, 0
        %v2114 = vsel %vm593, %v2046, 0
        %v2117 = vsel %vm593, %v2047, 0
        %v2120 = vsel %vm593, %v2048, 0
        %v2123 = vsel %vm593, %v2049, 0
        %2125 = vmatpush.msra.mxu0 0.0
        %2126 = vmatpush.msra.mxu0 0.0
        %2127 = vmatpush.msra.mxu0 0.0
        %2128 = vmatpush.msra.mxu0 0.0
        %2129 = vmatpush.msra.mxu0 0.0
        %2130 = vmatpush.msra.mxu0 0.0
        %2131 = vmatpush.msra.mxu0 0.0
        %2132 = vmatpush.msra.mxu0 0.0
        %2133 = vmatpush.msra.mxu0 0.0
        %2134 = vmatpush.msra.mxu0 0.0
        %2135 = vmatpush.msra.mxu0 0.0
        %2136 = vmatpush.msra.mxu0 0.0
        %2137 = vmatpush.msra.mxu0 %v2053
        %2138 = vmatpush.msra.mxu0 %v2052
        %2139 = vmatpush.msra.mxu0 %v2051
        %2140 = vmatpush.msra.mxu0 %v2050
        %2141 = vmatmul.f32.gmra.mxu0 %v2111
        %v2142 = vpop.f32.mrf.mxu0
        %v2143 = vadd.f32 %v2096, %v2142
        %2144 = vmatmul.f32.gmra.mxu0 %v2114
        %v2145 = vpop.f32.mrf.mxu0
        %v2146 = vadd.f32 %v2099, %v2145
        %2147 = vmatmul.f32.gmra.mxu0 %v2117
        %v2148 = vpop.f32.mrf.mxu0
        %v2149 = vadd.f32 %v2102, %v2148
        %2150 = vmatmul.f32.gmra.mxu0 %v2120
        %v2151 = vpop.f32.mrf.mxu0
        %v2152 = vadd.f32 %v2105, %v2151
        %2153 = vmatmul.f32.gmra.mxu0 %v2123
        %v2154 = vpop.f32.mrf.mxu0
        %v2155 = vadd.f32 %v2108, %v2154
        %2156 = vdwg.mxu0
        %v2157 = vld [vmem:[#allocation3 + $0x2] sm:$0xff]
        %v2158 = vld [vmem:[#allocation3 + $0xa] sm:$0xff]
        %v2159 = vld [vmem:[#allocation3 + $0x12] sm:$0xff]
        %v2160 = vld [vmem:[#allocation3 + $0x1a] sm:$0xff]
        %v2161 = vld [vmem:[#allocation3 + $0x22] sm:$0xff]
        %v2162 = vld [vmem:[%s919] sm:$0xff]
        %v2163 = vld [vmem:[%s919 + $0x8] sm:$0xff]
        %v2164 = vld [vmem:[%s919 + $0x10] sm:$0xff]
        %v2165 = vld [vmem:[%s919 + $0x18] sm:$0xff]
        %v2167 = vsel %vm593, %v2157, 0
        %v2170 = vsel %vm593, %v2158, 0
        %v2173 = vsel %vm593, %v2159, 0
        %v2176 = vsel %vm593, %v2160, 0
        %v2179 = vsel %vm593, %v2161, 0
        %2181 = vmatpush.msra.mxu0 0.0
        %2182 = vmatpush.msra.mxu0 0.0
        %2183 = vmatpush.msra.mxu0 0.0
        %2184 = vmatpush.msra.mxu0 0.0
        %2185 = vmatpush.msra.mxu0 0.0
        %2186 = vmatpush.msra.mxu0 0.0
        %2187 = vmatpush.msra.mxu0 0.0
        %2188 = vmatpush.msra.mxu0 0.0
        %2189 = vmatpush.msra.mxu0 0.0
        %2190 = vmatpush.msra.mxu0 0.0
        %2191 = vmatpush.msra.mxu0 0.0
        %2192 = vmatpush.msra.mxu0 0.0
        %2193 = vmatpush.msra.mxu0 %v2165
        %2194 = vmatpush.msra.mxu0 %v2164
        %2195 = vmatpush.msra.mxu0 %v2163
        %2196 = vmatpush.msra.mxu0 %v2162
        %2197 = vmatmul.f32.gmra.mxu0 %v2167
        %v2198 = vpop.f32.mrf.mxu0
        %v2199 = vadd.f32 0.0, %v2198
        %2200 = vmatmul.f32.gmra.mxu0 %v2170
        %v2201 = vpop.f32.mrf.mxu0
        %v2202 = vadd.f32 0.0, %v2201
        %2203 = vmatmul.f32.gmra.mxu0 %v2173
        %v2204 = vpop.f32.mrf.mxu0
        %v2205 = vadd.f32 0.0, %v2204
        %2206 = vmatmul.f32.gmra.mxu0 %v2176
        %v2207 = vpop.f32.mrf.mxu0
        %v2208 = vadd.f32 0.0, %v2207
        %2209 = vmatmul.f32.gmra.mxu0 %v2179
        %v2210 = vpop.f32.mrf.mxu0
        %v2211 = vadd.f32 0.0, %v2210
        %2212 = vdwg.mxu0
        %v2213 = vadd.f32 %v2143, %v2199
        %v2214 = vadd.f32 %v2146, %v2202
        %v2215 = vadd.f32 %v2149, %v2205
        %v2216 = vadd.f32 %v2152, %v2208
        %v2217 = vadd.f32 %v2155, %v2211
        %v2218 = vld [vmem:[#allocation3 + $0x3] sm:$0xff]
        %v2219 = vld [vmem:[#allocation3 + $0xb] sm:$0xff]
        %v2220 = vld [vmem:[#allocation3 + $0x13] sm:$0xff]
        %v2221 = vld [vmem:[#allocation3 + $0x1b] sm:$0xff]
        %v2222 = vld [vmem:[#allocation3 + $0x23] sm:$0xff]
        %v2223 = vld [vmem:[%s981] sm:$0xff]
        %v2224 = vld [vmem:[%s981 + $0x8] sm:$0xff]
        %v2225 = vld [vmem:[%s981 + $0x10] sm:$0xff]
        %v2226 = vld [vmem:[%s981 + $0x18] sm:$0xff]
        %v2228 = vsel %vm593, %v2218, 0
        %v2231 = vsel %vm593, %v2219, 0
        %v2234 = vsel %vm593, %v2220, 0
        %v2237 = vsel %vm593, %v2221, 0
        %v2240 = vsel %vm593, %v2222, 0
        %2242 = vmatpush.msra.mxu0 0.0
        %2243 = vmatpush.msra.mxu0 0.0
        %2244 = vmatpush.msra.mxu0 0.0
        %2245 = vmatpush.msra.mxu0 0.0
        %2246 = vmatpush.msra.mxu0 0.0
        %2247 = vmatpush.msra.mxu0 0.0
        %2248 = vmatpush.msra.mxu0 0.0
        %2249 = vmatpush.msra.mxu0 0.0
        %2250 = vmatpush.msra.mxu0 0.0
        %2251 = vmatpush.msra.mxu0 0.0
        %2252 = vmatpush.msra.mxu0 0.0
        %2253 = vmatpush.msra.mxu0 0.0
        %2254 = vmatpush.msra.mxu0 %v2226
        %2255 = vmatpush.msra.mxu0 %v2225
        %2256 = vmatpush.msra.mxu0 %v2224
        %2257 = vmatpush.msra.mxu0 %v2223
        %2258 = vmatmul.f32.gmra.mxu0 %v2228
        %v2259 = vpop.f32.mrf.mxu0
        %v2260 = vadd.f32 0.0, %v2259
        %2261 = vmatmul.f32.gmra.mxu0 %v2231
        %v2262 = vpop.f32.mrf.mxu0
        %v2263 = vadd.f32 0.0, %v2262
        %2264 = vmatmul.f32.gmra.mxu0 %v2234
        %v2265 = vpop.f32.mrf.mxu0
        %v2266 = vadd.f32 0.0, %v2265
        %2267 = vmatmul.f32.gmra.mxu0 %v2237
        %v2268 = vpop.f32.mrf.mxu0
        %v2269 = vadd.f32 0.0, %v2268
        %2270 = vmatmul.f32.gmra.mxu0 %v2240
        %v2271 = vpop.f32.mrf.mxu0
        %v2272 = vadd.f32 0.0, %v2271
        %2273 = vdwg.mxu0
        %v2274 = vadd.f32 %v2213, %v2260
        %v2275 = vadd.f32 %v2214, %v2263
        %v2276 = vadd.f32 %v2215, %v2266
        %v2277 = vadd.f32 %v2216, %v2269
        %v2278 = vadd.f32 %v2217, %v2272
        %v2279 = vld [vmem:[#allocation3 + $0x4] sm:$0xff]
        %v2280 = vld [vmem:[#allocation3 + $0xc] sm:$0xff]
        %v2281 = vld [vmem:[#allocation3 + $0x14] sm:$0xff]
        %v2282 = vld [vmem:[#allocation3 + $0x1c] sm:$0xff]
        %v2283 = vld [vmem:[#allocation3 + $0x24] sm:$0xff]
        %v2284 = vld [vmem:[%s1043] sm:$0xff]
        %v2285 = vld [vmem:[%s1043 + $0x8] sm:$0xff]
        %v2286 = vld [vmem:[%s1043 + $0x10] sm:$0xff]
        %v2287 = vld [vmem:[%s1043 + $0x18] sm:$0xff]
        %v2289 = vsel %vm593, %v2279, 0
        %v2292 = vsel %vm593, %v2280, 0
        %v2295 = vsel %vm593, %v2281, 0
        %v2298 = vsel %vm593, %v2282, 0
        %v2301 = vsel %vm593, %v2283, 0
        %2303 = vmatpush.msra.mxu0 0.0
        %2304 = vmatpush.msra.mxu0 0.0
        %2305 = vmatpush.msra.mxu0 0.0
        %2306 = vmatpush.msra.mxu0 0.0
        %2307 = vmatpush.msra.mxu0 0.0
        %2308 = vmatpush.msra.mxu0 0.0
        %2309 = vmatpush.msra.mxu0 0.0
        %2310 = vmatpush.msra.mxu0 0.0
        %2311 = vmatpush.msra.mxu0 0.0
        %2312 = vmatpush.msra.mxu0 0.0
        %2313 = vmatpush.msra.mxu0 0.0
        %2314 = vmatpush.msra.mxu0 0.0
        %2315 = vmatpush.msra.mxu0 %v2287
        %2316 = vmatpush.msra.mxu0 %v2286
        %2317 = vmatpush.msra.mxu0 %v2285
        %2318 = vmatpush.msra.mxu0 %v2284
        %2319 = vmatmul.f32.gmra.mxu0 %v2289
        %v2320 = vpop.f32.mrf.mxu0
        %v2321 = vadd.f32 0.0, %v2320
        %2322 = vmatmul.f32.gmra.mxu0 %v2292
        %v2323 = vpop.f32.mrf.mxu0
        %v2324 = vadd.f32 0.0, %v2323
        %2325 = vmatmul.f32.gmra.mxu0 %v2295
        %v2326 = vpop.f32.mrf.mxu0
        %v2327 = vadd.f32 0.0, %v2326
        %2328 = vmatmul.f32.gmra.mxu0 %v2298
        %v2329 = vpop.f32.mrf.mxu0
        %v2330 = vadd.f32 0.0, %v2329
        %2331 = vmatmul.f32.gmra.mxu0 %v2301
        %v2332 = vpop.f32.mrf.mxu0
        %v2333 = vadd.f32 0.0, %v2332
        %2334 = vdwg.mxu0
        %v2335 = vadd.f32 %v2274, %v2321
        %v2336 = vadd.f32 %v2275, %v2324
        %v2337 = vadd.f32 %v2276, %v2327
        %v2338 = vadd.f32 %v2277, %v2330
        %v2339 = vadd.f32 %v2278, %v2333
        %v2340 = vld [vmem:[#allocation3 + $0x5] sm:$0xff]
        %v2341 = vld [vmem:[#allocation3 + $0xd] sm:$0xff]
        %v2342 = vld [vmem:[#allocation3 + $0x15] sm:$0xff]
        %v2343 = vld [vmem:[#allocation3 + $0x1d] sm:$0xff]
        %v2344 = vld [vmem:[#allocation3 + $0x25] sm:$0xff]
        %v2345 = vld [vmem:[%s1105] sm:$0xff]
        %v2346 = vld [vmem:[%s1105 + $0x8] sm:$0xff]
        %v2347 = vld [vmem:[%s1105 + $0x10] sm:$0xff]
        %v2348 = vld [vmem:[%s1105 + $0x18] sm:$0xff]
        %v2350 = vsel %vm593, %v2340, 0
        %v2353 = vsel %vm593, %v2341, 0
        %v2356 = vsel %vm593, %v2342, 0
        %v2359 = vsel %vm593, %v2343, 0
        %v2362 = vsel %vm593, %v2344, 0
        %2364 = vmatpush.msra.mxu0 0.0
        %2365 = vmatpush.msra.mxu0 0.0
        %2366 = vmatpush.msra.mxu0 0.0
        %2367 = vmatpush.msra.mxu0 0.0
        %2368 = vmatpush.msra.mxu0 0.0
        %2369 = vmatpush.msra.mxu0 0.0
        %2370 = vmatpush.msra.mxu0 0.0
        %2371 = vmatpush.msra.mxu0 0.0
        %2372 = vmatpush.msra.mxu0 0.0
        %2373 = vmatpush.msra.mxu0 0.0
        %2374 = vmatpush.msra.mxu0 0.0
        %2375 = vmatpush.msra.mxu0 0.0
        %2376 = vmatpush.msra.mxu0 %v2348
        %2377 = vmatpush.msra.mxu0 %v2347
        %2378 = vmatpush.msra.mxu0 %v2346
        %2379 = vmatpush.msra.mxu0 %v2345
        %2380 = vmatmul.f32.gmra.mxu0 %v2350
        %v2381 = vpop.f32.mrf.mxu0
        %v2382 = vadd.f32 0.0, %v2381
        %2383 = vmatmul.f32.gmra.mxu0 %v2353
        %v2384 = vpop.f32.mrf.mxu0
        %v2385 = vadd.f32 0.0, %v2384
        %2386 = vmatmul.f32.gmra.mxu0 %v2356
        %v2387 = vpop.f32.mrf.mxu0
        %v2388 = vadd.f32 0.0, %v2387
        %2389 = vmatmul.f32.gmra.mxu0 %v2359
        %v2390 = vpop.f32.mrf.mxu0
        %v2391 = vadd.f32 0.0, %v2390
        %2392 = vmatmul.f32.gmra.mxu0 %v2362
        %v2393 = vpop.f32.mrf.mxu0
        %v2394 = vadd.f32 0.0, %v2393
        %2395 = vdwg.mxu0
        %v2396 = vadd.f32 %v2335, %v2382
        %v2397 = vadd.f32 %v2336, %v2385
        %v2398 = vadd.f32 %v2337, %v2388
        %v2399 = vadd.f32 %v2338, %v2391
        %v2400 = vadd.f32 %v2339, %v2394
        %v2401 = vld [vmem:[#allocation3 + $0x6] sm:$0xff]
        %v2402 = vld [vmem:[#allocation3 + $0xe] sm:$0xff]
        %v2403 = vld [vmem:[#allocation3 + $0x16] sm:$0xff]
        %v2404 = vld [vmem:[#allocation3 + $0x1e] sm:$0xff]
        %v2405 = vld [vmem:[#allocation3 + $0x26] sm:$0xff]
        %v2406 = vld [vmem:[%s1167] sm:$0xff]
        %v2407 = vld [vmem:[%s1167 + $0x8] sm:$0xff]
        %v2408 = vld [vmem:[%s1167 + $0x10] sm:$0xff]
        %v2409 = vld [vmem:[%s1167 + $0x18] sm:$0xff]
        %v2411 = vsel %vm593, %v2401, 0
        %v2414 = vsel %vm593, %v2402, 0
        %v2417 = vsel %vm593, %v2403, 0
        %v2420 = vsel %vm593, %v2404, 0
        %v2423 = vsel %vm593, %v2405, 0
        %2425 = vmatpush.msra.mxu0 0.0
        %2426 = vmatpush.msra.mxu0 0.0
        %2427 = vmatpush.msra.mxu0 0.0
        %2428 = vmatpush.msra.mxu0 0.0
        %2429 = vmatpush.msra.mxu0 0.0
        %2430 = vmatpush.msra.mxu0 0.0
        %2431 = vmatpush.msra.mxu0 0.0
        %2432 = vmatpush.msra.mxu0 0.0
        %2433 = vmatpush.msra.mxu0 0.0
        %2434 = vmatpush.msra.mxu0 0.0
        %2435 = vmatpush.msra.mxu0 0.0
        %2436 = vmatpush.msra.mxu0 0.0
        %2437 = vmatpush.msra.mxu0 %v2409
        %2438 = vmatpush.msra.mxu0 %v2408
        %2439 = vmatpush.msra.mxu0 %v2407
        %2440 = vmatpush.msra.mxu0 %v2406
        %2441 = vmatmul.f32.gmra.mxu0 %v2411
        %v2442 = vpop.f32.mrf.mxu0
        %v2443 = vadd.f32 0.0, %v2442
        %2444 = vmatmul.f32.gmra.mxu0 %v2414
        %v2445 = vpop.f32.mrf.mxu0
        %v2446 = vadd.f32 0.0, %v2445
        %2447 = vmatmul.f32.gmra.mxu0 %v2417
        %v2448 = vpop.f32.mrf.mxu0
        %v2449 = vadd.f32 0.0, %v2448
        %2450 = vmatmul.f32.gmra.mxu0 %v2420
        %v2451 = vpop.f32.mrf.mxu0
        %v2452 = vadd.f32 0.0, %v2451
        %2453 = vmatmul.f32.gmra.mxu0 %v2423
        %v2454 = vpop.f32.mrf.mxu0
        %v2455 = vadd.f32 0.0, %v2454
        %2456 = vdwg.mxu0
        %v2457 = vadd.f32 %v2396, %v2443
        %v2458 = vadd.f32 %v2397, %v2446
        %v2459 = vadd.f32 %v2398, %v2449
        %v2460 = vadd.f32 %v2399, %v2452
        %v2461 = vadd.f32 %v2400, %v2455
        %v2462 = vld [vmem:[#allocation3 + $0x7] sm:$0xff]
        %v2463 = vld [vmem:[#allocation3 + $0xf] sm:$0xff]
        %v2464 = vld [vmem:[#allocation3 + $0x17] sm:$0xff]
        %v2465 = vld [vmem:[#allocation3 + $0x1f] sm:$0xff]
        %v2466 = vld [vmem:[#allocation3 + $0x27] sm:$0xff]
        %v2467 = vld [vmem:[%s1229] sm:$0xff]
        %v2468 = vld [vmem:[%s1229 + $0x8] sm:$0xff]
        %v2469 = vld [vmem:[%s1229 + $0x10] sm:$0xff]
        %v2470 = vld [vmem:[%s1229 + $0x18] sm:$0xff]
        %v2472 = vsel %vm593, %v2462, 0
        %v2475 = vsel %vm593, %v2463, 0
        %v2478 = vsel %vm593, %v2464, 0
        %v2481 = vsel %vm593, %v2465, 0
        %v2484 = vsel %vm593, %v2466, 0
        %2486 = vmatpush.msra.mxu0 0.0
        %2487 = vmatpush.msra.mxu0 0.0
        %2488 = vmatpush.msra.mxu0 0.0
        %2489 = vmatpush.msra.mxu0 0.0
        %2490 = vmatpush.msra.mxu0 0.0
        %2491 = vmatpush.msra.mxu0 0.0
        %2492 = vmatpush.msra.mxu0 0.0
        %2493 = vmatpush.msra.mxu0 0.0
        %2494 = vmatpush.msra.mxu0 0.0
        %2495 = vmatpush.msra.mxu0 0.0
        %2496 = vmatpush.msra.mxu0 0.0
        %2497 = vmatpush.msra.mxu0 0.0
        %2498 = vmatpush.msra.mxu0 %v2470
        %2499 = vmatpush.msra.mxu0 %v2469
        %2500 = vmatpush.msra.mxu0 %v2468
        %2501 = vmatpush.msra.mxu0 %v2467
        %2502 = vmatmul.f32.gmra.mxu0 %v2472
        %v2503 = vpop.f32.mrf.mxu0
        %v2504 = vadd.f32 0.0, %v2503
        %2505 = vmatmul.f32.gmra.mxu0 %v2475
        %v2506 = vpop.f32.mrf.mxu0
        %v2507 = vadd.f32 0.0, %v2506
        %2508 = vmatmul.f32.gmra.mxu0 %v2478
        %v2509 = vpop.f32.mrf.mxu0
        %v2510 = vadd.f32 0.0, %v2509
        %2511 = vmatmul.f32.gmra.mxu0 %v2481
        %v2512 = vpop.f32.mrf.mxu0
        %v2513 = vadd.f32 0.0, %v2512
        %2514 = vmatmul.f32.gmra.mxu0 %v2484
        %v2515 = vpop.f32.mrf.mxu0
        %v2516 = vadd.f32 0.0, %v2515
        %2517 = vdwg.mxu0
        %v2518 = vadd.f32 %v2457, %v2504
        %v2519 = vadd.f32 %v2458, %v2507
        %v2520 = vadd.f32 %v2459, %v2510
        %v2521 = vadd.f32 %v2460, %v2513
        %v2522 = vadd.f32 %v2461, %v2516
        %v2523 = vld [vmem:[#allocation3 + $0x8] sm:$0xff]
        %v2524 = vld [vmem:[#allocation3 + $0x10] sm:$0xff]
        %v2525 = vld [vmem:[#allocation3 + $0x18] sm:$0xff]
        %v2526 = vld [vmem:[#allocation3 + $0x20] sm:$0xff]
        %v2527 = vld [vmem:[#allocation3 + $0x28] sm:$0xff]
        %v2528 = vld [vmem:[%s1291] sm:$0xff]
        %v2529 = vld [vmem:[%s1291 + $0x8] sm:$0xff]
        %v2530 = vld [vmem:[%s1291 + $0x10] sm:$0xff]
        %v2531 = vld [vmem:[%s1291 + $0x18] sm:$0xff]
        %v2533 = vsel %vm593, %v2523, 0
        %v2536 = vsel %vm593, %v2524, 0
        %v2539 = vsel %vm593, %v2525, 0
        %v2542 = vsel %vm593, %v2526, 0
        %v2545 = vsel %vm593, %v2527, 0
        %2547 = vmatpush.msra.mxu0 0.0
        %2548 = vmatpush.msra.mxu0 0.0
        %2549 = vmatpush.msra.mxu0 0.0
        %2550 = vmatpush.msra.mxu0 0.0
        %2551 = vmatpush.msra.mxu0 0.0
        %2552 = vmatpush.msra.mxu0 0.0
        %2553 = vmatpush.msra.mxu0 0.0
        %2554 = vmatpush.msra.mxu0 0.0
        %2555 = vmatpush.msra.mxu0 0.0
        %2556 = vmatpush.msra.mxu0 0.0
        %2557 = vmatpush.msra.mxu0 0.0
        %2558 = vmatpush.msra.mxu0 0.0
        %2559 = vmatpush.msra.mxu0 %v2531
        %2560 = vmatpush.msra.mxu0 %v2530
        %2561 = vmatpush.msra.mxu0 %v2529
        %2562 = vmatpush.msra.mxu0 %v2528
        %2563 = vmatmul.f32.gmra.mxu0 %v2533
        %v2564 = vpop.f32.mrf.mxu0
        %v2565 = vadd.f32 0.0, %v2564
        %2566 = vmatmul.f32.gmra.mxu0 %v2536
        %v2567 = vpop.f32.mrf.mxu0
        %v2568 = vadd.f32 0.0, %v2567
        %2569 = vmatmul.f32.gmra.mxu0 %v2539
        %v2570 = vpop.f32.mrf.mxu0
        %v2571 = vadd.f32 0.0, %v2570
        %2572 = vmatmul.f32.gmra.mxu0 %v2542
        %v2573 = vpop.f32.mrf.mxu0
        %v2574 = vadd.f32 0.0, %v2573
        %2575 = vmatmul.f32.gmra.mxu0 %v2545
        %v2576 = vpop.f32.mrf.mxu0
        %v2577 = vadd.f32 0.0, %v2576
        %2578 = vdwg.mxu0
        %v2579 = vadd.f32 %v2518, %v2565
        %v2580 = vadd.f32 %v2519, %v2568
        %v2581 = vadd.f32 %v2520, %v2571
        %v2582 = vadd.f32 %v2521, %v2574
        %v2583 = vadd.f32 %v2522, %v2577
        %v2584 = vld [vmem:[#allocation3 + $0x9] sm:$0xff]
        %v2585 = vld [vmem:[#allocation3 + $0x11] sm:$0xff]
        %v2586 = vld [vmem:[#allocation3 + $0x19] sm:$0xff]
        %v2587 = vld [vmem:[#allocation3 + $0x21] sm:$0xff]
        %v2588 = vld [vmem:[#allocation3 + $0x29] sm:$0xff]
        %v2589 = vld [vmem:[%s1353] sm:$0xff]
        %v2590 = vld [vmem:[%s1353 + $0x8] sm:$0xff]
        %v2591 = vld [vmem:[%s1353 + $0x10] sm:$0xff]
        %v2592 = vld [vmem:[%s1353 + $0x18] sm:$0xff]
        %v2594 = vsel %vm593, %v2584, 0
        %v2597 = vsel %vm593, %v2585, 0
        %v2600 = vsel %vm593, %v2586, 0
        %v2603 = vsel %vm593, %v2587, 0
        %v2606 = vsel %vm593, %v2588, 0
        %2608 = vmatpush.msra.mxu0 0.0
        %2609 = vmatpush.msra.mxu0 0.0
        %2610 = vmatpush.msra.mxu0 0.0
        %2611 = vmatpush.msra.mxu0 0.0
        %2612 = vmatpush.msra.mxu0 0.0
        %2613 = vmatpush.msra.mxu0 0.0
        %2614 = vmatpush.msra.mxu0 0.0
        %2615 = vmatpush.msra.mxu0 0.0
        %2616 = vmatpush.msra.mxu0 0.0
        %2617 = vmatpush.msra.mxu0 0.0
        %2618 = vmatpush.msra.mxu0 0.0
        %2619 = vmatpush.msra.mxu0 0.0
        %2620 = vmatpush.msra.mxu0 %v2592
        %2621 = vmatpush.msra.mxu0 %v2591
        %2622 = vmatpush.msra.mxu0 %v2590
        %2623 = vmatpush.msra.mxu0 %v2589
        %2624 = vmatmul.f32.gmra.mxu0 %v2594
        %v2625 = vpop.f32.mrf.mxu0
        %v2626 = vadd.f32 0.0, %v2625
        %2627 = vmatmul.f32.gmra.mxu0 %v2597
        %v2628 = vpop.f32.mrf.mxu0
        %v2629 = vadd.f32 0.0, %v2628
        %2630 = vmatmul.f32.gmra.mxu0 %v2600
        %v2631 = vpop.f32.mrf.mxu0
        %v2632 = vadd.f32 0.0, %v2631
        %2633 = vmatmul.f32.gmra.mxu0 %v2603
        %v2634 = vpop.f32.mrf.mxu0
        %v2635 = vadd.f32 0.0, %v2634
        %2636 = vmatmul.f32.gmra.mxu0 %v2606
        %v2637 = vpop.f32.mrf.mxu0
        %v2638 = vadd.f32 0.0, %v2637
        %2639 = vdwg.mxu0
        %v2640 = vadd.f32 %v2579, %v2626
        %v2641 = vadd.f32 %v2580, %v2629
        %v2642 = vadd.f32 %v2581, %v2632
        %v2643 = vadd.f32 %v2582, %v2635
        %v2644 = vadd.f32 %v2583, %v2638
        %v2645 = vld [vmem:[#allocation3 + $0xa] sm:$0xff]
        %v2646 = vld [vmem:[#allocation3 + $0x12] sm:$0xff]
        %v2647 = vld [vmem:[#allocation3 + $0x1a] sm:$0xff]
        %v2648 = vld [vmem:[#allocation3 + $0x22] sm:$0xff]
        %v2649 = vld [vmem:[#allocation3 + $0x2a] sm:$0xff]
        %v2650 = vld [vmem:[%s1415] sm:$0xff]
        %v2651 = vld [vmem:[%s1415 + $0x8] sm:$0xff]
        %v2652 = vld [vmem:[%s1415 + $0x10] sm:$0xff]
        %v2653 = vld [vmem:[%s1415 + $0x18] sm:$0xff]
        %v2655 = vsel %vm593, %v2645, 0
        %v2658 = vsel %vm593, %v2646, 0
        %v2661 = vsel %vm593, %v2647, 0
        %v2664 = vsel %vm593, %v2648, 0
        %v2667 = vsel %vm593, %v2649, 0
        %2669 = vmatpush.msra.mxu0 0.0
        %2670 = vmatpush.msra.mxu0 0.0
        %2671 = vmatpush.msra.mxu0 0.0
        %2672 = vmatpush.msra.mxu0 0.0
        %2673 = vmatpush.msra.mxu0 0.0
        %2674 = vmatpush.msra.mxu0 0.0
        %2675 = vmatpush.msra.mxu0 0.0
        %2676 = vmatpush.msra.mxu0 0.0
        %2677 = vmatpush.msra.mxu0 0.0
        %2678 = vmatpush.msra.mxu0 0.0
        %2679 = vmatpush.msra.mxu0 0.0
        %2680 = vmatpush.msra.mxu0 0.0
        %2681 = vmatpush.msra.mxu0 %v2653
        %2682 = vmatpush.msra.mxu0 %v2652
        %2683 = vmatpush.msra.mxu0 %v2651
        %2684 = vmatpush.msra.mxu0 %v2650
        %2685 = vmatmul.f32.gmra.mxu0 %v2655
        %v2686 = vpop.f32.mrf.mxu0
        %v2687 = vadd.f32 0.0, %v2686
        %2688 = vmatmul.f32.gmra.mxu0 %v2658
        %v2689 = vpop.f32.mrf.mxu0
        %v2690 = vadd.f32 0.0, %v2689
        %2691 = vmatmul.f32.gmra.mxu0 %v2661
        %v2692 = vpop.f32.mrf.mxu0
        %v2693 = vadd.f32 0.0, %v2692
        %2694 = vmatmul.f32.gmra.mxu0 %v2664
        %v2695 = vpop.f32.mrf.mxu0
        %v2696 = vadd.f32 0.0, %v2695
        %2697 = vmatmul.f32.gmra.mxu0 %v2667
        %v2698 = vpop.f32.mrf.mxu0
        %v2699 = vadd.f32 0.0, %v2698
        %2700 = vdwg.mxu0
        %v2701 = vadd.f32 %v2640, %v2687
        %v2702 = vadd.f32 %v2641, %v2690
        %v2703 = vadd.f32 %v2642, %v2693
        %v2704 = vadd.f32 %v2643, %v2696
        %v2705 = vadd.f32 %v2644, %v2699
        %v2706 = vld [vmem:[#allocation3 + $0xb] sm:$0xff]
        %v2707 = vld [vmem:[#allocation3 + $0x13] sm:$0xff]
        %v2708 = vld [vmem:[#allocation3 + $0x1b] sm:$0xff]
        %v2709 = vld [vmem:[#allocation3 + $0x23] sm:$0xff]
        %v2710 = vld [vmem:[#allocation3 + $0x2b] sm:$0xff]
        %v2711 = vld [vmem:[%s1477] sm:$0xff]
        %v2712 = vld [vmem:[%s1477 + $0x8] sm:$0xff]
        %v2713 = vld [vmem:[%s1477 + $0x10] sm:$0xff]
        %v2714 = vld [vmem:[%s1477 + $0x18] sm:$0xff]
        %v2716 = vsel %vm593, %v2706, 0
        %v2719 = vsel %vm593, %v2707, 0
        %v2722 = vsel %vm593, %v2708, 0
        %v2725 = vsel %vm593, %v2709, 0
        %v2728 = vsel %vm593, %v2710, 0
        %2730 = vmatpush.msra.mxu0 0.0
        %2731 = vmatpush.msra.mxu0 0.0
        %2732 = vmatpush.msra.mxu0 0.0
        %2733 = vmatpush.msra.mxu0 0.0
        %2734 = vmatpush.msra.mxu0 0.0
        %2735 = vmatpush.msra.mxu0 0.0
        %2736 = vmatpush.msra.mxu0 0.0
        %2737 = vmatpush.msra.mxu0 0.0
        %2738 = vmatpush.msra.mxu0 0.0
        %2739 = vmatpush.msra.mxu0 0.0
        %2740 = vmatpush.msra.mxu0 0.0
        %2741 = vmatpush.msra.mxu0 0.0
        %2742 = vmatpush.msra.mxu0 %v2714
        %2743 = vmatpush.msra.mxu0 %v2713
        %2744 = vmatpush.msra.mxu0 %v2712
        %2745 = vmatpush.msra.mxu0 %v2711
        %2746 = vmatmul.f32.gmra.mxu0 %v2716
        %v2747 = vpop.f32.mrf.mxu0
        %v2748 = vadd.f32 0.0, %v2747
        %2749 = vmatmul.f32.gmra.mxu0 %v2719
        %v2750 = vpop.f32.mrf.mxu0
        %v2751 = vadd.f32 0.0, %v2750
        %2752 = vmatmul.f32.gmra.mxu0 %v2722
        %v2753 = vpop.f32.mrf.mxu0
        %v2754 = vadd.f32 0.0, %v2753
        %2755 = vmatmul.f32.gmra.mxu0 %v2725
        %v2756 = vpop.f32.mrf.mxu0
        %v2757 = vadd.f32 0.0, %v2756
        %2758 = vmatmul.f32.gmra.mxu0 %v2728
        %v2759 = vpop.f32.mrf.mxu0
        %v2760 = vadd.f32 0.0, %v2759
        %2761 = vdwg.mxu0
        %v2762 = vadd.f32 %v2701, %v2748
        %v2763 = vadd.f32 %v2702, %v2751
        %v2764 = vadd.f32 %v2703, %v2754
        %v2765 = vadd.f32 %v2704, %v2757
        %v2766 = vadd.f32 %v2705, %v2760
        %v2767 = vld [vmem:[#allocation3 + $0xc] sm:$0xff]
        %v2768 = vld [vmem:[#allocation3 + $0x14] sm:$0xff]
        %v2769 = vld [vmem:[#allocation3 + $0x1c] sm:$0xff]
        %v2770 = vld [vmem:[#allocation3 + $0x24] sm:$0xff]
        %v2771 = vld [vmem:[#allocation3 + $0x2c] sm:$0xff]
        %v2772 = vld [vmem:[%s1539] sm:$0xff]
        %v2773 = vld [vmem:[%s1539 + $0x8] sm:$0xff]
        %v2774 = vld [vmem:[%s1539 + $0x10] sm:$0xff]
        %v2775 = vld [vmem:[%s1539 + $0x18] sm:$0xff]
        %v2777 = vsel %vm593, %v2767, 0
        %v2780 = vsel %vm593, %v2768, 0
        %v2783 = vsel %vm593, %v2769, 0
        %v2786 = vsel %vm593, %v2770, 0
        %v2789 = vsel %vm593, %v2771, 0
        %2791 = vmatpush.msra.mxu0 0.0
        %2792 = vmatpush.msra.mxu0 0.0
        %2793 = vmatpush.msra.mxu0 0.0
        %2794 = vmatpush.msra.mxu0 0.0
        %2795 = vmatpush.msra.mxu0 0.0
        %2796 = vmatpush.msra.mxu0 0.0
        %2797 = vmatpush.msra.mxu0 0.0
        %2798 = vmatpush.msra.mxu0 0.0
        %2799 = vmatpush.msra.mxu0 0.0
        %2800 = vmatpush.msra.mxu0 0.0
        %2801 = vmatpush.msra.mxu0 0.0
        %2802 = vmatpush.msra.mxu0 0.0
        %2803 = vmatpush.msra.mxu0 %v2775
        %2804 = vmatpush.msra.mxu0 %v2774
        %2805 = vmatpush.msra.mxu0 %v2773
        %2806 = vmatpush.msra.mxu0 %v2772
        %2807 = vmatmul.f32.gmra.mxu0 %v2777
        %v2808 = vpop.f32.mrf.mxu0
        %v2809 = vadd.f32 0.0, %v2808
        %2810 = vmatmul.f32.gmra.mxu0 %v2780
        %v2811 = vpop.f32.mrf.mxu0
        %v2812 = vadd.f32 0.0, %v2811
        %2813 = vmatmul.f32.gmra.mxu0 %v2783
        %v2814 = vpop.f32.mrf.mxu0
        %v2815 = vadd.f32 0.0, %v2814
        %2816 = vmatmul.f32.gmra.mxu0 %v2786
        %v2817 = vpop.f32.mrf.mxu0
        %v2818 = vadd.f32 0.0, %v2817
        %2819 = vmatmul.f32.gmra.mxu0 %v2789
        %v2820 = vpop.f32.mrf.mxu0
        %v2821 = vadd.f32 0.0, %v2820
        %2822 = vdwg.mxu0
        %v2823 = vadd.f32 %v2762, %v2809
        %v2824 = vadd.f32 %v2763, %v2812
        %v2825 = vadd.f32 %v2764, %v2815
        %v2826 = vadd.f32 %v2765, %v2818
        %v2827 = vadd.f32 %v2766, %v2821
        %v2828 = vld [vmem:[#allocation3 + $0xd] sm:$0xff]
        %v2829 = vld [vmem:[#allocation3 + $0x15] sm:$0xff]
        %v2830 = vld [vmem:[#allocation3 + $0x1d] sm:$0xff]
        %v2831 = vld [vmem:[#allocation3 + $0x25] sm:$0xff]
        %v2832 = vld [vmem:[#allocation3 + $0x2d] sm:$0xff]
        %v2833 = vld [vmem:[%s1601] sm:$0xff]
        %v2834 = vld [vmem:[%s1601 + $0x8] sm:$0xff]
        %v2835 = vld [vmem:[%s1601 + $0x10] sm:$0xff]
        %v2836 = vld [vmem:[%s1601 + $0x18] sm:$0xff]
        %v2838 = vsel %vm593, %v2828, 0
        %v2841 = vsel %vm593, %v2829, 0
        %v2844 = vsel %vm593, %v2830, 0
        %v2847 = vsel %vm593, %v2831, 0
        %v2850 = vsel %vm593, %v2832, 0
        %2852 = vmatpush.msra.mxu0 0.0
        %2853 = vmatpush.msra.mxu0 0.0
        %2854 = vmatpush.msra.mxu0 0.0
        %2855 = vmatpush.msra.mxu0 0.0
        %2856 = vmatpush.msra.mxu0 0.0
        %2857 = vmatpush.msra.mxu0 0.0
        %2858 = vmatpush.msra.mxu0 0.0
        %2859 = vmatpush.msra.mxu0 0.0
        %2860 = vmatpush.msra.mxu0 0.0
        %2861 = vmatpush.msra.mxu0 0.0
        %2862 = vmatpush.msra.mxu0 0.0
        %2863 = vmatpush.msra.mxu0 0.0
        %2864 = vmatpush.msra.mxu0 %v2836
        %2865 = vmatpush.msra.mxu0 %v2835
        %2866 = vmatpush.msra.mxu0 %v2834
        %2867 = vmatpush.msra.mxu0 %v2833
        %2868 = vmatmul.f32.gmra.mxu0 %v2838
        %v2869 = vpop.f32.mrf.mxu0
        %v2870 = vadd.f32 0.0, %v2869
        %2871 = vmatmul.f32.gmra.mxu0 %v2841
        %v2872 = vpop.f32.mrf.mxu0
        %v2873 = vadd.f32 0.0, %v2872
        %2874 = vmatmul.f32.gmra.mxu0 %v2844
        %v2875 = vpop.f32.mrf.mxu0
        %v2876 = vadd.f32 0.0, %v2875
        %2877 = vmatmul.f32.gmra.mxu0 %v2847
        %v2878 = vpop.f32.mrf.mxu0
        %v2879 = vadd.f32 0.0, %v2878
        %2880 = vmatmul.f32.gmra.mxu0 %v2850
        %v2881 = vpop.f32.mrf.mxu0
        %v2882 = vadd.f32 0.0, %v2881
        %2883 = vdwg.mxu0
        %v2884 = vadd.f32 %v2823, %v2870
        %v2885 = vadd.f32 %v2824, %v2873
        %v2886 = vadd.f32 %v2825, %v2876
        %v2887 = vadd.f32 %v2826, %v2879
        %v2888 = vadd.f32 %v2827, %v2882
        %v2889 = vld [vmem:[#allocation3 + $0xe] sm:$0xff]
        %v2890 = vld [vmem:[#allocation3 + $0x16] sm:$0xff]
        %v2891 = vld [vmem:[#allocation3 + $0x1e] sm:$0xff]
        %v2892 = vld [vmem:[#allocation3 + $0x26] sm:$0xff]
        %v2893 = vld [vmem:[#allocation3 + $0x2e] sm:$0xff]
        %v2894 = vld [vmem:[%s1663] sm:$0xff]
        %v2895 = vld [vmem:[%s1663 + $0x8] sm:$0xff]
        %v2896 = vld [vmem:[%s1663 + $0x10] sm:$0xff]
        %v2897 = vld [vmem:[%s1663 + $0x18] sm:$0xff]
        %v2899 = vsel %vm593, %v2889, 0
        %v2902 = vsel %vm593, %v2890, 0
        %v2905 = vsel %vm593, %v2891, 0
        %v2908 = vsel %vm593, %v2892, 0
        %v2911 = vsel %vm593, %v2893, 0
        %2913 = vmatpush.msra.mxu0 0.0
        %2914 = vmatpush.msra.mxu0 0.0
        %2915 = vmatpush.msra.mxu0 0.0
        %2916 = vmatpush.msra.mxu0 0.0
        %2917 = vmatpush.msra.mxu0 0.0
        %2918 = vmatpush.msra.mxu0 0.0
        %2919 = vmatpush.msra.mxu0 0.0
        %2920 = vmatpush.msra.mxu0 0.0
        %2921 = vmatpush.msra.mxu0 0.0
        %2922 = vmatpush.msra.mxu0 0.0
        %2923 = vmatpush.msra.mxu0 0.0
        %2924 = vmatpush.msra.mxu0 0.0
        %2925 = vmatpush.msra.mxu0 %v2897
        %2926 = vmatpush.msra.mxu0 %v2896
        %2927 = vmatpush.msra.mxu0 %v2895
        %2928 = vmatpush.msra.mxu0 %v2894
        %2929 = vmatmul.f32.gmra.mxu0 %v2899
        %v2930 = vpop.f32.mrf.mxu0
        %v2931 = vadd.f32 0.0, %v2930
        %2932 = vmatmul.f32.gmra.mxu0 %v2902
        %v2933 = vpop.f32.mrf.mxu0
        %v2934 = vadd.f32 0.0, %v2933
        %2935 = vmatmul.f32.gmra.mxu0 %v2905
        %v2936 = vpop.f32.mrf.mxu0
        %v2937 = vadd.f32 0.0, %v2936
        %2938 = vmatmul.f32.gmra.mxu0 %v2908
        %v2939 = vpop.f32.mrf.mxu0
        %v2940 = vadd.f32 0.0, %v2939
        %2941 = vmatmul.f32.gmra.mxu0 %v2911
        %v2942 = vpop.f32.mrf.mxu0
        %v2943 = vadd.f32 0.0, %v2942
        %2944 = vdwg.mxu0
        %v2945 = vadd.f32 %v2884, %v2931
        %v2946 = vadd.f32 %v2885, %v2934
        %v2947 = vadd.f32 %v2886, %v2937
        %v2948 = vadd.f32 %v2887, %v2940
        %v2949 = vadd.f32 %v2888, %v2943
        %v2950 = vld [vmem:[#allocation3 + $0xf] sm:$0xff]
        %v2951 = vld [vmem:[#allocation3 + $0x17] sm:$0xff]
        %v2952 = vld [vmem:[#allocation3 + $0x1f] sm:$0xff]
        %v2953 = vld [vmem:[#allocation3 + $0x27] sm:$0xff]
        %v2954 = vld [vmem:[#allocation3 + $0x2f] sm:$0xff]
        %v2955 = vld [vmem:[%s1725] sm:$0xff]
        %v2956 = vld [vmem:[%s1725 + $0x8] sm:$0xff]
        %v2957 = vld [vmem:[%s1725 + $0x10] sm:$0xff]
        %v2958 = vld [vmem:[%s1725 + $0x18] sm:$0xff]
        %v2960 = vsel %vm593, %v2950, 0
        %v2963 = vsel %vm593, %v2951, 0
        %v2966 = vsel %vm593, %v2952, 0
        %v2969 = vsel %vm593, %v2953, 0
        %v2972 = vsel %vm593, %v2954, 0
        %2974 = vmatpush.msra.mxu0 0.0
        %2975 = vmatpush.msra.mxu0 0.0
        %2976 = vmatpush.msra.mxu0 0.0
        %2977 = vmatpush.msra.mxu0 0.0
        %2978 = vmatpush.msra.mxu0 0.0
        %2979 = vmatpush.msra.mxu0 0.0
        %2980 = vmatpush.msra.mxu0 0.0
        %2981 = vmatpush.msra.mxu0 0.0
        %2982 = vmatpush.msra.mxu0 0.0
        %2983 = vmatpush.msra.mxu0 0.0
        %2984 = vmatpush.msra.mxu0 0.0
        %2985 = vmatpush.msra.mxu0 0.0
        %2986 = vmatpush.msra.mxu0 %v2958
        %2987 = vmatpush.msra.mxu0 %v2957
        %2988 = vmatpush.msra.mxu0 %v2956
        %2989 = vmatpush.msra.mxu0 %v2955
        %2990 = vmatmul.f32.gmra.mxu0 %v2960
        %v2991 = vpop.f32.mrf.mxu0
        %v2992 = vadd.f32 0.0, %v2991
        %2993 = vmatmul.f32.gmra.mxu0 %v2963
        %v2994 = vpop.f32.mrf.mxu0
        %v2995 = vadd.f32 0.0, %v2994
        %2996 = vmatmul.f32.gmra.mxu0 %v2966
        %v2997 = vpop.f32.mrf.mxu0
        %v2998 = vadd.f32 0.0, %v2997
        %2999 = vmatmul.f32.gmra.mxu0 %v2969
        %v3000 = vpop.f32.mrf.mxu0
        %v3001 = vadd.f32 0.0, %v3000
        %3002 = vmatmul.f32.gmra.mxu0 %v2972
        %v3003 = vpop.f32.mrf.mxu0
        %v3004 = vadd.f32 0.0, %v3003
        %3005 = vdwg.mxu0
        %v3006 = vadd.f32 %v2945, %v2992
        %v3007 = vadd.f32 %v2946, %v2995
        %v3008 = vadd.f32 %v2947, %v2998
        %v3009 = vadd.f32 %v2948, %v3001
        %v3010 = vadd.f32 %v2949, %v3004
        %v3011 = vld [vmem:[%s6] sm:$0x1]
        %v3013 = vperm.slane %v3011, 0
        %v3015 = vadd.f32 %v3006, %v3013
        %v3016 = vadd.f32 %v3007, %v3013
        %v3017 = vadd.f32 %v3008, %v3013
        %v3018 = vadd.f32 %v3009, %v3013
        %v3019 = vadd.f32 %v3010, %v3013
        %v3020 = vmul.f32 %v3015, 0.5
        %v3021 = vmul.f32 %v3016, 0.5
        %v3022 = vmul.f32 %v3017, 0.5
        %v3023 = vmul.f32 %v3018, 0.5
        %v3024 = vmul.f32 %v3019, 0.5
        %v3025 = vmul.f32 %v3015, 0.044715
        %v3026 = vmul.f32 %v3016, 0.044715
        %v3027 = vmul.f32 %v3017, 0.044715
        %v3028 = vmul.f32 %v3018, 0.044715
        %v3029 = vmul.f32 %v3019, 0.044715
        %v3030 = vmul.f32 %v3025, %v3015
        %v3031 = vmul.f32 %v3026, %v3016
        %v3032 = vmul.f32 %v3027, %v3017
        %v3033 = vmul.f32 %v3028, %v3018
        %v3034 = vmul.f32 %v3029, %v3019
        %v3035 = vmul.f32 %v3030, %v3015
        %v3036 = vmul.f32 %v3031, %v3016
        %v3037 = vmul.f32 %v3032, %v3017
        %v3038 = vmul.f32 %v3033, %v3018
        %v3039 = vmul.f32 %v3034, %v3019
        %v3040 = vadd.f32 %v3015, %v3035
        %v3041 = vadd.f32 %v3016, %v3036
        %v3042 = vadd.f32 %v3017, %v3037
        %v3043 = vadd.f32 %v3018, %v3038
        %v3044 = vadd.f32 %v3019, %v3039
        %v3045 = vmul.f32 %v3040, 0.7978846
        %v3046 = vmul.f32 %v3041, 0.7978846
        %v3047 = vmul.f32 %v3042, 0.7978846
        %v3048 = vmul.f32 %v3043, 0.7978846
        %v3049 = vmul.f32 %v3044, 0.7978846
        %v3050 = vtanh.pop %v3045
        %v3051 = vtanh.pop %v3046
        %v3052 = vtanh.pop %v3047
        %v3053 = vtanh.pop %v3048
        %v3054 = vtanh.pop %v3049
        %v3055 = vadd.f32 %v3050, 1.0
        %v3056 = vadd.f32 %v3051, 1.0
        %v3057 = vadd.f32 %v3052, 1.0
        %v3058 = vadd.f32 %v3053, 1.0
        %v3059 = vadd.f32 %v3054, 1.0
        %v3060 = vmul.f32 %v3020, %v3055
        %v3061 = vmul.f32 %v3021, %v3056
        %v3062 = vmul.f32 %v3022, %v3057
        %v3063 = vmul.f32 %v3023, %v3058
        %v3064 = vmul.f32 %v3024, %v3059
        %v3065 = vadd.f32 %v2035, %v3060
        %v3066 = vadd.f32 %v2036, %v3061
        %v3067 = vadd.f32 %v2037, %v3062
        %v3068 = vadd.f32 %v2038, %v3063
        %v3069 = vadd.f32 %v2039, %v3064
        %3070 = vst.msk [vmem:[#allocation2 + $0x28] sm:$0xff] %vm593, %v3065
        %3071 = vst.msk [vmem:[#allocation2 + $0x30] sm:$0xff] %vm593, %v3066
        %3072 = vst.msk [vmem:[#allocation2 + $0x38] sm:$0xff] %vm593, %v3067
        %3073 = vst.msk [vmem:[#allocation2 + $0x40] sm:$0xff] %vm593, %v3068
        %3074 = vst.msk [vmem:[#allocation2 + $0x48] sm:$0xff] %vm593, %v3069
      $region100: #{_lambda_.5} parent=95 // pred_fallthru
        _
      %v3075 = vld [vmem:[#allocation2] sm:$0xff]
      %v3076 = vld [vmem:[#allocation2 + $0x8] sm:$0xff]
      %v3077 = vld [vmem:[#allocation2 + $0x10] sm:$0xff]
      %v3078 = vld [vmem:[#allocation2 + $0x18] sm:$0xff]
      %v3079 = vld [vmem:[#allocation2 + $0x20] sm:$0xff]
      %v3080 = vld [vmem:[#allocation2 + $0x28] sm:$0xff]
      %v3081 = vld [vmem:[#allocation2 + $0x30] sm:$0xff]
      %v3082 = vld [vmem:[#allocation2 + $0x38] sm:$0xff]
      %v3083 = vld [vmem:[#allocation2 + $0x40] sm:$0xff]
      %v3084 = vld [vmem:[#allocation2 + $0x48] sm:$0xff]
      %v3085 = vlaneseq
      %v3086 = vand.u32 %v3085, 127
      %vm3087 = vcmp.lt.s32.totalorder %v3086, 39
      %v3088 = vsel %vm3087, 0.0, -1e+30
      %s3089 = scalar_lea.vmem %s7, %s30
      %v3090 = vld [vmem:[%s3089] sm:$0x1]
      %s3091 = scalar_lea.vmem %s8, %s30
      %v3092 = vld [vmem:[%s3091] sm:$0x1]
      %vm3093 = vcmask 261120
      %v3094 = vsel %vm3093, %v3075, 0.0
      %3095 = vadd.xlane.f32.xlu0 %v3094
      %v3096 = vpop.xlane.xlu0 %3095
      %v3097 = vsel %vm3093, %v3076, 0.0
      %3098 = vadd.xlane.f32.xlu0 %v3097
      %v3099 = vpop.xlane.xlu0 %3098
      %v3100 = vsel %vm3093, %v3077, 0.0
      %3101 = vadd.xlane.f32.xlu0 %v3100
      %v3102 = vpop.xlane.xlu0 %3101
      %v3103 = vsel %vm3093, %v3078, 0.0
      %3104 = vadd.xlane.f32.xlu0 %v3103
      %v3105 = vpop.xlane.xlu0 %3104
      %v3106 = vsel %vm3093, %v3079, 0.0
      %3107 = vadd.xlane.f32.xlu0 %v3106
      %v3108 = vpop.xlane.xlu0 %3107
      %v3109 = vsel %vm3093, %v3080, 0.0
      %3110 = vadd.xlane.f32.xlu0 %v3109
      %v3111 = vpop.xlane.xlu0 %3110
      %v3112 = vsel %vm3093, %v3081, 0.0
      %3113 = vadd.xlane.f32.xlu0 %v3112
      %v3114 = vpop.xlane.xlu0 %3113
      %v3115 = vsel %vm3093, %v3082, 0.0
      %3116 = vadd.xlane.f32.xlu0 %v3115
      %v3117 = vpop.xlane.xlu0 %3116
      %v3118 = vsel %vm3093, %v3083, 0.0
      %3119 = vadd.xlane.f32.xlu0 %v3118
      %v3120 = vpop.xlane.xlu0 %3119
      %v3121 = vsel %vm3093, %v3084, 0.0
      %3122 = vadd.xlane.f32.xlu0 %v3121
      %v3123 = vpop.xlane.xlu0 %3122
      %v3124 = vrcp.pop 32.0
      %v3125 = vmul.f32 32.0, %v3124
      %v3126 = vsub.f32 1.0, %v3125
      %v3127 = vmul.f32 %v3124, %v3126
      %v3128 = vadd.f32 %v3124, %v3127
      %vm3129 = vweird.f32 %v3124
      %v3130 = vsel %vm3129, %v3124, %v3128
      %v3131 = vmul.f32 %v3096, %v3130
      %v3132 = vmul.f32 %v3099, %v3130
      %v3133 = vmul.f32 %v3102, %v3130
      %v3134 = vmul.f32 %v3105, %v3130
      %v3135 = vmul.f32 %v3108, %v3130
      %v3136 = vmul.f32 %v3111, %v3130
      %v3137 = vmul.f32 %v3114, %v3130
      %v3138 = vmul.f32 %v3117, %v3130
      %v3139 = vmul.f32 %v3120, %v3130
      %v3140 = vmul.f32 %v3123, %v3130
      %v3141 = vsub.f32 %v3075, %v3131
      %v3142 = vsub.f32 %v3076, %v3132
      %v3143 = vsub.f32 %v3077, %v3133
      %v3144 = vsub.f32 %v3078, %v3134
      %v3145 = vsub.f32 %v3079, %v3135
      %v3146 = vsub.f32 %v3080, %v3136
      %v3147 = vsub.f32 %v3081, %v3137
      %v3148 = vsub.f32 %v3082, %v3138
      %v3149 = vsub.f32 %v3083, %v3139
      %v3150 = vsub.f32 %v3084, %v3140
      %v3151 = vmul.f32 %v3141, %v3141
      %v3152 = vmul.f32 %v3142, %v3142
      %v3153 = vmul.f32 %v3143, %v3143
      %v3154 = vmul.f32 %v3144, %v3144
      %v3155 = vmul.f32 %v3145, %v3145
      %v3156 = vmul.f32 %v3146, %v3146
      %v3157 = vmul.f32 %v3147, %v3147
      %v3158 = vmul.f32 %v3148, %v3148
      %v3159 = vmul.f32 %v3149, %v3149
      %v3160 = vmul.f32 %v3150, %v3150
      %v3161 = vsel %vm3093, %v3151, 0.0
      %3162 = vadd.xlane.f32.xlu0 %v3161
      %v3163 = vpop.xlane.xlu0 %3162
      %v3164 = vsel %vm3093, %v3152, 0.0
      %3165 = vadd.xlane.f32.xlu0 %v3164
      %v3166 = vpop.xlane.xlu0 %3165
      %v3167 = vsel %vm3093, %v3153, 0.0
      %3168 = vadd.xlane.f32.xlu0 %v3167
      %v3169 = vpop.xlane.xlu0 %3168
      %v3170 = vsel %vm3093, %v3154, 0.0
      %3171 = vadd.xlane.f32.xlu0 %v3170
      %v3172 = vpop.xlane.xlu0 %3171
      %v3173 = vsel %vm3093, %v3155, 0.0
      %3174 = vadd.xlane.f32.xlu0 %v3173
      %v3175 = vpop.xlane.xlu0 %3174
      %v3176 = vsel %vm3093, %v3156, 0.0
      %3177 = vadd.xlane.f32.xlu0 %v3176
      %v3178 = vpop.xlane.xlu0 %3177
      %v3179 = vsel %vm3093, %v3157, 0.0
      %3180 = vadd.xlane.f32.xlu0 %v3179
      %v3181 = vpop.xlane.xlu0 %3180
      %v3182 = vsel %vm3093, %v3158, 0.0
      %3183 = vadd.xlane.f32.xlu0 %v3182
      %v3184 = vpop.xlane.xlu0 %3183
      %v3185 = vsel %vm3093, %v3159, 0.0
      %3186 = vadd.xlane.f32.xlu0 %v3185
      %v3187 = vpop.xlane.xlu0 %3186
      %v3188 = vsel %vm3093, %v3160, 0.0
      %3189 = vadd.xlane.f32.xlu0 %v3188
      %v3190 = vpop.xlane.xlu0 %3189
      %v3191 = vmul.f32 %v3163, %v3130
      %v3192 = vmul.f32 %v3166, %v3130
      %v3193 = vmul.f32 %v3169, %v3130
      %v3194 = vmul.f32 %v3172, %v3130
      %v3195 = vmul.f32 %v3175, %v3130
      %v3196 = vmul.f32 %v3178, %v3130
      %v3197 = vmul.f32 %v3181, %v3130
      %v3198 = vmul.f32 %v3184, %v3130
      %v3199 = vmul.f32 %v3187, %v3130
      %v3200 = vmul.f32 %v3190, %v3130
      %v3201 = vadd.f32 %v3191, 1e-05
      %v3202 = vadd.f32 %v3192, 1e-05
      %v3203 = vadd.f32 %v3193, 1e-05
      %v3204 = vadd.f32 %v3194, 1e-05
      %v3205 = vadd.f32 %v3195, 1e-05
      %v3206 = vadd.f32 %v3196, 1e-05
      %v3207 = vadd.f32 %v3197, 1e-05
      %v3208 = vadd.f32 %v3198, 1e-05
      %v3209 = vadd.f32 %v3199, 1e-05
      %v3210 = vadd.f32 %v3200, 1e-05
      %v3211 = vrsqrt.pop %v3201
      %v3212 = vmul.f32 %v3211, %v3201
      %v3213 = vmul.f32 %v3212, %v3211
      %v3214 = vmul.f32 0.5, %v3213
      %v3215 = vsub.f32 1.5, %v3214
      %v3216 = vmul.f32 %v3211, %v3215
      %vm3217 = vweird.f32 %v3201
      %vm3218 = vweird.f32 %v3211
      %vm3219 = vmor %vm3217, %vm3218
      %v3220 = vsel %vm3219, %v3211, %v3216
      %v3221 = vrsqrt.pop %v3202
      %v3222 = vmul.f32 %v3221, %v3202
      %v3223 = vmul.f32 %v3222, %v3221
      %v3224 = vmul.f32 0.5, %v3223
      %v3225 = vsub.f32 1.5, %v3224
      %v3226 = vmul.f32 %v3221, %v3225
      %vm3227 = vweird.f32 %v3202
      %vm3228 = vweird.f32 %v3221
      %vm3229 = vmor %vm3227, %vm3228
      %v3230 = vsel %vm3229, %v3221, %v3226
      %v3231 = vrsqrt.pop %v3203
      %v3232 = vmul.f32 %v3231, %v3203
      %v3233 = vmul.f32 %v3232, %v3231
      %v3234 = vmul.f32 0.5, %v3233
      %v3235 = vsub.f32 1.5, %v3234
      %v3236 = vmul.f32 %v3231, %v3235
      %vm3237 = vweird.f32 %v3203
      %vm3238 = vweird.f32 %v3231
      %vm3239 = vmor %vm3237, %vm3238
      %v3240 = vsel %vm3239, %v3231, %v3236
      %v3241 = vrsqrt.pop %v3204
      %v3242 = vmul.f32 %v3241, %v3204
      %v3243 = vmul.f32 %v3242, %v3241
      %v3244 = vmul.f32 0.5, %v3243
      %v3245 = vsub.f32 1.5, %v3244
      %v3246 = vmul.f32 %v3241, %v3245
      %vm3247 = vweird.f32 %v3204
      %vm3248 = vweird.f32 %v3241
      %vm3249 = vmor %vm3247, %vm3248
      %v3250 = vsel %vm3249, %v3241, %v3246
      %v3251 = vrsqrt.pop %v3205
      %v3252 = vmul.f32 %v3251, %v3205
      %v3253 = vmul.f32 %v3252, %v3251
      %v3254 = vmul.f32 0.5, %v3253
      %v3255 = vsub.f32 1.5, %v3254
      %v3256 = vmul.f32 %v3251, %v3255
      %vm3257 = vweird.f32 %v3205
      %vm3258 = vweird.f32 %v3251
      %vm3259 = vmor %vm3257, %vm3258
      %v3260 = vsel %vm3259, %v3251, %v3256
      %v3261 = vrsqrt.pop %v3206
      %v3262 = vmul.f32 %v3261, %v3206
      %v3263 = vmul.f32 %v3262, %v3261
      %v3264 = vmul.f32 0.5, %v3263
      %v3265 = vsub.f32 1.5, %v3264
      %v3266 = vmul.f32 %v3261, %v3265
      %vm3267 = vweird.f32 %v3206
      %vm3268 = vweird.f32 %v3261
      %vm3269 = vmor %vm3267, %vm3268
      %v3270 = vsel %vm3269, %v3261, %v3266
      %v3271 = vrsqrt.pop %v3207
      %v3272 = vmul.f32 %v3271, %v3207
      %v3273 = vmul.f32 %v3272, %v3271
      %v3274 = vmul.f32 0.5, %v3273
      %v3275 = vsub.f32 1.5, %v3274
      %v3276 = vmul.f32 %v3271, %v3275
      %vm3277 = vweird.f32 %v3207
      %vm3278 = vweird.f32 %v3271
      %vm3279 = vmor %vm3277, %vm3278
      %v3280 = vsel %vm3279, %v3271, %v3276
      %v3281 = vrsqrt.pop %v3208
      %v3282 = vmul.f32 %v3281, %v3208
      %v3283 = vmul.f32 %v3282, %v3281
      %v3284 = vmul.f32 0.5, %v3283
      %v3285 = vsub.f32 1.5, %v3284
      %v3286 = vmul.f32 %v3281, %v3285
      %vm3287 = vweird.f32 %v3208
      %vm3288 = vweird.f32 %v3281
      %vm3289 = vmor %vm3287, %vm3288
      %v3290 = vsel %vm3289, %v3281, %v3286
      %v3291 = vrsqrt.pop %v3209
      %v3292 = vmul.f32 %v3291, %v3209
      %v3293 = vmul.f32 %v3292, %v3291
      %v3294 = vmul.f32 0.5, %v3293
      %v3295 = vsub.f32 1.5, %v3294
      %v3296 = vmul.f32 %v3291, %v3295
      %vm3297 = vweird.f32 %v3209
      %vm3298 = vweird.f32 %v3291
      %vm3299 = vmor %vm3297, %vm3298
      %v3300 = vsel %vm3299, %v3291, %v3296
      %v3301 = vrsqrt.pop %v3210
      %v3302 = vmul.f32 %v3301, %v3210
      %v3303 = vmul.f32 %v3302, %v3301
      %v3304 = vmul.f32 0.5, %v3303
      %v3305 = vsub.f32 1.5, %v3304
      %v3306 = vmul.f32 %v3301, %v3305
      %vm3307 = vweird.f32 %v3210
      %vm3308 = vweird.f32 %v3301
      %vm3309 = vmor %vm3307, %vm3308
      %v3310 = vsel %vm3309, %v3301, %v3306
      %v3311 = vmul.f32 %v3141, %v3220
      %v3312 = vmul.f32 %v3142, %v3230
      %v3313 = vmul.f32 %v3143, %v3240
      %v3314 = vmul.f32 %v3144, %v3250
      %v3315 = vmul.f32 %v3145, %v3260
      %v3316 = vmul.f32 %v3146, %v3270
      %v3317 = vmul.f32 %v3147, %v3280
      %v3318 = vmul.f32 %v3148, %v3290
      %v3319 = vmul.f32 %v3149, %v3300
      %v3320 = vmul.f32 %v3150, %v3310
      %v3322 = vperm.slane %v3090, 0
      %v3324 = vmul.f32 %v3311, %v3322
      %v3325 = vmul.f32 %v3312, %v3322
      %v3326 = vmul.f32 %v3313, %v3322
      %v3327 = vmul.f32 %v3314, %v3322
      %v3328 = vmul.f32 %v3315, %v3322
      %v3329 = vmul.f32 %v3316, %v3322
      %v3330 = vmul.f32 %v3317, %v3322
      %v3331 = vmul.f32 %v3318, %v3322
      %v3332 = vmul.f32 %v3319, %v3322
      %v3333 = vmul.f32 %v3320, %v3322
      %v3335 = vperm.slane %v3092, 0
      %v3337 = vadd.f32 %v3324, %v3335
      %v3338 = vadd.f32 %v3325, %v3335
      %v3339 = vadd.f32 %v3326, %v3335
      %v3340 = vadd.f32 %v3327, %v3335
      %v3341 = vadd.f32 %v3328, %v3335
      %v3342 = vadd.f32 %v3329, %v3335
      %v3343 = vadd.f32 %v3330, %v3335
      %v3344 = vadd.f32 %v3331, %v3335
      %v3345 = vadd.f32 %v3332, %v3335
      %v3346 = vadd.f32 %v3333, %v3335
      %s3347 = smul.u32 %s30, 32
      %s3348 = scalar_lea.vmem %s9, %s3347
      %v3349 = vld [vmem:[%s3348] sm:$0xff]
      %v3350 = vld [vmem:[%s3348 + $0x8] sm:$0xff]
      %v3351 = vld [vmem:[%s3348 + $0x10] sm:$0xff]
      %v3352 = vld [vmem:[%s3348 + $0x18] sm:$0xff]
      %s3353 = scalar_lea.vmem %s10, %s30
      %v3354 = vld [vmem:[%s3353] sm:$0x1]
      %v3356 = vperm.slane %v3354, 0
      %v3359 = vsel %vm3093, %v3337, 0
      %v3362 = vsel %vm3093, %v3338, 0
      %v3365 = vsel %vm3093, %v3339, 0
      %v3368 = vsel %vm3093, %v3340, 0
      %v3371 = vsel %vm3093, %v3341, 0
      %v3374 = vsel %vm3093, %v3342, 0
      %v3377 = vsel %vm3093, %v3343, 0
      %v3380 = vsel %vm3093, %v3344, 0
      %v3383 = vsel %vm3093, %v3345, 0
      %v3386 = vsel %vm3093, %v3346, 0
      %3388 = vmatpush.msra.mxu0 0.0
      %3389 = vmatpush.msra.mxu0 0.0
      %3390 = vmatpush.msra.mxu0 0.0
      %3391 = vmatpush.msra.mxu0 0.0
      %3392 = vmatpush.msra.mxu0 0.0
      %3393 = vmatpush.msra.mxu0 0.0
      %3394 = vmatpush.msra.mxu0 0.0
      %3395 = vmatpush.msra.mxu0 0.0
      %3396 = vmatpush.msra.mxu0 0.0
      %3397 = vmatpush.msra.mxu0 0.0
      %3398 = vmatpush.msra.mxu0 0.0
      %3399 = vmatpush.msra.mxu0 0.0
      %3400 = vmatpush.msra.mxu0 %v3352
      %3401 = vmatpush.msra.mxu0 %v3351
      %3402 = vmatpush.msra.mxu0 %v3350
      %3403 = vmatpush.msra.mxu0 %v3349
      %3404 = vmatmul.f32.gmra.mxu0 %v3359
      %v3405 = vpop.f32.mrf.mxu0
      %v3406 = vadd.f32 %v3356, %v3405
      %3407 = vmatmul.f32.gmra.mxu0 %v3362
      %v3408 = vpop.f32.mrf.mxu0
      %v3409 = vadd.f32 %v3356, %v3408
      %3410 = vmatmul.f32.gmra.mxu0 %v3365
      %v3411 = vpop.f32.mrf.mxu0
      %v3412 = vadd.f32 %v3356, %v3411
      %3413 = vmatmul.f32.gmra.mxu0 %v3368
      %v3414 = vpop.f32.mrf.mxu0
      %v3415 = vadd.f32 %v3356, %v3414
      %3416 = vmatmul.f32.gmra.mxu0 %v3371
      %v3417 = vpop.f32.mrf.mxu0
      %v3418 = vadd.f32 %v3356, %v3417
      %3419 = vmatmul.f32.gmra.mxu0 %v3374
      %v3420 = vpop.f32.mrf.mxu0
      %v3421 = vadd.f32 %v3356, %v3420
      %3422 = vmatmul.f32.gmra.mxu0 %v3377
      %v3423 = vpop.f32.mrf.mxu0
      %v3424 = vadd.f32 %v3356, %v3423
      %3425 = vmatmul.f32.gmra.mxu0 %v3380
      %v3426 = vpop.f32.mrf.mxu0
      %v3427 = vadd.f32 %v3356, %v3426
      %3428 = vmatmul.f32.gmra.mxu0 %v3383
      %v3429 = vpop.f32.mrf.mxu0
      %v3430 = vadd.f32 %v3356, %v3429
      %3431 = vmatmul.f32.gmra.mxu0 %v3386
      %v3432 = vpop.f32.mrf.mxu0
      %v3433 = vadd.f32 %v3356, %v3432
      %3434 = vdwg.mxu0
      %s3435 = scalar_lea.vmem %s11, %s3347
      %v3436 = vld [vmem:[%s3435] sm:$0xff]
      %v3437 = vld [vmem:[%s3435 + $0x8] sm:$0xff]
      %v3438 = vld [vmem:[%s3435 + $0x10] sm:$0xff]
      %v3439 = vld [vmem:[%s3435 + $0x18] sm:$0xff]
      %s3440 = scalar_lea.vmem %s12, %s30
      %v3441 = vld [vmem:[%s3440] sm:$0x1]
      %3447 = vrot.lane.b32.xlu0 %v3406, 96
      %v3448 = vpop.permute.xlu0 %3447
      %3449 = vrot.lane.b32.xlu0 %v3409, 96
      %v3450 = vpop.permute.xlu0 %3449
      %3451 = vrot.lane.b32.xlu0 %v3412, 96
      %v3452 = vpop.permute.xlu0 %3451
      %3453 = vrot.lane.b32.xlu0 %v3415, 96
      %v3454 = vpop.permute.xlu0 %3453
      %3455 = vrot.lane.b32.xlu0 %v3418, 96
      %v3456 = vpop.permute.xlu0 %3455
      %vm3457 = vcmask 64512
      %v3458 = vsel %vm3457, %v3406, 0
      %v3460 = vsel %vm3457, %v3409, 0
      %v3462 = vsel %vm3457, %v3412, 0
      %v3464 = vsel %vm3457, %v3415, 0
      %v3466 = vsel %vm3457, %v3418, 0
      %v3468 = vsel %vm3457, %v3448, 0
      %v3470 = vsel %vm3457, %v3450, 0
      %v3472 = vsel %vm3457, %v3452, 0
      %v3474 = vsel %vm3457, %v3454, 0
      %v3476 = vsel %vm3457, %v3456, 0
      %3478 = vmatpush.xpose.msra.mxu0 0.0
      %3479 = vmatpush.xpose.msra.mxu0 0.0
      %3480 = vmatpush.xpose.msra.mxu0 0.0
      %3481 = vmatpush.xpose.msra.mxu0 0.0
      %3482 = vmatpush.xpose.msra.mxu0 0.0
      %3483 = vmatpush.xpose.msra.mxu0 0.0
      %3484 = vmatpush.xpose.msra.mxu0 0.0
      %3485 = vmatpush.xpose.msra.mxu0 0.0
      %3486 = vmatpush.xpose.msra.mxu0 0.0
      %3487 = vmatpush.xpose.msra.mxu0 0.0
      %3488 = vmatpush.xpose.msra.mxu0 0.0
      %3489 = vmatpush.xpose.msra.mxu0 %v3476
      %3490 = vmatpush.xpose.msra.mxu0 %v3474
      %3491 = vmatpush.xpose.msra.mxu0 %v3472
      %3492 = vmatpush.xpose.msra.mxu0 %v3470
      %3493 = vmatpush.xpose.msra.mxu0 %v3468
      %3494 = vmatmul.f32.gmra.mxu0 %v3458
      %v3495 = vpop.f32.mrf.mxu0
      %v3496 = vadd.f32 %v3088, %v3495
      %3497 = vmatmul.f32.gmra.mxu0 %v3460
      %v3498 = vpop.f32.mrf.mxu0
      %v3499 = vadd.f32 %v3088, %v3498
      %3500 = vmatmul.f32.gmra.mxu0 %v3462
      %v3501 = vpop.f32.mrf.mxu0
      %v3502 = vadd.f32 %v3088, %v3501
      %3503 = vmatmul.f32.gmra.mxu0 %v3464
      %v3504 = vpop.f32.mrf.mxu0
      %v3505 = vadd.f32 %v3088, %v3504
      %3506 = vmatmul.f32.gmra.mxu0 %v3466
      %v3507 = vpop.f32.mrf.mxu0
      %v3508 = vadd.f32 %v3088, %v3507
      %3509 = vdwg.mxu0
      %vm3510 = vcmask 326656
      %v3511 = vsel %vm3510, %v3496, -inf
      %3512 = vmax.xlane.f32.xlu0 %v3511
      %v3513 = vpop.xlane.xlu0 %3512
      %v3514 = vsel %vm3510, %v3499, -inf
      %3515 = vmax.xlane.f32.xlu0 %v3514
      %v3516 = vpop.xlane.xlu0 %3515
      %v3517 = vsel %vm3510, %v3502, -inf
      %3518 = vmax.xlane.f32.xlu0 %v3517
      %v3519 = vpop.xlane.xlu0 %3518
      %v3520 = vsel %vm3510, %v3505, -inf
      %3521 = vmax.xlane.f32.xlu0 %v3520
      %v3522 = vpop.xlane.xlu0 %3521
      %v3523 = vsel %vm3510, %v3508, -inf
      %3524 = vmax.xlane.f32.xlu0 %v3523
      %v3525 = vpop.xlane.xlu0 %3524
      %v3526 = vsub.f32 %v3496, %v3513
      %v3527 = vsub.f32 %v3499, %v3516
      %v3528 = vsub.f32 %v3502, %v3519
      %v3529 = vsub.f32 %v3505, %v3522
      %v3530 = vsub.f32 %v3508, %v3525
      %v3531 = vmul.f32 %v3526, 1.442695
      %v3532 = vpow.pop %v3531
      %v3533 = vmul.f32 %v3527, 1.442695
      %v3534 = vpow.pop %v3533
      %v3535 = vmul.f32 %v3528, 1.442695
      %v3536 = vpow.pop %v3535
      %v3537 = vmul.f32 %v3529, 1.442695
      %v3538 = vpow.pop %v3537
      %v3539 = vmul.f32 %v3530, 1.442695
      %v3540 = vpow.pop %v3539
      %v3541 = vsel %vm3510, %v3532, 0.0
      %3542 = vadd.xlane.f32.xlu0 %v3541
      %v3543 = vpop.xlane.xlu0 %3542
      %v3544 = vsel %vm3510, %v3534, 0.0
      %3545 = vadd.xlane.f32.xlu0 %v3544
      %v3546 = vpop.xlane.xlu0 %3545
      %v3547 = vsel %vm3510, %v3536, 0.0
      %3548 = vadd.xlane.f32.xlu0 %v3547
      %v3549 = vpop.xlane.xlu0 %3548
      %v3550 = vsel %vm3510, %v3538, 0.0
      %3551 = vadd.xlane.f32.xlu0 %v3550
      %v3552 = vpop.xlane.xlu0 %3551
      %v3553 = vsel %vm3510, %v3540, 0.0
      %3554 = vadd.xlane.f32.xlu0 %v3553
      %v3555 = vpop.xlane.xlu0 %3554
      %v3556 = vrcp.pop %v3543
      %v3557 = vrcp.pop %v3546
      %v3558 = vrcp.pop %v3549
      %v3559 = vrcp.pop %v3552
      %v3560 = vrcp.pop %v3555
      %v3561 = vmul.f32 %v3532, %v3556
      %v3562 = vmul.f32 %v3534, %v3557
      %v3563 = vmul.f32 %v3536, %v3558
      %v3564 = vmul.f32 %v3538, %v3559
      %v3565 = vmul.f32 %v3540, %v3560
      %3566 = vrot.lane.b32.xlu0 %v3406, 64
      %v3567 = vpop.permute.xlu0 %3566
      %3568 = vrot.lane.b32.xlu0 %v3409, 64
      %v3569 = vpop.permute.xlu0 %3568
      %3570 = vrot.lane.b32.xlu0 %v3412, 64
      %v3571 = vpop.permute.xlu0 %3570
      %3572 = vrot.lane.b32.xlu0 %v3415, 64
      %v3573 = vpop.permute.xlu0 %3572
      %3574 = vrot.lane.b32.xlu0 %v3418, 64
      %v3575 = vpop.permute.xlu0 %3574
      %v3582 = vsel %vm3510, %v3561, 0
      %v3585 = vsel %vm3510, %v3562, 0
      %v3588 = vsel %vm3510, %v3563, 0
      %v3591 = vsel %vm3510, %v3564, 0
      %v3594 = vsel %vm3510, %v3565, 0
      %3596 = vmatpush.msra.mxu0 0.0
      %3597 = vmatpush.msra.mxu0 0.0
      %3598 = vmatpush.msra.mxu0 0.0
      %3599 = vmatpush.msra.mxu0 0.0
      %3600 = vmatpush.msra.mxu0 0.0
      %3601 = vmatpush.msra.mxu0 0.0
      %3602 = vmatpush.msra.mxu0 0.0
      %3603 = vmatpush.msra.mxu0 0.0
      %3604 = vmatpush.msra.mxu0 0.0
      %3605 = vmatpush.msra.mxu0 0.0
      %3606 = vmatpush.msra.mxu0 0.0
      %3607 = vmatpush.msra.mxu0 %v3575
      %3608 = vmatpush.msra.mxu0 %v3573
      %3609 = vmatpush.msra.mxu0 %v3571
      %3610 = vmatpush.msra.mxu0 %v3569
      %3611 = vmatpush.msra.mxu0 %v3567
      %3612 = vmatmul.f32.gmra.mxu0 %v3582
      %v3613 = vpop.f32.mrf.mxu0
      %v3614 = vadd.f32 0.0, %v3613
      %3615 = vmatmul.f32.gmra.mxu0 %v3585
      %v3616 = vpop.f32.mrf.mxu0
      %v3617 = vadd.f32 0.0, %v3616
      %3618 = vmatmul.f32.gmra.mxu0 %v3588
      %v3619 = vpop.f32.mrf.mxu0
      %v3620 = vadd.f32 0.0, %v3619
      %3621 = vmatmul.f32.gmra.mxu0 %v3591
      %v3622 = vpop.f32.mrf.mxu0
      %v3623 = vadd.f32 0.0, %v3622
      %3624 = vmatmul.f32.gmra.mxu0 %v3594
      %v3625 = vpop.f32.mrf.mxu0
      %v3626 = vadd.f32 0.0, %v3625
      %3627 = vdwg.mxu0
      %3628 = vrot.lane.b32.xlu0 %v3406, 120
      %v3629 = vpop.permute.xlu0 %3628
      %3630 = vrot.lane.b32.xlu0 %v3409, 120
      %v3631 = vpop.permute.xlu0 %3630
      %3632 = vrot.lane.b32.xlu0 %v3412, 120
      %v3633 = vpop.permute.xlu0 %3632
      %3634 = vrot.lane.b32.xlu0 %v3415, 120
      %v3635 = vpop.permute.xlu0 %3634
      %3636 = vrot.lane.b32.xlu0 %v3418, 120
      %v3637 = vpop.permute.xlu0 %3636
      %3638 = vrot.lane.b32.xlu0 %v3406, 88
      %v3639 = vpop.permute.xlu0 %3638
      %3640 = vrot.lane.b32.xlu0 %v3409, 88
      %v3641 = vpop.permute.xlu0 %3640
      %3642 = vrot.lane.b32.xlu0 %v3412, 88
      %v3643 = vpop.permute.xlu0 %3642
      %3644 = vrot.lane.b32.xlu0 %v3415, 88
      %v3645 = vpop.permute.xlu0 %3644
      %3646 = vrot.lane.b32.xlu0 %v3418, 88
      %v3647 = vpop.permute.xlu0 %3646
      %v3648 = vsel %vm3457, %v3629, 0
      %v3650 = vsel %vm3457, %v3631, 0
      %v3652 = vsel %vm3457, %v3633, 0
      %v3654 = vsel %vm3457, %v3635, 0
      %v3656 = vsel %vm3457, %v3637, 0
      %v3658 = vsel %vm3457, %v3639, 0
      %v3660 = vsel %vm3457, %v3641, 0
      %v3662 = vsel %vm3457, %v3643, 0
      %v3664 = vsel %vm3457, %v3645, 0
      %v3666 = vsel %vm3457, %v3647, 0
      %3668 = vmatpush.xpose.msra.mxu0 0.0
      %3669 = vmatpush.xpose.msra.mxu0 0.0
      %3670 = vmatpush.xpose.msra.mxu0 0.0
      %3671 = vmatpush.xpose.msra.mxu0 0.0
      %3672 = vmatpush.xpose.msra.mxu0 0.0
      %3673 = vmatpush.xpose.msra.mxu0 0.0
      %3674 = vmatpush.xpose.msra.mxu0 0.0
      %3675 = vmatpush.xpose.msra.mxu0 0.0
      %3676 = vmatpush.xpose.msra.mxu0 0.0
      %3677 = vmatpush.xpose.msra.mxu0 0.0
      %3678 = vmatpush.xpose.msra.mxu0 0.0
      %3679 = vmatpush.xpose.msra.mxu0 %v3666
      %3680 = vmatpush.xpose.msra.mxu0 %v3664
      %3681 = vmatpush.xpose.msra.mxu0 %v3662
      %3682 = vmatpush.xpose.msra.mxu0 %v3660
      %3683 = vmatpush.xpose.msra.mxu0 %v3658
      %3684 = vmatmul.f32.gmra.mxu0 %v3648
      %v3685 = vpop.f32.mrf.mxu0
      %v3686 = vadd.f32 %v3088, %v3685
      %3687 = vmatmul.f32.gmra.mxu0 %v3650
      %v3688 = vpop.f32.mrf.mxu0
      %v3689 = vadd.f32 %v3088, %v3688
      %3690 = vmatmul.f32.gmra.mxu0 %v3652
      %v3691 = vpop.f32.mrf.mxu0
      %v3692 = vadd.f32 %v3088, %v3691
      %3693 = vmatmul.f32.gmra.mxu0 %v3654
      %v3694 = vpop.f32.mrf.mxu0
      %v3695 = vadd.f32 %v3088, %v3694
      %3696 = vmatmul.f32.gmra.mxu0 %v3656
      %v3697 = vpop.f32.mrf.mxu0
      %v3698 = vadd.f32 %v3088, %v3697
      %3699 = vdwg.mxu0
      %v3700 = vsel %vm3510, %v3686, -inf
      %3701 = vmax.xlane.f32.xlu0 %v3700
      %v3702 = vpop.xlane.xlu0 %3701
      %v3703 = vsel %vm3510, %v3689, -inf
      %3704 = vmax.xlane.f32.xlu0 %v3703
      %v3705 = vpop.xlane.xlu0 %3704
      %v3706 = vsel %vm3510, %v3692, -inf
      %3707 = vmax.xlane.f32.xlu0 %v3706
      %v3708 = vpop.xlane.xlu0 %3707
      %v3709 = vsel %vm3510, %v3695, -inf
      %3710 = vmax.xlane.f32.xlu0 %v3709
      %v3711 = vpop.xlane.xlu0 %3710
      %v3712 = vsel %vm3510, %v3698, -inf
      %3713 = vmax.xlane.f32.xlu0 %v3712
      %v3714 = vpop.xlane.xlu0 %3713
      %v3715 = vsub.f32 %v3686, %v3702
      %v3716 = vsub.f32 %v3689, %v3705
      %v3717 = vsub.f32 %v3692, %v3708
      %v3718 = vsub.f32 %v3695, %v3711
      %v3719 = vsub.f32 %v3698, %v3714
      %v3720 = vmul.f32 %v3715, 1.442695
      %v3721 = vpow.pop %v3720
      %v3722 = vmul.f32 %v3716, 1.442695
      %v3723 = vpow.pop %v3722
      %v3724 = vmul.f32 %v3717, 1.442695
      %v3725 = vpow.pop %v3724
      %v3726 = vmul.f32 %v3718, 1.442695
      %v3727 = vpow.pop %v3726
      %v3728 = vmul.f32 %v3719, 1.442695
      %v3729 = vpow.pop %v3728
      %v3730 = vsel %vm3510, %v3721, 0.0
      %3731 = vadd.xlane.f32.xlu0 %v3730
      %v3732 = vpop.xlane.xlu0 %3731
      %v3733 = vsel %vm3510, %v3723, 0.0
      %3734 = vadd.xlane.f32.xlu0 %v3733
      %v3735 = vpop.xlane.xlu0 %3734
      %v3736 = vsel %vm3510, %v3725, 0.0
      %3737 = vadd.xlane.f32.xlu0 %v3736
      %v3738 = vpop.xlane.xlu0 %3737
      %v3739 = vsel %vm3510, %v3727, 0.0
      %3740 = vadd.xlane.f32.xlu0 %v3739
      %v3741 = vpop.xlane.xlu0 %3740
      %v3742 = vsel %vm3510, %v3729, 0.0
      %3743 = vadd.xlane.f32.xlu0 %v3742
      %v3744 = vpop.xlane.xlu0 %3743
      %v3745 = vrcp.pop %v3732
      %v3746 = vrcp.pop %v3735
      %v3747 = vrcp.pop %v3738
      %v3748 = vrcp.pop %v3741
      %v3749 = vrcp.pop %v3744
      %v3750 = vmul.f32 %v3721, %v3745
      %v3751 = vmul.f32 %v3723, %v3746
      %v3752 = vmul.f32 %v3725, %v3747
      %v3753 = vmul.f32 %v3727, %v3748
      %v3754 = vmul.f32 %v3729, %v3749
      %3755 = vrot.lane.b32.xlu0 %v3406, 56
      %v3756 = vpop.permute.xlu0 %3755
      %3757 = vrot.lane.b32.xlu0 %v3409, 56
      %v3758 = vpop.permute.xlu0 %3757
      %3759 = vrot.lane.b32.xlu0 %v3412, 56
      %v3760 = vpop.permute.xlu0 %3759
      %3761 = vrot.lane.b32.xlu0 %v3415, 56
      %v3762 = vpop.permute.xlu0 %3761
      %3763 = vrot.lane.b32.xlu0 %v3418, 56
      %v3764 = vpop.permute.xlu0 %3763
      %v3771 = vsel %vm3510, %v3750, 0
      %v3774 = vsel %vm3510, %v3751, 0
      %v3777 = vsel %vm3510, %v3752, 0
      %v3780 = vsel %vm3510, %v3753, 0
      %v3783 = vsel %vm3510, %v3754, 0
      %3785 = vmatpush.msra.mxu0 0.0
      %3786 = vmatpush.msra.mxu0 0.0
      %3787 = vmatpush.msra.mxu0 0.0
      %3788 = vmatpush.msra.mxu0 0.0
      %3789 = vmatpush.msra.mxu0 0.0
      %3790 = vmatpush.msra.mxu0 0.0
      %3791 = vmatpush.msra.mxu0 0.0
      %3792 = vmatpush.msra.mxu0 0.0
      %3793 = vmatpush.msra.mxu0 0.0
      %3794 = vmatpush.msra.mxu0 0.0
      %3795 = vmatpush.msra.mxu0 0.0
      %3796 = vmatpush.msra.mxu0 %v3764
      %3797 = vmatpush.msra.mxu0 %v3762
      %3798 = vmatpush.msra.mxu0 %v3760
      %3799 = vmatpush.msra.mxu0 %v3758
      %3800 = vmatpush.msra.mxu0 %v3756
      %3801 = vmatmul.f32.gmra.mxu0 %v3771
      %v3802 = vpop.f32.mrf.mxu0
      %v3803 = vadd.f32 0.0, %v3802
      %3804 = vmatmul.f32.gmra.mxu0 %v3774
      %v3805 = vpop.f32.mrf.mxu0
      %v3806 = vadd.f32 0.0, %v3805
      %3807 = vmatmul.f32.gmra.mxu0 %v3777
      %v3808 = vpop.f32.mrf.mxu0
      %v3809 = vadd.f32 0.0, %v3808
      %3810 = vmatmul.f32.gmra.mxu0 %v3780
      %v3811 = vpop.f32.mrf.mxu0
      %v3812 = vadd.f32 0.0, %v3811
      %3813 = vmatmul.f32.gmra.mxu0 %v3783
      %v3814 = vpop.f32.mrf.mxu0
      %v3815 = vadd.f32 0.0, %v3814
      %3816 = vdwg.mxu0
      %v3818 = vsel %vm3457, %v3803, 0
      %v3821 = vsel %vm3457, %v3806, 0
      %v3824 = vsel %vm3457, %v3809, 0
      %v3827 = vsel %vm3457, %v3812, 0
      %v3830 = vsel %vm3457, %v3815, 0
      %3832 = vmatpush.msra.mxu0 0.0
      %3833 = vmatpush.msra.mxu0 0.0
      %3834 = vmatpush.msra.mxu0 0.0
      %3835 = vmatpush.msra.mxu0 0.0
      %3836 = vmatpush.msra.mxu0 0.0
      %3837 = vmatpush.msra.mxu0 0.0
      %3838 = vmatpush.msra.mxu0 0.0
      %3839 = vmatpush.msra.mxu0 0.0
      %3840 = vmatpush.msra.mxu0 0.0
      %3841 = vmatpush.msra.mxu0 0.0
      %3842 = vmatpush.msra.mxu0 0.0
      %3843 = vmatpush.msra.mxu0 0.0
      %3844 = vmatpush.msra.mxu0 0.0
      %3845 = vmatpush.msra.mxu0 0.0
      %3846 = vmatpush.msra.mxu0 0.0
      %3847 = vmatpush.msra.mxu0 %v3437
      %3848 = vmatmul.f32.gmra.mxu0 %v3818
      %v3849 = vpop.f32.mrf.mxu0
      %v3850 = vadd.f32 0.0, %v3849
      %3851 = vmatmul.f32.gmra.mxu0 %v3821
      %v3852 = vpop.f32.mrf.mxu0
      %v3853 = vadd.f32 0.0, %v3852
      %3854 = vmatmul.f32.gmra.mxu0 %v3824
      %v3855 = vpop.f32.mrf.mxu0
      %v3856 = vadd.f32 0.0, %v3855
      %3857 = vmatmul.f32.gmra.mxu0 %v3827
      %v3858 = vpop.f32.mrf.mxu0
      %v3859 = vadd.f32 0.0, %v3858
      %3860 = vmatmul.f32.gmra.mxu0 %v3830
      %v3861 = vpop.f32.mrf.mxu0
      %v3862 = vadd.f32 0.0, %v3861
      %3863 = vdwg.mxu0
      %v3865 = vsel %vm3457, %v3614, 0
      %v3868 = vsel %vm3457, %v3617, 0
      %v3871 = vsel %vm3457, %v3620, 0
      %v3874 = vsel %vm3457, %v3623, 0
      %v3877 = vsel %vm3457, %v3626, 0
      %3879 = vmatpush.msra.mxu0 0.0
      %3880 = vmatpush.msra.mxu0 0.0
      %3881 = vmatpush.msra.mxu0 0.0
      %3882 = vmatpush.msra.mxu0 0.0
      %3883 = vmatpush.msra.mxu0 0.0
      %3884 = vmatpush.msra.mxu0 0.0
      %3885 = vmatpush.msra.mxu0 0.0
      %3886 = vmatpush.msra.mxu0 0.0
      %3887 = vmatpush.msra.mxu0 0.0
      %3888 = vmatpush.msra.mxu0 0.0
      %3889 = vmatpush.msra.mxu0 0.0
      %3890 = vmatpush.msra.mxu0 0.0
      %3891 = vmatpush.msra.mxu0 0.0
      %3892 = vmatpush.msra.mxu0 0.0
      %3893 = vmatpush.msra.mxu0 0.0
      %3894 = vmatpush.msra.mxu0 %v3436
      %3895 = vmatmul.f32.gmra.mxu0 %v3865
      %v3896 = vpop.f32.mrf.mxu0
      %v3897 = vadd.f32 %v3850, %v3896
      %3898 = vmatmul.f32.gmra.mxu0 %v3868
      %v3899 = vpop.f32.mrf.mxu0
      %v3900 = vadd.f32 %v3853, %v3899
      %3901 = vmatmul.f32.gmra.mxu0 %v3871
      %v3902 = vpop.f32.mrf.mxu0
      %v3903 = vadd.f32 %v3856, %v3902
      %3904 = vmatmul.f32.gmra.mxu0 %v3874
      %v3905 = vpop.f32.mrf.mxu0
      %v3906 = vadd.f32 %v3859, %v3905
      %3907 = vmatmul.f32.gmra.mxu0 %v3877
      %v3908 = vpop.f32.mrf.mxu0
      %v3909 = vadd.f32 %v3862, %v3908
      %3910 = vdwg.mxu0
      %3911 = vrot.lane.b32.xlu0 %v3406, 112
      %v3912 = vpop.permute.xlu0 %3911
      %3913 = vrot.lane.b32.xlu0 %v3409, 112
      %v3914 = vpop.permute.xlu0 %3913
      %3915 = vrot.lane.b32.xlu0 %v3412, 112
      %v3916 = vpop.permute.xlu0 %3915
      %3917 = vrot.lane.b32.xlu0 %v3415, 112
      %v3918 = vpop.permute.xlu0 %3917
      %3919 = vrot.lane.b32.xlu0 %v3418, 112
      %v3920 = vpop.permute.xlu0 %3919
      %3921 = vrot.lane.b32.xlu0 %v3406, 80
      %v3922 = vpop.permute.xlu0 %3921
      %3923 = vrot.lane.b32.xlu0 %v3409, 80
      %v3924 = vpop.permute.xlu0 %3923
      %3925 = vrot.lane.b32.xlu0 %v3412, 80
      %v3926 = vpop.permute.xlu0 %3925
      %3927 = vrot.lane.b32.xlu0 %v3415, 80
      %v3928 = vpop.permute.xlu0 %3927
      %3929 = vrot.lane.b32.xlu0 %v3418, 80
      %v3930 = vpop.permute.xlu0 %3929
      %v3931 = vsel %vm3457, %v3912, 0
      %v3933 = vsel %vm3457, %v3914, 0
      %v3935 = vsel %vm3457, %v3916, 0
      %v3937 = vsel %vm3457, %v3918, 0
      %v3939 = vsel %vm3457, %v3920, 0
      %v3941 = vsel %vm3457, %v3922, 0
      %v3943 = vsel %vm3457, %v3924, 0
      %v3945 = vsel %vm3457, %v3926, 0
      %v3947 = vsel %vm3457, %v3928, 0
      %v3949 = vsel %vm3457, %v3930, 0
      %3951 = vmatpush.xpose.msra.mxu0 0.0
      %3952 = vmatpush.xpose.msra.mxu0 0.0
      %3953 = vmatpush.xpose.msra.mxu0 0.0
      %3954 = vmatpush.xpose.msra.mxu0 0.0
      %3955 = vmatpush.xpose.msra.mxu0 0.0
      %3956 = vmatpush.xpose.msra.mxu0 0.0
      %3957 = vmatpush.xpose.msra.mxu0 0.0
      %3958 = vmatpush.xpose.msra.mxu0 0.0
      %3959 = vmatpush.xpose.msra.mxu0 0.0
      %3960 = vmatpush.xpose.msra.mxu0 0.0
      %3961 = vmatpush.xpose.msra.mxu0 0.0
      %3962 = vmatpush.xpose.msra.mxu0 %v3949
      %3963 = vmatpush.xpose.msra.mxu0 %v3947
      %3964 = vmatpush.xpose.msra.mxu0 %v3945
      %3965 = vmatpush.xpose.msra.mxu0 %v3943
      %3966 = vmatpush.xpose.msra.mxu0 %v3941
      %3967 = vmatmul.f32.gmra.mxu0 %v3931
      %v3968 = vpop.f32.mrf.mxu0
      %v3969 = vadd.f32 %v3088, %v3968
      %3970 = vmatmul.f32.gmra.mxu0 %v3933
      %v3971 = vpop.f32.mrf.mxu0
      %v3972 = vadd.f32 %v3088, %v3971
      %3973 = vmatmul.f32.gmra.mxu0 %v3935
      %v3974 = vpop.f32.mrf.mxu0
      %v3975 = vadd.f32 %v3088, %v3974
      %3976 = vmatmul.f32.gmra.mxu0 %v3937
      %v3977 = vpop.f32.mrf.mxu0
      %v3978 = vadd.f32 %v3088, %v3977
      %3979 = vmatmul.f32.gmra.mxu0 %v3939
      %v3980 = vpop.f32.mrf.mxu0
      %v3981 = vadd.f32 %v3088, %v3980
      %3982 = vdwg.mxu0
      %v3983 = vsel %vm3510, %v3969, -inf
      %3984 = vmax.xlane.f32.xlu0 %v3983
      %v3985 = vpop.xlane.xlu0 %3984
      %v3986 = vsel %vm3510, %v3972, -inf
      %3987 = vmax.xlane.f32.xlu0 %v3986
      %v3988 = vpop.xlane.xlu0 %3987
      %v3989 = vsel %vm3510, %v3975, -inf
      %3990 = vmax.xlane.f32.xlu0 %v3989
      %v3991 = vpop.xlane.xlu0 %3990
      %v3992 = vsel %vm3510, %v3978, -inf
      %3993 = vmax.xlane.f32.xlu0 %v3992
      %v3994 = vpop.xlane.xlu0 %3993
      %v3995 = vsel %vm3510, %v3981, -inf
      %3996 = vmax.xlane.f32.xlu0 %v3995
      %v3997 = vpop.xlane.xlu0 %3996
      %v3998 = vsub.f32 %v3969, %v3985
      %v3999 = vsub.f32 %v3972, %v3988
      %v4000 = vsub.f32 %v3975, %v3991
      %v4001 = vsub.f32 %v3978, %v3994
      %v4002 = vsub.f32 %v3981, %v3997
      %v4003 = vmul.f32 %v3998, 1.442695
      %v4004 = vpow.pop %v4003
      %v4005 = vmul.f32 %v3999, 1.442695
      %v4006 = vpow.pop %v4005
      %v4007 = vmul.f32 %v4000, 1.442695
      %v4008 = vpow.pop %v4007
      %v4009 = vmul.f32 %v4001, 1.442695
      %v4010 = vpow.pop %v4009
      %v4011 = vmul.f32 %v4002, 1.442695
      %v4012 = vpow.pop %v4011
      %v4013 = vsel %vm3510, %v4004, 0.0
      %4014 = vadd.xlane.f32.xlu0 %v4013
      %v4015 = vpop.xlane.xlu0 %4014
      %v4016 = vsel %vm3510, %v4006, 0.0
      %4017 = vadd.xlane.f32.xlu0 %v4016
      %v4018 = vpop.xlane.xlu0 %4017
      %v4019 = vsel %vm3510, %v4008, 0.0
      %4020 = vadd.xlane.f32.xlu0 %v4019
      %v4021 = vpop.xlane.xlu0 %4020
      %v4022 = vsel %vm3510, %v4010, 0.0
      %4023 = vadd.xlane.f32.xlu0 %v4022
      %v4024 = vpop.xlane.xlu0 %4023
      %v4025 = vsel %vm3510, %v4012, 0.0
      %4026 = vadd.xlane.f32.xlu0 %v4025
      %v4027 = vpop.xlane.xlu0 %4026
      %v4028 = vrcp.pop %v4015
      %v4029 = vrcp.pop %v4018
      %v4030 = vrcp.pop %v4021
      %v4031 = vrcp.pop %v4024
      %v4032 = vrcp.pop %v4027
      %v4033 = vmul.f32 %v4004, %v4028
      %v4034 = vmul.f32 %v4006, %v4029
      %v4035 = vmul.f32 %v4008, %v4030
      %v4036 = vmul.f32 %v4010, %v4031
      %v4037 = vmul.f32 %v4012, %v4032
      %4038 = vrot.lane.b32.xlu0 %v3406, 48
      %v4039 = vpop.permute.xlu0 %4038
      %4040 = vrot.lane.b32.xlu0 %v3409, 48
      %v4041 = vpop.permute.xlu0 %4040
      %4042 = vrot.lane.b32.xlu0 %v3412, 48
      %v4043 = vpop.permute.xlu0 %4042
      %4044 = vrot.lane.b32.xlu0 %v3415, 48
      %v4045 = vpop.permute.xlu0 %4044
      %4046 = vrot.lane.b32.xlu0 %v3418, 48
      %v4047 = vpop.permute.xlu0 %4046
      %v4054 = vsel %vm3510, %v4033, 0
      %v4057 = vsel %vm3510, %v4034, 0
      %v4060 = vsel %vm3510, %v4035, 0
      %v4063 = vsel %vm3510, %v4036, 0
      %v4066 = vsel %vm3510, %v4037, 0
      %4068 = vmatpush.msra.mxu0 0.0
      %4069 = vmatpush.msra.mxu0 0.0
      %4070 = vmatpush.msra.mxu0 0.0
      %4071 = vmatpush.msra.mxu0 0.0
      %4072 = vmatpush.msra.mxu0 0.0
      %4073 = vmatpush.msra.mxu0 0.0
      %4074 = vmatpush.msra.mxu0 0.0
      %4075 = vmatpush.msra.mxu0 0.0
      %4076 = vmatpush.msra.mxu0 0.0
      %4077 = vmatpush.msra.mxu0 0.0
      %4078 = vmatpush.msra.mxu0 0.0
      %4079 = vmatpush.msra.mxu0 %v4047
      %4080 = vmatpush.msra.mxu0 %v4045
      %4081 = vmatpush.msra.mxu0 %v4043
      %4082 = vmatpush.msra.mxu0 %v4041
      %4083 = vmatpush.msra.mxu0 %v4039
      %4084 = vmatmul.f32.gmra.mxu0 %v4054
      %v4085 = vpop.f32.mrf.mxu0
      %v4086 = vadd.f32 0.0, %v4085
      %4087 = vmatmul.f32.gmra.mxu0 %v4057
      %v4088 = vpop.f32.mrf.mxu0
      %v4089 = vadd.f32 0.0, %v4088
      %4090 = vmatmul.f32.gmra.mxu0 %v4060
      %v4091 = vpop.f32.mrf.mxu0
      %v4092 = vadd.f32 0.0, %v4091
      %4093 = vmatmul.f32.gmra.mxu0 %v4063
      %v4094 = vpop.f32.mrf.mxu0
      %v4095 = vadd.f32 0.0, %v4094
      %4096 = vmatmul.f32.gmra.mxu0 %v4066
      %v4097 = vpop.f32.mrf.mxu0
      %v4098 = vadd.f32 0.0, %v4097
      %4099 = vdwg.mxu0
      %v4101 = vsel %vm3457, %v4086, 0
      %v4104 = vsel %vm3457, %v4089, 0
      %v4107 = vsel %vm3457, %v4092, 0
      %v4110 = vsel %vm3457, %v4095, 0
      %v4113 = vsel %vm3457, %v4098, 0
      %4115 = vmatpush.msra.mxu0 0.0
      %4116 = vmatpush.msra.mxu0 0.0
      %4117 = vmatpush.msra.mxu0 0.0
      %4118 = vmatpush.msra.mxu0 0.0
      %4119 = vmatpush.msra.mxu0 0.0
      %4120 = vmatpush.msra.mxu0 0.0
      %4121 = vmatpush.msra.mxu0 0.0
      %4122 = vmatpush.msra.mxu0 0.0
      %4123 = vmatpush.msra.mxu0 0.0
      %4124 = vmatpush.msra.mxu0 0.0
      %4125 = vmatpush.msra.mxu0 0.0
      %4126 = vmatpush.msra.mxu0 0.0
      %4127 = vmatpush.msra.mxu0 0.0
      %4128 = vmatpush.msra.mxu0 0.0
      %4129 = vmatpush.msra.mxu0 0.0
      %4130 = vmatpush.msra.mxu0 %v3438
      %4131 = vmatmul.f32.gmra.mxu0 %v4101
      %v4132 = vpop.f32.mrf.mxu0
      %v4133 = vadd.f32 0.0, %v4132
      %4134 = vmatmul.f32.gmra.mxu0 %v4104
      %v4135 = vpop.f32.mrf.mxu0
      %v4136 = vadd.f32 0.0, %v4135
      %4137 = vmatmul.f32.gmra.mxu0 %v4107
      %v4138 = vpop.f32.mrf.mxu0
      %v4139 = vadd.f32 0.0, %v4138
      %4140 = vmatmul.f32.gmra.mxu0 %v4110
      %v4141 = vpop.f32.mrf.mxu0
      %v4142 = vadd.f32 0.0, %v4141
      %4143 = vmatmul.f32.gmra.mxu0 %v4113
      %v4144 = vpop.f32.mrf.mxu0
      %v4145 = vadd.f32 0.0, %v4144
      %4146 = vdwg.mxu0
      %v4147 = vadd.f32 %v3897, %v4133
      %v4148 = vadd.f32 %v3900, %v4136
      %v4149 = vadd.f32 %v3903, %v4139
      %v4150 = vadd.f32 %v3906, %v4142
      %v4151 = vadd.f32 %v3909, %v4145
      %4152 = vrot.lane.b32.xlu0 %v3406, 104
      %v4153 = vpop.permute.xlu0 %4152
      %4154 = vrot.lane.b32.xlu0 %v3409, 104
      %v4155 = vpop.permute.xlu0 %4154
      %4156 = vrot.lane.b32.xlu0 %v3412, 104
      %v4157 = vpop.permute.xlu0 %4156
      %4158 = vrot.lane.b32.xlu0 %v3415, 104
      %v4159 = vpop.permute.xlu0 %4158
      %4160 = vrot.lane.b32.xlu0 %v3418, 104
      %v4161 = vpop.permute.xlu0 %4160
      %4162 = vrot.lane.b32.xlu0 %v3406, 72
      %v4163 = vpop.permute.xlu0 %4162
      %4164 = vrot.lane.b32.xlu0 %v3409, 72
      %v4165 = vpop.permute.xlu0 %4164
      %4166 = vrot.lane.b32.xlu0 %v3412, 72
      %v4167 = vpop.permute.xlu0 %4166
      %4168 = vrot.lane.b32.xlu0 %v3415, 72
      %v4169 = vpop.permute.xlu0 %4168
      %4170 = vrot.lane.b32.xlu0 %v3418, 72
      %v4171 = vpop.permute.xlu0 %4170
      %v4172 = vsel %vm3457, %v4153, 0
      %v4174 = vsel %vm3457, %v4155, 0
      %v4176 = vsel %vm3457, %v4157, 0
      %v4178 = vsel %vm3457, %v4159, 0
      %v4180 = vsel %vm3457, %v4161, 0
      %v4182 = vsel %vm3457, %v4163, 0
      %v4184 = vsel %vm3457, %v4165, 0
      %v4186 = vsel %vm3457, %v4167, 0
      %v4188 = vsel %vm3457, %v4169, 0
      %v4190 = vsel %vm3457, %v4171, 0
      %4192 = vmatpush.xpose.msra.mxu0 0.0
      %4193 = vmatpush.xpose.msra.mxu0 0.0
      %4194 = vmatpush.xpose.msra.mxu0 0.0
      %4195 = vmatpush.xpose.msra.mxu0 0.0
      %4196 = vmatpush.xpose.msra.mxu0 0.0
      %4197 = vmatpush.xpose.msra.mxu0 0.0
      %4198 = vmatpush.xpose.msra.mxu0 0.0
      %4199 = vmatpush.xpose.msra.mxu0 0.0
      %4200 = vmatpush.xpose.msra.mxu0 0.0
      %4201 = vmatpush.xpose.msra.mxu0 0.0
      %4202 = vmatpush.xpose.msra.mxu0 0.0
      %4203 = vmatpush.xpose.msra.mxu0 %v4190
      %4204 = vmatpush.xpose.msra.mxu0 %v4188
      %4205 = vmatpush.xpose.msra.mxu0 %v4186
      %4206 = vmatpush.xpose.msra.mxu0 %v4184
      %4207 = vmatpush.xpose.msra.mxu0 %v4182
      %4208 = vmatmul.f32.gmra.mxu0 %v4172
      %v4209 = vpop.f32.mrf.mxu0
      %v4210 = vadd.f32 %v3088, %v4209
      %4211 = vmatmul.f32.gmra.mxu0 %v4174
      %v4212 = vpop.f32.mrf.mxu0
      %v4213 = vadd.f32 %v3088, %v4212
      %4214 = vmatmul.f32.gmra.mxu0 %v4176
      %v4215 = vpop.f32.mrf.mxu0
      %v4216 = vadd.f32 %v3088, %v4215
      %4217 = vmatmul.f32.gmra.mxu0 %v4178
      %v4218 = vpop.f32.mrf.mxu0
      %v4219 = vadd.f32 %v3088, %v4218
      %4220 = vmatmul.f32.gmra.mxu0 %v4180
      %v4221 = vpop.f32.mrf.mxu0
      %v4222 = vadd.f32 %v3088, %v4221
      %4223 = vdwg.mxu0
      %v4224 = vsel %vm3510, %v4210, -inf
      %4225 = vmax.xlane.f32.xlu0 %v4224
      %v4226 = vpop.xlane.xlu0 %4225
      %v4227 = vsel %vm3510, %v4213, -inf
      %4228 = vmax.xlane.f32.xlu0 %v4227
      %v4229 = vpop.xlane.xlu0 %4228
      %v4230 = vsel %vm3510, %v4216, -inf
      %4231 = vmax.xlane.f32.xlu0 %v4230
      %v4232 = vpop.xlane.xlu0 %4231
      %v4233 = vsel %vm3510, %v4219, -inf
      %4234 = vmax.xlane.f32.xlu0 %v4233
      %v4235 = vpop.xlane.xlu0 %4234
      %v4236 = vsel %vm3510, %v4222, -inf
      %4237 = vmax.xlane.f32.xlu0 %v4236
      %v4238 = vpop.xlane.xlu0 %4237
      %v4239 = vsub.f32 %v4210, %v4226
      %v4240 = vsub.f32 %v4213, %v4229
      %v4241 = vsub.f32 %v4216, %v4232
      %v4242 = vsub.f32 %v4219, %v4235
      %v4243 = vsub.f32 %v4222, %v4238
      %v4244 = vmul.f32 %v4239, 1.442695
      %v4245 = vpow.pop %v4244
      %v4246 = vmul.f32 %v4240, 1.442695
      %v4247 = vpow.pop %v4246
      %v4248 = vmul.f32 %v4241, 1.442695
      %v4249 = vpow.pop %v4248
      %v4250 = vmul.f32 %v4242, 1.442695
      %v4251 = vpow.pop %v4250
      %v4252 = vmul.f32 %v4243, 1.442695
      %v4253 = vpow.pop %v4252
      %v4254 = vsel %vm3510, %v4245, 0.0
      %4255 = vadd.xlane.f32.xlu0 %v4254
      %v4256 = vpop.xlane.xlu0 %4255
      %v4257 = vsel %vm3510, %v4247, 0.0
      %4258 = vadd.xlane.f32.xlu0 %v4257
      %v4259 = vpop.xlane.xlu0 %4258
      %v4260 = vsel %vm3510, %v4249, 0.0
      %4261 = vadd.xlane.f32.xlu0 %v4260
      %v4262 = vpop.xlane.xlu0 %4261
      %v4263 = vsel %vm3510, %v4251, 0.0
      %4264 = vadd.xlane.f32.xlu0 %v4263
      %v4265 = vpop.xlane.xlu0 %4264
      %v4266 = vsel %vm3510, %v4253, 0.0
      %4267 = vadd.xlane.f32.xlu0 %v4266
      %v4268 = vpop.xlane.xlu0 %4267
      %v4269 = vrcp.pop %v4256
      %v4270 = vrcp.pop %v4259
      %v4271 = vrcp.pop %v4262
      %v4272 = vrcp.pop %v4265
      %v4273 = vrcp.pop %v4268
      %v4274 = vmul.f32 %v4245, %v4269
      %v4275 = vmul.f32 %v4247, %v4270
      %v4276 = vmul.f32 %v4249, %v4271
      %v4277 = vmul.f32 %v4251, %v4272
      %v4278 = vmul.f32 %v4253, %v4273
      %4279 = vrot.lane.b32.xlu0 %v3406, 40
      %v4280 = vpop.permute.xlu0 %4279
      %4281 = vrot.lane.b32.xlu0 %v3409, 40
      %v4282 = vpop.permute.xlu0 %4281
      %4283 = vrot.lane.b32.xlu0 %v3412, 40
      %v4284 = vpop.permute.xlu0 %4283
      %4285 = vrot.lane.b32.xlu0 %v3415, 40
      %v4286 = vpop.permute.xlu0 %4285
      %4287 = vrot.lane.b32.xlu0 %v3418, 40
      %v4288 = vpop.permute.xlu0 %4287
      %v4295 = vsel %vm3510, %v4274, 0
      %v4298 = vsel %vm3510, %v4275, 0
      %v4301 = vsel %vm3510, %v4276, 0
      %v4304 = vsel %vm3510, %v4277, 0
      %v4307 = vsel %vm3510, %v4278, 0
      %4309 = vmatpush.msra.mxu0 0.0
      %4310 = vmatpush.msra.mxu0 0.0
      %4311 = vmatpush.msra.mxu0 0.0
      %4312 = vmatpush.msra.mxu0 0.0
      %4313 = vmatpush.msra.mxu0 0.0
      %4314 = vmatpush.msra.mxu0 0.0
      %4315 = vmatpush.msra.mxu0 0.0
      %4316 = vmatpush.msra.mxu0 0.0
      %4317 = vmatpush.msra.mxu0 0.0
      %4318 = vmatpush.msra.mxu0 0.0
      %4319 = vmatpush.msra.mxu0 0.0
      %4320 = vmatpush.msra.mxu0 %v4288
      %4321 = vmatpush.msra.mxu0 %v4286
      %4322 = vmatpush.msra.mxu0 %v4284
      %4323 = vmatpush.msra.mxu0 %v4282
      %4324 = vmatpush.msra.mxu0 %v4280
      %4325 = vmatmul.f32.gmra.mxu0 %v4295
      %v4326 = vpop.f32.mrf.mxu0
      %v4327 = vadd.f32 0.0, %v4326
      %4328 = vmatmul.f32.gmra.mxu0 %v4298
      %v4329 = vpop.f32.mrf.mxu0
      %v4330 = vadd.f32 0.0, %v4329
      %4331 = vmatmul.f32.gmra.mxu0 %v4301
      %v4332 = vpop.f32.mrf.mxu0
      %v4333 = vadd.f32 0.0, %v4332
      %4334 = vmatmul.f32.gmra.mxu0 %v4304
      %v4335 = vpop.f32.mrf.mxu0
      %v4336 = vadd.f32 0.0, %v4335
      %4337 = vmatmul.f32.gmra.mxu0 %v4307
      %v4338 = vpop.f32.mrf.mxu0
      %v4339 = vadd.f32 0.0, %v4338
      %4340 = vdwg.mxu0
      %v4342 = vsel %vm3457, %v4327, 0
      %v4345 = vsel %vm3457, %v4330, 0
      %v4348 = vsel %vm3457, %v4333, 0
      %v4351 = vsel %vm3457, %v4336, 0
      %v4354 = vsel %vm3457, %v4339, 0
      %4356 = vmatpush.msra.mxu0 0.0
      %4357 = vmatpush.msra.mxu0 0.0
      %4358 = vmatpush.msra.mxu0 0.0
      %4359 = vmatpush.msra.mxu0 0.0
      %4360 = vmatpush.msra.mxu0 0.0
      %4361 = vmatpush.msra.mxu0 0.0
      %4362 = vmatpush.msra.mxu0 0.0
      %4363 = vmatpush.msra.mxu0 0.0
      %4364 = vmatpush.msra.mxu0 0.0
      %4365 = vmatpush.msra.mxu0 0.0
      %4366 = vmatpush.msra.mxu0 0.0
      %4367 = vmatpush.msra.mxu0 0.0
      %4368 = vmatpush.msra.mxu0 0.0
      %4369 = vmatpush.msra.mxu0 0.0
      %4370 = vmatpush.msra.mxu0 0.0
      %4371 = vmatpush.msra.mxu0 %v3439
      %4372 = vmatmul.f32.gmra.mxu0 %v4342
      %v4373 = vpop.f32.mrf.mxu0
      %v4374 = vadd.f32 0.0, %v4373
      %4375 = vmatmul.f32.gmra.mxu0 %v4345
      %v4376 = vpop.f32.mrf.mxu0
      %v4377 = vadd.f32 0.0, %v4376
      %4378 = vmatmul.f32.gmra.mxu0 %v4348
      %v4379 = vpop.f32.mrf.mxu0
      %v4380 = vadd.f32 0.0, %v4379
      %4381 = vmatmul.f32.gmra.mxu0 %v4351
      %v4382 = vpop.f32.mrf.mxu0
      %v4383 = vadd.f32 0.0, %v4382
      %4384 = vmatmul.f32.gmra.mxu0 %v4354
      %v4385 = vpop.f32.mrf.mxu0
      %v4386 = vadd.f32 0.0, %v4385
      %4387 = vdwg.mxu0
      %v4388 = vadd.f32 %v4147, %v4374
      %v4389 = vadd.f32 %v4148, %v4377
      %v4390 = vadd.f32 %v4149, %v4380
      %v4391 = vadd.f32 %v4150, %v4383
      %v4392 = vadd.f32 %v4151, %v4386
      %v4393 = vadd.f32 %v3075, %v4388
      %v4394 = vadd.f32 %v3076, %v4389
      %v4395 = vadd.f32 %v3077, %v4390
      %v4396 = vadd.f32 %v3078, %v4391
      %v4397 = vadd.f32 %v3079, %v4392
      %v4399 = vperm.slane %v3441, 0
      %v4401 = vadd.f32 %v4393, %v4399
      %v4402 = vadd.f32 %v4394, %v4399
      %v4403 = vadd.f32 %v4395, %v4399
      %v4404 = vadd.f32 %v4396, %v4399
      %v4405 = vadd.f32 %v4397, %v4399
      %4406 = vst.msk [vmem:[#allocation2] sm:$0xff] %vm3093, %v4401
      %4407 = vst.msk [vmem:[#allocation2 + $0x8] sm:$0xff] %vm3093, %v4402
      %4408 = vst.msk [vmem:[#allocation2 + $0x10] sm:$0xff] %vm3093, %v4403
      %4409 = vst.msk [vmem:[#allocation2 + $0x18] sm:$0xff] %vm3093, %v4404
      %4410 = vst.msk [vmem:[#allocation2 + $0x20] sm:$0xff] %vm3093, %v4405
      %4416 = vrot.lane.b32.xlu0 %v3421, 96
      %v4417 = vpop.permute.xlu0 %4416
      %4418 = vrot.lane.b32.xlu0 %v3424, 96
      %v4419 = vpop.permute.xlu0 %4418
      %4420 = vrot.lane.b32.xlu0 %v3427, 96
      %v4421 = vpop.permute.xlu0 %4420
      %4422 = vrot.lane.b32.xlu0 %v3430, 96
      %v4423 = vpop.permute.xlu0 %4422
      %4424 = vrot.lane.b32.xlu0 %v3433, 96
      %v4425 = vpop.permute.xlu0 %4424
      %v4426 = vsel %vm3457, %v3421, 0
      %v4428 = vsel %vm3457, %v3424, 0
      %v4430 = vsel %vm3457, %v3427, 0
      %v4432 = vsel %vm3457, %v3430, 0
      %v4434 = vsel %vm3457, %v3433, 0
      %v4436 = vsel %vm3457, %v4417, 0
      %v4438 = vsel %vm3457, %v4419, 0
      %v4440 = vsel %vm3457, %v4421, 0
      %v4442 = vsel %vm3457, %v4423, 0
      %v4444 = vsel %vm3457, %v4425, 0
      %4446 = vmatpush.xpose.msra.mxu0 0.0
      %4447 = vmatpush.xpose.msra.mxu0 0.0
      %4448 = vmatpush.xpose.msra.mxu0 0.0
      %4449 = vmatpush.xpose.msra.mxu0 0.0
      %4450 = vmatpush.xpose.msra.mxu0 0.0
      %4451 = vmatpush.xpose.msra.mxu0 0.0
      %4452 = vmatpush.xpose.msra.mxu0 0.0
      %4453 = vmatpush.xpose.msra.mxu0 0.0
      %4454 = vmatpush.xpose.msra.mxu0 0.0
      %4455 = vmatpush.xpose.msra.mxu0 0.0
      %4456 = vmatpush.xpose.msra.mxu0 0.0
      %4457 = vmatpush.xpose.msra.mxu0 %v4444
      %4458 = vmatpush.xpose.msra.mxu0 %v4442
      %4459 = vmatpush.xpose.msra.mxu0 %v4440
      %4460 = vmatpush.xpose.msra.mxu0 %v4438
      %4461 = vmatpush.xpose.msra.mxu0 %v4436
      %4462 = vmatmul.f32.gmra.mxu0 %v4426
      %v4463 = vpop.f32.mrf.mxu0
      %v4464 = vadd.f32 %v3088, %v4463
      %4465 = vmatmul.f32.gmra.mxu0 %v4428
      %v4466 = vpop.f32.mrf.mxu0
      %v4467 = vadd.f32 %v3088, %v4466
      %4468 = vmatmul.f32.gmra.mxu0 %v4430
      %v4469 = vpop.f32.mrf.mxu0
      %v4470 = vadd.f32 %v3088, %v4469
      %4471 = vmatmul.f32.gmra.mxu0 %v4432
      %v4472 = vpop.f32.mrf.mxu0
      %v4473 = vadd.f32 %v3088, %v4472
      %4474 = vmatmul.f32.gmra.mxu0 %v4434
      %v4475 = vpop.f32.mrf.mxu0
      %v4476 = vadd.f32 %v3088, %v4475
      %4477 = vdwg.mxu0
      %v4478 = vsel %vm3510, %v4464, -inf
      %4479 = vmax.xlane.f32.xlu0 %v4478
      %v4480 = vpop.xlane.xlu0 %4479
      %v4481 = vsel %vm3510, %v4467, -inf
      %4482 = vmax.xlane.f32.xlu0 %v4481
      %v4483 = vpop.xlane.xlu0 %4482
      %v4484 = vsel %vm3510, %v4470, -inf
      %4485 = vmax.xlane.f32.xlu0 %v4484
      %v4486 = vpop.xlane.xlu0 %4485
      %v4487 = vsel %vm3510, %v4473, -inf
      %4488 = vmax.xlane.f32.xlu0 %v4487
      %v4489 = vpop.xlane.xlu0 %4488
      %v4490 = vsel %vm3510, %v4476, -inf
      %4491 = vmax.xlane.f32.xlu0 %v4490
      %v4492 = vpop.xlane.xlu0 %4491
      %v4493 = vsub.f32 %v4464, %v4480
      %v4494 = vsub.f32 %v4467, %v4483
      %v4495 = vsub.f32 %v4470, %v4486
      %v4496 = vsub.f32 %v4473, %v4489
      %v4497 = vsub.f32 %v4476, %v4492
      %v4498 = vmul.f32 %v4493, 1.442695
      %v4499 = vpow.pop %v4498
      %v4500 = vmul.f32 %v4494, 1.442695
      %v4501 = vpow.pop %v4500
      %v4502 = vmul.f32 %v4495, 1.442695
      %v4503 = vpow.pop %v4502
      %v4504 = vmul.f32 %v4496, 1.442695
      %v4505 = vpow.pop %v4504
      %v4506 = vmul.f32 %v4497, 1.442695
      %v4507 = vpow.pop %v4506
      %v4508 = vsel %vm3510, %v4499, 0.0
      %4509 = vadd.xlane.f32.xlu0 %v4508
      %v4510 = vpop.xlane.xlu0 %4509
      %v4511 = vsel %vm3510, %v4501, 0.0
      %4512 = vadd.xlane.f32.xlu0 %v4511
      %v4513 = vpop.xlane.xlu0 %4512
      %v4514 = vsel %vm3510, %v4503, 0.0
      %4515 = vadd.xlane.f32.xlu0 %v4514
      %v4516 = vpop.xlane.xlu0 %4515
      %v4517 = vsel %vm3510, %v4505, 0.0
      %4518 = vadd.xlane.f32.xlu0 %v4517
      %v4519 = vpop.xlane.xlu0 %4518
      %v4520 = vsel %vm3510, %v4507, 0.0
      %4521 = vadd.xlane.f32.xlu0 %v4520
      %v4522 = vpop.xlane.xlu0 %4521
      %v4523 = vrcp.pop %v4510
      %v4524 = vrcp.pop %v4513
      %v4525 = vrcp.pop %v4516
      %v4526 = vrcp.pop %v4519
      %v4527 = vrcp.pop %v4522
      %v4528 = vmul.f32 %v4499, %v4523
      %v4529 = vmul.f32 %v4501, %v4524
      %v4530 = vmul.f32 %v4503, %v4525
      %v4531 = vmul.f32 %v4505, %v4526
      %v4532 = vmul.f32 %v4507, %v4527
      %4533 = vrot.lane.b32.xlu0 %v3421, 64
      %v4534 = vpop.permute.xlu0 %4533
      %4535 = vrot.lane.b32.xlu0 %v3424, 64
      %v4536 = vpop.permute.xlu0 %4535
      %4537 = vrot.lane.b32.xlu0 %v3427, 64
      %v4538 = vpop.permute.xlu0 %4537
      %4539 = vrot.lane.b32.xlu0 %v3430, 64
      %v4540 = vpop.permute.xlu0 %4539
      %4541 = vrot.lane.b32.xlu0 %v3433, 64
      %v4542 = vpop.permute.xlu0 %4541
      %v4549 = vsel %vm3510, %v4528, 0
      %v4552 = vsel %vm3510, %v4529, 0
      %v4555 = vsel %vm3510, %v4530, 0
      %v4558 = vsel %vm3510, %v4531, 0
      %v4561 = vsel %vm3510, %v4532, 0
      %4563 = vmatpush.msra.mxu0 0.0
      %4564 = vmatpush.msra.mxu0 0.0
      %4565 = vmatpush.msra.mxu0 0.0
      %4566 = vmatpush.msra.mxu0 0.0
      %4567 = vmatpush.msra.mxu0 0.0
      %4568 = vmatpush.msra.mxu0 0.0
      %4569 = vmatpush.msra.mxu0 0.0
      %4570 = vmatpush.msra.mxu0 0.0
      %4571 = vmatpush.msra.mxu0 0.0
      %4572 = vmatpush.msra.mxu0 0.0
      %4573 = vmatpush.msra.mxu0 0.0
      %4574 = vmatpush.msra.mxu0 %v4542
      %4575 = vmatpush.msra.mxu0 %v4540
      %4576 = vmatpush.msra.mxu0 %v4538
      %4577 = vmatpush.msra.mxu0 %v4536
      %4578 = vmatpush.msra.mxu0 %v4534
      %4579 = vmatmul.f32.gmra.mxu0 %v4549
      %v4580 = vpop.f32.mrf.mxu0
      %v4581 = vadd.f32 0.0, %v4580
      %4582 = vmatmul.f32.gmra.mxu0 %v4552
      %v4583 = vpop.f32.mrf.mxu0
      %v4584 = vadd.f32 0.0, %v4583
      %4585 = vmatmul.f32.gmra.mxu0 %v4555
      %v4586 = vpop.f32.mrf.mxu0
      %v4587 = vadd.f32 0.0, %v4586
      %4588 = vmatmul.f32.gmra.mxu0 %v4558
      %v4589 = vpop.f32.mrf.mxu0
      %v4590 = vadd.f32 0.0, %v4589
      %4591 = vmatmul.f32.gmra.mxu0 %v4561
      %v4592 = vpop.f32.mrf.mxu0
      %v4593 = vadd.f32 0.0, %v4592
      %4594 = vdwg.mxu0
      %4595 = vrot.lane.b32.xlu0 %v3421, 120
      %v4596 = vpop.permute.xlu0 %4595
      %4597 = vrot.lane.b32.xlu0 %v3424, 120
      %v4598 = vpop.permute.xlu0 %4597
      %4599 = vrot.lane.b32.xlu0 %v3427, 120
      %v4600 = vpop.permute.xlu0 %4599
      %4601 = vrot.lane.b32.xlu0 %v3430, 120
      %v4602 = vpop.permute.xlu0 %4601
      %4603 = vrot.lane.b32.xlu0 %v3433, 120
      %v4604 = vpop.permute.xlu0 %4603
      %4605 = vrot.lane.b32.xlu0 %v3421, 88
      %v4606 = vpop.permute.xlu0 %4605
      %4607 = vrot.lane.b32.xlu0 %v3424, 88
      %v4608 = vpop.permute.xlu0 %4607
      %4609 = vrot.lane.b32.xlu0 %v3427, 88
      %v4610 = vpop.permute.xlu0 %4609
      %4611 = vrot.lane.b32.xlu0 %v3430, 88
      %v4612 = vpop.permute.xlu0 %4611
      %4613 = vrot.lane.b32.xlu0 %v3433, 88
      %v4614 = vpop.permute.xlu0 %4613
      %v4615 = vsel %vm3457, %v4596, 0
      %v4617 = vsel %vm3457, %v4598, 0
      %v4619 = vsel %vm3457, %v4600, 0
      %v4621 = vsel %vm3457, %v4602, 0
      %v4623 = vsel %vm3457, %v4604, 0
      %v4625 = vsel %vm3457, %v4606, 0
      %v4627 = vsel %vm3457, %v4608, 0
      %v4629 = vsel %vm3457, %v4610, 0
      %v4631 = vsel %vm3457, %v4612, 0
      %v4633 = vsel %vm3457, %v4614, 0
      %4635 = vmatpush.xpose.msra.mxu0 0.0
      %4636 = vmatpush.xpose.msra.mxu0 0.0
      %4637 = vmatpush.xpose.msra.mxu0 0.0
      %4638 = vmatpush.xpose.msra.mxu0 0.0
      %4639 = vmatpush.xpose.msra.mxu0 0.0
      %4640 = vmatpush.xpose.msra.mxu0 0.0
      %4641 = vmatpush.xpose.msra.mxu0 0.0
      %4642 = vmatpush.xpose.msra.mxu0 0.0
      %4643 = vmatpush.xpose.msra.mxu0 0.0
      %4644 = vmatpush.xpose.msra.mxu0 0.0
      %4645 = vmatpush.xpose.msra.mxu0 0.0
      %4646 = vmatpush.xpose.msra.mxu0 %v4633
      %4647 = vmatpush.xpose.msra.mxu0 %v4631
      %4648 = vmatpush.xpose.msra.mxu0 %v4629
      %4649 = vmatpush.xpose.msra.mxu0 %v4627
      %4650 = vmatpush.xpose.msra.mxu0 %v4625
      %4651 = vmatmul.f32.gmra.mxu0 %v4615
      %v4652 = vpop.f32.mrf.mxu0
      %v4653 = vadd.f32 %v3088, %v4652
      %4654 = vmatmul.f32.gmra.mxu0 %v4617
      %v4655 = vpop.f32.mrf.mxu0
      %v4656 = vadd.f32 %v3088, %v4655
      %4657 = vmatmul.f32.gmra.mxu0 %v4619
      %v4658 = vpop.f32.mrf.mxu0
      %v4659 = vadd.f32 %v3088, %v4658
      %4660 = vmatmul.f32.gmra.mxu0 %v4621
      %v4661 = vpop.f32.mrf.mxu0
      %v4662 = vadd.f32 %v3088, %v4661
      %4663 = vmatmul.f32.gmra.mxu0 %v4623
      %v4664 = vpop.f32.mrf.mxu0
      %v4665 = vadd.f32 %v3088, %v4664
      %4666 = vdwg.mxu0
      %v4667 = vsel %vm3510, %v4653, -inf
      %4668 = vmax.xlane.f32.xlu0 %v4667
      %v4669 = vpop.xlane.xlu0 %4668
      %v4670 = vsel %vm3510, %v4656, -inf
      %4671 = vmax.xlane.f32.xlu0 %v4670
      %v4672 = vpop.xlane.xlu0 %4671
      %v4673 = vsel %vm3510, %v4659, -inf
      %4674 = vmax.xlane.f32.xlu0 %v4673
      %v4675 = vpop.xlane.xlu0 %4674
      %v4676 = vsel %vm3510, %v4662, -inf
      %4677 = vmax.xlane.f32.xlu0 %v4676
      %v4678 = vpop.xlane.xlu0 %4677
      %v4679 = vsel %vm3510, %v4665, -inf
      %4680 = vmax.xlane.f32.xlu0 %v4679
      %v4681 = vpop.xlane.xlu0 %4680
      %v4682 = vsub.f32 %v4653, %v4669
      %v4683 = vsub.f32 %v4656, %v4672
      %v4684 = vsub.f32 %v4659, %v4675
      %v4685 = vsub.f32 %v4662, %v4678
      %v4686 = vsub.f32 %v4665, %v4681
      %v4687 = vmul.f32 %v4682, 1.442695
      %v4688 = vpow.pop %v4687
      %v4689 = vmul.f32 %v4683, 1.442695
      %v4690 = vpow.pop %v4689
      %v4691 = vmul.f32 %v4684, 1.442695
      %v4692 = vpow.pop %v4691
      %v4693 = vmul.f32 %v4685, 1.442695
      %v4694 = vpow.pop %v4693
      %v4695 = vmul.f32 %v4686, 1.442695
      %v4696 = vpow.pop %v4695
      %v4697 = vsel %vm3510, %v4688, 0.0
      %4698 = vadd.xlane.f32.xlu0 %v4697
      %v4699 = vpop.xlane.xlu0 %4698
      %v4700 = vsel %vm3510, %v4690, 0.0
      %4701 = vadd.xlane.f32.xlu0 %v4700
      %v4702 = vpop.xlane.xlu0 %4701
      %v4703 = vsel %vm3510, %v4692, 0.0
      %4704 = vadd.xlane.f32.xlu0 %v4703
      %v4705 = vpop.xlane.xlu0 %4704
      %v4706 = vsel %vm3510, %v4694, 0.0
      %4707 = vadd.xlane.f32.xlu0 %v4706
      %v4708 = vpop.xlane.xlu0 %4707
      %v4709 = vsel %vm3510, %v4696, 0.0
      %4710 = vadd.xlane.f32.xlu0 %v4709
      %v4711 = vpop.xlane.xlu0 %4710
      %v4712 = vrcp.pop %v4699
      %v4713 = vrcp.pop %v4702
      %v4714 = vrcp.pop %v4705
      %v4715 = vrcp.pop %v4708
      %v4716 = vrcp.pop %v4711
      %v4717 = vmul.f32 %v4688, %v4712
      %v4718 = vmul.f32 %v4690, %v4713
      %v4719 = vmul.f32 %v4692, %v4714
      %v4720 = vmul.f32 %v4694, %v4715
      %v4721 = vmul.f32 %v4696, %v4716
      %4722 = vrot.lane.b32.xlu0 %v3421, 56
      %v4723 = vpop.permute.xlu0 %4722
      %4724 = vrot.lane.b32.xlu0 %v3424, 56
      %v4725 = vpop.permute.xlu0 %4724
      %4726 = vrot.lane.b32.xlu0 %v3427, 56
      %v4727 = vpop.permute.xlu0 %4726
      %4728 = vrot.lane.b32.xlu0 %v3430, 56
      %v4729 = vpop.permute.xlu0 %4728
      %4730 = vrot.lane.b32.xlu0 %v3433, 56
      %v4731 = vpop.permute.xlu0 %4730
      %v4738 = vsel %vm3510, %v4717, 0
      %v4741 = vsel %vm3510, %v4718, 0
      %v4744 = vsel %vm3510, %v4719, 0
      %v4747 = vsel %vm3510, %v4720, 0
      %v4750 = vsel %vm3510, %v4721, 0
      %4752 = vmatpush.msra.mxu0 0.0
      %4753 = vmatpush.msra.mxu0 0.0
      %4754 = vmatpush.msra.mxu0 0.0
      %4755 = vmatpush.msra.mxu0 0.0
      %4756 = vmatpush.msra.mxu0 0.0
      %4757 = vmatpush.msra.mxu0 0.0
      %4758 = vmatpush.msra.mxu0 0.0
      %4759 = vmatpush.msra.mxu0 0.0
      %4760 = vmatpush.msra.mxu0 0.0
      %4761 = vmatpush.msra.mxu0 0.0
      %4762 = vmatpush.msra.mxu0 0.0
      %4763 = vmatpush.msra.mxu0 %v4731
      %4764 = vmatpush.msra.mxu0 %v4729
      %4765 = vmatpush.msra.mxu0 %v4727
      %4766 = vmatpush.msra.mxu0 %v4725
      %4767 = vmatpush.msra.mxu0 %v4723
      %4768 = vmatmul.f32.gmra.mxu0 %v4738
      %v4769 = vpop.f32.mrf.mxu0
      %v4770 = vadd.f32 0.0, %v4769
      %4771 = vmatmul.f32.gmra.mxu0 %v4741
      %v4772 = vpop.f32.mrf.mxu0
      %v4773 = vadd.f32 0.0, %v4772
      %4774 = vmatmul.f32.gmra.mxu0 %v4744
      %v4775 = vpop.f32.mrf.mxu0
      %v4776 = vadd.f32 0.0, %v4775
      %4777 = vmatmul.f32.gmra.mxu0 %v4747
      %v4778 = vpop.f32.mrf.mxu0
      %v4779 = vadd.f32 0.0, %v4778
      %4780 = vmatmul.f32.gmra.mxu0 %v4750
      %v4781 = vpop.f32.mrf.mxu0
      %v4782 = vadd.f32 0.0, %v4781
      %4783 = vdwg.mxu0
      %v4785 = vsel %vm3457, %v4770, 0
      %v4788 = vsel %vm3457, %v4773, 0
      %v4791 = vsel %vm3457, %v4776, 0
      %v4794 = vsel %vm3457, %v4779, 0
      %v4797 = vsel %vm3457, %v4782, 0
      %4799 = vmatpush.msra.mxu0 0.0
      %4800 = vmatpush.msra.mxu0 0.0
      %4801 = vmatpush.msra.mxu0 0.0
      %4802 = vmatpush.msra.mxu0 0.0
      %4803 = vmatpush.msra.mxu0 0.0
      %4804 = vmatpush.msra.mxu0 0.0
      %4805 = vmatpush.msra.mxu0 0.0
      %4806 = vmatpush.msra.mxu0 0.0
      %4807 = vmatpush.msra.mxu0 0.0
      %4808 = vmatpush.msra.mxu0 0.0
      %4809 = vmatpush.msra.mxu0 0.0
      %4810 = vmatpush.msra.mxu0 0.0
      %4811 = vmatpush.msra.mxu0 0.0
      %4812 = vmatpush.msra.mxu0 0.0
      %4813 = vmatpush.msra.mxu0 0.0
      %4814 = vmatpush.msra.mxu0 %v3437
      %4815 = vmatmul.f32.gmra.mxu0 %v4785
      %v4816 = vpop.f32.mrf.mxu0
      %v4817 = vadd.f32 0.0, %v4816
      %4818 = vmatmul.f32.gmra.mxu0 %v4788
      %v4819 = vpop.f32.mrf.mxu0
      %v4820 = vadd.f32 0.0, %v4819
      %4821 = vmatmul.f32.gmra.mxu0 %v4791
      %v4822 = vpop.f32.mrf.mxu0
      %v4823 = vadd.f32 0.0, %v4822
      %4824 = vmatmul.f32.gmra.mxu0 %v4794
      %v4825 = vpop.f32.mrf.mxu0
      %v4826 = vadd.f32 0.0, %v4825
      %4827 = vmatmul.f32.gmra.mxu0 %v4797
      %v4828 = vpop.f32.mrf.mxu0
      %v4829 = vadd.f32 0.0, %v4828
      %4830 = vdwg.mxu0
      %v4832 = vsel %vm3457, %v4581, 0
      %v4835 = vsel %vm3457, %v4584, 0
      %v4838 = vsel %vm3457, %v4587, 0
      %v4841 = vsel %vm3457, %v4590, 0
      %v4844 = vsel %vm3457, %v4593, 0
      %4846 = vmatpush.msra.mxu0 0.0
      %4847 = vmatpush.msra.mxu0 0.0
      %4848 = vmatpush.msra.mxu0 0.0
      %4849 = vmatpush.msra.mxu0 0.0
      %4850 = vmatpush.msra.mxu0 0.0
      %4851 = vmatpush.msra.mxu0 0.0
      %4852 = vmatpush.msra.mxu0 0.0
      %4853 = vmatpush.msra.mxu0 0.0
      %4854 = vmatpush.msra.mxu0 0.0
      %4855 = vmatpush.msra.mxu0 0.0
      %4856 = vmatpush.msra.mxu0 0.0
      %4857 = vmatpush.msra.mxu0 0.0
      %4858 = vmatpush.msra.mxu0 0.0
      %4859 = vmatpush.msra.mxu0 0.0
      %4860 = vmatpush.msra.mxu0 0.0
      %4861 = vmatpush.msra.mxu0 %v3436
      %4862 = vmatmul.f32.gmra.mxu0 %v4832
      %v4863 = vpop.f32.mrf.mxu0
      %v4864 = vadd.f32 %v4817, %v4863
      %4865 = vmatmul.f32.gmra.mxu0 %v4835
      %v4866 = vpop.f32.mrf.mxu0
      %v4867 = vadd.f32 %v4820, %v4866
      %4868 = vmatmul.f32.gmra.mxu0 %v4838
      %v4869 = vpop.f32.mrf.mxu0
      %v4870 = vadd.f32 %v4823, %v4869
      %4871 = vmatmul.f32.gmra.mxu0 %v4841
      %v4872 = vpop.f32.mrf.mxu0
      %v4873 = vadd.f32 %v4826, %v4872
      %4874 = vmatmul.f32.gmra.mxu0 %v4844
      %v4875 = vpop.f32.mrf.mxu0
      %v4876 = vadd.f32 %v4829, %v4875
      %4877 = vdwg.mxu0
      %4878 = vrot.lane.b32.xlu0 %v3421, 112
      %v4879 = vpop.permute.xlu0 %4878
      %4880 = vrot.lane.b32.xlu0 %v3424, 112
      %v4881 = vpop.permute.xlu0 %4880
      %4882 = vrot.lane.b32.xlu0 %v3427, 112
      %v4883 = vpop.permute.xlu0 %4882
      %4884 = vrot.lane.b32.xlu0 %v3430, 112
      %v4885 = vpop.permute.xlu0 %4884
      %4886 = vrot.lane.b32.xlu0 %v3433, 112
      %v4887 = vpop.permute.xlu0 %4886
      %4888 = vrot.lane.b32.xlu0 %v3421, 80
      %v4889 = vpop.permute.xlu0 %4888
      %4890 = vrot.lane.b32.xlu0 %v3424, 80
      %v4891 = vpop.permute.xlu0 %4890
      %4892 = vrot.lane.b32.xlu0 %v3427, 80
      %v4893 = vpop.permute.xlu0 %4892
      %4894 = vrot.lane.b32.xlu0 %v3430, 80
      %v4895 = vpop.permute.xlu0 %4894
      %4896 = vrot.lane.b32.xlu0 %v3433, 80
      %v4897 = vpop.permute.xlu0 %4896
      %v4898 = vsel %vm3457, %v4879, 0
      %v4900 = vsel %vm3457, %v4881, 0
      %v4902 = vsel %vm3457, %v4883, 0
      %v4904 = vsel %vm3457, %v4885, 0
      %v4906 = vsel %vm3457, %v4887, 0
      %v4908 = vsel %vm3457, %v4889, 0
      %v4910 = vsel %vm3457, %v4891, 0
      %v4912 = vsel %vm3457, %v4893, 0
      %v4914 = vsel %vm3457, %v4895, 0
      %v4916 = vsel %vm3457, %v4897, 0
      %4918 = vmatpush.xpose.msra.mxu0 0.0
      %4919 = vmatpush.xpose.msra.mxu0 0.0
      %4920 = vmatpush.xpose.msra.mxu0 0.0
      %4921 = vmatpush.xpose.msra.mxu0 0.0
      %4922 = vmatpush.xpose.msra.mxu0 0.0
      %4923 = vmatpush.xpose.msra.mxu0 0.0
      %4924 = vmatpush.xpose.msra.mxu0 0.0
      %4925 = vmatpush.xpose.msra.mxu0 0.0
      %4926 = vmatpush.xpose.msra.mxu0 0.0
      %4927 = vmatpush.xpose.msra.mxu0 0.0
      %4928 = vmatpush.xpose.msra.mxu0 0.0
      %4929 = vmatpush.xpose.msra.mxu0 %v4916
      %4930 = vmatpush.xpose.msra.mxu0 %v4914
      %4931 = vmatpush.xpose.msra.mxu0 %v4912
      %4932 = vmatpush.xpose.msra.mxu0 %v4910
      %4933 = vmatpush.xpose.msra.mxu0 %v4908
      %4934 = vmatmul.f32.gmra.mxu0 %v4898
      %v4935 = vpop.f32.mrf.mxu0
      %v4936 = vadd.f32 %v3088, %v4935
      %4937 = vmatmul.f32.gmra.mxu0 %v4900
      %v4938 = vpop.f32.mrf.mxu0
      %v4939 = vadd.f32 %v3088, %v4938
      %4940 = vmatmul.f32.gmra.mxu0 %v4902
      %v4941 = vpop.f32.mrf.mxu0
      %v4942 = vadd.f32 %v3088, %v4941
      %4943 = vmatmul.f32.gmra.mxu0 %v4904
      %v4944 = vpop.f32.mrf.mxu0
      %v4945 = vadd.f32 %v3088, %v4944
      %4946 = vmatmul.f32.gmra.mxu0 %v4906
      %v4947 = vpop.f32.mrf.mxu0
      %v4948 = vadd.f32 %v3088, %v4947
      %4949 = vdwg.mxu0
      %v4950 = vsel %vm3510, %v4936, -inf
      %4951 = vmax.xlane.f32.xlu0 %v4950
      %v4952 = vpop.xlane.xlu0 %4951
      %v4953 = vsel %vm3510, %v4939, -inf
      %4954 = vmax.xlane.f32.xlu0 %v4953
      %v4955 = vpop.xlane.xlu0 %4954
      %v4956 = vsel %vm3510, %v4942, -inf
      %4957 = vmax.xlane.f32.xlu0 %v4956
      %v4958 = vpop.xlane.xlu0 %4957
      %v4959 = vsel %vm3510, %v4945, -inf
      %4960 = vmax.xlane.f32.xlu0 %v4959
      %v4961 = vpop.xlane.xlu0 %4960
      %v4962 = vsel %vm3510, %v4948, -inf
      %4963 = vmax.xlane.f32.xlu0 %v4962
      %v4964 = vpop.xlane.xlu0 %4963
      %v4965 = vsub.f32 %v4936, %v4952
      %v4966 = vsub.f32 %v4939, %v4955
      %v4967 = vsub.f32 %v4942, %v4958
      %v4968 = vsub.f32 %v4945, %v4961
      %v4969 = vsub.f32 %v4948, %v4964
      %v4970 = vmul.f32 %v4965, 1.442695
      %v4971 = vpow.pop %v4970
      %v4972 = vmul.f32 %v4966, 1.442695
      %v4973 = vpow.pop %v4972
      %v4974 = vmul.f32 %v4967, 1.442695
      %v4975 = vpow.pop %v4974
      %v4976 = vmul.f32 %v4968, 1.442695
      %v4977 = vpow.pop %v4976
      %v4978 = vmul.f32 %v4969, 1.442695
      %v4979 = vpow.pop %v4978
      %v4980 = vsel %vm3510, %v4971, 0.0
      %4981 = vadd.xlane.f32.xlu0 %v4980
      %v4982 = vpop.xlane.xlu0 %4981
      %v4983 = vsel %vm3510, %v4973, 0.0
      %4984 = vadd.xlane.f32.xlu0 %v4983
      %v4985 = vpop.xlane.xlu0 %4984
      %v4986 = vsel %vm3510, %v4975, 0.0
      %4987 = vadd.xlane.f32.xlu0 %v4986
      %v4988 = vpop.xlane.xlu0 %4987
      %v4989 = vsel %vm3510, %v4977, 0.0
      %4990 = vadd.xlane.f32.xlu0 %v4989
      %v4991 = vpop.xlane.xlu0 %4990
      %v4992 = vsel %vm3510, %v4979, 0.0
      %4993 = vadd.xlane.f32.xlu0 %v4992
      %v4994 = vpop.xlane.xlu0 %4993
      %v4995 = vrcp.pop %v4982
      %v4996 = vrcp.pop %v4985
      %v4997 = vrcp.pop %v4988
      %v4998 = vrcp.pop %v4991
      %v4999 = vrcp.pop %v4994
      %v5000 = vmul.f32 %v4971, %v4995
      %v5001 = vmul.f32 %v4973, %v4996
      %v5002 = vmul.f32 %v4975, %v4997
      %v5003 = vmul.f32 %v4977, %v4998
      %v5004 = vmul.f32 %v4979, %v4999
      %5005 = vrot.lane.b32.xlu0 %v3421, 48
      %v5006 = vpop.permute.xlu0 %5005
      %5007 = vrot.lane.b32.xlu0 %v3424, 48
      %v5008 = vpop.permute.xlu0 %5007
      %5009 = vrot.lane.b32.xlu0 %v3427, 48
      %v5010 = vpop.permute.xlu0 %5009
      %5011 = vrot.lane.b32.xlu0 %v3430, 48
      %v5012 = vpop.permute.xlu0 %5011
      %5013 = vrot.lane.b32.xlu0 %v3433, 48
      %v5014 = vpop.permute.xlu0 %5013
      %v5021 = vsel %vm3510, %v5000, 0
      %v5024 = vsel %vm3510, %v5001, 0
      %v5027 = vsel %vm3510, %v5002, 0
      %v5030 = vsel %vm3510, %v5003, 0
      %v5033 = vsel %vm3510, %v5004, 0
      %5035 = vmatpush.msra.mxu0 0.0
      %5036 = vmatpush.msra.mxu0 0.0
      %5037 = vmatpush.msra.mxu0 0.0
      %5038 = vmatpush.msra.mxu0 0.0
      %5039 = vmatpush.msra.mxu0 0.0
      %5040 = vmatpush.msra.mxu0 0.0
      %5041 = vmatpush.msra.mxu0 0.0
      %5042 = vmatpush.msra.mxu0 0.0
      %5043 = vmatpush.msra.mxu0 0.0
      %5044 = vmatpush.msra.mxu0 0.0
      %5045 = vmatpush.msra.mxu0 0.0
      %5046 = vmatpush.msra.mxu0 %v5014
      %5047 = vmatpush.msra.mxu0 %v5012
      %5048 = vmatpush.msra.mxu0 %v5010
      %5049 = vmatpush.msra.mxu0 %v5008
      %5050 = vmatpush.msra.mxu0 %v5006
      %5051 = vmatmul.f32.gmra.mxu0 %v5021
      %v5052 = vpop.f32.mrf.mxu0
      %v5053 = vadd.f32 0.0, %v5052
      %5054 = vmatmul.f32.gmra.mxu0 %v5024
      %v5055 = vpop.f32.mrf.mxu0
      %v5056 = vadd.f32 0.0, %v5055
      %5057 = vmatmul.f32.gmra.mxu0 %v5027
      %v5058 = vpop.f32.mrf.mxu0
      %v5059 = vadd.f32 0.0, %v5058
      %5060 = vmatmul.f32.gmra.mxu0 %v5030
      %v5061 = vpop.f32.mrf.mxu0
      %v5062 = vadd.f32 0.0, %v5061
      %5063 = vmatmul.f32.gmra.mxu0 %v5033
      %v5064 = vpop.f32.mrf.mxu0
      %v5065 = vadd.f32 0.0, %v5064
      %5066 = vdwg.mxu0
      %v5068 = vsel %vm3457, %v5053, 0
      %v5071 = vsel %vm3457, %v5056, 0
      %v5074 = vsel %vm3457, %v5059, 0
      %v5077 = vsel %vm3457, %v5062, 0
      %v5080 = vsel %vm3457, %v5065, 0
      %5082 = vmatpush.msra.mxu0 0.0
      %5083 = vmatpush.msra.mxu0 0.0
      %5084 = vmatpush.msra.mxu0 0.0
      %5085 = vmatpush.msra.mxu0 0.0
      %5086 = vmatpush.msra.mxu0 0.0
      %5087 = vmatpush.msra.mxu0 0.0
      %5088 = vmatpush.msra.mxu0 0.0
      %5089 = vmatpush.msra.mxu0 0.0
      %5090 = vmatpush.msra.mxu0 0.0
      %5091 = vmatpush.msra.mxu0 0.0
      %5092 = vmatpush.msra.mxu0 0.0
      %5093 = vmatpush.msra.mxu0 0.0
      %5094 = vmatpush.msra.mxu0 0.0
      %5095 = vmatpush.msra.mxu0 0.0
      %5096 = vmatpush.msra.mxu0 0.0
      %5097 = vmatpush.msra.mxu0 %v3438
      %5098 = vmatmul.f32.gmra.mxu0 %v5068
      %v5099 = vpop.f32.mrf.mxu0
      %v5100 = vadd.f32 0.0, %v5099
      %5101 = vmatmul.f32.gmra.mxu0 %v5071
      %v5102 = vpop.f32.mrf.mxu0
      %v5103 = vadd.f32 0.0, %v5102
      %5104 = vmatmul.f32.gmra.mxu0 %v5074
      %v5105 = vpop.f32.mrf.mxu0
      %v5106 = vadd.f32 0.0, %v5105
      %5107 = vmatmul.f32.gmra.mxu0 %v5077
      %v5108 = vpop.f32.mrf.mxu0
      %v5109 = vadd.f32 0.0, %v5108
      %5110 = vmatmul.f32.gmra.mxu0 %v5080
      %v5111 = vpop.f32.mrf.mxu0
      %v5112 = vadd.f32 0.0, %v5111
      %5113 = vdwg.mxu0
      %v5114 = vadd.f32 %v4864, %v5100
      %v5115 = vadd.f32 %v4867, %v5103
      %v5116 = vadd.f32 %v4870, %v5106
      %v5117 = vadd.f32 %v4873, %v5109
      %v5118 = vadd.f32 %v4876, %v5112
      %5119 = vrot.lane.b32.xlu0 %v3421, 104
      %v5120 = vpop.permute.xlu0 %5119
      %5121 = vrot.lane.b32.xlu0 %v3424, 104
      %v5122 = vpop.permute.xlu0 %5121
      %5123 = vrot.lane.b32.xlu0 %v3427, 104
      %v5124 = vpop.permute.xlu0 %5123
      %5125 = vrot.lane.b32.xlu0 %v3430, 104
      %v5126 = vpop.permute.xlu0 %5125
      %5127 = vrot.lane.b32.xlu0 %v3433, 104
      %v5128 = vpop.permute.xlu0 %5127
      %5129 = vrot.lane.b32.xlu0 %v3421, 72
      %v5130 = vpop.permute.xlu0 %5129
      %5131 = vrot.lane.b32.xlu0 %v3424, 72
      %v5132 = vpop.permute.xlu0 %5131
      %5133 = vrot.lane.b32.xlu0 %v3427, 72
      %v5134 = vpop.permute.xlu0 %5133
      %5135 = vrot.lane.b32.xlu0 %v3430, 72
      %v5136 = vpop.permute.xlu0 %5135
      %5137 = vrot.lane.b32.xlu0 %v3433, 72
      %v5138 = vpop.permute.xlu0 %5137
      %v5139 = vsel %vm3457, %v5120, 0
      %v5141 = vsel %vm3457, %v5122, 0
      %v5143 = vsel %vm3457, %v5124, 0
      %v5145 = vsel %vm3457, %v5126, 0
      %v5147 = vsel %vm3457, %v5128, 0
      %v5149 = vsel %vm3457, %v5130, 0
      %v5151 = vsel %vm3457, %v5132, 0
      %v5153 = vsel %vm3457, %v5134, 0
      %v5155 = vsel %vm3457, %v5136, 0
      %v5157 = vsel %vm3457, %v5138, 0
      %5159 = vmatpush.xpose.msra.mxu0 0.0
      %5160 = vmatpush.xpose.msra.mxu0 0.0
      %5161 = vmatpush.xpose.msra.mxu0 0.0
      %5162 = vmatpush.xpose.msra.mxu0 0.0
      %5163 = vmatpush.xpose.msra.mxu0 0.0
      %5164 = vmatpush.xpose.msra.mxu0 0.0
      %5165 = vmatpush.xpose.msra.mxu0 0.0
      %5166 = vmatpush.xpose.msra.mxu0 0.0
      %5167 = vmatpush.xpose.msra.mxu0 0.0
      %5168 = vmatpush.xpose.msra.mxu0 0.0
      %5169 = vmatpush.xpose.msra.mxu0 0.0
      %5170 = vmatpush.xpose.msra.mxu0 %v5157
      %5171 = vmatpush.xpose.msra.mxu0 %v5155
      %5172 = vmatpush.xpose.msra.mxu0 %v5153
      %5173 = vmatpush.xpose.msra.mxu0 %v5151
      %5174 = vmatpush.xpose.msra.mxu0 %v5149
      %5175 = vmatmul.f32.gmra.mxu0 %v5139
      %v5176 = vpop.f32.mrf.mxu0
      %v5177 = vadd.f32 %v3088, %v5176
      %5178 = vmatmul.f32.gmra.mxu0 %v5141
      %v5179 = vpop.f32.mrf.mxu0
      %v5180 = vadd.f32 %v3088, %v5179
      %5181 = vmatmul.f32.gmra.mxu0 %v5143
      %v5182 = vpop.f32.mrf.mxu0
      %v5183 = vadd.f32 %v3088, %v5182
      %5184 = vmatmul.f32.gmra.mxu0 %v5145
      %v5185 = vpop.f32.mrf.mxu0
      %v5186 = vadd.f32 %v3088, %v5185
      %5187 = vmatmul.f32.gmra.mxu0 %v5147
      %v5188 = vpop.f32.mrf.mxu0
      %v5189 = vadd.f32 %v3088, %v5188
      %5190 = vdwg.mxu0
      %v5191 = vsel %vm3510, %v5177, -inf
      %5192 = vmax.xlane.f32.xlu0 %v5191
      %v5193 = vpop.xlane.xlu0 %5192
      %v5194 = vsel %vm3510, %v5180, -inf
      %5195 = vmax.xlane.f32.xlu0 %v5194
      %v5196 = vpop.xlane.xlu0 %5195
      %v5197 = vsel %vm3510, %v5183, -inf
      %5198 = vmax.xlane.f32.xlu0 %v5197
      %v5199 = vpop.xlane.xlu0 %5198
      %v5200 = vsel %vm3510, %v5186, -inf
      %5201 = vmax.xlane.f32.xlu0 %v5200
      %v5202 = vpop.xlane.xlu0 %5201
      %v5203 = vsel %vm3510, %v5189, -inf
      %5204 = vmax.xlane.f32.xlu0 %v5203
      %v5205 = vpop.xlane.xlu0 %5204
      %v5206 = vsub.f32 %v5177, %v5193
      %v5207 = vsub.f32 %v5180, %v5196
      %v5208 = vsub.f32 %v5183, %v5199
      %v5209 = vsub.f32 %v5186, %v5202
      %v5210 = vsub.f32 %v5189, %v5205
      %v5211 = vmul.f32 %v5206, 1.442695
      %v5212 = vpow.pop %v5211
      %v5213 = vmul.f32 %v5207, 1.442695
      %v5214 = vpow.pop %v5213
      %v5215 = vmul.f32 %v5208, 1.442695
      %v5216 = vpow.pop %v5215
      %v5217 = vmul.f32 %v5209, 1.442695
      %v5218 = vpow.pop %v5217
      %v5219 = vmul.f32 %v5210, 1.442695
      %v5220 = vpow.pop %v5219
      %v5221 = vsel %vm3510, %v5212, 0.0
      %5222 = vadd.xlane.f32.xlu0 %v5221
      %v5223 = vpop.xlane.xlu0 %5222
      %v5224 = vsel %vm3510, %v5214, 0.0
      %5225 = vadd.xlane.f32.xlu0 %v5224
      %v5226 = vpop.xlane.xlu0 %5225
      %v5227 = vsel %vm3510, %v5216, 0.0
      %5228 = vadd.xlane.f32.xlu0 %v5227
      %v5229 = vpop.xlane.xlu0 %5228
      %v5230 = vsel %vm3510, %v5218, 0.0
      %5231 = vadd.xlane.f32.xlu0 %v5230
      %v5232 = vpop.xlane.xlu0 %5231
      %v5233 = vsel %vm3510, %v5220, 0.0
      %5234 = vadd.xlane.f32.xlu0 %v5233
      %v5235 = vpop.xlane.xlu0 %5234
      %v5236 = vrcp.pop %v5223
      %v5237 = vrcp.pop %v5226
      %v5238 = vrcp.pop %v5229
      %v5239 = vrcp.pop %v5232
      %v5240 = vrcp.pop %v5235
      %v5241 = vmul.f32 %v5212, %v5236
      %v5242 = vmul.f32 %v5214, %v5237
      %v5243 = vmul.f32 %v5216, %v5238
      %v5244 = vmul.f32 %v5218, %v5239
      %v5245 = vmul.f32 %v5220, %v5240
      %5246 = vrot.lane.b32.xlu0 %v3421, 40
      %v5247 = vpop.permute.xlu0 %5246
      %5248 = vrot.lane.b32.xlu0 %v3424, 40
      %v5249 = vpop.permute.xlu0 %5248
      %5250 = vrot.lane.b32.xlu0 %v3427, 40
      %v5251 = vpop.permute.xlu0 %5250
      %5252 = vrot.lane.b32.xlu0 %v3430, 40
      %v5253 = vpop.permute.xlu0 %5252
      %5254 = vrot.lane.b32.xlu0 %v3433, 40
      %v5255 = vpop.permute.xlu0 %5254
      %v5262 = vsel %vm3510, %v5241, 0
      %v5265 = vsel %vm3510, %v5242, 0
      %v5268 = vsel %vm3510, %v5243, 0
      %v5271 = vsel %vm3510, %v5244, 0
      %v5274 = vsel %vm3510, %v5245, 0
      %5276 = vmatpush.msra.mxu0 0.0
      %5277 = vmatpush.msra.mxu0 0.0
      %5278 = vmatpush.msra.mxu0 0.0
      %5279 = vmatpush.msra.mxu0 0.0
      %5280 = vmatpush.msra.mxu0 0.0
      %5281 = vmatpush.msra.mxu0 0.0
      %5282 = vmatpush.msra.mxu0 0.0
      %5283 = vmatpush.msra.mxu0 0.0
      %5284 = vmatpush.msra.mxu0 0.0
      %5285 = vmatpush.msra.mxu0 0.0
      %5286 = vmatpush.msra.mxu0 0.0
      %5287 = vmatpush.msra.mxu0 %v5255
      %5288 = vmatpush.msra.mxu0 %v5253
      %5289 = vmatpush.msra.mxu0 %v5251
      %5290 = vmatpush.msra.mxu0 %v5249
      %5291 = vmatpush.msra.mxu0 %v5247
      %5292 = vmatmul.f32.gmra.mxu0 %v5262
      %v5293 = vpop.f32.mrf.mxu0
      %v5294 = vadd.f32 0.0, %v5293
      %5295 = vmatmul.f32.gmra.mxu0 %v5265
      %v5296 = vpop.f32.mrf.mxu0
      %v5297 = vadd.f32 0.0, %v5296
      %5298 = vmatmul.f32.gmra.mxu0 %v5268
      %v5299 = vpop.f32.mrf.mxu0
      %v5300 = vadd.f32 0.0, %v5299
      %5301 = vmatmul.f32.gmra.mxu0 %v5271
      %v5302 = vpop.f32.mrf.mxu0
      %v5303 = vadd.f32 0.0, %v5302
      %5304 = vmatmul.f32.gmra.mxu0 %v5274
      %v5305 = vpop.f32.mrf.mxu0
      %v5306 = vadd.f32 0.0, %v5305
      %5307 = vdwg.mxu0
      %v5309 = vsel %vm3457, %v5294, 0
      %v5312 = vsel %vm3457, %v5297, 0
      %v5315 = vsel %vm3457, %v5300, 0
      %v5318 = vsel %vm3457, %v5303, 0
      %v5321 = vsel %vm3457, %v5306, 0
      %5323 = vmatpush.msra.mxu0 0.0
      %5324 = vmatpush.msra.mxu0 0.0
      %5325 = vmatpush.msra.mxu0 0.0
      %5326 = vmatpush.msra.mxu0 0.0
      %5327 = vmatpush.msra.mxu0 0.0
      %5328 = vmatpush.msra.mxu0 0.0
      %5329 = vmatpush.msra.mxu0 0.0
      %5330 = vmatpush.msra.mxu0 0.0
      %5331 = vmatpush.msra.mxu0 0.0
      %5332 = vmatpush.msra.mxu0 0.0
      %5333 = vmatpush.msra.mxu0 0.0
      %5334 = vmatpush.msra.mxu0 0.0
      %5335 = vmatpush.msra.mxu0 0.0
      %5336 = vmatpush.msra.mxu0 0.0
      %5337 = vmatpush.msra.mxu0 0.0
      %5338 = vmatpush.msra.mxu0 %v3439
      %5339 = vmatmul.f32.gmra.mxu0 %v5309
      %v5340 = vpop.f32.mrf.mxu0
      %v5341 = vadd.f32 0.0, %v5340
      %5342 = vmatmul.f32.gmra.mxu0 %v5312
      %v5343 = vpop.f32.mrf.mxu0
      %v5344 = vadd.f32 0.0, %v5343
      %5345 = vmatmul.f32.gmra.mxu0 %v5315
      %v5346 = vpop.f32.mrf.mxu0
      %v5347 = vadd.f32 0.0, %v5346
      %5348 = vmatmul.f32.gmra.mxu0 %v5318
      %v5349 = vpop.f32.mrf.mxu0
      %v5350 = vadd.f32 0.0, %v5349
      %5351 = vmatmul.f32.gmra.mxu0 %v5321
      %v5352 = vpop.f32.mrf.mxu0
      %v5353 = vadd.f32 0.0, %v5352
      %5354 = vdwg.mxu0
      %v5355 = vadd.f32 %v5114, %v5341
      %v5356 = vadd.f32 %v5115, %v5344
      %v5357 = vadd.f32 %v5116, %v5347
      %v5358 = vadd.f32 %v5117, %v5350
      %v5359 = vadd.f32 %v5118, %v5353
      %v5360 = vadd.f32 %v3080, %v5355
      %v5361 = vadd.f32 %v3081, %v5356
      %v5362 = vadd.f32 %v3082, %v5357
      %v5363 = vadd.f32 %v3083, %v5358
      %v5364 = vadd.f32 %v3084, %v5359
      %v5365 = vadd.f32 %v5360, %v4399
      %v5366 = vadd.f32 %v5361, %v4399
      %v5367 = vadd.f32 %v5362, %v4399
      %v5368 = vadd.f32 %v5363, %v4399
      %v5369 = vadd.f32 %v5364, %v4399
      %5370 = vst.msk [vmem:[#allocation2 + $0x28] sm:$0xff] %vm3093, %v5365
      %5371 = vst.msk [vmem:[#allocation2 + $0x30] sm:$0xff] %vm3093, %v5366
      %5372 = vst.msk [vmem:[#allocation2 + $0x38] sm:$0xff] %vm3093, %v5367
      %5373 = vst.msk [vmem:[#allocation2 + $0x40] sm:$0xff] %vm3093, %v5368
      %5374 = vst.msk [vmem:[#allocation2 + $0x48] sm:$0xff] %vm3093, %v5369
      %v5375 = vld [vmem:[#allocation2] sm:$0xff]
      %v5376 = vld [vmem:[#allocation2 + $0x8] sm:$0xff]
      %v5377 = vld [vmem:[#allocation2 + $0x10] sm:$0xff]
      %v5378 = vld [vmem:[#allocation2 + $0x18] sm:$0xff]
      %v5379 = vld [vmem:[#allocation2 + $0x20] sm:$0xff]
      %v5380 = vld [vmem:[#allocation2 + $0x28] sm:$0xff]
      %v5381 = vld [vmem:[#allocation2 + $0x30] sm:$0xff]
      %v5382 = vld [vmem:[#allocation2 + $0x38] sm:$0xff]
      %v5383 = vld [vmem:[#allocation2 + $0x40] sm:$0xff]
      %v5384 = vld [vmem:[#allocation2 + $0x48] sm:$0xff]
      %s5385 = scalar_lea.vmem %s13, %s30
      %v5386 = vld [vmem:[%s5385] sm:$0x1]
      %s5387 = scalar_lea.vmem %s14, %s30
      %v5388 = vld [vmem:[%s5387] sm:$0x1]
      %v5389 = vsel %vm3093, %v5375, 0.0
      %5390 = vadd.xlane.f32.xlu0 %v5389
      %v5391 = vpop.xlane.xlu0 %5390
      %v5392 = vsel %vm3093, %v5376, 0.0
      %5393 = vadd.xlane.f32.xlu0 %v5392
      %v5394 = vpop.xlane.xlu0 %5393
      %v5395 = vsel %vm3093, %v5377, 0.0
      %5396 = vadd.xlane.f32.xlu0 %v5395
      %v5397 = vpop.xlane.xlu0 %5396
      %v5398 = vsel %vm3093, %v5378, 0.0
      %5399 = vadd.xlane.f32.xlu0 %v5398
      %v5400 = vpop.xlane.xlu0 %5399
      %v5401 = vsel %vm3093, %v5379, 0.0
      %5402 = vadd.xlane.f32.xlu0 %v5401
      %v5403 = vpop.xlane.xlu0 %5402
      %v5404 = vsel %vm3093, %v5380, 0.0
      %5405 = vadd.xlane.f32.xlu0 %v5404
      %v5406 = vpop.xlane.xlu0 %5405
      %v5407 = vsel %vm3093, %v5381, 0.0
      %5408 = vadd.xlane.f32.xlu0 %v5407
      %v5409 = vpop.xlane.xlu0 %5408
      %v5410 = vsel %vm3093, %v5382, 0.0
      %5411 = vadd.xlane.f32.xlu0 %v5410
      %v5412 = vpop.xlane.xlu0 %5411
      %v5413 = vsel %vm3093, %v5383, 0.0
      %5414 = vadd.xlane.f32.xlu0 %v5413
      %v5415 = vpop.xlane.xlu0 %5414
      %v5416 = vsel %vm3093, %v5384, 0.0
      %5417 = vadd.xlane.f32.xlu0 %v5416
      %v5418 = vpop.xlane.xlu0 %5417
      %v5419 = vmul.f32 %v5391, %v3130
      %v5420 = vmul.f32 %v5394, %v3130
      %v5421 = vmul.f32 %v5397, %v3130
      %v5422 = vmul.f32 %v5400, %v3130
      %v5423 = vmul.f32 %v5403, %v3130
      %v5424 = vmul.f32 %v5406, %v3130
      %v5425 = vmul.f32 %v5409, %v3130
      %v5426 = vmul.f32 %v5412, %v3130
      %v5427 = vmul.f32 %v5415, %v3130
      %v5428 = vmul.f32 %v5418, %v3130
      %v5429 = vsub.f32 %v5375, %v5419
      %v5430 = vsub.f32 %v5376, %v5420
      %v5431 = vsub.f32 %v5377, %v5421
      %v5432 = vsub.f32 %v5378, %v5422
      %v5433 = vsub.f32 %v5379, %v5423
      %v5434 = vsub.f32 %v5380, %v5424
      %v5435 = vsub.f32 %v5381, %v5425
      %v5436 = vsub.f32 %v5382, %v5426
      %v5437 = vsub.f32 %v5383, %v5427
      %v5438 = vsub.f32 %v5384, %v5428
      %v5439 = vmul.f32 %v5429, %v5429
      %v5440 = vmul.f32 %v5430, %v5430
      %v5441 = vmul.f32 %v5431, %v5431
      %v5442 = vmul.f32 %v5432, %v5432
      %v5443 = vmul.f32 %v5433, %v5433
      %v5444 = vmul.f32 %v5434, %v5434
      %v5445 = vmul.f32 %v5435, %v5435
      %v5446 = vmul.f32 %v5436, %v5436
      %v5447 = vmul.f32 %v5437, %v5437
      %v5448 = vmul.f32 %v5438, %v5438
      %v5449 = vsel %vm3093, %v5439, 0.0
      %5450 = vadd.xlane.f32.xlu0 %v5449
      %v5451 = vpop.xlane.xlu0 %5450
      %v5452 = vsel %vm3093, %v5440, 0.0
      %5453 = vadd.xlane.f32.xlu0 %v5452
      %v5454 = vpop.xlane.xlu0 %5453
      %v5455 = vsel %vm3093, %v5441, 0.0
      %5456 = vadd.xlane.f32.xlu0 %v5455
      %v5457 = vpop.xlane.xlu0 %5456
      %v5458 = vsel %vm3093, %v5442, 0.0
      %5459 = vadd.xlane.f32.xlu0 %v5458
      %v5460 = vpop.xlane.xlu0 %5459
      %v5461 = vsel %vm3093, %v5443, 0.0
      %5462 = vadd.xlane.f32.xlu0 %v5461
      %v5463 = vpop.xlane.xlu0 %5462
      %v5464 = vsel %vm3093, %v5444, 0.0
      %5465 = vadd.xlane.f32.xlu0 %v5464
      %v5466 = vpop.xlane.xlu0 %5465
      %v5467 = vsel %vm3093, %v5445, 0.0
      %5468 = vadd.xlane.f32.xlu0 %v5467
      %v5469 = vpop.xlane.xlu0 %5468
      %v5470 = vsel %vm3093, %v5446, 0.0
      %5471 = vadd.xlane.f32.xlu0 %v5470
      %v5472 = vpop.xlane.xlu0 %5471
      %v5473 = vsel %vm3093, %v5447, 0.0
      %5474 = vadd.xlane.f32.xlu0 %v5473
      %v5475 = vpop.xlane.xlu0 %5474
      %v5476 = vsel %vm3093, %v5448, 0.0
      %5477 = vadd.xlane.f32.xlu0 %v5476
      %v5478 = vpop.xlane.xlu0 %5477
      %v5479 = vmul.f32 %v5451, %v3130
      %v5480 = vmul.f32 %v5454, %v3130
      %v5481 = vmul.f32 %v5457, %v3130
      %v5482 = vmul.f32 %v5460, %v3130
      %v5483 = vmul.f32 %v5463, %v3130
      %v5484 = vmul.f32 %v5466, %v3130
      %v5485 = vmul.f32 %v5469, %v3130
      %v5486 = vmul.f32 %v5472, %v3130
      %v5487 = vmul.f32 %v5475, %v3130
      %v5488 = vmul.f32 %v5478, %v3130
      %v5489 = vadd.f32 %v5479, 1e-05
      %v5490 = vadd.f32 %v5480, 1e-05
      %v5491 = vadd.f32 %v5481, 1e-05
      %v5492 = vadd.f32 %v5482, 1e-05
      %v5493 = vadd.f32 %v5483, 1e-05
      %v5494 = vadd.f32 %v5484, 1e-05
      %v5495 = vadd.f32 %v5485, 1e-05
      %v5496 = vadd.f32 %v5486, 1e-05
      %v5497 = vadd.f32 %v5487, 1e-05
      %v5498 = vadd.f32 %v5488, 1e-05
      %v5499 = vrsqrt.pop %v5489
      %v5500 = vmul.f32 %v5499, %v5489
      %v5501 = vmul.f32 %v5500, %v5499
      %v5502 = vmul.f32 0.5, %v5501
      %v5503 = vsub.f32 1.5, %v5502
      %v5504 = vmul.f32 %v5499, %v5503
      %vm5505 = vweird.f32 %v5489
      %vm5506 = vweird.f32 %v5499
      %vm5507 = vmor %vm5505, %vm5506
      %v5508 = vsel %vm5507, %v5499, %v5504
      %v5509 = vrsqrt.pop %v5490
      %v5510 = vmul.f32 %v5509, %v5490
      %v5511 = vmul.f32 %v5510, %v5509
      %v5512 = vmul.f32 0.5, %v5511
      %v5513 = vsub.f32 1.5, %v5512
      %v5514 = vmul.f32 %v5509, %v5513
      %vm5515 = vweird.f32 %v5490
      %vm5516 = vweird.f32 %v5509
      %vm5517 = vmor %vm5515, %vm5516
      %v5518 = vsel %vm5517, %v5509, %v5514
      %v5519 = vrsqrt.pop %v5491
      %v5520 = vmul.f32 %v5519, %v5491
      %v5521 = vmul.f32 %v5520, %v5519
      %v5522 = vmul.f32 0.5, %v5521
      %v5523 = vsub.f32 1.5, %v5522
      %v5524 = vmul.f32 %v5519, %v5523
      %vm5525 = vweird.f32 %v5491
      %vm5526 = vweird.f32 %v5519
      %vm5527 = vmor %vm5525, %vm5526
      %v5528 = vsel %vm5527, %v5519, %v5524
      %v5529 = vrsqrt.pop %v5492
      %v5530 = vmul.f32 %v5529, %v5492
      %v5531 = vmul.f32 %v5530, %v5529
      %v5532 = vmul.f32 0.5, %v5531
      %v5533 = vsub.f32 1.5, %v5532
      %v5534 = vmul.f32 %v5529, %v5533
      %vm5535 = vweird.f32 %v5492
      %vm5536 = vweird.f32 %v5529
      %vm5537 = vmor %vm5535, %vm5536
      %v5538 = vsel %vm5537, %v5529, %v5534
      %v5539 = vrsqrt.pop %v5493
      %v5540 = vmul.f32 %v5539, %v5493
      %v5541 = vmul.f32 %v5540, %v5539
      %v5542 = vmul.f32 0.5, %v5541
      %v5543 = vsub.f32 1.5, %v5542
      %v5544 = vmul.f32 %v5539, %v5543
      %vm5545 = vweird.f32 %v5493
      %vm5546 = vweird.f32 %v5539
      %vm5547 = vmor %vm5545, %vm5546
      %v5548 = vsel %vm5547, %v5539, %v5544
      %v5549 = vrsqrt.pop %v5494
      %v5550 = vmul.f32 %v5549, %v5494
      %v5551 = vmul.f32 %v5550, %v5549
      %v5552 = vmul.f32 0.5, %v5551
      %v5553 = vsub.f32 1.5, %v5552
      %v5554 = vmul.f32 %v5549, %v5553
      %vm5555 = vweird.f32 %v5494
      %vm5556 = vweird.f32 %v5549
      %vm5557 = vmor %vm5555, %vm5556
      %v5558 = vsel %vm5557, %v5549, %v5554
      %v5559 = vrsqrt.pop %v5495
      %v5560 = vmul.f32 %v5559, %v5495
      %v5561 = vmul.f32 %v5560, %v5559
      %v5562 = vmul.f32 0.5, %v5561
      %v5563 = vsub.f32 1.5, %v5562
      %v5564 = vmul.f32 %v5559, %v5563
      %vm5565 = vweird.f32 %v5495
      %vm5566 = vweird.f32 %v5559
      %vm5567 = vmor %vm5565, %vm5566
      %v5568 = vsel %vm5567, %v5559, %v5564
      %v5569 = vrsqrt.pop %v5496
      %v5570 = vmul.f32 %v5569, %v5496
      %v5571 = vmul.f32 %v5570, %v5569
      %v5572 = vmul.f32 0.5, %v5571
      %v5573 = vsub.f32 1.5, %v5572
      %v5574 = vmul.f32 %v5569, %v5573
      %vm5575 = vweird.f32 %v5496
      %vm5576 = vweird.f32 %v5569
      %vm5577 = vmor %vm5575, %vm5576
      %v5578 = vsel %vm5577, %v5569, %v5574
      %v5579 = vrsqrt.pop %v5497
      %v5580 = vmul.f32 %v5579, %v5497
      %v5581 = vmul.f32 %v5580, %v5579
      %v5582 = vmul.f32 0.5, %v5581
      %v5583 = vsub.f32 1.5, %v5582
      %v5584 = vmul.f32 %v5579, %v5583
      %vm5585 = vweird.f32 %v5497
      %vm5586 = vweird.f32 %v5579
      %vm5587 = vmor %vm5585, %vm5586
      %v5588 = vsel %vm5587, %v5579, %v5584
      %v5589 = vrsqrt.pop %v5498
      %v5590 = vmul.f32 %v5589, %v5498
      %v5591 = vmul.f32 %v5590, %v5589
      %v5592 = vmul.f32 0.5, %v5591
      %v5593 = vsub.f32 1.5, %v5592
      %v5594 = vmul.f32 %v5589, %v5593
      %vm5595 = vweird.f32 %v5498
      %vm5596 = vweird.f32 %v5589
      %vm5597 = vmor %vm5595, %vm5596
      %v5598 = vsel %vm5597, %v5589, %v5594
      %v5599 = vmul.f32 %v5429, %v5508
      %v5600 = vmul.f32 %v5430, %v5518
      %v5601 = vmul.f32 %v5431, %v5528
      %v5602 = vmul.f32 %v5432, %v5538
      %v5603 = vmul.f32 %v5433, %v5548
      %v5604 = vmul.f32 %v5434, %v5558
      %v5605 = vmul.f32 %v5435, %v5568
      %v5606 = vmul.f32 %v5436, %v5578
      %v5607 = vmul.f32 %v5437, %v5588
      %v5608 = vmul.f32 %v5438, %v5598
      %v5610 = vperm.slane %v5386, 0
      %v5612 = vmul.f32 %v5599, %v5610
      %v5613 = vmul.f32 %v5600, %v5610
      %v5614 = vmul.f32 %v5601, %v5610
      %v5615 = vmul.f32 %v5602, %v5610
      %v5616 = vmul.f32 %v5603, %v5610
      %v5617 = vmul.f32 %v5604, %v5610
      %v5618 = vmul.f32 %v5605, %v5610
      %v5619 = vmul.f32 %v5606, %v5610
      %v5620 = vmul.f32 %v5607, %v5610
      %v5621 = vmul.f32 %v5608, %v5610
      %v5623 = vperm.slane %v5388, 0
      %v5625 = vadd.f32 %v5612, %v5623
      %v5626 = vadd.f32 %v5613, %v5623
      %v5627 = vadd.f32 %v5614, %v5623
      %v5628 = vadd.f32 %v5615, %v5623
      %v5629 = vadd.f32 %v5616, %v5623
      %v5630 = vadd.f32 %v5617, %v5623
      %v5631 = vadd.f32 %v5618, %v5623
      %v5632 = vadd.f32 %v5619, %v5623
      %v5633 = vadd.f32 %v5620, %v5623
      %v5634 = vadd.f32 %v5621, %v5623
      %s5635 = scalar_lea.vmem %s15, %s3347
      %v5636 = vld [vmem:[%s5635] sm:$0xff]
      %v5637 = vld [vmem:[%s5635 + $0x8] sm:$0xff]
      %v5638 = vld [vmem:[%s5635 + $0x10] sm:$0xff]
      %v5639 = vld [vmem:[%s5635 + $0x18] sm:$0xff]
      %s5640 = scalar_lea.vmem %s16, %s30
      %v5641 = vld [vmem:[%s5640] sm:$0x1]
      %v5643 = vperm.slane %v5641, 0
      %v5646 = vsel %vm3093, %v5625, 0
      %v5649 = vsel %vm3093, %v5626, 0
      %v5652 = vsel %vm3093, %v5627, 0
      %v5655 = vsel %vm3093, %v5628, 0
      %v5658 = vsel %vm3093, %v5629, 0
      %v5661 = vsel %vm3093, %v5630, 0
      %v5664 = vsel %vm3093, %v5631, 0
      %v5667 = vsel %vm3093, %v5632, 0
      %v5670 = vsel %vm3093, %v5633, 0
      %v5673 = vsel %vm3093, %v5634, 0
      %5675 = vmatpush.msra.mxu0 0.0
      %5676 = vmatpush.msra.mxu0 0.0
      %5677 = vmatpush.msra.mxu0 0.0
      %5678 = vmatpush.msra.mxu0 0.0
      %5679 = vmatpush.msra.mxu0 0.0
      %5680 = vmatpush.msra.mxu0 0.0
      %5681 = vmatpush.msra.mxu0 0.0
      %5682 = vmatpush.msra.mxu0 0.0
      %5683 = vmatpush.msra.mxu0 0.0
      %5684 = vmatpush.msra.mxu0 0.0
      %5685 = vmatpush.msra.mxu0 0.0
      %5686 = vmatpush.msra.mxu0 0.0
      %5687 = vmatpush.msra.mxu0 %v5639
      %5688 = vmatpush.msra.mxu0 %v5638
      %5689 = vmatpush.msra.mxu0 %v5637
      %5690 = vmatpush.msra.mxu0 %v5636
      %5691 = vmatmul.f32.gmra.mxu0 %v5646
      %v5692 = vpop.f32.mrf.mxu0
      %v5693 = vadd.f32 %v5643, %v5692
      %5694 = vmatmul.f32.gmra.mxu0 %v5649
      %v5695 = vpop.f32.mrf.mxu0
      %v5696 = vadd.f32 %v5643, %v5695
      %5697 = vmatmul.f32.gmra.mxu0 %v5652
      %v5698 = vpop.f32.mrf.mxu0
      %v5699 = vadd.f32 %v5643, %v5698
      %5700 = vmatmul.f32.gmra.mxu0 %v5655
      %v5701 = vpop.f32.mrf.mxu0
      %v5702 = vadd.f32 %v5643, %v5701
      %5703 = vmatmul.f32.gmra.mxu0 %v5658
      %v5704 = vpop.f32.mrf.mxu0
      %v5705 = vadd.f32 %v5643, %v5704
      %5706 = vmatmul.f32.gmra.mxu0 %v5661
      %v5707 = vpop.f32.mrf.mxu0
      %v5708 = vadd.f32 %v5643, %v5707
      %5709 = vmatmul.f32.gmra.mxu0 %v5664
      %v5710 = vpop.f32.mrf.mxu0
      %v5711 = vadd.f32 %v5643, %v5710
      %5712 = vmatmul.f32.gmra.mxu0 %v5667
      %v5713 = vpop.f32.mrf.mxu0
      %v5714 = vadd.f32 %v5643, %v5713
      %5715 = vmatmul.f32.gmra.mxu0 %v5670
      %v5716 = vpop.f32.mrf.mxu0
      %v5717 = vadd.f32 %v5643, %v5716
      %5718 = vmatmul.f32.gmra.mxu0 %v5673
      %v5719 = vpop.f32.mrf.mxu0
      %v5720 = vadd.f32 %v5643, %v5719
      %5721 = vdwg.mxu0
      %v5722 = vmul.f32 %v5693, 0.5
      %v5723 = vmul.f32 %v5696, 0.5
      %v5724 = vmul.f32 %v5699, 0.5
      %v5725 = vmul.f32 %v5702, 0.5
      %v5726 = vmul.f32 %v5705, 0.5
      %v5727 = vmul.f32 %v5708, 0.5
      %v5728 = vmul.f32 %v5711, 0.5
      %v5729 = vmul.f32 %v5714, 0.5
      %v5730 = vmul.f32 %v5717, 0.5
      %v5731 = vmul.f32 %v5720, 0.5
      %v5732 = vmul.f32 %v5693, 0.044715
      %v5733 = vmul.f32 %v5696, 0.044715
      %v5734 = vmul.f32 %v5699, 0.044715
      %v5735 = vmul.f32 %v5702, 0.044715
      %v5736 = vmul.f32 %v5705, 0.044715
      %v5737 = vmul.f32 %v5708, 0.044715
      %v5738 = vmul.f32 %v5711, 0.044715
      %v5739 = vmul.f32 %v5714, 0.044715
      %v5740 = vmul.f32 %v5717, 0.044715
      %v5741 = vmul.f32 %v5720, 0.044715
      %v5742 = vmul.f32 %v5732, %v5693
      %v5743 = vmul.f32 %v5733, %v5696
      %v5744 = vmul.f32 %v5734, %v5699
      %v5745 = vmul.f32 %v5735, %v5702
      %v5746 = vmul.f32 %v5736, %v5705
      %v5747 = vmul.f32 %v5737, %v5708
      %v5748 = vmul.f32 %v5738, %v5711
      %v5749 = vmul.f32 %v5739, %v5714
      %v5750 = vmul.f32 %v5740, %v5717
      %v5751 = vmul.f32 %v5741, %v5720
      %v5752 = vmul.f32 %v5742, %v5693
      %v5753 = vmul.f32 %v5743, %v5696
      %v5754 = vmul.f32 %v5744, %v5699
      %v5755 = vmul.f32 %v5745, %v5702
      %v5756 = vmul.f32 %v5746, %v5705
      %v5757 = vmul.f32 %v5747, %v5708
      %v5758 = vmul.f32 %v5748, %v5711
      %v5759 = vmul.f32 %v5749, %v5714
      %v5760 = vmul.f32 %v5750, %v5717
      %v5761 = vmul.f32 %v5751, %v5720
      %v5762 = vadd.f32 %v5693, %v5752
      %v5763 = vadd.f32 %v5696, %v5753
      %v5764 = vadd.f32 %v5699, %v5754
      %v5765 = vadd.f32 %v5702, %v5755
      %v5766 = vadd.f32 %v5705, %v5756
      %v5767 = vadd.f32 %v5708, %v5757
      %v5768 = vadd.f32 %v5711, %v5758
      %v5769 = vadd.f32 %v5714, %v5759
      %v5770 = vadd.f32 %v5717, %v5760
      %v5771 = vadd.f32 %v5720, %v5761
      %v5772 = vmul.f32 %v5762, 0.7978846
      %v5773 = vmul.f32 %v5763, 0.7978846
      %v5774 = vmul.f32 %v5764, 0.7978846
      %v5775 = vmul.f32 %v5765, 0.7978846
      %v5776 = vmul.f32 %v5766, 0.7978846
      %v5777 = vmul.f32 %v5767, 0.7978846
      %v5778 = vmul.f32 %v5768, 0.7978846
      %v5779 = vmul.f32 %v5769, 0.7978846
      %v5780 = vmul.f32 %v5770, 0.7978846
      %v5781 = vmul.f32 %v5771, 0.7978846
      %v5782 = vtanh.pop %v5772
      %v5783 = vtanh.pop %v5773
      %v5784 = vtanh.pop %v5774
      %v5785 = vtanh.pop %v5775
      %v5786 = vtanh.pop %v5776
      %v5787 = vtanh.pop %v5777
      %v5788 = vtanh.pop %v5778
      %v5789 = vtanh.pop %v5779
      %v5790 = vtanh.pop %v5780
      %v5791 = vtanh.pop %v5781
      %v5792 = vadd.f32 %v5782, 1.0
      %v5793 = vadd.f32 %v5783, 1.0
      %v5794 = vadd.f32 %v5784, 1.0
      %v5795 = vadd.f32 %v5785, 1.0
      %v5796 = vadd.f32 %v5786, 1.0
      %v5797 = vadd.f32 %v5787, 1.0
      %v5798 = vadd.f32 %v5788, 1.0
      %v5799 = vadd.f32 %v5789, 1.0
      %v5800 = vadd.f32 %v5790, 1.0
      %v5801 = vadd.f32 %v5791, 1.0
      %v5802 = vmul.f32 %v5722, %v5792
      %v5803 = vmul.f32 %v5723, %v5793
      %v5804 = vmul.f32 %v5724, %v5794
      %v5805 = vmul.f32 %v5725, %v5795
      %v5806 = vmul.f32 %v5726, %v5796
      %v5807 = vmul.f32 %v5727, %v5797
      %v5808 = vmul.f32 %v5728, %v5798
      %v5809 = vmul.f32 %v5729, %v5799
      %v5810 = vmul.f32 %v5730, %v5800
      %v5811 = vmul.f32 %v5731, %v5801
      %s5812 = smul.u32 %s30, 64
      %s5813 = scalar_lea.vmem %s17, %s5812
      %v5814 = vld [vmem:[%s5813] sm:$0xff]
      %v5815 = vld [vmem:[%s5813 + $0x8] sm:$0xff]
      %v5816 = vld [vmem:[%s5813 + $0x10] sm:$0xff]
      %v5817 = vld [vmem:[%s5813 + $0x18] sm:$0xff]
      %v5818 = vld [vmem:[%s5813 + $0x20] sm:$0xff]
      %v5819 = vld [vmem:[%s5813 + $0x28] sm:$0xff]
      %v5820 = vld [vmem:[%s5813 + $0x30] sm:$0xff]
      %v5821 = vld [vmem:[%s5813 + $0x38] sm:$0xff]
      %vm5822 = vcmask 523264
      %v5824 = vsel %vm5822, %v5802, 0
      %v5827 = vsel %vm5822, %v5803, 0
      %v5830 = vsel %vm5822, %v5804, 0
      %v5833 = vsel %vm5822, %v5805, 0
      %v5836 = vsel %vm5822, %v5806, 0
      %v5839 = vsel %vm5822, %v5807, 0
      %v5842 = vsel %vm5822, %v5808, 0
      %v5845 = vsel %vm5822, %v5809, 0
      %v5848 = vsel %vm5822, %v5810, 0
      %v5851 = vsel %vm5822, %v5811, 0
      %5853 = vmatpush.msra.mxu0 0.0
      %5854 = vmatpush.msra.mxu0 0.0
      %5855 = vmatpush.msra.mxu0 0.0
      %5856 = vmatpush.msra.mxu0 0.0
      %5857 = vmatpush.msra.mxu0 0.0
      %5858 = vmatpush.msra.mxu0 0.0
      %5859 = vmatpush.msra.mxu0 0.0
      %5860 = vmatpush.msra.mxu0 0.0
      %5861 = vmatpush.msra.mxu0 %v5821
      %5862 = vmatpush.msra.mxu0 %v5820
      %5863 = vmatpush.msra.mxu0 %v5819
      %5864 = vmatpush.msra.mxu0 %v5818
      %5865 = vmatpush.msra.mxu0 %v5817
      %5866 = vmatpush.msra.mxu0 %v5816
      %5867 = vmatpush.msra.mxu0 %v5815
      %5868 = vmatpush.msra.mxu0 %v5814
      %5869 = vmatmul.f32.gmra.mxu0 %v5824
      %v5870 = vpop.f32.mrf.mxu0
      %v5871 = vadd.f32 0.0, %v5870
      %5872 = vmatmul.f32.gmra.mxu0 %v5827
      %v5873 = vpop.f32.mrf.mxu0
      %v5874 = vadd.f32 0.0, %v5873
      %5875 = vmatmul.f32.gmra.mxu0 %v5830
      %v5876 = vpop.f32.mrf.mxu0
      %v5877 = vadd.f32 0.0, %v5876
      %5878 = vmatmul.f32.gmra.mxu0 %v5833
      %v5879 = vpop.f32.mrf.mxu0
      %v5880 = vadd.f32 0.0, %v5879
      %5881 = vmatmul.f32.gmra.mxu0 %v5836
      %v5882 = vpop.f32.mrf.mxu0
      %v5883 = vadd.f32 0.0, %v5882
      %5884 = vmatmul.f32.gmra.mxu0 %v5839
      %v5885 = vpop.f32.mrf.mxu0
      %v5886 = vadd.f32 0.0, %v5885
      %5887 = vmatmul.f32.gmra.mxu0 %v5842
      %v5888 = vpop.f32.mrf.mxu0
      %v5889 = vadd.f32 0.0, %v5888
      %5890 = vmatmul.f32.gmra.mxu0 %v5845
      %v5891 = vpop.f32.mrf.mxu0
      %v5892 = vadd.f32 0.0, %v5891
      %5893 = vmatmul.f32.gmra.mxu0 %v5848
      %v5894 = vpop.f32.mrf.mxu0
      %v5895 = vadd.f32 0.0, %v5894
      %5896 = vmatmul.f32.gmra.mxu0 %v5851
      %v5897 = vpop.f32.mrf.mxu0
      %v5898 = vadd.f32 0.0, %v5897
      %5899 = vdwg.mxu0
      %v5900 = vadd.f32 %v5375, %v5871
      %v5901 = vadd.f32 %v5376, %v5874
      %v5902 = vadd.f32 %v5377, %v5877
      %v5903 = vadd.f32 %v5378, %v5880
      %v5904 = vadd.f32 %v5379, %v5883
      %v5905 = vadd.f32 %v5380, %v5886
      %v5906 = vadd.f32 %v5381, %v5889
      %v5907 = vadd.f32 %v5382, %v5892
      %v5908 = vadd.f32 %v5383, %v5895
      %v5909 = vadd.f32 %v5384, %v5898
      %s5910 = scalar_lea.vmem %s18, %s30
      %v5911 = vld [vmem:[%s5910] sm:$0x1]
      %v5913 = vperm.slane %v5911, 0
      %v5915 = vadd.f32 %v5900, %v5913
      %v5916 = vadd.f32 %v5901, %v5913
      %v5917 = vadd.f32 %v5902, %v5913
      %v5918 = vadd.f32 %v5903, %v5913
      %v5919 = vadd.f32 %v5904, %v5913
      %v5920 = vadd.f32 %v5905, %v5913
      %v5921 = vadd.f32 %v5906, %v5913
      %v5922 = vadd.f32 %v5907, %v5913
      %v5923 = vadd.f32 %v5908, %v5913
      %v5924 = vadd.f32 %v5909, %v5913
      %5925 = vst.msk [vmem:[#allocation2] sm:$0xff] %vm3093, %v5915
      %5926 = vst.msk [vmem:[#allocation2 + $0x8] sm:$0xff] %vm3093, %v5916
      %5927 = vst.msk [vmem:[#allocation2 + $0x10] sm:$0xff] %vm3093, %v5917
      %5928 = vst.msk [vmem:[#allocation2 + $0x18] sm:$0xff] %vm3093, %v5918
      %5929 = vst.msk [vmem:[#allocation2 + $0x20] sm:$0xff] %vm3093, %v5919
      %5930 = vst.msk [vmem:[#allocation2 + $0x28] sm:$0xff] %vm3093, %v5920
      %5931 = vst.msk [vmem:[#allocation2 + $0x30] sm:$0xff] %vm3093, %v5921
      %5932 = vst.msk [vmem:[#allocation2 + $0x38] sm:$0xff] %vm3093, %v5922
      %5933 = vst.msk [vmem:[#allocation2 + $0x40] sm:$0xff] %vm3093, %v5923
      %5934 = vst.msk [vmem:[#allocation2 + $0x48] sm:$0xff] %vm3093, %v5924
      %p5935 = scmp.eq.s32.totalorder %s30, 6
      // Predicated region
      $region101: #{_lambda_.5} parent=95 // pred_check
        %p5936 = pneg %p5935
      $region102: #{_lambda_.5} parent=95 // pred_check_branch
        %5938 = sbr.rel (%p5936) target = $region104
      $region103: #{_lambda_.5} parent=95 // pred_region
        %5939 = vst.msk [vmem:[%s19] sm:$0xff] %vm3093, %v5915
        %5940 = vst.msk [vmem:[%s19 + $0x8] sm:$0xff] %vm3093, %v5916
        %5941 = vst.msk [vmem:[%s19 + $0x10] sm:$0xff] %vm3093, %v5917
        %5942 = vst.msk [vmem:[%s19 + $0x18] sm:$0xff] %vm3093, %v5918
        %5943 = vst.msk [vmem:[%s19 + $0x20] sm:$0xff] %vm3093, %v5919
        %5944 = vst.msk [vmem:[%s19 + $0x28] sm:$0xff] %vm3093, %v5920
        %5945 = vst.msk [vmem:[%s19 + $0x30] sm:$0xff] %vm3093, %v5921
        %5946 = vst.msk [vmem:[%s19 + $0x38] sm:$0xff] %vm3093, %v5922
        %5947 = vst.msk [vmem:[%s19 + $0x40] sm:$0xff] %vm3093, %v5923
        %5948 = vst.msk [vmem:[%s19 + $0x48] sm:$0xff] %vm3093, %v5924
      $region104: #{_lambda_.5} parent=95 // pred_fallthru
        _
      // Predicated region
      $region105: #{_lambda_.5} parent=95 // pred_check
        %p5949 = pneg %p442
      $region106: #{_lambda_.5} parent=95 // pred_check_branch
        %5951 = sbr.rel (%p5949) target = $region108
      $region107: #{_lambda_.5} parent=95 // pred_region
        _
      $region108: #{_lambda_.5} parent=95 // pred_fallthru
        _
      // Predicated region
      $region109: #{_lambda_.5} parent=95 // pred_check
        %p5952 = pneg %p442
      $region110: #{_lambda_.5} parent=95 // pred_check_branch
        %5954 = sbr.rel (%p5952) target = $region112
      $region111: #{_lambda_.5} parent=95 // pred_region
        _
      $region112: #{_lambda_.5} parent=95 // pred_fallthru
        _
    $region96: #{_lambda_.5} parent=5 // pred_fallthru
      _
    %p5955 = scmp.le.s32.totalorder 2, %s25
    // Predicated region
    $region113: #{_lambda_.5} parent=5 // pred_check
      %p5956 = pneg %p5955
    $region114: #{_lambda_.5} parent=5 // pred_check_branch
      %5958 = sbr.rel (%p5956) target = $region116
    $region115: #{_lambda_.5} parent=5 // pred_region
      %s5959 = ssub.s32 %s25, 2
    $region116: #{_lambda_.5} parent=5 // pred_fallthru
      _
  $region6: #{_lambda_.5} parent=0 // loop_footer
    %s29 = sadd.s32 1, %s25
  $region7: #{_lambda_.5} parent=0 // loop_footer_branch
    %24 = sbr.rel target = $region3
  $region8: #{_lambda_.5} parent=0 // loop_exit
    _

</llo_original>
